<compile_context>
chip_gen: v7x
topology: tpu7x:2x2x1
jax: 0.10.0
libtpu: 0.0.40
codegen_flags: <defaults>
</compile_context>

<pallas_src>
import functools
import math

import numpy as np
import jax
import jax.numpy as jnp
from jax import lax
from jax.experimental import pallas as pl
from jax.experimental.pallas import tpu as pltpu


# ----------------------------------------------------------------------------------
# static helpers (numpy / trace-time)
# ----------------------------------------------------------------------------------
def get_relative_position_index(win_h, win_w):
    ch, cw = np.meshgrid(np.arange(win_h), np.arange(win_w), indexing="ij")
    coords = np.stack([ch, cw]).reshape(2, -1)                  # (2, N)
    rel = coords[:, :, None] - coords[:, None, :]               # (2, N, N)
    rel = rel.transpose(1, 2, 0).astype(np.int32)               # (N, N, 2)
    rel[:, :, 0] += win_h - 1
    rel[:, :, 1] += win_w - 1
    rel[:, :, 0] *= 2 * win_w - 1
    return rel.sum(-1)                                          # (N, N)


def checkerboard_pattern(ws):
    cb = np.ones((ws, ws), np.float32)
    cb[0::2, 1::2] = 0.0
    cb[1::2, 0::2] = 0.0
    return cb


def rel_pos_bias(table, index_np, num_heads):
    n = index_np.shape[0]
    b = jnp.take(table, jnp.asarray(index_np.reshape(-1)), axis=0)          # (N*N, H)
    return b.reshape(n, n, num_heads).transpose(2, 0, 1).astype(jnp.float32)  # (H,N,N)


def _vmem_budget():
    """Generation-aware VMEM budget: ~48 MiB limit on v7x (64 MiB/TC),
    ~96 MiB on v5e/v6e (128 MiB)."""
    cap = 64 << 20
    try:
        info = pltpu.get_tpu_info()
        cap = int(getattr(info, "vmem_capacity_bytes", cap) or cap)
    except Exception:
        pass
    limit = min(int(cap * 3 // 4), 110 << 20)
    budget = int(limit * 3 // 5)          # headroom for compiler scratch / padding
    return budget, limit


def _pick_block_windows(num_windows, na, c, num_heads, head_dim, d_out, budget_bytes):
    """Largest divisor of num_windows whose per-step VMEM estimate (including the
    persistent weights/bias) fits the budget; prefer >=4 grid steps (2 pipelined
    steps per TensorCore on v7x), else >=2, else the largest fitting block."""
    a = num_heads * head_dim

    def step_bytes(d):
        t = d * na
        persist = (3 * c * a * 2 + 3 * a * 4 + num_heads * na * na * 4
                   + a * d_out * 2 + d_out * 4 + num_heads * 4)
        stream = 2 * (t * c * 2 + t * d_out * 4)                 # double-buffered I/O
        temps = (3 * t * a * 4 + 3 * t * head_dim * 2 + d * na * na * 6
                 + t * head_dim * 4 + t * d_out * 4)
        return persist + stream + 2 * temps                      # 2x slack on temps

    divisors = [d for d in range(1, num_windows + 1) if num_windows % d == 0]
    aligned = [d for d in divisors if (d * na) % 16 == 0 or d == num_windows]
    if not aligned:
        aligned = [num_windows]
    fit = [d for d in aligned if step_bytes(d) <= budget_bytes] or [min(aligned)]
    for min_steps in (4, 2):
        cand = [d for d in fit if num_windows // d >= min_steps]
        if cand:
            return max(cand)
    return max(fit)


# ----------------------------------------------------------------------------------
# fused attention kernel (active-token subset only; no mask needed in-kernel)
# ----------------------------------------------------------------------------------
def _cb_window_attn_kernel(x_ref, wq_ref, wk_ref, wv_ref, bq_ref, bk_ref, bv_ref,
                           scale_ref, bias_ref, wproj_ref, bproj_ref, o_ref,
                           *, num_heads, head_dim, win_tokens):
    t = x_ref.shape[0]                         # (block windows) * win_tokens
    nw = t // win_tokens
    d_out = wproj_ref.shape[2]
    x2 = x_ref[...]                            # (t, c) bf16

    # q/k/v projections: bf16 operands on the MXU, f32 accumulation, f32 bias add
    q_all = jnp.dot(x2, wq_ref[...], preferred_element_type=jnp.float32) + bq_ref[...]
    k_all = jnp.dot(x2, wk_ref[...], preferred_element_type=jnp.float32) + bk_ref[...]
    v_all = jnp.dot(x2, wv_ref[...], preferred_element_type=jnp.float32) + bv_ref[...]

    y_acc = jnp.zeros((t, d_out), jnp.float32)
    for h in range(num_heads):                 # static unroll; only 2-D / 3-D ops below
        lo = h * head_dim
        q = q_all[:, lo:lo + head_dim]         # (t, hd) f32
        k = k_all[:, lo:lo + head_dim]
        v = v_all[:, lo:lo + head_dim]

        # torch F.normalize(..., dim=-1, eps=1e-12); the precomputed per-head logit
        # scale is folded into q here (saves a full pass over the (na x na) logits).
        inv_q = jnp.minimum(lax.rsqrt(jnp.sum(q * q, axis=-1, keepdims=True)), 1e12)
        inv_k = jnp.minimum(lax.rsqrt(jnp.sum(k * k, axis=-1, keepdims=True)), 1e12)
        qn = (q * (inv_q * scale_ref[h])).reshape(nw, win_tokens, head_dim)
        kn = (k * inv_k).reshape(nw, win_tokens, head_dim)
        qn = qn.astype(jnp.bfloat16)
        kn = kn.astype(jnp.bfloat16)
        vb = v.reshape(nw, win_tokens, head_dim).astype(jnp.bfloat16)

        # active-subset cosine attention: no checkerboard mask / where / NaN handling
        logits = jnp.einsum("bnd,bmd->bnm", qn, kn,
                            preferred_element_type=jnp.float32)      # (nw, na, na) f32
        logits = logits + bias_ref[h][None]
        logits = logits - jnp.max(logits, axis=-1, keepdims=True)
        p = jnp.exp(logits)
        inv_den = pl.reciprocal(jnp.sum(p, axis=-1, keepdims=True), approx=True)
        p = (p * inv_den).astype(jnp.bfloat16)

        ctx = jnp.einsum("bnm,bmd->bnd", p, vb,
                         preferred_element_type=jnp.float32)          # (nw, na, hd) f32
        # per-head contribution to the output projection (no lane-dim concat)
        y_acc = y_acc + jnp.dot(ctx.reshape(t, head_dim).astype(jnp.bfloat16),
                                wproj_ref[h], preferred_element_type=jnp.float32)

    o_ref[...] = (y_acc + bproj_ref[...]).astype(o_ref.dtype)


# ----------------------------------------------------------------------------------
# wrapper
# ----------------------------------------------------------------------------------
def checkerboard_window_attention(x, params, *, num_heads, mask=None):
    """x: [B_, N, D] with N = window_size**2.  Returns [B_, N, D] (float32)."""
    # TODO(synk): the optional additive shifted-window `mask` argument (0/-inf bias per
    # window) is not implemented; only the mask=None branch of the torch forward.
    assert mask is None
    bw, n, c = x.shape
    ws = int(round(math.sqrt(n)))
    assert ws * ws == n, "token count must be a square window"
    a = params["wqkv"].shape[1] // 3
    head_dim = a // num_heads
    d_out = params["wproj"].shape[1]

    # ---- static checkerboard analysis: rank-1 mask => active-token subset -----------
    cb = checkerboard_pattern(ws).reshape(-1)                    # (n,)
    active_idx = np.nonzero(cb > 0.5)[0]
    inactive_idx = np.nonzero(cb <= 0.5)[0]
    na = int(active_idx.size)
    inv_perm = np.argsort(np.concatenate([active_idx, inactive_idx]))

    # ---- constant prep (all outside the kernel) --------------------------------------
    bias = rel_pos_bias(params["rpb_table"],
                        get_relative_position_index(ws, ws), num_heads)      # (H, n, n)
    bias_act = bias[:, active_idx][:, :, active_idx]                         # (H,na,na)
    scale = jnp.exp(jnp.minimum(params["logit_scale"].astype(jnp.float32),
                                math.log(1.0 / 0.01))).reshape(num_heads, 1)

    wqkv = params["wqkv"].astype(jnp.bfloat16)                               # (c, 3a)
    wq, wk, wv = wqkv[:, :a], wqkv[:, a:2 * a], wqkv[:, 2 * a:]
    bqkv = params["bqkv"].astype(jnp.float32).reshape(1, 3 * a)
    bq, bk, bv = bqkv[:, :a], bqkv[:, a:2 * a], bqkv[:, 2 * a:]
    wproj = params["wproj"].astype(jnp.bfloat16).reshape(num_heads, head_dim, d_out)
    bproj = params["bproj"].astype(jnp.float32).reshape(1, d_out)

    # active tokens only, window-major 2-D stream (no in-kernel input reshape needed)
    x_act = x[:, active_idx, :].astype(jnp.bfloat16).reshape(bw * na, c)

    # ---- block sizing / VMEM budgeting -----------------------------------------------
    budget, vmem_limit = _vmem_budget()
    bwk = _pick_block_windows(bw, na, c, num_heads, head_dim, d_out, budget)
    grid = (bw // bwk,)

    tokens = bw * na
    cost = pl.CostEstimate(
        flops=int(2 * tokens * c * 3 * a
                  + 4 * bw * num_heads * na * na * head_dim
                  + 2 * tokens * a * d_out),
        transcendentals=int(bw * num_heads * na * na
                            + 2 * tokens * num_heads + bw * num_heads * na),
        bytes_accessed=int(tokens * c * 2 + tokens * d_out * 4
                           + 3 * c * a * 2 + 3 * a * 4 + num_heads * na * na * 4
                           + a * d_out * 2 + d_out * 4 + num_heads * 4),
    )

    kernel = functools.partial(_cb_window_attn_kernel, num_heads=num_heads,
                               head_dim=head_dim, win_tokens=na)
    operands = (x_act, wq, wk, wv, bq, bk, bv, scale, bias_act, wproj, bproj)

    def build(single_buffer_consts):
        def const_spec(arr):
            kw = {}
            if single_buffer_consts:
                kw["pipeline_mode"] = pl.Buffered(1)     # grid-invariant: 1 buffer
            nd = arr.ndim
            return pl.BlockSpec(arr.shape, lambda i, _n=nd: (0,) * _n, **kw)

        in_specs = [pl.BlockSpec((bwk * na, c), lambda i: (i, 0))]
        in_specs += [const_spec(op) for op in operands[1:]]
        return pl.pallas_call(
            kernel,
            out_shape=jax.ShapeDtypeStruct((bw * na, d_out), jnp.float32),
            grid=grid,
            in_specs=in_specs,
            out_specs=pl.BlockSpec((bwk * na, d_out), lambda i: (i, 0)),
            compiler_params=pltpu.CompilerParams(
                dimension_semantics=("parallel",),
                vmem_limit_bytes=vmem_limit),
            cost_estimate=cost,
        )

    try:
        out_act = build(True)(*operands)
    except Exception:
        # pipeline_mode=pl.Buffered(1) not supported by this JAX build: retry without.
        out_act = build(False)(*operands)

    # ---- scatter back: fully-masked (inactive) rows are exactly the projection bias --
    out_act = out_act.reshape(bw, na, d_out)
    if inactive_idx.size:
        fill = jnp.broadcast_to(bproj.reshape(1, 1, d_out),
                                (bw, int(inactive_idx.size), d_out))
        out = jnp.concatenate([out_act, fill], axis=1)
        out = jnp.take(out, jnp.asarray(inv_perm), axis=1)
    else:
        out = out_act
    return out


# ----------------------------------------------------------------------------------
# pure-JAX reference (mirrors the torch forward, mask=None path) and parameter init
# ----------------------------------------------------------------------------------
def _reference(x, params, *, num_heads):
    bw, n, c = x.shape
    a = params["wqkv"].shape[1] // 3
    hd = a // num_heads
    ws = int(round(math.sqrt(n)))
    qkv = x @ params["wqkv"] + params["bqkv"]
    qkv = qkv.reshape(bw, n, 3, num_heads, hd).transpose(2, 0, 3, 1, 4)
    q, k, v = qkv[0], qkv[1], qkv[2]                              # (bw, H, n, hd)
    qn = q / jnp.maximum(jnp.linalg.norm(q, axis=-1, keepdims=True), 1e-12)
    kn = k / jnp.maximum(jnp.linalg.norm(k, axis=-1, keepdims=True), 1e-12)
    attn = qn @ jnp.swapaxes(kn, -2, -1)
    scale = jnp.exp(jnp.minimum(params["logit_scale"], math.log(1.0 / 0.01)))
    attn = attn * scale[None] + rel_pos_bias(
        params["rpb_table"], get_relative_position_index(ws, ws), num_heads)[None]
    cb = checkerboard_pattern(ws).reshape(-1)
    m = jnp.asarray((cb[:, None] * cb[None, :]) > 0.5)
    attn = jnp.where(m[None, None], attn, -jnp.inf)
    attn = jax.nn.softmax(attn, axis=-1)
    attn = jnp.where(jnp.isnan(attn), 0.0, attn)
    out = (attn @ v).transpose(0, 2, 1, 3).reshape(bw, n, a)
    return out @ params["wproj"] + params["bproj"]


def init_params(key, dim, num_heads, window_size, head_dim=None):
    head_dim = head_dim or dim // num_heads
    attn_dim = head_dim * num_heads
    ws = window_size
    ks = jax.random.split(key, 5)
    nrm = lambda k, s: jax.random.normal(k, s, jnp.float32) * 0.02
    return {
        "wqkv": nrm(ks[0], (dim, 3 * attn_dim)),
        "bqkv": nrm(ks[1], (1, 3 * attn_dim)),
        "wproj": nrm(ks[2], (attn_dim, dim)),
        "bproj": nrm(ks[3], (1, dim)),
        "logit_scale": jnp.log(10.0 * jnp.ones((num_heads, 1, 1), jnp.float32)),
        "rpb_table": nrm(ks[4], ((2 * ws - 1) * (2 * ws - 1), num_heads)),
    }


if __name__ == "__main__":
    DIM, HEADS, WS = 32, 2, 4          # head_dim = 16, window area N = 16
    B, NWH, NWW = 2, 4, 4              # B_ = B * nWh * nWw = 32 windows
    N = WS * WS

    key = jax.random.PRNGKey(0)
    kx, kp = jax.random.split(key)
    x = jax.random.normal(kx, (B * NWH * NWW, N, DIM), jnp.float32)
    params = init_params(kp, DIM, HEADS, WS)

    out = checkerboard_window_attention(x, params, num_heads=HEADS)
    out = jax.block_until_ready(out)
    assert out.shape == (B * NWH * NWW, N, DIM)
    assert bool(jnp.all(jnp.isfinite(out)))

    ref = jax.block_until_ready(_reference(x, params, num_heads=HEADS))
    max_err = float(jnp.max(jnp.abs(out - ref)))
    assert max_err < 2e-2, f"mismatch vs reference: max abs err {max_err}"
    print("KERNEL_OK")
</pallas_src>

<mosaic_0001>
module attributes {stable_mosaic.version = 11 : i64} {
  func.func @_cb_window_attn_kernel(%arg0: i32, %arg1: memref<64x32xbf16, #tpu.memory_space<vmem>>, %arg2: memref<32x32xbf16, #tpu.memory_space<vmem>>, %arg3: memref<32x32xbf16, #tpu.memory_space<vmem>>, %arg4: memref<32x32xbf16, #tpu.memory_space<vmem>>, %arg5: memref<1x32xf32, #tpu.memory_space<vmem>>, %arg6: memref<1x32xf32, #tpu.memory_space<vmem>>, %arg7: memref<1x32xf32, #tpu.memory_space<vmem>>, %arg8: memref<2x1xf32, #tpu.memory_space<vmem>>, %arg9: memref<2x8x8xf32, #tpu.memory_space<vmem>>, %arg10: memref<2x16x32xbf16, #tpu.memory_space<vmem>>, %arg11: memref<1x32xf32, #tpu.memory_space<vmem>>, %arg12: memref<64x32xf32, #tpu.memory_space<vmem>>) attributes {dimension_semantics = [#tpu.dimension_semantics<parallel>], iteration_bounds = array<i64: 4>, scalar_prefetch = 0 : i64, scratch_operands = 0 : i64, tpu.core_type = #tpu.core_type<tc>, window_params = [{transform_indices = @transform_0, window_bounds = array<i64: 64, 32>}, {pipeline_mode = #tpu.pipeline_mode<synchronous>, transform_indices = @transform_1, window_bounds = array<i64: 32, 32>}, {pipeline_mode = #tpu.pipeline_mode<synchronous>, transform_indices = @transform_2, window_bounds = array<i64: 32, 32>}, {pipeline_mode = #tpu.pipeline_mode<synchronous>, transform_indices = @transform_3, window_bounds = array<i64: 32, 32>}, {pipeline_mode = #tpu.pipeline_mode<synchronous>, transform_indices = @transform_4, window_bounds = array<i64: 1, 32>}, {pipeline_mode = #tpu.pipeline_mode<synchronous>, transform_indices = @transform_5, window_bounds = array<i64: 1, 32>}, {pipeline_mode = #tpu.pipeline_mode<synchronous>, transform_indices = @transform_6, window_bounds = array<i64: 1, 32>}, {pipeline_mode = #tpu.pipeline_mode<synchronous>, transform_indices = @transform_7, window_bounds = array<i64: 2, 1>}, {pipeline_mode = #tpu.pipeline_mode<synchronous>, transform_indices = @transform_8, window_bounds = array<i64: 2, 8, 8>}, {pipeline_mode = #tpu.pipeline_mode<synchronous>, transform_indices = @transform_9, window_bounds = array<i64: 2, 16, 32>}, {pipeline_mode = #tpu.pipeline_mode<synchronous>, transform_indices = @transform_10, window_bounds = array<i64: 1, 32>}, {transform_indices = @transform_11, window_bounds = array<i64: 64, 32>}]} {
    %c0 = arith.constant 0 : index
    %c0_0 = arith.constant 0 : index
    %0 = vector.load %arg1[%c0, %c0_0] : memref<64x32xbf16, #tpu.memory_space<vmem>>, vector<64x32xbf16>
    %c0_1 = arith.constant 0 : index
    %c0_2 = arith.constant 0 : index
    %1 = vector.load %arg2[%c0_1, %c0_2] : memref<32x32xbf16, #tpu.memory_space<vmem>>, vector<32x32xbf16>
    %cst = arith.constant dense<0.000000e+00> : vector<64x32xf32>
    %2 = tpu.matmul %0, %1, %cst {dimension_numbers = #tpu.dot_dimension_numbers<[1], [0], [0], [1], [0, 0, 1, 1], [], []>} : vector<64x32xbf16>, vector<32x32xbf16>, vector<64x32xf32> -> vector<64x32xf32>
    %c0_3 = arith.constant 0 : index
    %c0_4 = arith.constant 0 : index
    %3 = vector.load %arg5[%c0_3, %c0_4] : memref<1x32xf32, #tpu.memory_space<vmem>>, vector<1x32xf32>
    %4 = vector.broadcast %3 : vector<1x32xf32> to vector<64x32xf32>
    %5 = arith.addf %2, %4 : vector<64x32xf32>
    %c0_5 = arith.constant 0 : index
    %c0_6 = arith.constant 0 : index
    %6 = vector.load %arg3[%c0_5, %c0_6] : memref<32x32xbf16, #tpu.memory_space<vmem>>, vector<32x32xbf16>
    %cst_7 = arith.constant dense<0.000000e+00> : vector<64x32xf32>
    %7 = tpu.matmul %0, %6, %cst_7 {dimension_numbers = #tpu.dot_dimension_numbers<[1], [0], [0], [1], [0, 0, 1, 1], [], []>} : vector<64x32xbf16>, vector<32x32xbf16>, vector<64x32xf32> -> vector<64x32xf32>
    %c0_8 = arith.constant 0 : index
    %c0_9 = arith.constant 0 : index
    %8 = vector.load %arg6[%c0_8, %c0_9] : memref<1x32xf32, #tpu.memory_space<vmem>>, vector<1x32xf32>
    %9 = vector.broadcast %8 : vector<1x32xf32> to vector<64x32xf32>
    %10 = arith.addf %7, %9 : vector<64x32xf32>
    %c0_10 = arith.constant 0 : index
    %c0_11 = arith.constant 0 : index
    %11 = vector.load %arg4[%c0_10, %c0_11] : memref<32x32xbf16, #tpu.memory_space<vmem>>, vector<32x32xbf16>
    %cst_12 = arith.constant dense<0.000000e+00> : vector<64x32xf32>
    %12 = tpu.matmul %0, %11, %cst_12 {dimension_numbers = #tpu.dot_dimension_numbers<[1], [0], [0], [1], [0, 0, 1, 1], [], []>} : vector<64x32xbf16>, vector<32x32xbf16>, vector<64x32xf32> -> vector<64x32xf32>
    %c0_13 = arith.constant 0 : index
    %c0_14 = arith.constant 0 : index
    %13 = vector.load %arg7[%c0_13, %c0_14] : memref<1x32xf32, #tpu.memory_space<vmem>>, vector<1x32xf32>
    %14 = vector.broadcast %13 : vector<1x32xf32> to vector<64x32xf32>
    %15 = arith.addf %12, %14 : vector<64x32xf32>
    %cst_15 = arith.constant 0.000000e+00 : f32
    %16 = vector.broadcast %cst_15 : f32 to vector<64x32xf32>
    %17 = vector.extract_strided_slice %5 {offsets = [0, 0], sizes = [64, 16], strides = [1, 1]} : vector<64x32xf32> to vector<64x16xf32>
    %18 = vector.extract_strided_slice %10 {offsets = [0, 0], sizes = [64, 16], strides = [1, 1]} : vector<64x32xf32> to vector<64x16xf32>
    %19 = vector.extract_strided_slice %15 {offsets = [0, 0], sizes = [64, 16], strides = [1, 1]} : vector<64x32xf32> to vector<64x16xf32>
    %20 = arith.mulf %17, %17 : vector<64x16xf32>
    %cst_16 = arith.constant dense<0.000000e+00> : vector<64xf32>
    %21 = vector.multi_reduction <add>, %20, %cst_16 [1] : vector<64x16xf32> to vector<64xf32>
    %22 = vector.shape_cast %21 : vector<64xf32> to vector<64x1xf32>
    %23 = math.rsqrt %22 : vector<64x1xf32>
    %cst_17 = arith.constant 9.99999995E+11 : f32
    %24 = vector.broadcast %cst_17 : f32 to vector<64x1xf32>
    %25 = arith.minimumf %23, %24 : vector<64x1xf32>
    %26 = arith.mulf %18, %18 : vector<64x16xf32>
    %cst_18 = arith.constant dense<0.000000e+00> : vector<64xf32>
    %27 = vector.multi_reduction <add>, %26, %cst_18 [1] : vector<64x16xf32> to vector<64xf32>
    %28 = vector.shape_cast %27 : vector<64xf32> to vector<64x1xf32>
    %29 = math.rsqrt %28 : vector<64x1xf32>
    %cst_19 = arith.constant 9.99999995E+11 : f32
    %30 = vector.broadcast %cst_19 : f32 to vector<64x1xf32>
    %31 = arith.minimumf %29, %30 : vector<64x1xf32>
    %c0_20 = arith.constant 0 : index
    %c0_21 = arith.constant 0 : index
    %32 = vector.load %arg8[%c0_20, %c0_21] : memref<2x1xf32, #tpu.memory_space<vmem>>, vector<1x1xf32>
    %33 = vector.shape_cast %32 : vector<1x1xf32> to vector<1xf32>
    %34 = vector.shape_cast %33 : vector<1xf32> to vector<1x1xf32>
    %35 = vector.broadcast %34 : vector<1x1xf32> to vector<64x1xf32>
    %36 = arith.mulf %25, %35 : vector<64x1xf32>
    %37 = vector.broadcast %36 : vector<64x1xf32> to vector<64x16xf32>
    %38 = arith.mulf %17, %37 : vector<64x16xf32>
    %39 = vector.shape_cast %38 : vector<64x16xf32> to vector<8x8x16xf32>
    %40 = vector.broadcast %31 : vector<64x1xf32> to vector<64x16xf32>
    %41 = arith.mulf %18, %40 : vector<64x16xf32>
    %42 = vector.shape_cast %41 : vector<64x16xf32> to vector<8x8x16xf32>
    %43 = arith.truncf %39 : vector<8x8x16xf32> to vector<8x8x16xbf16>
    %44 = arith.truncf %42 : vector<8x8x16xf32> to vector<8x8x16xbf16>
    %45 = vector.shape_cast %19 : vector<64x16xf32> to vector<8x8x16xf32>
    %46 = arith.truncf %45 : vector<8x8x16xf32> to vector<8x8x16xbf16>
    "tpu.trace_start"() <{level = 10 : i32, message = "bnd,bmd->bnm"}> : () -> ()
    %cst_22 = arith.constant dense<0.000000e+00> : vector<8x8x8xf32>
    %47 = tpu.matmul %43, %44, %cst_22 {dimension_numbers = #tpu.dot_dimension_numbers<[2], [2], [1], [1], [0, 0, 0, 1, 1, 1], [0], [0]>} : vector<8x8x16xbf16>, vector<8x8x16xbf16>, vector<8x8x8xf32> -> vector<8x8x8xf32>
    "tpu.trace_stop"() : () -> ()
    %c0_23 = arith.constant 0 : index
    %c0_24 = arith.constant 0 : index
    %c0_25 = arith.constant 0 : index
    %48 = vector.load %arg9[%c0_23, %c0_24, %c0_25] : memref<2x8x8xf32, #tpu.memory_space<vmem>>, vector<1x8x8xf32>
    %49 = vector.shape_cast %48 : vector<1x8x8xf32> to vector<8x8xf32>
    %50 = vector.shape_cast %49 : vector<8x8xf32> to vector<1x8x8xf32>
    %51 = vector.broadcast %50 : vector<1x8x8xf32> to vector<8x8x8xf32>
    %52 = arith.addf %47, %51 : vector<8x8x8xf32>
    %cst_26 = arith.constant dense<0xFF800000> : vector<8x8xf32>
    %53 = vector.multi_reduction <maximumf>, %52, %cst_26 [2] : vector<8x8x8xf32> to vector<8x8xf32>
    %54 = vector.shape_cast %53 : vector<8x8xf32> to vector<8x8x1xf32>
    %55 = vector.broadcast %54 : vector<8x8x1xf32> to vector<8x8x8xf32>
    %56 = arith.subf %52, %55 : vector<8x8x8xf32>
    %57 = math.exp %56 : vector<8x8x8xf32>
    %cst_27 = arith.constant dense<0.000000e+00> : vector<8x8xf32>
    %58 = vector.multi_reduction <add>, %57, %cst_27 [2] : vector<8x8x8xf32> to vector<8x8xf32>
    %59 = vector.shape_cast %58 : vector<8x8xf32> to vector<8x8x1xf32>
    %60 = tpu.reciprocal %59 {approx = true} : vector<8x8x1xf32> -> vector<8x8x1xf32>
    %61 = vector.broadcast %60 : vector<8x8x1xf32> to vector<8x8x8xf32>
    %62 = arith.mulf %57, %61 : vector<8x8x8xf32>
    %63 = arith.truncf %62 : vector<8x8x8xf32> to vector<8x8x8xbf16>
    "tpu.trace_start"() <{level = 10 : i32, message = "bnm,bmd->bnd"}> : () -> ()
    %cst_28 = arith.constant dense<0.000000e+00> : vector<8x8x16xf32>
    %64 = tpu.matmul %63, %46, %cst_28 {dimension_numbers = #tpu.dot_dimension_numbers<[2], [1], [1], [2], [0, 0, 0, 1, 1, 2], [0], [0]>} : vector<8x8x8xbf16>, vector<8x8x16xbf16>, vector<8x8x16xf32> -> vector<8x8x16xf32>
    "tpu.trace_stop"() : () -> ()
    %65 = vector.shape_cast %64 : vector<8x8x16xf32> to vector<64x16xf32>
    %66 = arith.truncf %65 : vector<64x16xf32> to vector<64x16xbf16>
    %c0_29 = arith.constant 0 : index
    %c0_30 = arith.constant 0 : index
    %c0_31 = arith.constant 0 : index
    %67 = vector.load %arg10[%c0_29, %c0_30, %c0_31] : memref<2x16x32xbf16, #tpu.memory_space<vmem>>, vector<1x16x32xbf16>
    %68 = vector.shape_cast %67 : vector<1x16x32xbf16> to vector<16x32xbf16>
    %cst_32 = arith.constant dense<0.000000e+00> : vector<64x32xf32>
    %69 = tpu.matmul %66, %68, %cst_32 {dimension_numbers = #tpu.dot_dimension_numbers<[1], [0], [0], [1], [0, 0, 1, 1], [], []>} : vector<64x16xbf16>, vector<16x32xbf16>, vector<64x32xf32> -> vector<64x32xf32>
    %70 = arith.addf %16, %69 : vector<64x32xf32>
    %71 = vector.extract_strided_slice %5 {offsets = [0, 16], sizes = [64, 16], strides = [1, 1]} : vector<64x32xf32> to vector<64x16xf32>
    %72 = vector.extract_strided_slice %10 {offsets = [0, 16], sizes = [64, 16], strides = [1, 1]} : vector<64x32xf32> to vector<64x16xf32>
    %73 = vector.extract_strided_slice %15 {offsets = [0, 16], sizes = [64, 16], strides = [1, 1]} : vector<64x32xf32> to vector<64x16xf32>
    %74 = arith.mulf %71, %71 : vector<64x16xf32>
    %cst_33 = arith.constant dense<0.000000e+00> : vector<64xf32>
    %75 = vector.multi_reduction <add>, %74, %cst_33 [1] : vector<64x16xf32> to vector<64xf32>
    %76 = vector.shape_cast %75 : vector<64xf32> to vector<64x1xf32>
    %77 = math.rsqrt %76 : vector<64x1xf32>
    %cst_34 = arith.constant 9.99999995E+11 : f32
    %78 = vector.broadcast %cst_34 : f32 to vector<64x1xf32>
    %79 = arith.minimumf %77, %78 : vector<64x1xf32>
    %80 = arith.mulf %72, %72 : vector<64x16xf32>
    %cst_35 = arith.constant dense<0.000000e+00> : vector<64xf32>
    %81 = vector.multi_reduction <add>, %80, %cst_35 [1] : vector<64x16xf32> to vector<64xf32>
    %82 = vector.shape_cast %81 : vector<64xf32> to vector<64x1xf32>
    %83 = math.rsqrt %82 : vector<64x1xf32>
    %cst_36 = arith.constant 9.99999995E+11 : f32
    %84 = vector.broadcast %cst_36 : f32 to vector<64x1xf32>
    %85 = arith.minimumf %83, %84 : vector<64x1xf32>
    %c1 = arith.constant 1 : index
    %c0_37 = arith.constant 0 : index
    %86 = vector.load %arg8[%c1, %c0_37] : memref<2x1xf32, #tpu.memory_space<vmem>>, vector<1x1xf32>
    %87 = vector.shape_cast %86 : vector<1x1xf32> to vector<1xf32>
    %88 = vector.shape_cast %87 : vector<1xf32> to vector<1x1xf32>
    %89 = vector.broadcast %88 : vector<1x1xf32> to vector<64x1xf32>
    %90 = arith.mulf %79, %89 : vector<64x1xf32>
    %91 = vector.broadcast %90 : vector<64x1xf32> to vector<64x16xf32>
    %92 = arith.mulf %71, %91 : vector<64x16xf32>
    %93 = vector.shape_cast %92 : vector<64x16xf32> to vector<8x8x16xf32>
    %94 = vector.broadcast %85 : vector<64x1xf32> to vector<64x16xf32>
    %95 = arith.mulf %72, %94 : vector<64x16xf32>
    %96 = vector.shape_cast %95 : vector<64x16xf32> to vector<8x8x16xf32>
    %97 = arith.truncf %93 : vector<8x8x16xf32> to vector<8x8x16xbf16>
    %98 = arith.truncf %96 : vector<8x8x16xf32> to vector<8x8x16xbf16>
    %99 = vector.shape_cast %73 : vector<64x16xf32> to vector<8x8x16xf32>
    %100 = arith.truncf %99 : vector<8x8x16xf32> to vector<8x8x16xbf16>
    "tpu.trace_start"() <{level = 10 : i32, message = "bnd,bmd->bnm"}> : () -> ()
    %cst_38 = arith.constant dense<0.000000e+00> : vector<8x8x8xf32>
    %101 = tpu.matmul %97, %98, %cst_38 {dimension_numbers = #tpu.dot_dimension_numbers<[2], [2], [1], [1], [0, 0, 0, 1, 1, 1], [0], [0]>} : vector<8x8x16xbf16>, vector<8x8x16xbf16>, vector<8x8x8xf32> -> vector<8x8x8xf32>
    "tpu.trace_stop"() : () -> ()
    %c1_39 = arith.constant 1 : index
    %c0_40 = arith.constant 0 : index
    %c0_41 = arith.constant 0 : index
    %102 = vector.load %arg9[%c1_39, %c0_40, %c0_41] : memref<2x8x8xf32, #tpu.memory_space<vmem>>, vector<1x8x8xf32>
    %103 = vector.shape_cast %102 : vector<1x8x8xf32> to vector<8x8xf32>
    %104 = vector.shape_cast %103 : vector<8x8xf32> to vector<1x8x8xf32>
    %105 = vector.broadcast %104 : vector<1x8x8xf32> to vector<8x8x8xf32>
    %106 = arith.addf %101, %105 : vector<8x8x8xf32>
    %cst_42 = arith.constant dense<0xFF800000> : vector<8x8xf32>
    %107 = vector.multi_reduction <maximumf>, %106, %cst_42 [2] : vector<8x8x8xf32> to vector<8x8xf32>
    %108 = vector.shape_cast %107 : vector<8x8xf32> to vector<8x8x1xf32>
    %109 = vector.broadcast %108 : vector<8x8x1xf32> to vector<8x8x8xf32>
    %110 = arith.subf %106, %109 : vector<8x8x8xf32>
    %111 = math.exp %110 : vector<8x8x8xf32>
    %cst_43 = arith.constant dense<0.000000e+00> : vector<8x8xf32>
    %112 = vector.multi_reduction <add>, %111, %cst_43 [2] : vector<8x8x8xf32> to vector<8x8xf32>
    %113 = vector.shape_cast %112 : vector<8x8xf32> to vector<8x8x1xf32>
    %114 = tpu.reciprocal %113 {approx = true} : vector<8x8x1xf32> -> vector<8x8x1xf32>
    %115 = vector.broadcast %114 : vector<8x8x1xf32> to vector<8x8x8xf32>
    %116 = arith.mulf %111, %115 : vector<8x8x8xf32>
    %117 = arith.truncf %116 : vector<8x8x8xf32> to vector<8x8x8xbf16>
    "tpu.trace_start"() <{level = 10 : i32, message = "bnm,bmd->bnd"}> : () -> ()
    %cst_44 = arith.constant dense<0.000000e+00> : vector<8x8x16xf32>
    %118 = tpu.matmul %117, %100, %cst_44 {dimension_numbers = #tpu.dot_dimension_numbers<[2], [1], [1], [2], [0, 0, 0, 1, 1, 2], [0], [0]>} : vector<8x8x8xbf16>, vector<8x8x16xbf16>, vector<8x8x16xf32> -> vector<8x8x16xf32>
    "tpu.trace_stop"() : () -> ()
    %119 = vector.shape_cast %118 : vector<8x8x16xf32> to vector<64x16xf32>
    %120 = arith.truncf %119 : vector<64x16xf32> to vector<64x16xbf16>
    %c1_45 = arith.constant 1 : index
    %c0_46 = arith.constant 0 : index
    %c0_47 = arith.constant 0 : index
    %121 = vector.load %arg10[%c1_45, %c0_46, %c0_47] : memref<2x16x32xbf16, #tpu.memory_space<vmem>>, vector<1x16x32xbf16>
    %122 = vector.shape_cast %121 : vector<1x16x32xbf16> to vector<16x32xbf16>
    %cst_48 = arith.constant dense<0.000000e+00> : vector<64x32xf32>
    %123 = tpu.matmul %120, %122, %cst_48 {dimension_numbers = #tpu.dot_dimension_numbers<[1], [0], [0], [1], [0, 0, 1, 1], [], []>} : vector<64x16xbf16>, vector<16x32xbf16>, vector<64x32xf32> -> vector<64x32xf32>
    %124 = arith.addf %70, %123 : vector<64x32xf32>
    %c0_49 = arith.constant 0 : index
    %c0_50 = arith.constant 0 : index
    %125 = vector.load %arg11[%c0_49, %c0_50] : memref<1x32xf32, #tpu.memory_space<vmem>>, vector<1x32xf32>
    %126 = vector.broadcast %125 : vector<1x32xf32> to vector<64x32xf32>
    %127 = arith.addf %124, %126 : vector<64x32xf32>
    %c0_51 = arith.constant 0 : index
    %c0_52 = arith.constant 0 : index
    %128 = vector.load %arg12[%c0_51, %c0_52] : memref<64x32xf32, #tpu.memory_space<vmem>>, vector<64x32xf32>
    tpu.vector_store %arg12[%c0_51, %c0_52], %127 {strides = array<i32>} : memref<64x32xf32, #tpu.memory_space<vmem>>, vector<64x32xf32>,
    return
  }
  func.func @transform_0(%arg0: i32) -> (i32, i32) {
    %c0_i32 = arith.constant 0 : i32
    %c0_i32_0 = arith.constant 0 : i32
    return %arg0, %c0_i32 : i32, i32
  }
  func.func @transform_1(%arg0: i32) -> (i32, i32) {
    %c0_i32 = arith.constant 0 : i32
    %c0_i32_0 = arith.constant 0 : i32
    %c0_i32_1 = arith.constant 0 : i32
    return %c0_i32, %c0_i32_0 : i32, i32
  }
  func.func @transform_2(%arg0: i32) -> (i32, i32) {
    %c0_i32 = arith.constant 0 : i32
    %c0_i32_0 = arith.constant 0 : i32
    %c0_i32_1 = arith.constant 0 : i32
    return %c0_i32, %c0_i32_0 : i32, i32
  }
  func.func @transform_3(%arg0: i32) -> (i32, i32) {
    %c0_i32 = arith.constant 0 : i32
    %c0_i32_0 = arith.constant 0 : i32
    %c0_i32_1 = arith.constant 0 : i32
    return %c0_i32, %c0_i32_0 : i32, i32
  }
  func.func @transform_4(%arg0: i32) -> (i32, i32) {
    %c0_i32 = arith.constant 0 : i32
    %c0_i32_0 = arith.constant 0 : i32
    %c0_i32_1 = arith.constant 0 : i32
    return %c0_i32, %c0_i32_0 : i32, i32
  }
  func.func @transform_5(%arg0: i32) -> (i32, i32) {
    %c0_i32 = arith.constant 0 : i32
    %c0_i32_0 = arith.constant 0 : i32
    %c0_i32_1 = arith.constant 0 : i32
    return %c0_i32, %c0_i32_0 : i32, i32
  }
  func.func @transform_6(%arg0: i32) -> (i32, i32) {
    %c0_i32 = arith.constant 0 : i32
    %c0_i32_0 = arith.constant 0 : i32
    %c0_i32_1 = arith.constant 0 : i32
    return %c0_i32, %c0_i32_0 : i32, i32
  }
  func.func @transform_7(%arg0: i32) -> (i32, i32) {
    %c0_i32 = arith.constant 0 : i32
    %c0_i32_0 = arith.constant 0 : i32
    %c0_i32_1 = arith.constant 0 : i32
    return %c0_i32, %c0_i32_0 : i32, i32
  }
  func.func @transform_8(%arg0: i32) -> (i32, i32, i32) {
    %c0_i32 = arith.constant 0 : i32
    %c0_i32_0 = arith.constant 0 : i32
    %c0_i32_1 = arith.constant 0 : i32
    %c0_i32_2 = arith.constant 0 : i32
    return %c0_i32, %c0_i32_0, %c0_i32_1 : i32, i32, i32
  }
  func.func @transform_9(%arg0: i32) -> (i32, i32, i32) {
    %c0_i32 = arith.constant 0 : i32
    %c0_i32_0 = arith.constant 0 : i32
    %c0_i32_1 = arith.constant 0 : i32
    %c0_i32_2 = arith.constant 0 : i32
    return %c0_i32, %c0_i32_0, %c0_i32_1 : i32, i32, i32
  }
  func.func @transform_10(%arg0: i32) -> (i32, i32) {
    %c0_i32 = arith.constant 0 : i32
    %c0_i32_0 = arith.constant 0 : i32
    %c0_i32_1 = arith.constant 0 : i32
    return %c0_i32, %c0_i32_0 : i32, i32
  }
  func.func @transform_11(%arg0: i32) -> (i32, i32) {
    %c0_i32 = arith.constant 0 : i32
    %c0_i32_0 = arith.constant 0 : i32
    return %arg0, %c0_i32 : i32, i32
  }
}

module attributes {stable_mosaic.version = 11 : i64} {
  func.func @_cb_window_attn_kernel(%arg0: i32, %arg1: memref<64x32xbf16, #tpu.memory_space<vmem>>, %arg2: memref<32x32xbf16, #tpu.memory_space<vmem>>, %arg3: memref<32x32xbf16, #tpu.memory_space<vmem>>, %arg4: memref<32x32xbf16, #tpu.memory_space<vmem>>, %arg5: memref<1x32xf32, #tpu.memory_space<vmem>>, %arg6: memref<1x32xf32, #tpu.memory_space<vmem>>, %arg7: memref<1x32xf32, #tpu.memory_space<vmem>>, %arg8: memref<2x1xf32, #tpu.memory_space<vmem>>, %arg9: memref<2x8x8xf32, #tpu.memory_space<vmem>>, %arg10: memref<2x16x32xbf16, #tpu.memory_space<vmem>>, %arg11: memref<1x32xf32, #tpu.memory_space<vmem>>, %arg12: memref<64x32xf32, #tpu.memory_space<vmem>>) attributes {dimension_semantics = [#tpu.dimension_semantics<parallel>], iteration_bounds = array<i64: 4>, scalar_prefetch = 0 : i64, scratch_operands = 0 : i64, tpu.core_type = #tpu.core_type<tc>, window_params = [{transform_indices = @transform_0, window_bounds = array<i64: 64, 32>}, {pipeline_mode = #tpu.pipeline_mode<synchronous>, transform_indices = @transform_1, window_bounds = array<i64: 32, 32>}, {pipeline_mode = #tpu.pipeline_mode<synchronous>, transform_indices = @transform_2, window_bounds = array<i64: 32, 32>}, {pipeline_mode = #tpu.pipeline_mode<synchronous>, transform_indices = @transform_3, window_bounds = array<i64: 32, 32>}, {pipeline_mode = #tpu.pipeline_mode<synchronous>, transform_indices = @transform_4, window_bounds = array<i64: 1, 32>}, {pipeline_mode = #tpu.pipeline_mode<synchronous>, transform_indices = @transform_5, window_bounds = array<i64: 1, 32>}, {pipeline_mode = #tpu.pipeline_mode<synchronous>, transform_indices = @transform_6, window_bounds = array<i64: 1, 32>}, {pipeline_mode = #tpu.pipeline_mode<synchronous>, transform_indices = @transform_7, window_bounds = array<i64: 2, 1>}, {pipeline_mode = #tpu.pipeline_mode<synchronous>, transform_indices = @transform_8, window_bounds = array<i64: 2, 8, 8>}, {pipeline_mode = #tpu.pipeline_mode<synchronous>, transform_indices = @transform_9, window_bounds = array<i64: 2, 16, 32>}, {pipeline_mode = #tpu.pipeline_mode<synchronous>, transform_indices = @transform_10, window_bounds = array<i64: 1, 32>}, {transform_indices = @transform_11, window_bounds = array<i64: 64, 32>}]} {
    %c0 = arith.constant 0 : index
    %c0_0 = arith.constant 0 : index
    %0 = vector.load %arg1[%c0, %c0_0] : memref<64x32xbf16, #tpu.memory_space<vmem>>, vector<64x32xbf16>
    %c0_1 = arith.constant 0 : index
    %c0_2 = arith.constant 0 : index
    %1 = vector.load %arg2[%c0_1, %c0_2] : memref<32x32xbf16, #tpu.memory_space<vmem>>, vector<32x32xbf16>
    %cst = arith.constant dense<0.000000e+00> : vector<64x32xf32>
    %2 = tpu.matmul %0, %1, %cst {dimension_numbers = #tpu.dot_dimension_numbers<[1], [0], [0], [1], [0, 0, 1, 1], [], []>} : vector<64x32xbf16>, vector<32x32xbf16>, vector<64x32xf32> -> vector<64x32xf32>
    %c0_3 = arith.constant 0 : index
    %c0_4 = arith.constant 0 : index
    %3 = vector.load %arg5[%c0_3, %c0_4] : memref<1x32xf32, #tpu.memory_space<vmem>>, vector<1x32xf32>
    %4 = vector.broadcast %3 : vector<1x32xf32> to vector<64x32xf32>
    %5 = arith.addf %2, %4 : vector<64x32xf32>
    %c0_5 = arith.constant 0 : index
    %c0_6 = arith.constant 0 : index
    %6 = vector.load %arg3[%c0_5, %c0_6] : memref<32x32xbf16, #tpu.memory_space<vmem>>, vector<32x32xbf16>
    %cst_7 = arith.constant dense<0.000000e+00> : vector<64x32xf32>
    %7 = tpu.matmul %0, %6, %cst_7 {dimension_numbers = #tpu.dot_dimension_numbers<[1], [0], [0], [1], [0, 0, 1, 1], [], []>} : vector<64x32xbf16>, vector<32x32xbf16>, vector<64x32xf32> -> vector<64x32xf32>
    %c0_8 = arith.constant 0 : index
    %c0_9 = arith.constant 0 : index
    %8 = vector.load %arg6[%c0_8, %c0_9] : memref<1x32xf32, #tpu.memory_space<vmem>>, vector<1x32xf32>
    %9 = vector.broadcast %8 : vector<1x32xf32> to vector<64x32xf32>
    %10 = arith.addf %7, %9 : vector<64x32xf32>
    %c0_10 = arith.constant 0 : index
    %c0_11 = arith.constant 0 : index
    %11 = vector.load %arg4[%c0_10, %c0_11] : memref<32x32xbf16, #tpu.memory_space<vmem>>, vector<32x32xbf16>
    %cst_12 = arith.constant dense<0.000000e+00> : vector<64x32xf32>
    %12 = tpu.matmul %0, %11, %cst_12 {dimension_numbers = #tpu.dot_dimension_numbers<[1], [0], [0], [1], [0, 0, 1, 1], [], []>} : vector<64x32xbf16>, vector<32x32xbf16>, vector<64x32xf32> -> vector<64x32xf32>
    %c0_13 = arith.constant 0 : index
    %c0_14 = arith.constant 0 : index
    %13 = vector.load %arg7[%c0_13, %c0_14] : memref<1x32xf32, #tpu.memory_space<vmem>>, vector<1x32xf32>
    %14 = vector.broadcast %13 : vector<1x32xf32> to vector<64x32xf32>
    %15 = arith.addf %12, %14 : vector<64x32xf32>
    %cst_15 = arith.constant 0.000000e+00 : f32
    %16 = vector.broadcast %cst_15 : f32 to vector<64x32xf32>
    %17 = vector.extract_strided_slice %5 {offsets = [0, 0], sizes = [64, 16], strides = [1, 1]} : vector<64x32xf32> to vector<64x16xf32>
    %18 = vector.extract_strided_slice %10 {offsets = [0, 0], sizes = [64, 16], strides = [1, 1]} : vector<64x32xf32> to vector<64x16xf32>
    %19 = vector.extract_strided_slice %15 {offsets = [0, 0], sizes = [64, 16], strides = [1, 1]} : vector<64x32xf32> to vector<64x16xf32>
    %20 = arith.mulf %17, %17 : vector<64x16xf32>
    %cst_16 = arith.constant dense<0.000000e+00> : vector<64xf32>
    %21 = vector.multi_reduction <add>, %20, %cst_16 [1] : vector<64x16xf32> to vector<64xf32>
    %22 = vector.shape_cast %21 : vector<64xf32> to vector<64x1xf32>
    %23 = math.rsqrt %22 : vector<64x1xf32>
    %cst_17 = arith.constant 9.99999995E+11 : f32
    %24 = vector.broadcast %cst_17 : f32 to vector<64x1xf32>
    %25 = arith.minimumf %23, %24 : vector<64x1xf32>
    %26 = arith.mulf %18, %18 : vector<64x16xf32>
    %cst_18 = arith.constant dense<0.000000e+00> : vector<64xf32>
    %27 = vector.multi_reduction <add>, %26, %cst_18 [1] : vector<64x16xf32> to vector<64xf32>
    %28 = vector.shape_cast %27 : vector<64xf32> to vector<64x1xf32>
    %29 = math.rsqrt %28 : vector<64x1xf32>
    %cst_19 = arith.constant 9.99999995E+11 : f32
    %30 = vector.broadcast %cst_19 : f32 to vector<64x1xf32>
    %31 = arith.minimumf %29, %30 : vector<64x1xf32>
    %c0_20 = arith.constant 0 : index
    %c0_21 = arith.constant 0 : index
    %32 = vector.load %arg8[%c0_20, %c0_21] : memref<2x1xf32, #tpu.memory_space<vmem>>, vector<1x1xf32>
    %33 = vector.shape_cast %32 : vector<1x1xf32> to vector<1xf32>
    %34 = vector.shape_cast %33 : vector<1xf32> to vector<1x1xf32>
    %35 = vector.broadcast %34 : vector<1x1xf32> to vector<64x1xf32>
    %36 = arith.mulf %25, %35 : vector<64x1xf32>
    %37 = vector.broadcast %36 : vector<64x1xf32> to vector<64x16xf32>
    %38 = arith.mulf %17, %37 : vector<64x16xf32>
    %39 = vector.shape_cast %38 : vector<64x16xf32> to vector<8x8x16xf32>
    %40 = vector.broadcast %31 : vector<64x1xf32> to vector<64x16xf32>
    %41 = arith.mulf %18, %40 : vector<64x16xf32>
    %42 = vector.shape_cast %41 : vector<64x16xf32> to vector<8x8x16xf32>
    %43 = arith.truncf %39 : vector<8x8x16xf32> to vector<8x8x16xbf16>
    %44 = arith.truncf %42 : vector<8x8x16xf32> to vector<8x8x16xbf16>
    %45 = vector.shape_cast %19 : vector<64x16xf32> to vector<8x8x16xf32>
    %46 = arith.truncf %45 : vector<8x8x16xf32> to vector<8x8x16xbf16>
    "tpu.trace_start"() <{level = 10 : i32, message = "bnd,bmd->bnm"}> : () -> ()
    %cst_22 = arith.constant dense<0.000000e+00> : vector<8x8x8xf32>
    %47 = tpu.matmul %43, %44, %cst_22 {dimension_numbers = #tpu.dot_dimension_numbers<[2], [2], [1], [1], [0, 0, 0, 1, 1, 1], [0], [0]>} : vector<8x8x16xbf16>, vector<8x8x16xbf16>, vector<8x8x8xf32> -> vector<8x8x8xf32>
    "tpu.trace_stop"() : () -> ()
    %c0_23 = arith.constant 0 : index
    %c0_24 = arith.constant 0 : index
    %c0_25 = arith.constant 0 : index
    %48 = vector.load %arg9[%c0_23, %c0_24, %c0_25] : memref<2x8x8xf32, #tpu.memory_space<vmem>>, vector<1x8x8xf32>
    %49 = vector.shape_cast %48 : vector<1x8x8xf32> to vector<8x8xf32>
    %50 = vector.shape_cast %49 : vector<8x8xf32> to vector<1x8x8xf32>
    %51 = vector.broadcast %50 : vector<1x8x8xf32> to vector<8x8x8xf32>
    %52 = arith.addf %47, %51 : vector<8x8x8xf32>
    %cst_26 = arith.constant dense<0xFF800000> : vector<8x8xf32>
    %53 = vector.multi_reduction <maximumf>, %52, %cst_26 [2] : vector<8x8x8xf32> to vector<8x8xf32>
    %54 = vector.shape_cast %53 : vector<8x8xf32> to vector<8x8x1xf32>
    %55 = vector.broadcast %54 : vector<8x8x1xf32> to vector<8x8x8xf32>
    %56 = arith.subf %52, %55 : vector<8x8x8xf32>
    %57 = math.exp %56 : vector<8x8x8xf32>
    %cst_27 = arith.constant dense<0.000000e+00> : vector<8x8xf32>
    %58 = vector.multi_reduction <add>, %57, %cst_27 [2] : vector<8x8x8xf32> to vector<8x8xf32>
    %59 = vector.shape_cast %58 : vector<8x8xf32> to vector<8x8x1xf32>
    %60 = tpu.reciprocal %59 {approx = true} : vector<8x8x1xf32> -> vector<8x8x1xf32>
    %61 = vector.broadcast %60 : vector<8x8x1xf32> to vector<8x8x8xf32>
    %62 = arith.mulf %57, %61 : vector<8x8x8xf32>
    %63 = arith.truncf %62 : vector<8x8x8xf32> to vector<8x8x8xbf16>
    "tpu.trace_start"() <{level = 10 : i32, message = "bnm,bmd->bnd"}> : () -> ()
    %cst_28 = arith.constant dense<0.000000e+00> : vector<8x8x16xf32>
    %64 = tpu.matmul %63, %46, %cst_28 {dimension_numbers = #tpu.dot_dimension_numbers<[2], [1], [1], [2], [0, 0, 0, 1, 1, 2], [0], [0]>} : vector<8x8x8xbf16>, vector<8x8x16xbf16>, vector<8x8x16xf32> -> vector<8x8x16xf32>
    "tpu.trace_stop"() : () -> ()
    %65 = vector.shape_cast %64 : vector<8x8x16xf32> to vector<64x16xf32>
    %66 = arith.truncf %65 : vector<64x16xf32> to vector<64x16xbf16>
    %c0_29 = arith.constant 0 : index
    %c0_30 = arith.constant 0 : index
    %c0_31 = arith.constant 0 : index
    %67 = vector.load %arg10[%c0_29, %c0_30, %c0_31] : memref<2x16x32xbf16, #tpu.memory_space<vmem>>, vector<1x16x32xbf16>
    %68 = vector.shape_cast %67 : vector<1x16x32xbf16> to vector<16x32xbf16>
    %cst_32 = arith.constant dense<0.000000e+00> : vector<64x32xf32>
    %69 = tpu.matmul %66, %68, %cst_32 {dimension_numbers = #tpu.dot_dimension_numbers<[1], [0], [0], [1], [0, 0, 1, 1], [], []>} : vector<64x16xbf16>, vector<16x32xbf16>, vector<64x32xf32> -> vector<64x32xf32>
    %70 = arith.addf %16, %69 : vector<64x32xf32>
    %71 = vector.extract_strided_slice %5 {offsets = [0, 16], sizes = [64, 16], strides = [1, 1]} : vector<64x32xf32> to vector<64x16xf32>
    %72 = vector.extract_strided_slice %10 {offsets = [0, 16], sizes = [64, 16], strides = [1, 1]} : vector<64x32xf32> to vector<64x16xf32>
    %73 = vector.extract_strided_slice %15 {offsets = [0, 16], sizes = [64, 16], strides = [1, 1]} : vector<64x32xf32> to vector<64x16xf32>
    %74 = arith.mulf %71, %71 : vector<64x16xf32>
    %cst_33 = arith.constant dense<0.000000e+00> : vector<64xf32>
    %75 = vector.multi_reduction <add>, %74, %cst_33 [1] : vector<64x16xf32> to vector<64xf32>
    %76 = vector.shape_cast %75 : vector<64xf32> to vector<64x1xf32>
    %77 = math.rsqrt %76 : vector<64x1xf32>
    %cst_34 = arith.constant 9.99999995E+11 : f32
    %78 = vector.broadcast %cst_34 : f32 to vector<64x1xf32>
    %79 = arith.minimumf %77, %78 : vector<64x1xf32>
    %80 = arith.mulf %72, %72 : vector<64x16xf32>
    %cst_35 = arith.constant dense<0.000000e+00> : vector<64xf32>
    %81 = vector.multi_reduction <add>, %80, %cst_35 [1] : vector<64x16xf32> to vector<64xf32>
    %82 = vector.shape_cast %81 : vector<64xf32> to vector<64x1xf32>
    %83 = math.rsqrt %82 : vector<64x1xf32>
    %cst_36 = arith.constant 9.99999995E+11 : f32
    %84 = vector.broadcast %cst_36 : f32 to vector<64x1xf32>
    %85 = arith.minimumf %83, %84 : vector<64x1xf32>
    %c1 = arith.constant 1 : index
    %c0_37 = arith.constant 0 : index
    %86 = vector.load %arg8[%c1, %c0_37] : memref<2x1xf32, #tpu.memory_space<vmem>>, vector<1x1xf32>
    %87 = vector.shape_cast %86 : vector<1x1xf32> to vector<1xf32>
    %88 = vector.shape_cast %87 : vector<1xf32> to vector<1x1xf32>
    %89 = vector.broadcast %88 : vector<1x1xf32> to vector<64x1xf32>
    %90 = arith.mulf %79, %89 : vector<64x1xf32>
    %91 = vector.broadcast %90 : vector<64x1xf32> to vector<64x16xf32>
    %92 = arith.mulf %71, %91 : vector<64x16xf32>
    %93 = vector.shape_cast %92 : vector<64x16xf32> to vector<8x8x16xf32>
    %94 = vector.broadcast %85 : vector<64x1xf32> to vector<64x16xf32>
    %95 = arith.mulf %72, %94 : vector<64x16xf32>
    %96 = vector.shape_cast %95 : vector<64x16xf32> to vector<8x8x16xf32>
    %97 = arith.truncf %93 : vector<8x8x16xf32> to vector<8x8x16xbf16>
    %98 = arith.truncf %96 : vector<8x8x16xf32> to vector<8x8x16xbf16>
    %99 = vector.shape_cast %73 : vector<64x16xf32> to vector<8x8x16xf32>
    %100 = arith.truncf %99 : vector<8x8x16xf32> to vector<8x8x16xbf16>
    "tpu.trace_start"() <{level = 10 : i32, message = "bnd,bmd->bnm"}> : () -> ()
    %cst_38 = arith.constant dense<0.000000e+00> : vector<8x8x8xf32>
    %101 = tpu.matmul %97, %98, %cst_38 {dimension_numbers = #tpu.dot_dimension_numbers<[2], [2], [1], [1], [0, 0, 0, 1, 1, 1], [0], [0]>} : vector<8x8x16xbf16>, vector<8x8x16xbf16>, vector<8x8x8xf32> -> vector<8x8x8xf32>
    "tpu.trace_stop"() : () -> ()
    %c1_39 = arith.constant 1 : index
    %c0_40 = arith.constant 0 : index
    %c0_41 = arith.constant 0 : index
    %102 = vector.load %arg9[%c1_39, %c0_40, %c0_41] : memref<2x8x8xf32, #tpu.memory_space<vmem>>, vector<1x8x8xf32>
    %103 = vector.shape_cast %102 : vector<1x8x8xf32> to vector<8x8xf32>
    %104 = vector.shape_cast %103 : vector<8x8xf32> to vector<1x8x8xf32>
    %105 = vector.broadcast %104 : vector<1x8x8xf32> to vector<8x8x8xf32>
    %106 = arith.addf %101, %105 : vector<8x8x8xf32>
    %cst_42 = arith.constant dense<0xFF800000> : vector<8x8xf32>
    %107 = vector.multi_reduction <maximumf>, %106, %cst_42 [2] : vector<8x8x8xf32> to vector<8x8xf32>
    %108 = vector.shape_cast %107 : vector<8x8xf32> to vector<8x8x1xf32>
    %109 = vector.broadcast %108 : vector<8x8x1xf32> to vector<8x8x8xf32>
    %110 = arith.subf %106, %109 : vector<8x8x8xf32>
    %111 = math.exp %110 : vector<8x8x8xf32>
    %cst_43 = arith.constant dense<0.000000e+00> : vector<8x8xf32>
    %112 = vector.multi_reduction <add>, %111, %cst_43 [2] : vector<8x8x8xf32> to vector<8x8xf32>
    %113 = vector.shape_cast %112 : vector<8x8xf32> to vector<8x8x1xf32>
    %114 = tpu.reciprocal %113 {approx = true} : vector<8x8x1xf32> -> vector<8x8x1xf32>
    %115 = vector.broadcast %114 : vector<8x8x1xf32> to vector<8x8x8xf32>
    %116 = arith.mulf %111, %115 : vector<8x8x8xf32>
    %117 = arith.truncf %116 : vector<8x8x8xf32> to vector<8x8x8xbf16>
    "tpu.trace_start"() <{level = 10 : i32, message = "bnm,bmd->bnd"}> : () -> ()
    %cst_44 = arith.constant dense<0.000000e+00> : vector<8x8x16xf32>
    %118 = tpu.matmul %117, %100, %cst_44 {dimension_numbers = #tpu.dot_dimension_numbers<[2], [1], [1], [2], [0, 0, 0, 1, 1, 2], [0], [0]>} : vector<8x8x8xbf16>, vector<8x8x16xbf16>, vector<8x8x16xf32> -> vector<8x8x16xf32>
    "tpu.trace_stop"() : () -> ()
    %119 = vector.shape_cast %118 : vector<8x8x16xf32> to vector<64x16xf32>
    %120 = arith.truncf %119 : vector<64x16xf32> to vector<64x16xbf16>
    %c1_45 = arith.constant 1 : index
    %c0_46 = arith.constant 0 : index
    %c0_47 = arith.constant 0 : index
    %121 = vector.load %arg10[%c1_45, %c0_46, %c0_47] : memref<2x16x32xbf16, #tpu.memory_space<vmem>>, vector<1x16x32xbf16>
    %122 = vector.shape_cast %121 : vector<1x16x32xbf16> to vector<16x32xbf16>
    %cst_48 = arith.constant dense<0.000000e+00> : vector<64x32xf32>
    %123 = tpu.matmul %120, %122, %cst_48 {dimension_numbers = #tpu.dot_dimension_numbers<[1], [0], [0], [1], [0, 0, 1, 1], [], []>} : vector<64x16xbf16>, vector<16x32xbf16>, vector<64x32xf32> -> vector<64x32xf32>
    %124 = arith.addf %70, %123 : vector<64x32xf32>
    %c0_49 = arith.constant 0 : index
    %c0_50 = arith.constant 0 : index
    %125 = vector.load %arg11[%c0_49, %c0_50] : memref<1x32xf32, #tpu.memory_space<vmem>>, vector<1x32xf32>
    %126 = vector.broadcast %125 : vector<1x32xf32> to vector<64x32xf32>
    %127 = arith.addf %124, %126 : vector<64x32xf32>
    %c0_51 = arith.constant 0 : index
    %c0_52 = arith.constant 0 : index
    %128 = vector.load %arg12[%c0_51, %c0_52] : memref<64x32xf32, #tpu.memory_space<vmem>>, vector<64x32xf32>
    tpu.vector_store %arg12[%c0_51, %c0_52], %127 {strides = array<i32>} : memref<64x32xf32, #tpu.memory_space<vmem>>, vector<64x32xf32>,
    return
  }
  func.func @transform_0(%arg0: i32) -> (i32, i32) {
    %c0_i32 = arith.constant 0 : i32
    %c0_i32_0 = arith.constant 0 : i32
    return %arg0, %c0_i32 : i32, i32
  }
  func.func @transform_1(%arg0: i32) -> (i32, i32) {
    %c0_i32 = arith.constant 0 : i32
    %c0_i32_0 = arith.constant 0 : i32
    %c0_i32_1 = arith.constant 0 : i32
    return %c0_i32, %c0_i32_0 : i32, i32
  }
  func.func @transform_2(%arg0: i32) -> (i32, i32) {
    %c0_i32 = arith.constant 0 : i32
    %c0_i32_0 = arith.constant 0 : i32
    %c0_i32_1 = arith.constant 0 : i32
    return %c0_i32, %c0_i32_0 : i32, i32
  }
  func.func @transform_3(%arg0: i32) -> (i32, i32) {
    %c0_i32 = arith.constant 0 : i32
    %c0_i32_0 = arith.constant 0 : i32
    %c0_i32_1 = arith.constant 0 : i32
    return %c0_i32, %c0_i32_0 : i32, i32
  }
  func.func @transform_4(%arg0: i32) -> (i32, i32) {
    %c0_i32 = arith.constant 0 : i32
    %c0_i32_0 = arith.constant 0 : i32
    %c0_i32_1 = arith.constant 0 : i32
    return %c0_i32, %c0_i32_0 : i32, i32
  }
  func.func @transform_5(%arg0: i32) -> (i32, i32) {
    %c0_i32 = arith.constant 0 : i32
    %c0_i32_0 = arith.constant 0 : i32
    %c0_i32_1 = arith.constant 0 : i32
    return %c0_i32, %c0_i32_0 : i32, i32
  }
  func.func @transform_6(%arg0: i32) -> (i32, i32) {
    %c0_i32 = arith.constant 0 : i32
    %c0_i32_0 = arith.constant 0 : i32
    %c0_i32_1 = arith.constant 0 : i32
    return %c0_i32, %c0_i32_0 : i32, i32
  }
  func.func @transform_7(%arg0: i32) -> (i32, i32) {
    %c0_i32 = arith.constant 0 : i32
    %c0_i32_0 = arith.constant 0 : i32
    %c0_i32_1 = arith.constant 0 : i32
    return %c0_i32, %c0_i32_0 : i32, i32
  }
  func.func @transform_8(%arg0: i32) -> (i32, i32, i32) {
    %c0_i32 = arith.constant 0 : i32
    %c0_i32_0 = arith.constant 0 : i32
    %c0_i32_1 = arith.constant 0 : i32
    %c0_i32_2 = arith.constant 0 : i32
    return %c0_i32, %c0_i32_0, %c0_i32_1 : i32, i32, i32
  }
  func.func @transform_9(%arg0: i32) -> (i32, i32, i32) {
    %c0_i32 = arith.constant 0 : i32
    %c0_i32_0 = arith.constant 0 : i32
    %c0_i32_1 = arith.constant 0 : i32
    %c0_i32_2 = arith.constant 0 : i32
    return %c0_i32, %c0_i32_0, %c0_i32_1 : i32, i32, i32
  }
  func.func @transform_10(%arg0: i32) -> (i32, i32) {
    %c0_i32 = arith.constant 0 : i32
    %c0_i32_0 = arith.constant 0 : i32
    %c0_i32_1 = arith.constant 0 : i32
    return %c0_i32, %c0_i32_0 : i32, i32
  }
  func.func @transform_11(%arg0: i32) -> (i32, i32) {
    %c0_i32 = arith.constant 0 : i32
    %c0_i32_0 = arith.constant 0 : i32
    return %arg0, %c0_i32 : i32, i32
  }
}

</mosaic_0001>

<llo_original>
// kernel: tpu_custom_call.1
$region0: #{tpu_custom_call.1}
  #allocation0 [shape = 'u32[]', space=smem, size = 0x4, offset = 0x4, fixed_abs, tag = 'smem constant byte address 0x4 - core index']
  #allocation1 [shape = 'u32[144,128]{1,0:T(1,128)}', space=vmem, size = 0x12000, scoped, tag = 'internal scratch']
  %s0 = inlined_call_operand.vmem [shape: bf16[256,32], index: 0, kind: input, shape index: {}]
  %s1 = inlined_call_operand.vmem [shape: bf16[32,32], index: 1, kind: input, shape index: {}]
  %s2 = inlined_call_operand.vmem [shape: bf16[32,32], index: 2, kind: input, shape index: {}]
  %s3 = inlined_call_operand.vmem [shape: bf16[32,32], index: 3, kind: input, shape index: {}]
  %s4 = inlined_call_operand.vmem [shape: f32[1,32], index: 4, kind: input, shape index: {}]
  %s5 = inlined_call_operand.vmem [shape: f32[1,32], index: 5, kind: input, shape index: {}]
  %s6 = inlined_call_operand.vmem [shape: f32[1,32], index: 6, kind: input, shape index: {}]
  %s7 = inlined_call_operand.vmem [shape: f32[2,1], index: 7, kind: input, shape index: {}]
  %s8 = inlined_call_operand.vmem [shape: f32[2,8,8], index: 8, kind: input, shape index: {}]
  %s9 = inlined_call_operand.vmem [shape: bf16[2,16,32], index: 9, kind: input, shape index: {}]
  %s10 = inlined_call_operand.vmem [shape: f32[1,32], index: 10, kind: input, shape index: {}]
  %s11 = inlined_call_operand.vmem [shape: f32[256,32], index: 11, kind: output, shape index: {}]
  %s12 = sld [smem:[#allocation0]]
  $region77: #{tpu_custom_call.1} parent=0
    _
  %s14 = ssub.s32 1, %s12
  %s15 = scalar_select 0, %s14, %s12
  loop: start=0, step=1, limit=6
  $region2: #{tpu_custom_call.1} parent=0 // loop_pre_header
    _
  $region3: #{tpu_custom_call.1} parent=0 // loop_header
    %s17 = sphi 0, %s21
    %p18 = scmp.ge.s32.totalorder %s17, 6
    %s27 = sphi 0, %s29
    %s30 = sphi 0, %s27
    %s31 = sphi 0, %s30
    %s47 = sphi 0, %s31
    %s51 = sphi 0, %s51
    %s53 = sphi 0, %s51
    %s54 = sphi 0, %s53
    %s68 = sphi 0, %s54
    %s72 = sphi 0, %s72
    %s74 = sphi 0, %s72
    %s75 = sphi 0, %s74
    %s89 = sphi 0, %s75
    %s93 = sphi 0, %s93
    %s95 = sphi 0, %s93
    %s96 = sphi 0, %s95
    %s110 = sphi 0, %s96
    %s114 = sphi 0, %s114
    %s116 = sphi 0, %s114
    %s117 = sphi 0, %s116
    %s131 = sphi 0, %s117
    %s135 = sphi 0, %s135
    %s137 = sphi 0, %s135
    %s138 = sphi 0, %s137
    %s152 = sphi 0, %s138
    %s156 = sphi 0, %s156
    %s158 = sphi 0, %s156
    %s159 = sphi 0, %s158
    %s173 = sphi 0, %s159
    %s177 = sphi 0, %s177
    %s179 = sphi 0, %s177
    %s180 = sphi 0, %s179
    %s194 = sphi 0, %s180
    %s198 = sphi 0, %s198
    %s200 = sphi 0, %s198
    %s201 = sphi 0, %s200
    %s215 = sphi 0, %s201
    %s219 = sphi 0, %s219
    %s221 = sphi 0, %s219
    %s222 = sphi 0, %s221
    %s236 = sphi 0, %s222
    %s240 = sphi 0, %s240
    %s242 = sphi 0, %s240
    %s243 = sphi 0, %s242
    %s257 = sphi 0, %s243
    %s263 = sphi 0, %s265
    %s266 = sphi 0, %s263
    %s267 = sphi 0, %s266
    %s283 = sphi 0, %s267
  $region4: #{tpu_custom_call.1} parent=0 // loop_header_branch
    %20 = sbr.rel (%p18) target = $region8
  $region5: #{tpu_custom_call.1} parent=0 // loop_body
    %s22 = ssub.s32 %s17, 1
    %s23 = ssub.s32 %s17, 2
    %s24 = sadd.s32 %s17, 1
    %s25 = ssub.s32 %s17, %s24
    %p26 = scmp.eq.s32.totalorder %s25, 0
    %s28 = sadd.s32 %s27, 1
    %s29 = scalar_select %p26, %s27, %s28
    %p32 = pneg %p26
    %p33 = scmp.eq.s32.totalorder %s17, 3
    %p34 = por %p32, %p33
    %p35 = scmp.ne.s32.totalorder %s27, %s30
    %p36 = scmp.eq.s32.totalorder %s17, 0
    %p37 = por %p35, %p36
    %p38 = scmp.ne.s32.totalorder %s27, %s30
    %p39 = scmp.eq.s32.totalorder %s22, 3
    %p40 = por %p38, %p39
    %p41 = scmp.ne.s32.totalorder %s30, %s31
    %p42 = scmp.eq.s32.totalorder %s22, 0
    %p43 = por %p41, %p42
    %p44 = scmp.ne.s32.totalorder %s30, %s31
    %p45 = scmp.eq.s32.totalorder %s23, 3
    %p46 = por %p44, %p45
    %p48 = scmp.ne.s32.totalorder %s31, %s47
    %p49 = scmp.eq.s32.totalorder %s23, 0
    %p50 = por %p48, %p49
    %s52 = sadd.s32 %s51, 1
    %p55 = scmp.eq.s32.totalorder %s17, 3
    %p56 = scmp.ne.s32.totalorder %s51, %s53
    %p57 = scmp.eq.s32.totalorder %s17, 0
    %p58 = por %p56, %p57
    %p59 = scmp.ne.s32.totalorder %s51, %s53
    %p60 = scmp.eq.s32.totalorder %s22, 3
    %p61 = por %p59, %p60
    %p62 = scmp.ne.s32.totalorder %s53, %s54
    %p63 = scmp.eq.s32.totalorder %s22, 0
    %p64 = por %p62, %p63
    %p65 = scmp.ne.s32.totalorder %s53, %s54
    %p66 = scmp.eq.s32.totalorder %s23, 3
    %p67 = por %p65, %p66
    %p69 = scmp.ne.s32.totalorder %s54, %s68
    %p70 = scmp.eq.s32.totalorder %s23, 0
    %p71 = por %p69, %p70
    %s73 = sadd.s32 %s72, 1
    %p76 = scmp.eq.s32.totalorder %s17, 3
    %p77 = scmp.ne.s32.totalorder %s72, %s74
    %p78 = scmp.eq.s32.totalorder %s17, 0
    %p79 = por %p77, %p78
    %p80 = scmp.ne.s32.totalorder %s72, %s74
    %p81 = scmp.eq.s32.totalorder %s22, 3
    %p82 = por %p80, %p81
    %p83 = scmp.ne.s32.totalorder %s74, %s75
    %p84 = scmp.eq.s32.totalorder %s22, 0
    %p85 = por %p83, %p84
    %p86 = scmp.ne.s32.totalorder %s74, %s75
    %p87 = scmp.eq.s32.totalorder %s23, 3
    %p88 = por %p86, %p87
    %p90 = scmp.ne.s32.totalorder %s75, %s89
    %p91 = scmp.eq.s32.totalorder %s23, 0
    %p92 = por %p90, %p91
    %s94 = sadd.s32 %s93, 1
    %p97 = scmp.eq.s32.totalorder %s17, 3
    %p98 = scmp.ne.s32.totalorder %s93, %s95
    %p99 = scmp.eq.s32.totalorder %s17, 0
    %p100 = por %p98, %p99
    %p101 = scmp.ne.s32.totalorder %s93, %s95
    %p102 = scmp.eq.s32.totalorder %s22, 3
    %p103 = por %p101, %p102
    %p104 = scmp.ne.s32.totalorder %s95, %s96
    %p105 = scmp.eq.s32.totalorder %s22, 0
    %p106 = por %p104, %p105
    %p107 = scmp.ne.s32.totalorder %s95, %s96
    %p108 = scmp.eq.s32.totalorder %s23, 3
    %p109 = por %p107, %p108
    %p111 = scmp.ne.s32.totalorder %s96, %s110
    %p112 = scmp.eq.s32.totalorder %s23, 0
    %p113 = por %p111, %p112
    %s115 = sadd.s32 %s114, 1
    %p118 = scmp.eq.s32.totalorder %s17, 3
    %p119 = scmp.ne.s32.totalorder %s114, %s116
    %p120 = scmp.eq.s32.totalorder %s17, 0
    %p121 = por %p119, %p120
    %p122 = scmp.ne.s32.totalorder %s114, %s116
    %p123 = scmp.eq.s32.totalorder %s22, 3
    %p124 = por %p122, %p123
    %p125 = scmp.ne.s32.totalorder %s116, %s117
    %p126 = scmp.eq.s32.totalorder %s22, 0
    %p127 = por %p125, %p126
    %p128 = scmp.ne.s32.totalorder %s116, %s117
    %p129 = scmp.eq.s32.totalorder %s23, 3
    %p130 = por %p128, %p129
    %p132 = scmp.ne.s32.totalorder %s117, %s131
    %p133 = scmp.eq.s32.totalorder %s23, 0
    %p134 = por %p132, %p133
    %s136 = sadd.s32 %s135, 1
    %p139 = scmp.eq.s32.totalorder %s17, 3
    %p140 = scmp.ne.s32.totalorder %s135, %s137
    %p141 = scmp.eq.s32.totalorder %s17, 0
    %p142 = por %p140, %p141
    %p143 = scmp.ne.s32.totalorder %s135, %s137
    %p144 = scmp.eq.s32.totalorder %s22, 3
    %p145 = por %p143, %p144
    %p146 = scmp.ne.s32.totalorder %s137, %s138
    %p147 = scmp.eq.s32.totalorder %s22, 0
    %p148 = por %p146, %p147
    %p149 = scmp.ne.s32.totalorder %s137, %s138
    %p150 = scmp.eq.s32.totalorder %s23, 3
    %p151 = por %p149, %p150
    %p153 = scmp.ne.s32.totalorder %s138, %s152
    %p154 = scmp.eq.s32.totalorder %s23, 0
    %p155 = por %p153, %p154
    %s157 = sadd.s32 %s156, 1
    %p160 = scmp.eq.s32.totalorder %s17, 3
    %p161 = scmp.ne.s32.totalorder %s156, %s158
    %p162 = scmp.eq.s32.totalorder %s17, 0
    %p163 = por %p161, %p162
    %p164 = scmp.ne.s32.totalorder %s156, %s158
    %p165 = scmp.eq.s32.totalorder %s22, 3
    %p166 = por %p164, %p165
    %p167 = scmp.ne.s32.totalorder %s158, %s159
    %p168 = scmp.eq.s32.totalorder %s22, 0
    %p169 = por %p167, %p168
    %p170 = scmp.ne.s32.totalorder %s158, %s159
    %p171 = scmp.eq.s32.totalorder %s23, 3
    %p172 = por %p170, %p171
    %p174 = scmp.ne.s32.totalorder %s159, %s173
    %p175 = scmp.eq.s32.totalorder %s23, 0
    %p176 = por %p174, %p175
    %s178 = sadd.s32 %s177, 1
    %p181 = scmp.eq.s32.totalorder %s17, 3
    %p182 = scmp.ne.s32.totalorder %s177, %s179
    %p183 = scmp.eq.s32.totalorder %s17, 0
    %p184 = por %p182, %p183
    %p185 = scmp.ne.s32.totalorder %s177, %s179
    %p186 = scmp.eq.s32.totalorder %s22, 3
    %p187 = por %p185, %p186
    %p188 = scmp.ne.s32.totalorder %s179, %s180
    %p189 = scmp.eq.s32.totalorder %s22, 0
    %p190 = por %p188, %p189
    %p191 = scmp.ne.s32.totalorder %s179, %s180
    %p192 = scmp.eq.s32.totalorder %s23, 3
    %p193 = por %p191, %p192
    %p195 = scmp.ne.s32.totalorder %s180, %s194
    %p196 = scmp.eq.s32.totalorder %s23, 0
    %p197 = por %p195, %p196
    %s199 = sadd.s32 %s198, 1
    %p202 = scmp.eq.s32.totalorder %s17, 3
    %p203 = scmp.ne.s32.totalorder %s198, %s200
    %p204 = scmp.eq.s32.totalorder %s17, 0
    %p205 = por %p203, %p204
    %p206 = scmp.ne.s32.totalorder %s198, %s200
    %p207 = scmp.eq.s32.totalorder %s22, 3
    %p208 = por %p206, %p207
    %p209 = scmp.ne.s32.totalorder %s200, %s201
    %p210 = scmp.eq.s32.totalorder %s22, 0
    %p211 = por %p209, %p210
    %p212 = scmp.ne.s32.totalorder %s200, %s201
    %p213 = scmp.eq.s32.totalorder %s23, 3
    %p214 = por %p212, %p213
    %p216 = scmp.ne.s32.totalorder %s201, %s215
    %p217 = scmp.eq.s32.totalorder %s23, 0
    %p218 = por %p216, %p217
    %s220 = sadd.s32 %s219, 1
    %p223 = scmp.eq.s32.totalorder %s17, 3
    %p224 = scmp.ne.s32.totalorder %s219, %s221
    %p225 = scmp.eq.s32.totalorder %s17, 0
    %p226 = por %p224, %p225
    %p227 = scmp.ne.s32.totalorder %s219, %s221
    %p228 = scmp.eq.s32.totalorder %s22, 3
    %p229 = por %p227, %p228
    %p230 = scmp.ne.s32.totalorder %s221, %s222
    %p231 = scmp.eq.s32.totalorder %s22, 0
    %p232 = por %p230, %p231
    %p233 = scmp.ne.s32.totalorder %s221, %s222
    %p234 = scmp.eq.s32.totalorder %s23, 3
    %p235 = por %p233, %p234
    %p237 = scmp.ne.s32.totalorder %s222, %s236
    %p238 = scmp.eq.s32.totalorder %s23, 0
    %p239 = por %p237, %p238
    %s241 = sadd.s32 %s240, 1
    %p244 = scmp.eq.s32.totalorder %s17, 3
    %p245 = scmp.ne.s32.totalorder %s240, %s242
    %p246 = scmp.eq.s32.totalorder %s17, 0
    %p247 = por %p245, %p246
    %p248 = scmp.ne.s32.totalorder %s240, %s242
    %p249 = scmp.eq.s32.totalorder %s22, 3
    %p250 = por %p248, %p249
    %p251 = scmp.ne.s32.totalorder %s242, %s243
    %p252 = scmp.eq.s32.totalorder %s22, 0
    %p253 = por %p251, %p252
    %p254 = scmp.ne.s32.totalorder %s242, %s243
    %p255 = scmp.eq.s32.totalorder %s23, 3
    %p256 = por %p254, %p255
    %p258 = scmp.ne.s32.totalorder %s243, %s257
    %p259 = scmp.eq.s32.totalorder %s23, 0
    %p260 = por %p258, %p259
    %s261 = ssub.s32 %s17, %s24
    %p262 = scmp.eq.s32.totalorder %s261, 0
    %s264 = sadd.s32 %s263, 1
    %s265 = scalar_select %p262, %s263, %s264
    %p268 = pneg %p262
    %p269 = scmp.eq.s32.totalorder %s17, 3
    %p270 = por %p268, %p269
    %p271 = scmp.ne.s32.totalorder %s263, %s266
    %p272 = scmp.eq.s32.totalorder %s17, 0
    %p273 = por %p271, %p272
    %p274 = scmp.ne.s32.totalorder %s263, %s266
    %p275 = scmp.eq.s32.totalorder %s22, 3
    %p276 = por %p274, %p275
    %p277 = scmp.ne.s32.totalorder %s266, %s267
    %p278 = scmp.eq.s32.totalorder %s22, 0
    %p279 = por %p277, %p278
    %p280 = scmp.ne.s32.totalorder %s266, %s267
    %p281 = scmp.eq.s32.totalorder %s23, 3
    %p282 = por %p280, %p281
    %p284 = scmp.ne.s32.totalorder %s267, %s283
    %p285 = scmp.eq.s32.totalorder %s23, 0
    %p286 = por %p284, %p285
    %p287 = scmp.le.s32.totalorder 1, %s17
    %p288 = scmp.lt.s32.totalorder %s17, 5
    %p289 = pnand %p287, %p288
    %p290 = pneg %p289
    // Predicated region
    $region9: #{tpu_custom_call.1} parent=5 // pred_check
      _
    $region10: #{tpu_custom_call.1} parent=5 // pred_check_branch
      %292 = sbr.rel (%p289) target = $region12
    $region11: #{tpu_custom_call.1} parent=5 // pred_region
      %s293 = ssub.s32 %s17, 1
      // Predicated region
      $region13: #{tpu_custom_call.1} parent=11 // pred_check
        %p294 = pneg %p64
      $region14: #{tpu_custom_call.1} parent=11 // pred_check_branch
        %296 = sbr.rel (%p294) target = $region16
      $region15: #{tpu_custom_call.1} parent=11 // pred_region
        _
      $region16: #{tpu_custom_call.1} parent=11 // pred_fallthru
        _
      // Predicated region
      $region17: #{tpu_custom_call.1} parent=11 // pred_check
        %p297 = pneg %p85
      $region18: #{tpu_custom_call.1} parent=11 // pred_check_branch
        %299 = sbr.rel (%p297) target = $region20
      $region19: #{tpu_custom_call.1} parent=11 // pred_region
        _
      $region20: #{tpu_custom_call.1} parent=11 // pred_fallthru
        _
      // Predicated region
      $region21: #{tpu_custom_call.1} parent=11 // pred_check
        %p300 = pneg %p106
      $region22: #{tpu_custom_call.1} parent=11 // pred_check_branch
        %302 = sbr.rel (%p300) target = $region24
      $region23: #{tpu_custom_call.1} parent=11 // pred_region
        _
      $region24: #{tpu_custom_call.1} parent=11 // pred_fallthru
        _
      // Predicated region
      $region25: #{tpu_custom_call.1} parent=11 // pred_check
        %p303 = pneg %p127
      $region26: #{tpu_custom_call.1} parent=11 // pred_check_branch
        %305 = sbr.rel (%p303) target = $region28
      $region27: #{tpu_custom_call.1} parent=11 // pred_region
        _
      $region28: #{tpu_custom_call.1} parent=11 // pred_fallthru
        _
      // Predicated region
      $region29: #{tpu_custom_call.1} parent=11 // pred_check
        %p306 = pneg %p148
      $region30: #{tpu_custom_call.1} parent=11 // pred_check_branch
        %308 = sbr.rel (%p306) target = $region32
      $region31: #{tpu_custom_call.1} parent=11 // pred_region
        _
      $region32: #{tpu_custom_call.1} parent=11 // pred_fallthru
        _
      // Predicated region
      $region33: #{tpu_custom_call.1} parent=11 // pred_check
        %p309 = pneg %p169
      $region34: #{tpu_custom_call.1} parent=11 // pred_check_branch
        %311 = sbr.rel (%p309) target = $region36
      $region35: #{tpu_custom_call.1} parent=11 // pred_region
        _
      $region36: #{tpu_custom_call.1} parent=11 // pred_fallthru
        _
      // Predicated region
      $region37: #{tpu_custom_call.1} parent=11 // pred_check
        %p312 = pneg %p190
      $region38: #{tpu_custom_call.1} parent=11 // pred_check_branch
        %314 = sbr.rel (%p312) target = $region40
      $region39: #{tpu_custom_call.1} parent=11 // pred_region
        _
      $region40: #{tpu_custom_call.1} parent=11 // pred_fallthru
        _
      // Predicated region
      $region41: #{tpu_custom_call.1} parent=11 // pred_check
        %p315 = pneg %p211
      $region42: #{tpu_custom_call.1} parent=11 // pred_check_branch
        %317 = sbr.rel (%p315) target = $region44
      $region43: #{tpu_custom_call.1} parent=11 // pred_region
        _
      $region44: #{tpu_custom_call.1} parent=11 // pred_fallthru
        _
      // Predicated region
      $region45: #{tpu_custom_call.1} parent=11 // pred_check
        %p318 = pneg %p232
      $region46: #{tpu_custom_call.1} parent=11 // pred_check_branch
        %320 = sbr.rel (%p318) target = $region48
      $region47: #{tpu_custom_call.1} parent=11 // pred_region
        _
      $region48: #{tpu_custom_call.1} parent=11 // pred_fallthru
        _
      // Predicated region
      $region49: #{tpu_custom_call.1} parent=11 // pred_check
        %p321 = pneg %p253
      $region50: #{tpu_custom_call.1} parent=11 // pred_check_branch
        %323 = sbr.rel (%p321) target = $region52
      $region51: #{tpu_custom_call.1} parent=11 // pred_region
        _
      $region52: #{tpu_custom_call.1} parent=11 // pred_fallthru
        _
    $region12: #{tpu_custom_call.1} parent=5 // pred_fallthru
      _
    %p324 = scmp.lt.s32.totalorder %s17, 4
    // Predicated region
    $region53: #{tpu_custom_call.1} parent=5 // pred_check
      %p325 = pneg %p324
    $region54: #{tpu_custom_call.1} parent=5 // pred_check_branch
      %327 = sbr.rel (%p325) target = $region56
    $region55: #{tpu_custom_call.1} parent=5 // pred_region
      // Predicated region
      $region57: #{tpu_custom_call.1} parent=55 // pred_check
        %p328 = pneg %p37
      $region58: #{tpu_custom_call.1} parent=55 // pred_check_branch
        %330 = sbr.rel (%p328) target = $region60
      $region59: #{tpu_custom_call.1} parent=55 // pred_region
        %s331 = smul.u32 8, %s17
        %p332 = scmp.lt.s32.totalorder %s331, 31
        %s333 = scalar_select %p332, %s331, 31
        %s334 = smul.addr %s333, 4
        %s335 = scalar_lea.vmem %s0, %s334
        %s336 = smul.u32 8, %s17
      $region60: #{tpu_custom_call.1} parent=55 // pred_fallthru
        _
    $region56: #{tpu_custom_call.1} parent=5 // pred_fallthru
      _
    %p337 = scmp.le.s32.totalorder 1, %s17
    %p338 = scmp.lt.s32.totalorder %s17, 5
    %p339 = pnand %p337, %p338
    %p340 = pneg %p339
    // Predicated region
    $region61: #{tpu_custom_call.1} parent=5 // pred_check
      _
    $region62: #{tpu_custom_call.1} parent=5 // pred_check_branch
      %342 = sbr.rel (%p339) target = $region64
    $region63: #{tpu_custom_call.1} parent=5 // pred_region
      %s343 = ssub.s32 %s17, 1
      %s344 = smul.u32 8, %s22
      %p345 = scmp.lt.s32.totalorder %s344, 31
      %s346 = scalar_select %p345, %s344, 31
      %s347 = smul.addr %s346, 4
      %s348 = scalar_lea.vmem %s0, %s347
      %p349 = pneg %p43
      %p350 = pneg %p40
      %p351 = pneg %p64
      %p352 = pneg %p61
      %p353 = pneg %p85
      %p354 = pneg %p82
      %p355 = pneg %p106
      %p356 = pneg %p103
      %p357 = pneg %p127
      %p358 = pneg %p124
      %p359 = pneg %p148
      %p360 = pneg %p145
      %p361 = pneg %p169
      %p362 = pneg %p166
      %p363 = pneg %p190
      %p364 = pneg %p187
      %p365 = pneg %p211
      %p366 = pneg %p208
      %p367 = pneg %p232
      %p368 = pneg %p229
      %p369 = pneg %p253
      %p370 = pneg %p250
      %p371 = pneg %p279
      %p372 = pneg %p276
      %s373 = smul.u32 8, %s22
      %p374 = scmp.lt.s32.totalorder %s373, 31
      %s375 = scalar_select %p374, %s373, 31
      %s376 = smul.addr %s375, 8
      %s377 = scalar_lea.vmem %s11, %s376
      %s378 = smul.u32 8, %s22
      %p379 = scmp.lt.s32.totalorder %s378, 31
      %s380 = scalar_select %p379, %s378, 31
      %s381 = smul.addr %s380, 4
      %s382 = scalar_lea.vmem %s0, %s381
      %s383 = smul.u32 8, %s22
      %s384 = smul.u32 8, %s22
      %p385 = scmp.lt.s32.totalorder %s384, 31
      %s386 = scalar_select %p385, %s384, 31
      %s387 = smul.addr %s386, 8
      %s388 = scalar_lea.vmem %s11, %s387
      %s389 = smul.u32 8, %s22
      %v391 = vld [vmem:[%s382] sm:$0xf]
      %v392 = vld [vmem:[%s382 + $0x4] sm:$0xf]
      %v393 = vld [vmem:[%s382 + $0x8] sm:$0xf]
      %v394 = vld [vmem:[%s382 + $0xc] sm:$0xf]
      %v395 = vld [vmem:[%s382 + $0x10] sm:$0xf]
      %v396 = vld [vmem:[%s382 + $0x14] sm:$0xf]
      %v397 = vld [vmem:[%s382 + $0x18] sm:$0xf]
      %v398 = vld [vmem:[%s382 + $0x1c] sm:$0xf]
      %v399 = vld [vmem:[%s1] sm:$0xf]
      %v400 = vld [vmem:[%s1 + $0x4] sm:$0xf]
      %v401 = vld [vmem:[%s1 + $0x8] sm:$0xf]
      %v402 = vld [vmem:[%s1 + $0xc] sm:$0xf]
      %v403 = vld [vmem:[%s4] sm:$0x1]
      %v405 = vlaneseq
      %v406 = vshrl.u32 %v405, 7
      %v407 = vsub.s32 0, %v406
      %v408 = vrot.slane %v403, %v407
      %v418 = vunpack.c.l.b16 %v391
      %v419 = vunpack.c.l.b16 %v392
      %v420 = vunpack.c.l.b16 %v393
      %v421 = vunpack.c.l.b16 %v394
      %v422 = vunpack.c.l.b16 %v395
      %v423 = vunpack.c.l.b16 %v396
      %v424 = vunpack.c.l.b16 %v397
      %v425 = vunpack.c.l.b16 %v398
      %v426 = vpack.c.b16 %v419, %v418
      %v427 = vpack.c.b16 %v421, %v420
      %v428 = vpack.c.b16 %v423, %v422
      %v429 = vpack.c.b16 %v425, %v424
      %v434 = vunpack.c.l.b16 %v399
      %v435 = vunpack.c.l.b16 %v400
      %v436 = vunpack.c.l.b16 %v401
      %v437 = vunpack.c.l.b16 %v402
      %v438 = vpack.c.b16 %v435, %v434
      %v439 = vpack.c.b16 %v437, %v436
      %vm442 = vcmask 261120
      %v444 = vsel %vm442, %v426, 0
      %v447 = vsel %vm442, %v427, 0
      %v450 = vsel %vm442, %v428, 0
      %v453 = vsel %vm442, %v429, 0
      %455 = vmatprep.subr.bf16.mxu0 0
      %456 = vmatpush1.bf16.msra.mxu0 %v438
      %457 = vmatprep.subr.bf16.mxu0 0
      %458 = vmatpush1.bf16.msra.mxu0 %v439
      %459 = vmatprep.subr.bf16.mxu0 0
      %460 = vmatpush1.bf16.msra.mxu0 0
      %461 = vmatprep.subr.bf16.mxu0 0
      %462 = vmatpush1.bf16.msra.mxu0 0
      %463 = vmatprep.subr.bf16.mxu0 0
      %464 = vmatpush1.bf16.msra.mxu0 0
      %465 = vmatprep.subr.bf16.mxu0 0
      %466 = vmatpush1.bf16.msra.mxu0 0
      %467 = vmatprep.subr.bf16.mxu0 0
      %468 = vmatpush1.bf16.msra.mxu0 0
      %469 = vmatprep.subr.bf16.mxu0 0
      %470 = vmatpush1.bf16.msra.mxu0 0
      %471 = vmatprep.subr.bf16.mxu0 0
      %472 = vmatpush1.bf16.msra.mxu0 0
      %473 = vmatprep.subr.bf16.mxu0 0
      %474 = vmatpush1.bf16.msra.mxu0 0
      %475 = vmatprep.subr.bf16.mxu0 0
      %476 = vmatpush1.bf16.msra.mxu0 0
      %477 = vmatprep.subr.bf16.mxu0 0
      %478 = vmatpush1.bf16.msra.mxu0 0
      %479 = vmatprep.subr.bf16.mxu0 0
      %480 = vmatpush1.bf16.msra.mxu0 0
      %481 = vmatprep.subr.bf16.mxu0 0
      %482 = vmatpush1.bf16.msra.mxu0 0
      %483 = vmatprep.subr.bf16.mxu0 0
      %484 = vmatpush1.bf16.msra.mxu0 0
      %485 = vmatprep.subr.bf16.mxu0 0
      %486 = vmatpush1.bf16.msra.mxu0 0
      %487 = vmatprep.mubr.bf16.mxu0 0
      %488 = vmatmul.mubr.bf16.gmra.mrb[0].mxu0 %v444
      %v489 = vpop.f32.mrb[0].mxu0
      %v490 = vadd.f32 %v408, %v489
      %v491 = vpop.f32.mrb[0].mxu0
      %v492 = vpop.f32.mrb[0].mxu0
      %v493 = vadd.f32 %v408, %v492
      %v494 = vpop.f32.mrb[0].mxu0
      %495 = vmatprep.mubr.bf16.mxu0 0
      %496 = vmatmul.mubr.bf16.gmra.mrb[0].mxu0 %v447
      %v497 = vpop.f32.mrb[0].mxu0
      %v498 = vadd.f32 %v408, %v497
      %v499 = vpop.f32.mrb[0].mxu0
      %v500 = vpop.f32.mrb[0].mxu0
      %v501 = vadd.f32 %v408, %v500
      %v502 = vpop.f32.mrb[0].mxu0
      %503 = vmatprep.mubr.bf16.mxu0 0
      %504 = vmatmul.mubr.bf16.gmra.mrb[0].mxu0 %v450
      %v505 = vpop.f32.mrb[0].mxu0
      %v506 = vadd.f32 %v408, %v505
      %v507 = vpop.f32.mrb[0].mxu0
      %v508 = vpop.f32.mrb[0].mxu0
      %v509 = vadd.f32 %v408, %v508
      %v510 = vpop.f32.mrb[0].mxu0
      %511 = vmatprep.mubr.bf16.mxu0 0
      %512 = vmatmul.mubr.bf16.gmra.mrb[0].mxu0 %v453
      %v513 = vpop.f32.mrb[0].mxu0
      %v514 = vadd.f32 %v408, %v513
      %v515 = vpop.f32.mrb[0].mxu0
      %v516 = vpop.f32.mrb[0].mxu0
      %v517 = vadd.f32 %v408, %v516
      %v518 = vpop.f32.mrb[0].mxu0
      %519 = vdwg.mxu0
      %v520 = vld [vmem:[%s2] sm:$0xf]
      %v521 = vld [vmem:[%s2 + $0x4] sm:$0xf]
      %v522 = vld [vmem:[%s2 + $0x8] sm:$0xf]
      %v523 = vld [vmem:[%s2 + $0xc] sm:$0xf]
      %v524 = vld [vmem:[%s5] sm:$0x1]
      %v526 = vlaneseq
      %v527 = vshrl.u32 %v526, 7
      %v528 = vsub.s32 0, %v527
      %v529 = vrot.slane %v524, %v528
      %v535 = vunpack.c.l.b16 %v520
      %v536 = vunpack.c.l.b16 %v521
      %v537 = vunpack.c.l.b16 %v522
      %v538 = vunpack.c.l.b16 %v523
      %v539 = vpack.c.b16 %v536, %v535
      %v540 = vpack.c.b16 %v538, %v537
      %543 = vmatprep.subr.bf16.mxu0 0
      %544 = vmatpush1.bf16.msra.mxu0 %v539
      %545 = vmatprep.subr.bf16.mxu0 0
      %546 = vmatpush1.bf16.msra.mxu0 %v540
      %547 = vmatprep.subr.bf16.mxu0 0
      %548 = vmatpush1.bf16.msra.mxu0 0
      %549 = vmatprep.subr.bf16.mxu0 0
      %550 = vmatpush1.bf16.msra.mxu0 0
      %551 = vmatprep.subr.bf16.mxu0 0
      %552 = vmatpush1.bf16.msra.mxu0 0
      %553 = vmatprep.subr.bf16.mxu0 0
      %554 = vmatpush1.bf16.msra.mxu0 0
      %555 = vmatprep.subr.bf16.mxu0 0
      %556 = vmatpush1.bf16.msra.mxu0 0
      %557 = vmatprep.subr.bf16.mxu0 0
      %558 = vmatpush1.bf16.msra.mxu0 0
      %559 = vmatprep.subr.bf16.mxu0 0
      %560 = vmatpush1.bf16.msra.mxu0 0
      %561 = vmatprep.subr.bf16.mxu0 0
      %562 = vmatpush1.bf16.msra.mxu0 0
      %563 = vmatprep.subr.bf16.mxu0 0
      %564 = vmatpush1.bf16.msra.mxu0 0
      %565 = vmatprep.subr.bf16.mxu0 0
      %566 = vmatpush1.bf16.msra.mxu0 0
      %567 = vmatprep.subr.bf16.mxu0 0
      %568 = vmatpush1.bf16.msra.mxu0 0
      %569 = vmatprep.subr.bf16.mxu0 0
      %570 = vmatpush1.bf16.msra.mxu0 0
      %571 = vmatprep.subr.bf16.mxu0 0
      %572 = vmatpush1.bf16.msra.mxu0 0
      %573 = vmatprep.subr.bf16.mxu0 0
      %574 = vmatpush1.bf16.msra.mxu0 0
      %575 = vmatprep.mubr.bf16.mxu0 0
      %576 = vmatmul.mubr.bf16.gmra.mrb[0].mxu0 %v444
      %v577 = vpop.f32.mrb[0].mxu0
      %v578 = vadd.f32 %v529, %v577
      %v579 = vpop.f32.mrb[0].mxu0
      %v580 = vpop.f32.mrb[0].mxu0
      %v581 = vadd.f32 %v529, %v580
      %v582 = vpop.f32.mrb[0].mxu0
      %583 = vmatprep.mubr.bf16.mxu0 0
      %584 = vmatmul.mubr.bf16.gmra.mrb[0].mxu0 %v447
      %v585 = vpop.f32.mrb[0].mxu0
      %v586 = vadd.f32 %v529, %v585
      %v587 = vpop.f32.mrb[0].mxu0
      %v588 = vpop.f32.mrb[0].mxu0
      %v589 = vadd.f32 %v529, %v588
      %v590 = vpop.f32.mrb[0].mxu0
      %591 = vmatprep.mubr.bf16.mxu0 0
      %592 = vmatmul.mubr.bf16.gmra.mrb[0].mxu0 %v450
      %v593 = vpop.f32.mrb[0].mxu0
      %v594 = vadd.f32 %v529, %v593
      %v595 = vpop.f32.mrb[0].mxu0
      %v596 = vpop.f32.mrb[0].mxu0
      %v597 = vadd.f32 %v529, %v596
      %v598 = vpop.f32.mrb[0].mxu0
      %599 = vmatprep.mubr.bf16.mxu0 0
      %600 = vmatmul.mubr.bf16.gmra.mrb[0].mxu0 %v453
      %v601 = vpop.f32.mrb[0].mxu0
      %v602 = vadd.f32 %v529, %v601
      %v603 = vpop.f32.mrb[0].mxu0
      %v604 = vpop.f32.mrb[0].mxu0
      %v605 = vadd.f32 %v529, %v604
      %v606 = vpop.f32.mrb[0].mxu0
      %607 = vdwg.mxu0
      %v608 = vld [vmem:[%s3] sm:$0xf]
      %v609 = vld [vmem:[%s3 + $0x4] sm:$0xf]
      %v610 = vld [vmem:[%s3 + $0x8] sm:$0xf]
      %v611 = vld [vmem:[%s3 + $0xc] sm:$0xf]
      %v612 = vld [vmem:[%s6] sm:$0x1]
      %v614 = vlaneseq
      %v615 = vshrl.u32 %v614, 7
      %v616 = vsub.s32 0, %v615
      %v617 = vrot.slane %v612, %v616
      %v623 = vunpack.c.l.b16 %v608
      %v624 = vunpack.c.l.b16 %v609
      %v625 = vunpack.c.l.b16 %v610
      %v626 = vunpack.c.l.b16 %v611
      %v627 = vpack.c.b16 %v624, %v623
      %v628 = vpack.c.b16 %v626, %v625
      %631 = vmatprep.subr.bf16.mxu0 0
      %632 = vmatpush1.bf16.msra.mxu0 %v627
      %633 = vmatprep.subr.bf16.mxu0 0
      %634 = vmatpush1.bf16.msra.mxu0 %v628
      %635 = vmatprep.subr.bf16.mxu0 0
      %636 = vmatpush1.bf16.msra.mxu0 0
      %637 = vmatprep.subr.bf16.mxu0 0
      %638 = vmatpush1.bf16.msra.mxu0 0
      %639 = vmatprep.subr.bf16.mxu0 0
      %640 = vmatpush1.bf16.msra.mxu0 0
      %641 = vmatprep.subr.bf16.mxu0 0
      %642 = vmatpush1.bf16.msra.mxu0 0
      %643 = vmatprep.subr.bf16.mxu0 0
      %644 = vmatpush1.bf16.msra.mxu0 0
      %645 = vmatprep.subr.bf16.mxu0 0
      %646 = vmatpush1.bf16.msra.mxu0 0
      %647 = vmatprep.subr.bf16.mxu0 0
      %648 = vmatpush1.bf16.msra.mxu0 0
      %649 = vmatprep.subr.bf16.mxu0 0
      %650 = vmatpush1.bf16.msra.mxu0 0
      %651 = vmatprep.subr.bf16.mxu0 0
      %652 = vmatpush1.bf16.msra.mxu0 0
      %653 = vmatprep.subr.bf16.mxu0 0
      %654 = vmatpush1.bf16.msra.mxu0 0
      %655 = vmatprep.subr.bf16.mxu0 0
      %656 = vmatpush1.bf16.msra.mxu0 0
      %657 = vmatprep.subr.bf16.mxu0 0
      %658 = vmatpush1.bf16.msra.mxu0 0
      %659 = vmatprep.subr.bf16.mxu0 0
      %660 = vmatpush1.bf16.msra.mxu0 0
      %661 = vmatprep.subr.bf16.mxu0 0
      %662 = vmatpush1.bf16.msra.mxu0 0
      %663 = vmatprep.mubr.bf16.mxu0 0
      %664 = vmatmul.mubr.bf16.gmra.mrb[0].mxu0 %v444
      %v665 = vpop.f32.mrb[0].mxu0
      %v666 = vadd.f32 %v617, %v665
      %v667 = vpop.f32.mrb[0].mxu0
      %v668 = vpop.f32.mrb[0].mxu0
      %v669 = vadd.f32 %v617, %v668
      %v670 = vpop.f32.mrb[0].mxu0
      %671 = vmatprep.mubr.bf16.mxu0 0
      %672 = vmatmul.mubr.bf16.gmra.mrb[0].mxu0 %v447
      %v673 = vpop.f32.mrb[0].mxu0
      %v674 = vadd.f32 %v617, %v673
      %v675 = vpop.f32.mrb[0].mxu0
      %v676 = vpop.f32.mrb[0].mxu0
      %v677 = vadd.f32 %v617, %v676
      %v678 = vpop.f32.mrb[0].mxu0
      %679 = vmatprep.mubr.bf16.mxu0 0
      %680 = vmatmul.mubr.bf16.gmra.mrb[0].mxu0 %v450
      %v681 = vpop.f32.mrb[0].mxu0
      %v682 = vadd.f32 %v617, %v681
      %v683 = vpop.f32.mrb[0].mxu0
      %v684 = vpop.f32.mrb[0].mxu0
      %v685 = vadd.f32 %v617, %v684
      %v686 = vpop.f32.mrb[0].mxu0
      %687 = vmatprep.mubr.bf16.mxu0 0
      %688 = vmatmul.mubr.bf16.gmra.mrb[0].mxu0 %v453
      %v689 = vpop.f32.mrb[0].mxu0
      %v690 = vadd.f32 %v617, %v689
      %v691 = vpop.f32.mrb[0].mxu0
      %v692 = vpop.f32.mrb[0].mxu0
      %v693 = vadd.f32 %v617, %v692
      %v694 = vpop.f32.mrb[0].mxu0
      %695 = vdwg.mxu0
      %v696 = vmul.f32 %v490, %v490
      %v697 = vmul.f32 %v493, %v493
      %v698 = vmul.f32 %v498, %v498
      %v699 = vmul.f32 %v501, %v501
      %v700 = vmul.f32 %v506, %v506
      %v701 = vmul.f32 %v509, %v509
      %v702 = vmul.f32 %v514, %v514
      %v703 = vmul.f32 %v517, %v517
      %vm704 = vcmask 130048
      %v705 = vsel %vm704, %v696, 0.0
      %706 = vadd.xlane.f32.xlu0 %v705
      %v707 = vpop.xlane.xlu0 %706
      %v708 = vsel %vm704, %v697, 0.0
      %709 = vadd.xlane.f32.xlu0 %v708
      %v710 = vpop.xlane.xlu0 %709
      %v711 = vsel %vm704, %v698, 0.0
      %712 = vadd.xlane.f32.xlu0 %v711
      %v713 = vpop.xlane.xlu0 %712
      %v714 = vsel %vm704, %v699, 0.0
      %715 = vadd.xlane.f32.xlu0 %v714
      %v716 = vpop.xlane.xlu0 %715
      %v717 = vsel %vm704, %v700, 0.0
      %718 = vadd.xlane.f32.xlu0 %v717
      %v719 = vpop.xlane.xlu0 %718
      %v720 = vsel %vm704, %v701, 0.0
      %721 = vadd.xlane.f32.xlu0 %v720
      %v722 = vpop.xlane.xlu0 %721
      %v723 = vsel %vm704, %v702, 0.0
      %724 = vadd.xlane.f32.xlu0 %v723
      %v725 = vpop.xlane.xlu0 %724
      %v726 = vsel %vm704, %v703, 0.0
      %727 = vadd.xlane.f32.xlu0 %v726
      %v728 = vpop.xlane.xlu0 %727
      %v729 = vrsqrt.pop %v707
      %v730 = vrsqrt.pop %v710
      %v731 = vrsqrt.pop %v713
      %v732 = vrsqrt.pop %v716
      %v733 = vrsqrt.pop %v719
      %v734 = vrsqrt.pop %v722
      %v735 = vrsqrt.pop %v725
      %v736 = vrsqrt.pop %v728
      %v737 = vmin.f32 %v729, 1e+12
      %v738 = vmin.f32 %v730, 1e+12
      %v739 = vmin.f32 %v731, 1e+12
      %v740 = vmin.f32 %v732, 1e+12
      %v741 = vmin.f32 %v733, 1e+12
      %v742 = vmin.f32 %v734, 1e+12
      %v743 = vmin.f32 %v735, 1e+12
      %v744 = vmin.f32 %v736, 1e+12
      %v745 = vmul.f32 %v578, %v578
      %v746 = vmul.f32 %v581, %v581
      %v747 = vmul.f32 %v586, %v586
      %v748 = vmul.f32 %v589, %v589
      %v749 = vmul.f32 %v594, %v594
      %v750 = vmul.f32 %v597, %v597
      %v751 = vmul.f32 %v602, %v602
      %v752 = vmul.f32 %v605, %v605
      %v753 = vsel %vm704, %v745, 0.0
      %754 = vadd.xlane.f32.xlu0 %v753
      %v755 = vpop.xlane.xlu0 %754
      %v756 = vsel %vm704, %v746, 0.0
      %757 = vadd.xlane.f32.xlu0 %v756
      %v758 = vpop.xlane.xlu0 %757
      %v759 = vsel %vm704, %v747, 0.0
      %760 = vadd.xlane.f32.xlu0 %v759
      %v761 = vpop.xlane.xlu0 %760
      %v762 = vsel %vm704, %v748, 0.0
      %763 = vadd.xlane.f32.xlu0 %v762
      %v764 = vpop.xlane.xlu0 %763
      %v765 = vsel %vm704, %v749, 0.0
      %766 = vadd.xlane.f32.xlu0 %v765
      %v767 = vpop.xlane.xlu0 %766
      %v768 = vsel %vm704, %v750, 0.0
      %769 = vadd.xlane.f32.xlu0 %v768
      %v770 = vpop.xlane.xlu0 %769
      %v771 = vsel %vm704, %v751, 0.0
      %772 = vadd.xlane.f32.xlu0 %v771
      %v773 = vpop.xlane.xlu0 %772
      %v774 = vsel %vm704, %v752, 0.0
      %775 = vadd.xlane.f32.xlu0 %v774
      %v776 = vpop.xlane.xlu0 %775
      %v777 = vrsqrt.pop %v755
      %v778 = vrsqrt.pop %v758
      %v779 = vrsqrt.pop %v761
      %v780 = vrsqrt.pop %v764
      %v781 = vrsqrt.pop %v767
      %v782 = vrsqrt.pop %v770
      %v783 = vrsqrt.pop %v773
      %v784 = vrsqrt.pop %v776
      %v785 = vmin.f32 %v777, 1e+12
      %v786 = vmin.f32 %v778, 1e+12
      %v787 = vmin.f32 %v779, 1e+12
      %v788 = vmin.f32 %v780, 1e+12
      %v789 = vmin.f32 %v781, 1e+12
      %v790 = vmin.f32 %v782, 1e+12
      %v791 = vmin.f32 %v783, 1e+12
      %v792 = vmin.f32 %v784, 1e+12
      %v793 = vld [vmem:[%s7] sm:$0x1]
      %v794 = vlaneseq
      %v795 = vshrl.u32 %v794, 7
      %v796 = vsub.s32 0, %v795
      %v797 = vrot.slane %v793, %v796
      %v798 = vmul.f32 %v737, %v797
      %v799 = vmul.f32 %v738, %v797
      %v800 = vmul.f32 %v739, %v797
      %v801 = vmul.f32 %v740, %v797
      %v802 = vmul.f32 %v741, %v797
      %v803 = vmul.f32 %v742, %v797
      %v804 = vmul.f32 %v743, %v797
      %v805 = vmul.f32 %v744, %v797
      %807 = vset.pattern.permute.xlu0 0
      %808 = vperm.xlu0 %807, %v798
      %v809 = vpop.permute.xlu0 %808
      %812 = vset.pattern.permute.xlu0 0
      %813 = vperm.xlu0 %812, %v799
      %v814 = vpop.permute.xlu0 %813
      %817 = vset.pattern.permute.xlu0 0
      %818 = vperm.xlu0 %817, %v800
      %v819 = vpop.permute.xlu0 %818
      %822 = vset.pattern.permute.xlu0 0
      %823 = vperm.xlu0 %822, %v801
      %v824 = vpop.permute.xlu0 %823
      %827 = vset.pattern.permute.xlu0 0
      %828 = vperm.xlu0 %827, %v802
      %v829 = vpop.permute.xlu0 %828
      %832 = vset.pattern.permute.xlu0 0
      %833 = vperm.xlu0 %832, %v803
      %v834 = vpop.permute.xlu0 %833
      %837 = vset.pattern.permute.xlu0 0
      %838 = vperm.xlu0 %837, %v804
      %v839 = vpop.permute.xlu0 %838
      %842 = vset.pattern.permute.xlu0 0
      %843 = vperm.xlu0 %842, %v805
      %v844 = vpop.permute.xlu0 %843
      %v846 = vmul.f32 %v490, %v809
      %v847 = vmul.f32 %v493, %v814
      %v848 = vmul.f32 %v498, %v819
      %v849 = vmul.f32 %v501, %v824
      %v850 = vmul.f32 %v506, %v829
      %v851 = vmul.f32 %v509, %v834
      %v852 = vmul.f32 %v514, %v839
      %v853 = vmul.f32 %v517, %v844
      %v854 = vmul.f32 %v578, %v785
      %v855 = vmul.f32 %v581, %v786
      %v856 = vmul.f32 %v586, %v787
      %v857 = vmul.f32 %v589, %v788
      %v858 = vmul.f32 %v594, %v789
      %v859 = vmul.f32 %v597, %v790
      %v860 = vmul.f32 %v602, %v791
      %v861 = vmul.f32 %v605, %v792
      %v862 = vpack.c.bf16 %v846, %v846
      %v863 = vpack.c.bf16 %v847, %v847
      %v864 = vpack.c.bf16 %v848, %v848
      %v865 = vpack.c.bf16 %v849, %v849
      %v866 = vpack.c.bf16 %v850, %v850
      %v867 = vpack.c.bf16 %v851, %v851
      %v868 = vpack.c.bf16 %v852, %v852
      %v869 = vpack.c.bf16 %v853, %v853
      %v870 = vpack.c.bf16 %v854, %v854
      %v871 = vpack.c.bf16 %v855, %v855
      %v872 = vpack.c.bf16 %v856, %v856
      %v873 = vpack.c.bf16 %v857, %v857
      %v874 = vpack.c.bf16 %v858, %v858
      %v875 = vpack.c.bf16 %v859, %v859
      %v876 = vpack.c.bf16 %v860, %v860
      %v877 = vpack.c.bf16 %v861, %v861
      %v878 = vpack.c.bf16 %v666, %v666
      %v879 = vpack.c.bf16 %v669, %v669
      %v880 = vpack.c.bf16 %v674, %v674
      %v881 = vpack.c.bf16 %v677, %v677
      %v882 = vpack.c.bf16 %v682, %v682
      %v883 = vpack.c.bf16 %v685, %v685
      %v884 = vpack.c.bf16 %v690, %v690
      %v885 = vpack.c.bf16 %v693, %v693
      %v886 = vld [vmem:[%s8] sm:$0xff]
      %v888 = vsel %vm704, %v862, 0
      %v891 = vsel %vm704, %v870, 0
      %893 = vmatprep.subr.bf16.mxu0 0
      %894 = vmatpush1.bf16.xpose.msra.mxu0 %v891
      %895 = vmatprep.subr.bf16.mxu0 0
      %896 = vmatpush1.bf16.xpose.msra.mxu0 0
      %897 = vmatprep.subr.bf16.mxu0 0
      %898 = vmatpush1.bf16.xpose.msra.mxu0 0
      %899 = vmatprep.subr.bf16.mxu0 0
      %900 = vmatpush1.bf16.xpose.msra.mxu0 0
      %901 = vmatprep.subr.bf16.mxu0 0
      %902 = vmatpush1.bf16.xpose.msra.mxu0 0
      %903 = vmatprep.subr.bf16.mxu0 0
      %904 = vmatpush1.bf16.xpose.msra.mxu0 0
      %905 = vmatprep.subr.bf16.mxu0 0
      %906 = vmatpush1.bf16.xpose.msra.mxu0 0
      %907 = vmatprep.subr.bf16.mxu0 0
      %908 = vmatpush1.bf16.xpose.msra.mxu0 0
      %909 = vmatprep.subr.bf16.mxu0 0
      %910 = vmatpush1.bf16.xpose.msra.mxu0 0
      %911 = vmatprep.subr.bf16.mxu0 0
      %912 = vmatpush1.bf16.xpose.msra.mxu0 0
      %913 = vmatprep.subr.bf16.mxu0 0
      %914 = vmatpush1.bf16.xpose.msra.mxu0 0
      %915 = vmatprep.subr.bf16.mxu0 0
      %916 = vmatpush1.bf16.xpose.msra.mxu0 0
      %917 = vmatprep.subr.bf16.mxu0 0
      %918 = vmatpush1.bf16.xpose.msra.mxu0 0
      %919 = vmatprep.subr.bf16.mxu0 0
      %920 = vmatpush1.bf16.xpose.msra.mxu0 0
      %921 = vmatprep.subr.bf16.mxu0 0
      %922 = vmatpush1.bf16.xpose.msra.mxu0 0
      %923 = vmatprep.subr.bf16.mxu0 0
      %924 = vmatpush1.bf16.xpose.msra.mxu0 0
      %925 = vmatprep.mubr.bf16.mxu0 0
      %926 = vmatmul.mubr.bf16.gmra.mrb[0].mxu0 %v888
      %v927 = vpop.f32.mrb[0].mxu0
      %v928 = vadd.f32 %v886, %v927
      %v929 = vpop.f32.mrb[0].mxu0
      %v930 = vpop.f32.mrb[0].mxu0
      %v931 = vpop.f32.mrb[0].mxu0
      %932 = vdwg.mxu0
      %v934 = vsel %vm704, %v863, 0
      %v937 = vsel %vm704, %v871, 0
      %939 = vmatprep.subr.bf16.mxu0 0
      %940 = vmatpush1.bf16.xpose.msra.mxu0 %v937
      %941 = vmatprep.subr.bf16.mxu0 0
      %942 = vmatpush1.bf16.xpose.msra.mxu0 0
      %943 = vmatprep.subr.bf16.mxu0 0
      %944 = vmatpush1.bf16.xpose.msra.mxu0 0
      %945 = vmatprep.subr.bf16.mxu0 0
      %946 = vmatpush1.bf16.xpose.msra.mxu0 0
      %947 = vmatprep.subr.bf16.mxu0 0
      %948 = vmatpush1.bf16.xpose.msra.mxu0 0
      %949 = vmatprep.subr.bf16.mxu0 0
      %950 = vmatpush1.bf16.xpose.msra.mxu0 0
      %951 = vmatprep.subr.bf16.mxu0 0
      %952 = vmatpush1.bf16.xpose.msra.mxu0 0
      %953 = vmatprep.subr.bf16.mxu0 0
      %954 = vmatpush1.bf16.xpose.msra.mxu0 0
      %955 = vmatprep.subr.bf16.mxu0 0
      %956 = vmatpush1.bf16.xpose.msra.mxu0 0
      %957 = vmatprep.subr.bf16.mxu0 0
      %958 = vmatpush1.bf16.xpose.msra.mxu0 0
      %959 = vmatprep.subr.bf16.mxu0 0
      %960 = vmatpush1.bf16.xpose.msra.mxu0 0
      %961 = vmatprep.subr.bf16.mxu0 0
      %962 = vmatpush1.bf16.xpose.msra.mxu0 0
      %963 = vmatprep.subr.bf16.mxu0 0
      %964 = vmatpush1.bf16.xpose.msra.mxu0 0
      %965 = vmatprep.subr.bf16.mxu0 0
      %966 = vmatpush1.bf16.xpose.msra.mxu0 0
      %967 = vmatprep.subr.bf16.mxu0 0
      %968 = vmatpush1.bf16.xpose.msra.mxu0 0
      %969 = vmatprep.subr.bf16.mxu0 0
      %970 = vmatpush1.bf16.xpose.msra.mxu0 0
      %971 = vmatprep.mubr.bf16.mxu0 0
      %972 = vmatmul.mubr.bf16.gmra.mrb[0].mxu0 %v934
      %v973 = vpop.f32.mrb[0].mxu0
      %v974 = vadd.f32 %v886, %v973
      %v975 = vpop.f32.mrb[0].mxu0
      %v976 = vpop.f32.mrb[0].mxu0
      %v977 = vpop.f32.mrb[0].mxu0
      %978 = vdwg.mxu0
      %v980 = vsel %vm704, %v864, 0
      %v983 = vsel %vm704, %v872, 0
      %985 = vmatprep.subr.bf16.mxu0 0
      %986 = vmatpush1.bf16.xpose.msra.mxu0 %v983
      %987 = vmatprep.subr.bf16.mxu0 0
      %988 = vmatpush1.bf16.xpose.msra.mxu0 0
      %989 = vmatprep.subr.bf16.mxu0 0
      %990 = vmatpush1.bf16.xpose.msra.mxu0 0
      %991 = vmatprep.subr.bf16.mxu0 0
      %992 = vmatpush1.bf16.xpose.msra.mxu0 0
      %993 = vmatprep.subr.bf16.mxu0 0
      %994 = vmatpush1.bf16.xpose.msra.mxu0 0
      %995 = vmatprep.subr.bf16.mxu0 0
      %996 = vmatpush1.bf16.xpose.msra.mxu0 0
      %997 = vmatprep.subr.bf16.mxu0 0
      %998 = vmatpush1.bf16.xpose.msra.mxu0 0
      %999 = vmatprep.subr.bf16.mxu0 0
      %1000 = vmatpush1.bf16.xpose.msra.mxu0 0
      %1001 = vmatprep.subr.bf16.mxu0 0
      %1002 = vmatpush1.bf16.xpose.msra.mxu0 0
      %1003 = vmatprep.subr.bf16.mxu0 0
      %1004 = vmatpush1.bf16.xpose.msra.mxu0 0
      %1005 = vmatprep.subr.bf16.mxu0 0
      %1006 = vmatpush1.bf16.xpose.msra.mxu0 0
      %1007 = vmatprep.subr.bf16.mxu0 0
      %1008 = vmatpush1.bf16.xpose.msra.mxu0 0
      %1009 = vmatprep.subr.bf16.mxu0 0
      %1010 = vmatpush1.bf16.xpose.msra.mxu0 0
      %1011 = vmatprep.subr.bf16.mxu0 0
      %1012 = vmatpush1.bf16.xpose.msra.mxu0 0
      %1013 = vmatprep.subr.bf16.mxu0 0
      %1014 = vmatpush1.bf16.xpose.msra.mxu0 0
      %1015 = vmatprep.subr.bf16.mxu0 0
      %1016 = vmatpush1.bf16.xpose.msra.mxu0 0
      %1017 = vmatprep.mubr.bf16.mxu0 0
      %1018 = vmatmul.mubr.bf16.gmra.mrb[0].mxu0 %v980
      %v1019 = vpop.f32.mrb[0].mxu0
      %v1020 = vadd.f32 %v886, %v1019
      %v1021 = vpop.f32.mrb[0].mxu0
      %v1022 = vpop.f32.mrb[0].mxu0
      %v1023 = vpop.f32.mrb[0].mxu0
      %1024 = vdwg.mxu0
      %v1026 = vsel %vm704, %v865, 0
      %v1029 = vsel %vm704, %v873, 0
      %1031 = vmatprep.subr.bf16.mxu0 0
      %1032 = vmatpush1.bf16.xpose.msra.mxu0 %v1029
      %1033 = vmatprep.subr.bf16.mxu0 0
      %1034 = vmatpush1.bf16.xpose.msra.mxu0 0
      %1035 = vmatprep.subr.bf16.mxu0 0
      %1036 = vmatpush1.bf16.xpose.msra.mxu0 0
      %1037 = vmatprep.subr.bf16.mxu0 0
      %1038 = vmatpush1.bf16.xpose.msra.mxu0 0
      %1039 = vmatprep.subr.bf16.mxu0 0
      %1040 = vmatpush1.bf16.xpose.msra.mxu0 0
      %1041 = vmatprep.subr.bf16.mxu0 0
      %1042 = vmatpush1.bf16.xpose.msra.mxu0 0
      %1043 = vmatprep.subr.bf16.mxu0 0
      %1044 = vmatpush1.bf16.xpose.msra.mxu0 0
      %1045 = vmatprep.subr.bf16.mxu0 0
      %1046 = vmatpush1.bf16.xpose.msra.mxu0 0
      %1047 = vmatprep.subr.bf16.mxu0 0
      %1048 = vmatpush1.bf16.xpose.msra.mxu0 0
      %1049 = vmatprep.subr.bf16.mxu0 0
      %1050 = vmatpush1.bf16.xpose.msra.mxu0 0
      %1051 = vmatprep.subr.bf16.mxu0 0
      %1052 = vmatpush1.bf16.xpose.msra.mxu0 0
      %1053 = vmatprep.subr.bf16.mxu0 0
      %1054 = vmatpush1.bf16.xpose.msra.mxu0 0
      %1055 = vmatprep.subr.bf16.mxu0 0
      %1056 = vmatpush1.bf16.xpose.msra.mxu0 0
      %1057 = vmatprep.subr.bf16.mxu0 0
      %1058 = vmatpush1.bf16.xpose.msra.mxu0 0
      %1059 = vmatprep.subr.bf16.mxu0 0
      %1060 = vmatpush1.bf16.xpose.msra.mxu0 0
      %1061 = vmatprep.subr.bf16.mxu0 0
      %1062 = vmatpush1.bf16.xpose.msra.mxu0 0
      %1063 = vmatprep.mubr.bf16.mxu0 0
      %1064 = vmatmul.mubr.bf16.gmra.mrb[0].mxu0 %v1026
      %v1065 = vpop.f32.mrb[0].mxu0
      %v1066 = vadd.f32 %v886, %v1065
      %v1067 = vpop.f32.mrb[0].mxu0
      %v1068 = vpop.f32.mrb[0].mxu0
      %v1069 = vpop.f32.mrb[0].mxu0
      %1070 = vdwg.mxu0
      %v1072 = vsel %vm704, %v866, 0
      %v1075 = vsel %vm704, %v874, 0
      %1077 = vmatprep.subr.bf16.mxu0 0
      %1078 = vmatpush1.bf16.xpose.msra.mxu0 %v1075
      %1079 = vmatprep.subr.bf16.mxu0 0
      %1080 = vmatpush1.bf16.xpose.msra.mxu0 0
      %1081 = vmatprep.subr.bf16.mxu0 0
      %1082 = vmatpush1.bf16.xpose.msra.mxu0 0
      %1083 = vmatprep.subr.bf16.mxu0 0
      %1084 = vmatpush1.bf16.xpose.msra.mxu0 0
      %1085 = vmatprep.subr.bf16.mxu0 0
      %1086 = vmatpush1.bf16.xpose.msra.mxu0 0
      %1087 = vmatprep.subr.bf16.mxu0 0
      %1088 = vmatpush1.bf16.xpose.msra.mxu0 0
      %1089 = vmatprep.subr.bf16.mxu0 0
      %1090 = vmatpush1.bf16.xpose.msra.mxu0 0
      %1091 = vmatprep.subr.bf16.mxu0 0
      %1092 = vmatpush1.bf16.xpose.msra.mxu0 0
      %1093 = vmatprep.subr.bf16.mxu0 0
      %1094 = vmatpush1.bf16.xpose.msra.mxu0 0
      %1095 = vmatprep.subr.bf16.mxu0 0
      %1096 = vmatpush1.bf16.xpose.msra.mxu0 0
      %1097 = vmatprep.subr.bf16.mxu0 0
      %1098 = vmatpush1.bf16.xpose.msra.mxu0 0
      %1099 = vmatprep.subr.bf16.mxu0 0
      %1100 = vmatpush1.bf16.xpose.msra.mxu0 0
      %1101 = vmatprep.subr.bf16.mxu0 0
      %1102 = vmatpush1.bf16.xpose.msra.mxu0 0
      %1103 = vmatprep.subr.bf16.mxu0 0
      %1104 = vmatpush1.bf16.xpose.msra.mxu0 0
      %1105 = vmatprep.subr.bf16.mxu0 0
      %1106 = vmatpush1.bf16.xpose.msra.mxu0 0
      %1107 = vmatprep.subr.bf16.mxu0 0
      %1108 = vmatpush1.bf16.xpose.msra.mxu0 0
      %1109 = vmatprep.mubr.bf16.mxu0 0
      %1110 = vmatmul.mubr.bf16.gmra.mrb[0].mxu0 %v1072
      %v1111 = vpop.f32.mrb[0].mxu0
      %v1112 = vadd.f32 %v886, %v1111
      %v1113 = vpop.f32.mrb[0].mxu0
      %v1114 = vpop.f32.mrb[0].mxu0
      %v1115 = vpop.f32.mrb[0].mxu0
      %1116 = vdwg.mxu0
      %v1118 = vsel %vm704, %v867, 0
      %v1121 = vsel %vm704, %v875, 0
      %1123 = vmatprep.subr.bf16.mxu0 0
      %1124 = vmatpush1.bf16.xpose.msra.mxu0 %v1121
      %1125 = vmatprep.subr.bf16.mxu0 0
      %1126 = vmatpush1.bf16.xpose.msra.mxu0 0
      %1127 = vmatprep.subr.bf16.mxu0 0
      %1128 = vmatpush1.bf16.xpose.msra.mxu0 0
      %1129 = vmatprep.subr.bf16.mxu0 0
      %1130 = vmatpush1.bf16.xpose.msra.mxu0 0
      %1131 = vmatprep.subr.bf16.mxu0 0
      %1132 = vmatpush1.bf16.xpose.msra.mxu0 0
      %1133 = vmatprep.subr.bf16.mxu0 0
      %1134 = vmatpush1.bf16.xpose.msra.mxu0 0
      %1135 = vmatprep.subr.bf16.mxu0 0
      %1136 = vmatpush1.bf16.xpose.msra.mxu0 0
      %1137 = vmatprep.subr.bf16.mxu0 0
      %1138 = vmatpush1.bf16.xpose.msra.mxu0 0
      %1139 = vmatprep.subr.bf16.mxu0 0
      %1140 = vmatpush1.bf16.xpose.msra.mxu0 0
      %1141 = vmatprep.subr.bf16.mxu0 0
      %1142 = vmatpush1.bf16.xpose.msra.mxu0 0
      %1143 = vmatprep.subr.bf16.mxu0 0
      %1144 = vmatpush1.bf16.xpose.msra.mxu0 0
      %1145 = vmatprep.subr.bf16.mxu0 0
      %1146 = vmatpush1.bf16.xpose.msra.mxu0 0
      %1147 = vmatprep.subr.bf16.mxu0 0
      %1148 = vmatpush1.bf16.xpose.msra.mxu0 0
      %1149 = vmatprep.subr.bf16.mxu0 0
      %1150 = vmatpush1.bf16.xpose.msra.mxu0 0
      %1151 = vmatprep.subr.bf16.mxu0 0
      %1152 = vmatpush1.bf16.xpose.msra.mxu0 0
      %1153 = vmatprep.subr.bf16.mxu0 0
      %1154 = vmatpush1.bf16.xpose.msra.mxu0 0
      %1155 = vmatprep.mubr.bf16.mxu0 0
      %1156 = vmatmul.mubr.bf16.gmra.mrb[0].mxu0 %v1118
      %v1157 = vpop.f32.mrb[0].mxu0
      %v1158 = vadd.f32 %v886, %v1157
      %v1159 = vpop.f32.mrb[0].mxu0
      %v1160 = vpop.f32.mrb[0].mxu0
      %v1161 = vpop.f32.mrb[0].mxu0
      %1162 = vdwg.mxu0
      %v1164 = vsel %vm704, %v868, 0
      %v1167 = vsel %vm704, %v876, 0
      %1169 = vmatprep.subr.bf16.mxu0 0
      %1170 = vmatpush1.bf16.xpose.msra.mxu0 %v1167
      %1171 = vmatprep.subr.bf16.mxu0 0
      %1172 = vmatpush1.bf16.xpose.msra.mxu0 0
      %1173 = vmatprep.subr.bf16.mxu0 0
      %1174 = vmatpush1.bf16.xpose.msra.mxu0 0
      %1175 = vmatprep.subr.bf16.mxu0 0
      %1176 = vmatpush1.bf16.xpose.msra.mxu0 0
      %1177 = vmatprep.subr.bf16.mxu0 0
      %1178 = vmatpush1.bf16.xpose.msra.mxu0 0
      %1179 = vmatprep.subr.bf16.mxu0 0
      %1180 = vmatpush1.bf16.xpose.msra.mxu0 0
      %1181 = vmatprep.subr.bf16.mxu0 0
      %1182 = vmatpush1.bf16.xpose.msra.mxu0 0
      %1183 = vmatprep.subr.bf16.mxu0 0
      %1184 = vmatpush1.bf16.xpose.msra.mxu0 0
      %1185 = vmatprep.subr.bf16.mxu0 0
      %1186 = vmatpush1.bf16.xpose.msra.mxu0 0
      %1187 = vmatprep.subr.bf16.mxu0 0
      %1188 = vmatpush1.bf16.xpose.msra.mxu0 0
      %1189 = vmatprep.subr.bf16.mxu0 0
      %1190 = vmatpush1.bf16.xpose.msra.mxu0 0
      %1191 = vmatprep.subr.bf16.mxu0 0
      %1192 = vmatpush1.bf16.xpose.msra.mxu0 0
      %1193 = vmatprep.subr.bf16.mxu0 0
      %1194 = vmatpush1.bf16.xpose.msra.mxu0 0
      %1195 = vmatprep.subr.bf16.mxu0 0
      %1196 = vmatpush1.bf16.xpose.msra.mxu0 0
      %1197 = vmatprep.subr.bf16.mxu0 0
      %1198 = vmatpush1.bf16.xpose.msra.mxu0 0
      %1199 = vmatprep.subr.bf16.mxu0 0
      %1200 = vmatpush1.bf16.xpose.msra.mxu0 0
      %1201 = vmatprep.mubr.bf16.mxu0 0
      %1202 = vmatmul.mubr.bf16.gmra.mrb[0].mxu0 %v1164
      %v1203 = vpop.f32.mrb[0].mxu0
      %v1204 = vadd.f32 %v886, %v1203
      %v1205 = vpop.f32.mrb[0].mxu0
      %v1206 = vpop.f32.mrb[0].mxu0
      %v1207 = vpop.f32.mrb[0].mxu0
      %1208 = vdwg.mxu0
      %v1210 = vsel %vm704, %v869, 0
      %v1213 = vsel %vm704, %v877, 0
      %1215 = vmatprep.subr.bf16.mxu0 0
      %1216 = vmatpush1.bf16.xpose.msra.mxu0 %v1213
      %1217 = vmatprep.subr.bf16.mxu0 0
      %1218 = vmatpush1.bf16.xpose.msra.mxu0 0
      %1219 = vmatprep.subr.bf16.mxu0 0
      %1220 = vmatpush1.bf16.xpose.msra.mxu0 0
      %1221 = vmatprep.subr.bf16.mxu0 0
      %1222 = vmatpush1.bf16.xpose.msra.mxu0 0
      %1223 = vmatprep.subr.bf16.mxu0 0
      %1224 = vmatpush1.bf16.xpose.msra.mxu0 0
      %1225 = vmatprep.subr.bf16.mxu0 0
      %1226 = vmatpush1.bf16.xpose.msra.mxu0 0
      %1227 = vmatprep.subr.bf16.mxu0 0
      %1228 = vmatpush1.bf16.xpose.msra.mxu0 0
      %1229 = vmatprep.subr.bf16.mxu0 0
      %1230 = vmatpush1.bf16.xpose.msra.mxu0 0
      %1231 = vmatprep.subr.bf16.mxu0 0
      %1232 = vmatpush1.bf16.xpose.msra.mxu0 0
      %1233 = vmatprep.subr.bf16.mxu0 0
      %1234 = vmatpush1.bf16.xpose.msra.mxu0 0
      %1235 = vmatprep.subr.bf16.mxu0 0
      %1236 = vmatpush1.bf16.xpose.msra.mxu0 0
      %1237 = vmatprep.subr.bf16.mxu0 0
      %1238 = vmatpush1.bf16.xpose.msra.mxu0 0
      %1239 = vmatprep.subr.bf16.mxu0 0
      %1240 = vmatpush1.bf16.xpose.msra.mxu0 0
      %1241 = vmatprep.subr.bf16.mxu0 0
      %1242 = vmatpush1.bf16.xpose.msra.mxu0 0
      %1243 = vmatprep.subr.bf16.mxu0 0
      %1244 = vmatpush1.bf16.xpose.msra.mxu0 0
      %1245 = vmatprep.subr.bf16.mxu0 0
      %1246 = vmatpush1.bf16.xpose.msra.mxu0 0
      %1247 = vmatprep.mubr.bf16.mxu0 0
      %1248 = vmatmul.mubr.bf16.gmra.mrb[0].mxu0 %v1210
      %v1249 = vpop.f32.mrb[0].mxu0
      %v1250 = vadd.f32 %v886, %v1249
      %v1251 = vpop.f32.mrb[0].mxu0
      %v1252 = vpop.f32.mrb[0].mxu0
      %v1253 = vpop.f32.mrb[0].mxu0
      %1254 = vdwg.mxu0
      %vm1255 = vcmask 64512
      %v1256 = vsel %vm1255, %v928, -inf
      %1257 = vmax.xlane.f32.xlu0 %v1256
      %v1258 = vpop.xlane.xlu0 %1257
      %v1259 = vsel %vm1255, %v974, -inf
      %1260 = vmax.xlane.f32.xlu0 %v1259
      %v1261 = vpop.xlane.xlu0 %1260
      %v1262 = vsel %vm1255, %v1020, -inf
      %1263 = vmax.xlane.f32.xlu0 %v1262
      %v1264 = vpop.xlane.xlu0 %1263
      %v1265 = vsel %vm1255, %v1066, -inf
      %1266 = vmax.xlane.f32.xlu0 %v1265
      %v1267 = vpop.xlane.xlu0 %1266
      %v1268 = vsel %vm1255, %v1112, -inf
      %1269 = vmax.xlane.f32.xlu0 %v1268
      %v1270 = vpop.xlane.xlu0 %1269
      %v1271 = vsel %vm1255, %v1158, -inf
      %1272 = vmax.xlane.f32.xlu0 %v1271
      %v1273 = vpop.xlane.xlu0 %1272
      %v1274 = vsel %vm1255, %v1204, -inf
      %1275 = vmax.xlane.f32.xlu0 %v1274
      %v1276 = vpop.xlane.xlu0 %1275
      %v1277 = vsel %vm1255, %v1250, -inf
      %1278 = vmax.xlane.f32.xlu0 %v1277
      %v1279 = vpop.xlane.xlu0 %1278
      %v1280 = vsub.f32 %v928, %v1258
      %v1281 = vsub.f32 %v974, %v1261
      %v1282 = vsub.f32 %v1020, %v1264
      %v1283 = vsub.f32 %v1066, %v1267
      %v1284 = vsub.f32 %v1112, %v1270
      %v1285 = vsub.f32 %v1158, %v1273
      %v1286 = vsub.f32 %v1204, %v1276
      %v1287 = vsub.f32 %v1250, %v1279
      %v1288 = vmul.f32 %v1280, 1.442695
      %v1289 = vpow.pop %v1288
      %v1290 = vmul.f32 %v1281, 1.442695
      %v1291 = vpow.pop %v1290
      %v1292 = vmul.f32 %v1282, 1.442695
      %v1293 = vpow.pop %v1292
      %v1294 = vmul.f32 %v1283, 1.442695
      %v1295 = vpow.pop %v1294
      %v1296 = vmul.f32 %v1284, 1.442695
      %v1297 = vpow.pop %v1296
      %v1298 = vmul.f32 %v1285, 1.442695
      %v1299 = vpow.pop %v1298
      %v1300 = vmul.f32 %v1286, 1.442695
      %v1301 = vpow.pop %v1300
      %v1302 = vmul.f32 %v1287, 1.442695
      %v1303 = vpow.pop %v1302
      %v1304 = vsel %vm1255, %v1289, 0.0
      %1305 = vadd.xlane.f32.xlu0 %v1304
      %v1306 = vpop.xlane.xlu0 %1305
      %v1307 = vsel %vm1255, %v1291, 0.0
      %1308 = vadd.xlane.f32.xlu0 %v1307
      %v1309 = vpop.xlane.xlu0 %1308
      %v1310 = vsel %vm1255, %v1293, 0.0
      %1311 = vadd.xlane.f32.xlu0 %v1310
      %v1312 = vpop.xlane.xlu0 %1311
      %v1313 = vsel %vm1255, %v1295, 0.0
      %1314 = vadd.xlane.f32.xlu0 %v1313
      %v1315 = vpop.xlane.xlu0 %1314
      %v1316 = vsel %vm1255, %v1297, 0.0
      %1317 = vadd.xlane.f32.xlu0 %v1316
      %v1318 = vpop.xlane.xlu0 %1317
      %v1319 = vsel %vm1255, %v1299, 0.0
      %1320 = vadd.xlane.f32.xlu0 %v1319
      %v1321 = vpop.xlane.xlu0 %1320
      %v1322 = vsel %vm1255, %v1301, 0.0
      %1323 = vadd.xlane.f32.xlu0 %v1322
      %v1324 = vpop.xlane.xlu0 %1323
      %v1325 = vsel %vm1255, %v1303, 0.0
      %1326 = vadd.xlane.f32.xlu0 %v1325
      %v1327 = vpop.xlane.xlu0 %1326
      %v1328 = vrcp.pop %v1306
      %v1329 = vrcp.pop %v1309
      %v1330 = vrcp.pop %v1312
      %v1331 = vrcp.pop %v1315
      %v1332 = vrcp.pop %v1318
      %v1333 = vrcp.pop %v1321
      %v1334 = vrcp.pop %v1324
      %v1335 = vrcp.pop %v1327
      %v1336 = vmul.f32 %v1289, %v1328
      %v1337 = vmul.f32 %v1291, %v1329
      %v1338 = vmul.f32 %v1293, %v1330
      %v1339 = vmul.f32 %v1295, %v1331
      %v1340 = vmul.f32 %v1297, %v1332
      %v1341 = vmul.f32 %v1299, %v1333
      %v1342 = vmul.f32 %v1301, %v1334
      %v1343 = vmul.f32 %v1303, %v1335
      %v1344 = vpack.c.bf16 %v1336, %v1336
      %v1345 = vpack.c.bf16 %v1337, %v1337
      %v1346 = vpack.c.bf16 %v1338, %v1338
      %v1347 = vpack.c.bf16 %v1339, %v1339
      %v1348 = vpack.c.bf16 %v1340, %v1340
      %v1349 = vpack.c.bf16 %v1341, %v1341
      %v1350 = vpack.c.bf16 %v1342, %v1342
      %v1351 = vpack.c.bf16 %v1343, %v1343
      %v1353 = vsel %vm1255, %v1344, 0
      %vm1355 = vcmask 1043456
      %v1357 = vsel %vm1355, %v878, 0
      %1359 = vmatprep.subr.bf16.mxu0 0
      %1360 = vmatpush1.bf16.msra.mxu0 %v1357
      %1361 = vmatprep.subr.bf16.mxu0 0
      %1362 = vmatpush1.bf16.msra.mxu0 0
      %1363 = vmatprep.subr.bf16.mxu0 0
      %1364 = vmatpush1.bf16.msra.mxu0 0
      %1365 = vmatprep.subr.bf16.mxu0 0
      %1366 = vmatpush1.bf16.msra.mxu0 0
      %1367 = vmatprep.subr.bf16.mxu0 0
      %1368 = vmatpush1.bf16.msra.mxu0 0
      %1369 = vmatprep.subr.bf16.mxu0 0
      %1370 = vmatpush1.bf16.msra.mxu0 0
      %1371 = vmatprep.subr.bf16.mxu0 0
      %1372 = vmatpush1.bf16.msra.mxu0 0
      %1373 = vmatprep.subr.bf16.mxu0 0
      %1374 = vmatpush1.bf16.msra.mxu0 0
      %1375 = vmatprep.subr.bf16.mxu0 0
      %1376 = vmatpush1.bf16.msra.mxu0 0
      %1377 = vmatprep.subr.bf16.mxu0 0
      %1378 = vmatpush1.bf16.msra.mxu0 0
      %1379 = vmatprep.subr.bf16.mxu0 0
      %1380 = vmatpush1.bf16.msra.mxu0 0
      %1381 = vmatprep.subr.bf16.mxu0 0
      %1382 = vmatpush1.bf16.msra.mxu0 0
      %1383 = vmatprep.subr.bf16.mxu0 0
      %1384 = vmatpush1.bf16.msra.mxu0 0
      %1385 = vmatprep.subr.bf16.mxu0 0
      %1386 = vmatpush1.bf16.msra.mxu0 0
      %1387 = vmatprep.subr.bf16.mxu0 0
      %1388 = vmatpush1.bf16.msra.mxu0 0
      %1389 = vmatprep.subr.bf16.mxu0 0
      %1390 = vmatpush1.bf16.msra.mxu0 0
      %1391 = vmatprep.mubr.bf16.mxu0 0
      %1392 = vmatmul.mubr.bf16.gmra.mrb[0].mxu0 %v1353
      %v1393 = vpop.f32.mrb[0].mxu0
      %v1394 = vadd.f32 0.0, %v1393
      %v1395 = vpop.f32.mrb[0].mxu0
      %v1396 = vpop.f32.mrb[0].mxu0
      %v1397 = vpop.f32.mrb[0].mxu0
      %1398 = vdwg.mxu0
      %v1400 = vsel %vm1255, %v1345, 0
      %v1403 = vsel %vm1355, %v879, 0
      %1405 = vmatprep.subr.bf16.mxu0 0
      %1406 = vmatpush1.bf16.msra.mxu0 %v1403
      %1407 = vmatprep.subr.bf16.mxu0 0
      %1408 = vmatpush1.bf16.msra.mxu0 0
      %1409 = vmatprep.subr.bf16.mxu0 0
      %1410 = vmatpush1.bf16.msra.mxu0 0
      %1411 = vmatprep.subr.bf16.mxu0 0
      %1412 = vmatpush1.bf16.msra.mxu0 0
      %1413 = vmatprep.subr.bf16.mxu0 0
      %1414 = vmatpush1.bf16.msra.mxu0 0
      %1415 = vmatprep.subr.bf16.mxu0 0
      %1416 = vmatpush1.bf16.msra.mxu0 0
      %1417 = vmatprep.subr.bf16.mxu0 0
      %1418 = vmatpush1.bf16.msra.mxu0 0
      %1419 = vmatprep.subr.bf16.mxu0 0
      %1420 = vmatpush1.bf16.msra.mxu0 0
      %1421 = vmatprep.subr.bf16.mxu0 0
      %1422 = vmatpush1.bf16.msra.mxu0 0
      %1423 = vmatprep.subr.bf16.mxu0 0
      %1424 = vmatpush1.bf16.msra.mxu0 0
      %1425 = vmatprep.subr.bf16.mxu0 0
      %1426 = vmatpush1.bf16.msra.mxu0 0
      %1427 = vmatprep.subr.bf16.mxu0 0
      %1428 = vmatpush1.bf16.msra.mxu0 0
      %1429 = vmatprep.subr.bf16.mxu0 0
      %1430 = vmatpush1.bf16.msra.mxu0 0
      %1431 = vmatprep.subr.bf16.mxu0 0
      %1432 = vmatpush1.bf16.msra.mxu0 0
      %1433 = vmatprep.subr.bf16.mxu0 0
      %1434 = vmatpush1.bf16.msra.mxu0 0
      %1435 = vmatprep.subr.bf16.mxu0 0
      %1436 = vmatpush1.bf16.msra.mxu0 0
      %1437 = vmatprep.mubr.bf16.mxu0 0
      %1438 = vmatmul.mubr.bf16.gmra.mrb[0].mxu0 %v1400
      %v1439 = vpop.f32.mrb[0].mxu0
      %v1440 = vadd.f32 0.0, %v1439
      %v1441 = vpop.f32.mrb[0].mxu0
      %v1442 = vpop.f32.mrb[0].mxu0
      %v1443 = vpop.f32.mrb[0].mxu0
      %1444 = vdwg.mxu0
      %v1446 = vsel %vm1255, %v1346, 0
      %v1449 = vsel %vm1355, %v880, 0
      %1451 = vmatprep.subr.bf16.mxu0 0
      %1452 = vmatpush1.bf16.msra.mxu0 %v1449
      %1453 = vmatprep.subr.bf16.mxu0 0
      %1454 = vmatpush1.bf16.msra.mxu0 0
      %1455 = vmatprep.subr.bf16.mxu0 0
      %1456 = vmatpush1.bf16.msra.mxu0 0
      %1457 = vmatprep.subr.bf16.mxu0 0
      %1458 = vmatpush1.bf16.msra.mxu0 0
      %1459 = vmatprep.subr.bf16.mxu0 0
      %1460 = vmatpush1.bf16.msra.mxu0 0
      %1461 = vmatprep.subr.bf16.mxu0 0
      %1462 = vmatpush1.bf16.msra.mxu0 0
      %1463 = vmatprep.subr.bf16.mxu0 0
      %1464 = vmatpush1.bf16.msra.mxu0 0
      %1465 = vmatprep.subr.bf16.mxu0 0
      %1466 = vmatpush1.bf16.msra.mxu0 0
      %1467 = vmatprep.subr.bf16.mxu0 0
      %1468 = vmatpush1.bf16.msra.mxu0 0
      %1469 = vmatprep.subr.bf16.mxu0 0
      %1470 = vmatpush1.bf16.msra.mxu0 0
      %1471 = vmatprep.subr.bf16.mxu0 0
      %1472 = vmatpush1.bf16.msra.mxu0 0
      %1473 = vmatprep.subr.bf16.mxu0 0
      %1474 = vmatpush1.bf16.msra.mxu0 0
      %1475 = vmatprep.subr.bf16.mxu0 0
      %1476 = vmatpush1.bf16.msra.mxu0 0
      %1477 = vmatprep.subr.bf16.mxu0 0
      %1478 = vmatpush1.bf16.msra.mxu0 0
      %1479 = vmatprep.subr.bf16.mxu0 0
      %1480 = vmatpush1.bf16.msra.mxu0 0
      %1481 = vmatprep.subr.bf16.mxu0 0
      %1482 = vmatpush1.bf16.msra.mxu0 0
      %1483 = vmatprep.mubr.bf16.mxu0 0
      %1484 = vmatmul.mubr.bf16.gmra.mrb[0].mxu0 %v1446
      %v1485 = vpop.f32.mrb[0].mxu0
      %v1486 = vadd.f32 0.0, %v1485
      %v1487 = vpop.f32.mrb[0].mxu0
      %v1488 = vpop.f32.mrb[0].mxu0
      %v1489 = vpop.f32.mrb[0].mxu0
      %1490 = vdwg.mxu0
      %v1492 = vsel %vm1255, %v1347, 0
      %v1495 = vsel %vm1355, %v881, 0
      %1497 = vmatprep.subr.bf16.mxu0 0
      %1498 = vmatpush1.bf16.msra.mxu0 %v1495
      %1499 = vmatprep.subr.bf16.mxu0 0
      %1500 = vmatpush1.bf16.msra.mxu0 0
      %1501 = vmatprep.subr.bf16.mxu0 0
      %1502 = vmatpush1.bf16.msra.mxu0 0
      %1503 = vmatprep.subr.bf16.mxu0 0
      %1504 = vmatpush1.bf16.msra.mxu0 0
      %1505 = vmatprep.subr.bf16.mxu0 0
      %1506 = vmatpush1.bf16.msra.mxu0 0
      %1507 = vmatprep.subr.bf16.mxu0 0
      %1508 = vmatpush1.bf16.msra.mxu0 0
      %1509 = vmatprep.subr.bf16.mxu0 0
      %1510 = vmatpush1.bf16.msra.mxu0 0
      %1511 = vmatprep.subr.bf16.mxu0 0
      %1512 = vmatpush1.bf16.msra.mxu0 0
      %1513 = vmatprep.subr.bf16.mxu0 0
      %1514 = vmatpush1.bf16.msra.mxu0 0
      %1515 = vmatprep.subr.bf16.mxu0 0
      %1516 = vmatpush1.bf16.msra.mxu0 0
      %1517 = vmatprep.subr.bf16.mxu0 0
      %1518 = vmatpush1.bf16.msra.mxu0 0
      %1519 = vmatprep.subr.bf16.mxu0 0
      %1520 = vmatpush1.bf16.msra.mxu0 0
      %1521 = vmatprep.subr.bf16.mxu0 0
      %1522 = vmatpush1.bf16.msra.mxu0 0
      %1523 = vmatprep.subr.bf16.mxu0 0
      %1524 = vmatpush1.bf16.msra.mxu0 0
      %1525 = vmatprep.subr.bf16.mxu0 0
      %1526 = vmatpush1.bf16.msra.mxu0 0
      %1527 = vmatprep.subr.bf16.mxu0 0
      %1528 = vmatpush1.bf16.msra.mxu0 0
      %1529 = vmatprep.mubr.bf16.mxu0 0
      %1530 = vmatmul.mubr.bf16.gmra.mrb[0].mxu0 %v1492
      %v1531 = vpop.f32.mrb[0].mxu0
      %v1532 = vadd.f32 0.0, %v1531
      %v1533 = vpop.f32.mrb[0].mxu0
      %v1534 = vpop.f32.mrb[0].mxu0
      %v1535 = vpop.f32.mrb[0].mxu0
      %1536 = vdwg.mxu0
      %v1538 = vsel %vm1255, %v1348, 0
      %v1541 = vsel %vm1355, %v882, 0
      %1543 = vmatprep.subr.bf16.mxu0 0
      %1544 = vmatpush1.bf16.msra.mxu0 %v1541
      %1545 = vmatprep.subr.bf16.mxu0 0
      %1546 = vmatpush1.bf16.msra.mxu0 0
      %1547 = vmatprep.subr.bf16.mxu0 0
      %1548 = vmatpush1.bf16.msra.mxu0 0
      %1549 = vmatprep.subr.bf16.mxu0 0
      %1550 = vmatpush1.bf16.msra.mxu0 0
      %1551 = vmatprep.subr.bf16.mxu0 0
      %1552 = vmatpush1.bf16.msra.mxu0 0
      %1553 = vmatprep.subr.bf16.mxu0 0
      %1554 = vmatpush1.bf16.msra.mxu0 0
      %1555 = vmatprep.subr.bf16.mxu0 0
      %1556 = vmatpush1.bf16.msra.mxu0 0
      %1557 = vmatprep.subr.bf16.mxu0 0
      %1558 = vmatpush1.bf16.msra.mxu0 0
      %1559 = vmatprep.subr.bf16.mxu0 0
      %1560 = vmatpush1.bf16.msra.mxu0 0
      %1561 = vmatprep.subr.bf16.mxu0 0
      %1562 = vmatpush1.bf16.msra.mxu0 0
      %1563 = vmatprep.subr.bf16.mxu0 0
      %1564 = vmatpush1.bf16.msra.mxu0 0
      %1565 = vmatprep.subr.bf16.mxu0 0
      %1566 = vmatpush1.bf16.msra.mxu0 0
      %1567 = vmatprep.subr.bf16.mxu0 0
      %1568 = vmatpush1.bf16.msra.mxu0 0
      %1569 = vmatprep.subr.bf16.mxu0 0
      %1570 = vmatpush1.bf16.msra.mxu0 0
      %1571 = vmatprep.subr.bf16.mxu0 0
      %1572 = vmatpush1.bf16.msra.mxu0 0
      %1573 = vmatprep.subr.bf16.mxu0 0
      %1574 = vmatpush1.bf16.msra.mxu0 0
      %1575 = vmatprep.mubr.bf16.mxu0 0
      %1576 = vmatmul.mubr.bf16.gmra.mrb[0].mxu0 %v1538
      %v1577 = vpop.f32.mrb[0].mxu0
      %v1578 = vadd.f32 0.0, %v1577
      %v1579 = vpop.f32.mrb[0].mxu0
      %v1580 = vpop.f32.mrb[0].mxu0
      %v1581 = vpop.f32.mrb[0].mxu0
      %1582 = vdwg.mxu0
      %v1584 = vsel %vm1255, %v1349, 0
      %v1587 = vsel %vm1355, %v883, 0
      %1589 = vmatprep.subr.bf16.mxu0 0
      %1590 = vmatpush1.bf16.msra.mxu0 %v1587
      %1591 = vmatprep.subr.bf16.mxu0 0
      %1592 = vmatpush1.bf16.msra.mxu0 0
      %1593 = vmatprep.subr.bf16.mxu0 0
      %1594 = vmatpush1.bf16.msra.mxu0 0
      %1595 = vmatprep.subr.bf16.mxu0 0
      %1596 = vmatpush1.bf16.msra.mxu0 0
      %1597 = vmatprep.subr.bf16.mxu0 0
      %1598 = vmatpush1.bf16.msra.mxu0 0
      %1599 = vmatprep.subr.bf16.mxu0 0
      %1600 = vmatpush1.bf16.msra.mxu0 0
      %1601 = vmatprep.subr.bf16.mxu0 0
      %1602 = vmatpush1.bf16.msra.mxu0 0
      %1603 = vmatprep.subr.bf16.mxu0 0
      %1604 = vmatpush1.bf16.msra.mxu0 0
      %1605 = vmatprep.subr.bf16.mxu0 0
      %1606 = vmatpush1.bf16.msra.mxu0 0
      %1607 = vmatprep.subr.bf16.mxu0 0
      %1608 = vmatpush1.bf16.msra.mxu0 0
      %1609 = vmatprep.subr.bf16.mxu0 0
      %1610 = vmatpush1.bf16.msra.mxu0 0
      %1611 = vmatprep.subr.bf16.mxu0 0
      %1612 = vmatpush1.bf16.msra.mxu0 0
      %1613 = vmatprep.subr.bf16.mxu0 0
      %1614 = vmatpush1.bf16.msra.mxu0 0
      %1615 = vmatprep.subr.bf16.mxu0 0
      %1616 = vmatpush1.bf16.msra.mxu0 0
      %1617 = vmatprep.subr.bf16.mxu0 0
      %1618 = vmatpush1.bf16.msra.mxu0 0
      %1619 = vmatprep.subr.bf16.mxu0 0
      %1620 = vmatpush1.bf16.msra.mxu0 0
      %1621 = vmatprep.mubr.bf16.mxu0 0
      %1622 = vmatmul.mubr.bf16.gmra.mrb[0].mxu0 %v1584
      %v1623 = vpop.f32.mrb[0].mxu0
      %v1624 = vadd.f32 0.0, %v1623
      %v1625 = vpop.f32.mrb[0].mxu0
      %v1626 = vpop.f32.mrb[0].mxu0
      %v1627 = vpop.f32.mrb[0].mxu0
      %1628 = vdwg.mxu0
      %v1630 = vsel %vm1255, %v1350, 0
      %v1633 = vsel %vm1355, %v884, 0
      %1635 = vmatprep.subr.bf16.mxu0 0
      %1636 = vmatpush1.bf16.msra.mxu0 %v1633
      %1637 = vmatprep.subr.bf16.mxu0 0
      %1638 = vmatpush1.bf16.msra.mxu0 0
      %1639 = vmatprep.subr.bf16.mxu0 0
      %1640 = vmatpush1.bf16.msra.mxu0 0
      %1641 = vmatprep.subr.bf16.mxu0 0
      %1642 = vmatpush1.bf16.msra.mxu0 0
      %1643 = vmatprep.subr.bf16.mxu0 0
      %1644 = vmatpush1.bf16.msra.mxu0 0
      %1645 = vmatprep.subr.bf16.mxu0 0
      %1646 = vmatpush1.bf16.msra.mxu0 0
      %1647 = vmatprep.subr.bf16.mxu0 0
      %1648 = vmatpush1.bf16.msra.mxu0 0
      %1649 = vmatprep.subr.bf16.mxu0 0
      %1650 = vmatpush1.bf16.msra.mxu0 0
      %1651 = vmatprep.subr.bf16.mxu0 0
      %1652 = vmatpush1.bf16.msra.mxu0 0
      %1653 = vmatprep.subr.bf16.mxu0 0
      %1654 = vmatpush1.bf16.msra.mxu0 0
      %1655 = vmatprep.subr.bf16.mxu0 0
      %1656 = vmatpush1.bf16.msra.mxu0 0
      %1657 = vmatprep.subr.bf16.mxu0 0
      %1658 = vmatpush1.bf16.msra.mxu0 0
      %1659 = vmatprep.subr.bf16.mxu0 0
      %1660 = vmatpush1.bf16.msra.mxu0 0
      %1661 = vmatprep.subr.bf16.mxu0 0
      %1662 = vmatpush1.bf16.msra.mxu0 0
      %1663 = vmatprep.subr.bf16.mxu0 0
      %1664 = vmatpush1.bf16.msra.mxu0 0
      %1665 = vmatprep.subr.bf16.mxu0 0
      %1666 = vmatpush1.bf16.msra.mxu0 0
      %1667 = vmatprep.mubr.bf16.mxu0 0
      %1668 = vmatmul.mubr.bf16.gmra.mrb[0].mxu0 %v1630
      %v1669 = vpop.f32.mrb[0].mxu0
      %v1670 = vadd.f32 0.0, %v1669
      %v1671 = vpop.f32.mrb[0].mxu0
      %v1672 = vpop.f32.mrb[0].mxu0
      %v1673 = vpop.f32.mrb[0].mxu0
      %1674 = vdwg.mxu0
      %v1676 = vsel %vm1255, %v1351, 0
      %v1679 = vsel %vm1355, %v885, 0
      %1681 = vmatprep.subr.bf16.mxu0 0
      %1682 = vmatpush1.bf16.msra.mxu0 %v1679
      %1683 = vmatprep.subr.bf16.mxu0 0
      %1684 = vmatpush1.bf16.msra.mxu0 0
      %1685 = vmatprep.subr.bf16.mxu0 0
      %1686 = vmatpush1.bf16.msra.mxu0 0
      %1687 = vmatprep.subr.bf16.mxu0 0
      %1688 = vmatpush1.bf16.msra.mxu0 0
      %1689 = vmatprep.subr.bf16.mxu0 0
      %1690 = vmatpush1.bf16.msra.mxu0 0
      %1691 = vmatprep.subr.bf16.mxu0 0
      %1692 = vmatpush1.bf16.msra.mxu0 0
      %1693 = vmatprep.subr.bf16.mxu0 0
      %1694 = vmatpush1.bf16.msra.mxu0 0
      %1695 = vmatprep.subr.bf16.mxu0 0
      %1696 = vmatpush1.bf16.msra.mxu0 0
      %1697 = vmatprep.subr.bf16.mxu0 0
      %1698 = vmatpush1.bf16.msra.mxu0 0
      %1699 = vmatprep.subr.bf16.mxu0 0
      %1700 = vmatpush1.bf16.msra.mxu0 0
      %1701 = vmatprep.subr.bf16.mxu0 0
      %1702 = vmatpush1.bf16.msra.mxu0 0
      %1703 = vmatprep.subr.bf16.mxu0 0
      %1704 = vmatpush1.bf16.msra.mxu0 0
      %1705 = vmatprep.subr.bf16.mxu0 0
      %1706 = vmatpush1.bf16.msra.mxu0 0
      %1707 = vmatprep.subr.bf16.mxu0 0
      %1708 = vmatpush1.bf16.msra.mxu0 0
      %1709 = vmatprep.subr.bf16.mxu0 0
      %1710 = vmatpush1.bf16.msra.mxu0 0
      %1711 = vmatprep.subr.bf16.mxu0 0
      %1712 = vmatpush1.bf16.msra.mxu0 0
      %1713 = vmatprep.mubr.bf16.mxu0 0
      %1714 = vmatmul.mubr.bf16.gmra.mrb[0].mxu0 %v1676
      %v1715 = vpop.f32.mrb[0].mxu0
      %v1716 = vadd.f32 0.0, %v1715
      %v1717 = vpop.f32.mrb[0].mxu0
      %v1718 = vpop.f32.mrb[0].mxu0
      %v1719 = vpop.f32.mrb[0].mxu0
      %1720 = vdwg.mxu0
      %v1721 = vpack.c.bf16 %v1440, %v1394
      %v1722 = vpack.c.bf16 %v1532, %v1486
      %v1723 = vpack.c.bf16 %v1624, %v1578
      %v1724 = vpack.c.bf16 %v1716, %v1670
      %v1725 = vld [vmem:[%s9] sm:$0xf]
      %v1726 = vld [vmem:[%s9 + $0x4] sm:$0xf]
      %1735 = vrot.lane.b32.xlu0 %v696, 112
      %v1736 = vpop.permute.xlu0 %1735
      %1737 = vrot.lane.b32.xlu0 %v697, 112
      %v1738 = vpop.permute.xlu0 %1737
      %1739 = vrot.lane.b32.xlu0 %v698, 112
      %v1740 = vpop.permute.xlu0 %1739
      %1741 = vrot.lane.b32.xlu0 %v699, 112
      %v1742 = vpop.permute.xlu0 %1741
      %1743 = vrot.lane.b32.xlu0 %v700, 112
      %v1744 = vpop.permute.xlu0 %1743
      %1745 = vrot.lane.b32.xlu0 %v701, 112
      %v1746 = vpop.permute.xlu0 %1745
      %1747 = vrot.lane.b32.xlu0 %v702, 112
      %v1748 = vpop.permute.xlu0 %1747
      %1749 = vrot.lane.b32.xlu0 %v703, 112
      %v1750 = vpop.permute.xlu0 %1749
      %v1759 = vsel %vm704, %v1736, 0.0
      %1760 = vadd.xlane.f32.xlu0 %v1759
      %v1761 = vpop.xlane.xlu0 %1760
      %v1762 = vsel %vm704, %v1738, 0.0
      %1763 = vadd.xlane.f32.xlu0 %v1762
      %v1764 = vpop.xlane.xlu0 %1763
      %v1765 = vsel %vm704, %v1740, 0.0
      %1766 = vadd.xlane.f32.xlu0 %v1765
      %v1767 = vpop.xlane.xlu0 %1766
      %v1768 = vsel %vm704, %v1742, 0.0
      %1769 = vadd.xlane.f32.xlu0 %v1768
      %v1770 = vpop.xlane.xlu0 %1769
      %v1771 = vsel %vm704, %v1744, 0.0
      %1772 = vadd.xlane.f32.xlu0 %v1771
      %v1773 = vpop.xlane.xlu0 %1772
      %v1774 = vsel %vm704, %v1746, 0.0
      %1775 = vadd.xlane.f32.xlu0 %v1774
      %v1776 = vpop.xlane.xlu0 %1775
      %v1777 = vsel %vm704, %v1748, 0.0
      %1778 = vadd.xlane.f32.xlu0 %v1777
      %v1779 = vpop.xlane.xlu0 %1778
      %v1780 = vsel %vm704, %v1750, 0.0
      %1781 = vadd.xlane.f32.xlu0 %v1780
      %v1782 = vpop.xlane.xlu0 %1781
      %v1783 = vrsqrt.pop %v1761
      %v1784 = vrsqrt.pop %v1764
      %v1785 = vrsqrt.pop %v1767
      %v1786 = vrsqrt.pop %v1770
      %v1787 = vrsqrt.pop %v1773
      %v1788 = vrsqrt.pop %v1776
      %v1789 = vrsqrt.pop %v1779
      %v1790 = vrsqrt.pop %v1782
      %v1791 = vmin.f32 %v1783, 1e+12
      %v1792 = vmin.f32 %v1784, 1e+12
      %v1793 = vmin.f32 %v1785, 1e+12
      %v1794 = vmin.f32 %v1786, 1e+12
      %v1795 = vmin.f32 %v1787, 1e+12
      %v1796 = vmin.f32 %v1788, 1e+12
      %v1797 = vmin.f32 %v1789, 1e+12
      %v1798 = vmin.f32 %v1790, 1e+12
      %1807 = vrot.lane.b32.xlu0 %v745, 112
      %v1808 = vpop.permute.xlu0 %1807
      %1809 = vrot.lane.b32.xlu0 %v746, 112
      %v1810 = vpop.permute.xlu0 %1809
      %1811 = vrot.lane.b32.xlu0 %v747, 112
      %v1812 = vpop.permute.xlu0 %1811
      %1813 = vrot.lane.b32.xlu0 %v748, 112
      %v1814 = vpop.permute.xlu0 %1813
      %1815 = vrot.lane.b32.xlu0 %v749, 112
      %v1816 = vpop.permute.xlu0 %1815
      %1817 = vrot.lane.b32.xlu0 %v750, 112
      %v1818 = vpop.permute.xlu0 %1817
      %1819 = vrot.lane.b32.xlu0 %v751, 112
      %v1820 = vpop.permute.xlu0 %1819
      %1821 = vrot.lane.b32.xlu0 %v752, 112
      %v1822 = vpop.permute.xlu0 %1821
      %v1831 = vsel %vm704, %v1808, 0.0
      %1832 = vadd.xlane.f32.xlu0 %v1831
      %v1833 = vpop.xlane.xlu0 %1832
      %v1834 = vsel %vm704, %v1810, 0.0
      %1835 = vadd.xlane.f32.xlu0 %v1834
      %v1836 = vpop.xlane.xlu0 %1835
      %v1837 = vsel %vm704, %v1812, 0.0
      %1838 = vadd.xlane.f32.xlu0 %v1837
      %v1839 = vpop.xlane.xlu0 %1838
      %v1840 = vsel %vm704, %v1814, 0.0
      %1841 = vadd.xlane.f32.xlu0 %v1840
      %v1842 = vpop.xlane.xlu0 %1841
      %v1843 = vsel %vm704, %v1816, 0.0
      %1844 = vadd.xlane.f32.xlu0 %v1843
      %v1845 = vpop.xlane.xlu0 %1844
      %v1846 = vsel %vm704, %v1818, 0.0
      %1847 = vadd.xlane.f32.xlu0 %v1846
      %v1848 = vpop.xlane.xlu0 %1847
      %v1849 = vsel %vm704, %v1820, 0.0
      %1850 = vadd.xlane.f32.xlu0 %v1849
      %v1851 = vpop.xlane.xlu0 %1850
      %v1852 = vsel %vm704, %v1822, 0.0
      %1853 = vadd.xlane.f32.xlu0 %v1852
      %v1854 = vpop.xlane.xlu0 %1853
      %v1855 = vrsqrt.pop %v1833
      %v1856 = vrsqrt.pop %v1836
      %v1857 = vrsqrt.pop %v1839
      %v1858 = vrsqrt.pop %v1842
      %v1859 = vrsqrt.pop %v1845
      %v1860 = vrsqrt.pop %v1848
      %v1861 = vrsqrt.pop %v1851
      %v1862 = vrsqrt.pop %v1854
      %v1863 = vmin.f32 %v1855, 1e+12
      %v1864 = vmin.f32 %v1856, 1e+12
      %v1865 = vmin.f32 %v1857, 1e+12
      %v1866 = vmin.f32 %v1858, 1e+12
      %v1867 = vmin.f32 %v1859, 1e+12
      %v1868 = vmin.f32 %v1860, 1e+12
      %v1869 = vmin.f32 %v1861, 1e+12
      %v1870 = vmin.f32 %v1862, 1e+12
      %v1871 = vld [vmem:[%s7 + $0x1] sm:$0x1]
      %v1872 = vlaneseq
      %v1873 = vshrl.u32 %v1872, 7
      %v1874 = vsub.s32 0, %v1873
      %v1875 = vrot.slane %v1871, %v1874
      %v1876 = vmul.f32 %v1791, %v1875
      %v1877 = vmul.f32 %v1792, %v1875
      %v1878 = vmul.f32 %v1793, %v1875
      %v1879 = vmul.f32 %v1794, %v1875
      %v1880 = vmul.f32 %v1795, %v1875
      %v1881 = vmul.f32 %v1796, %v1875
      %v1882 = vmul.f32 %v1797, %v1875
      %v1883 = vmul.f32 %v1798, %v1875
      %1885 = vset.pattern.permute.xlu0 0
      %1886 = vperm.xlu0 %1885, %v1876
      %v1887 = vpop.permute.xlu0 %1886
      %1890 = vset.pattern.permute.xlu0 0
      %1891 = vperm.xlu0 %1890, %v1877
      %v1892 = vpop.permute.xlu0 %1891
      %1895 = vset.pattern.permute.xlu0 0
      %1896 = vperm.xlu0 %1895, %v1878
      %v1897 = vpop.permute.xlu0 %1896
      %1900 = vset.pattern.permute.xlu0 0
      %1901 = vperm.xlu0 %1900, %v1879
      %v1902 = vpop.permute.xlu0 %1901
      %1905 = vset.pattern.permute.xlu0 0
      %1906 = vperm.xlu0 %1905, %v1880
      %v1907 = vpop.permute.xlu0 %1906
      %1910 = vset.pattern.permute.xlu0 0
      %1911 = vperm.xlu0 %1910, %v1881
      %v1912 = vpop.permute.xlu0 %1911
      %1915 = vset.pattern.permute.xlu0 0
      %1916 = vperm.xlu0 %1915, %v1882
      %v1917 = vpop.permute.xlu0 %1916
      %1920 = vset.pattern.permute.xlu0 0
      %1921 = vperm.xlu0 %1920, %v1883
      %v1922 = vpop.permute.xlu0 %1921
      %v1924 = vmul.f32 %v490, %v1887
      %v1925 = vmul.f32 %v493, %v1892
      %v1926 = vmul.f32 %v498, %v1897
      %v1927 = vmul.f32 %v501, %v1902
      %v1928 = vmul.f32 %v506, %v1907
      %v1929 = vmul.f32 %v509, %v1912
      %v1930 = vmul.f32 %v514, %v1917
      %v1931 = vmul.f32 %v517, %v1922
      %v1932 = vmul.f32 %v578, %v1863
      %v1933 = vmul.f32 %v581, %v1864
      %v1934 = vmul.f32 %v586, %v1865
      %v1935 = vmul.f32 %v589, %v1866
      %v1936 = vmul.f32 %v594, %v1867
      %v1937 = vmul.f32 %v597, %v1868
      %v1938 = vmul.f32 %v602, %v1869
      %v1939 = vmul.f32 %v605, %v1870
      %v1940 = vpack.c.bf16 %v1924, %v1924
      %v1941 = vpack.c.bf16 %v1925, %v1925
      %v1942 = vpack.c.bf16 %v1926, %v1926
      %v1943 = vpack.c.bf16 %v1927, %v1927
      %v1944 = vpack.c.bf16 %v1928, %v1928
      %v1945 = vpack.c.bf16 %v1929, %v1929
      %v1946 = vpack.c.bf16 %v1930, %v1930
      %v1947 = vpack.c.bf16 %v1931, %v1931
      %v1948 = vpack.c.bf16 %v1932, %v1932
      %v1949 = vpack.c.bf16 %v1933, %v1933
      %v1950 = vpack.c.bf16 %v1934, %v1934
      %v1951 = vpack.c.bf16 %v1935, %v1935
      %v1952 = vpack.c.bf16 %v1936, %v1936
      %v1953 = vpack.c.bf16 %v1937, %v1937
      %v1954 = vpack.c.bf16 %v1938, %v1938
      %v1955 = vpack.c.bf16 %v1939, %v1939
      %s1956 = scalar_lea.vmem %s8, 8
      %v1957 = vld [vmem:[%s1956] sm:$0xff]
      %1959 = vrot.lane.b32.xlu0 %v1940, 112
      %v1960 = vpop.permute.xlu0 %1959
      %1962 = vrot.lane.b32.xlu0 %v1948, 112
      %v1963 = vpop.permute.xlu0 %1962
      %v1965 = vsel %vm704, %v1960, 0
      %v1968 = vsel %vm704, %v1963, 0
      %1970 = vmatprep.subr.bf16.mxu0 0
      %1971 = vmatpush1.bf16.xpose.msra.mxu0 %v1968
      %1972 = vmatprep.subr.bf16.mxu0 0
      %1973 = vmatpush1.bf16.xpose.msra.mxu0 0
      %1974 = vmatprep.subr.bf16.mxu0 0
      %1975 = vmatpush1.bf16.xpose.msra.mxu0 0
      %1976 = vmatprep.subr.bf16.mxu0 0
      %1977 = vmatpush1.bf16.xpose.msra.mxu0 0
      %1978 = vmatprep.subr.bf16.mxu0 0
      %1979 = vmatpush1.bf16.xpose.msra.mxu0 0
      %1980 = vmatprep.subr.bf16.mxu0 0
      %1981 = vmatpush1.bf16.xpose.msra.mxu0 0
      %1982 = vmatprep.subr.bf16.mxu0 0
      %1983 = vmatpush1.bf16.xpose.msra.mxu0 0
      %1984 = vmatprep.subr.bf16.mxu0 0
      %1985 = vmatpush1.bf16.xpose.msra.mxu0 0
      %1986 = vmatprep.subr.bf16.mxu0 0
      %1987 = vmatpush1.bf16.xpose.msra.mxu0 0
      %1988 = vmatprep.subr.bf16.mxu0 0
      %1989 = vmatpush1.bf16.xpose.msra.mxu0 0
      %1990 = vmatprep.subr.bf16.mxu0 0
      %1991 = vmatpush1.bf16.xpose.msra.mxu0 0
      %1992 = vmatprep.subr.bf16.mxu0 0
      %1993 = vmatpush1.bf16.xpose.msra.mxu0 0
      %1994 = vmatprep.subr.bf16.mxu0 0
      %1995 = vmatpush1.bf16.xpose.msra.mxu0 0
      %1996 = vmatprep.subr.bf16.mxu0 0
      %1997 = vmatpush1.bf16.xpose.msra.mxu0 0
      %1998 = vmatprep.subr.bf16.mxu0 0
      %1999 = vmatpush1.bf16.xpose.msra.mxu0 0
      %2000 = vmatprep.subr.bf16.mxu0 0
      %2001 = vmatpush1.bf16.xpose.msra.mxu0 0
      %2002 = vmatprep.mubr.bf16.mxu0 0
      %2003 = vmatmul.mubr.bf16.gmra.mrb[0].mxu0 %v1965
      %v2004 = vpop.f32.mrb[0].mxu0
      %v2005 = vadd.f32 %v1957, %v2004
      %v2006 = vpop.f32.mrb[0].mxu0
      %v2007 = vpop.f32.mrb[0].mxu0
      %v2008 = vpop.f32.mrb[0].mxu0
      %2009 = vdwg.mxu0
      %2011 = vrot.lane.b32.xlu0 %v1941, 112
      %v2012 = vpop.permute.xlu0 %2011
      %2014 = vrot.lane.b32.xlu0 %v1949, 112
      %v2015 = vpop.permute.xlu0 %2014
      %v2017 = vsel %vm704, %v2012, 0
      %v2020 = vsel %vm704, %v2015, 0
      %2022 = vmatprep.subr.bf16.mxu0 0
      %2023 = vmatpush1.bf16.xpose.msra.mxu0 %v2020
      %2024 = vmatprep.subr.bf16.mxu0 0
      %2025 = vmatpush1.bf16.xpose.msra.mxu0 0
      %2026 = vmatprep.subr.bf16.mxu0 0
      %2027 = vmatpush1.bf16.xpose.msra.mxu0 0
      %2028 = vmatprep.subr.bf16.mxu0 0
      %2029 = vmatpush1.bf16.xpose.msra.mxu0 0
      %2030 = vmatprep.subr.bf16.mxu0 0
      %2031 = vmatpush1.bf16.xpose.msra.mxu0 0
      %2032 = vmatprep.subr.bf16.mxu0 0
      %2033 = vmatpush1.bf16.xpose.msra.mxu0 0
      %2034 = vmatprep.subr.bf16.mxu0 0
      %2035 = vmatpush1.bf16.xpose.msra.mxu0 0
      %2036 = vmatprep.subr.bf16.mxu0 0
      %2037 = vmatpush1.bf16.xpose.msra.mxu0 0
      %2038 = vmatprep.subr.bf16.mxu0 0
      %2039 = vmatpush1.bf16.xpose.msra.mxu0 0
      %2040 = vmatprep.subr.bf16.mxu0 0
      %2041 = vmatpush1.bf16.xpose.msra.mxu0 0
      %2042 = vmatprep.subr.bf16.mxu0 0
      %2043 = vmatpush1.bf16.xpose.msra.mxu0 0
      %2044 = vmatprep.subr.bf16.mxu0 0
      %2045 = vmatpush1.bf16.xpose.msra.mxu0 0
      %2046 = vmatprep.subr.bf16.mxu0 0
      %2047 = vmatpush1.bf16.xpose.msra.mxu0 0
      %2048 = vmatprep.subr.bf16.mxu0 0
      %2049 = vmatpush1.bf16.xpose.msra.mxu0 0
      %2050 = vmatprep.subr.bf16.mxu0 0
      %2051 = vmatpush1.bf16.xpose.msra.mxu0 0
      %2052 = vmatprep.subr.bf16.mxu0 0
      %2053 = vmatpush1.bf16.xpose.msra.mxu0 0
      %2054 = vmatprep.mubr.bf16.mxu0 0
      %2055 = vmatmul.mubr.bf16.gmra.mrb[0].mxu0 %v2017
      %v2056 = vpop.f32.mrb[0].mxu0
      %v2057 = vadd.f32 %v1957, %v2056
      %v2058 = vpop.f32.mrb[0].mxu0
      %v2059 = vpop.f32.mrb[0].mxu0
      %v2060 = vpop.f32.mrb[0].mxu0
      %2061 = vdwg.mxu0
      %2063 = vrot.lane.b32.xlu0 %v1942, 112
      %v2064 = vpop.permute.xlu0 %2063
      %2066 = vrot.lane.b32.xlu0 %v1950, 112
      %v2067 = vpop.permute.xlu0 %2066
      %v2069 = vsel %vm704, %v2064, 0
      %v2072 = vsel %vm704, %v2067, 0
      %2074 = vmatprep.subr.bf16.mxu0 0
      %2075 = vmatpush1.bf16.xpose.msra.mxu0 %v2072
      %2076 = vmatprep.subr.bf16.mxu0 0
      %2077 = vmatpush1.bf16.xpose.msra.mxu0 0
      %2078 = vmatprep.subr.bf16.mxu0 0
      %2079 = vmatpush1.bf16.xpose.msra.mxu0 0
      %2080 = vmatprep.subr.bf16.mxu0 0
      %2081 = vmatpush1.bf16.xpose.msra.mxu0 0
      %2082 = vmatprep.subr.bf16.mxu0 0
      %2083 = vmatpush1.bf16.xpose.msra.mxu0 0
      %2084 = vmatprep.subr.bf16.mxu0 0
      %2085 = vmatpush1.bf16.xpose.msra.mxu0 0
      %2086 = vmatprep.subr.bf16.mxu0 0
      %2087 = vmatpush1.bf16.xpose.msra.mxu0 0
      %2088 = vmatprep.subr.bf16.mxu0 0
      %2089 = vmatpush1.bf16.xpose.msra.mxu0 0
      %2090 = vmatprep.subr.bf16.mxu0 0
      %2091 = vmatpush1.bf16.xpose.msra.mxu0 0
      %2092 = vmatprep.subr.bf16.mxu0 0
      %2093 = vmatpush1.bf16.xpose.msra.mxu0 0
      %2094 = vmatprep.subr.bf16.mxu0 0
      %2095 = vmatpush1.bf16.xpose.msra.mxu0 0
      %2096 = vmatprep.subr.bf16.mxu0 0
      %2097 = vmatpush1.bf16.xpose.msra.mxu0 0
      %2098 = vmatprep.subr.bf16.mxu0 0
      %2099 = vmatpush1.bf16.xpose.msra.mxu0 0
      %2100 = vmatprep.subr.bf16.mxu0 0
      %2101 = vmatpush1.bf16.xpose.msra.mxu0 0
      %2102 = vmatprep.subr.bf16.mxu0 0
      %2103 = vmatpush1.bf16.xpose.msra.mxu0 0
      %2104 = vmatprep.subr.bf16.mxu0 0
      %2105 = vmatpush1.bf16.xpose.msra.mxu0 0
      %2106 = vmatprep.mubr.bf16.mxu0 0
      %2107 = vmatmul.mubr.bf16.gmra.mrb[0].mxu0 %v2069
      %v2108 = vpop.f32.mrb[0].mxu0
      %v2109 = vadd.f32 %v1957, %v2108
      %v2110 = vpop.f32.mrb[0].mxu0
      %v2111 = vpop.f32.mrb[0].mxu0
      %v2112 = vpop.f32.mrb[0].mxu0
      %2113 = vdwg.mxu0
      %2115 = vrot.lane.b32.xlu0 %v1943, 112
      %v2116 = vpop.permute.xlu0 %2115
      %2118 = vrot.lane.b32.xlu0 %v1951, 112
      %v2119 = vpop.permute.xlu0 %2118
      %v2121 = vsel %vm704, %v2116, 0
      %v2124 = vsel %vm704, %v2119, 0
      %2126 = vmatprep.subr.bf16.mxu0 0
      %2127 = vmatpush1.bf16.xpose.msra.mxu0 %v2124
      %2128 = vmatprep.subr.bf16.mxu0 0
      %2129 = vmatpush1.bf16.xpose.msra.mxu0 0
      %2130 = vmatprep.subr.bf16.mxu0 0
      %2131 = vmatpush1.bf16.xpose.msra.mxu0 0
      %2132 = vmatprep.subr.bf16.mxu0 0
      %2133 = vmatpush1.bf16.xpose.msra.mxu0 0
      %2134 = vmatprep.subr.bf16.mxu0 0
      %2135 = vmatpush1.bf16.xpose.msra.mxu0 0
      %2136 = vmatprep.subr.bf16.mxu0 0
      %2137 = vmatpush1.bf16.xpose.msra.mxu0 0
      %2138 = vmatprep.subr.bf16.mxu0 0
      %2139 = vmatpush1.bf16.xpose.msra.mxu0 0
      %2140 = vmatprep.subr.bf16.mxu0 0
      %2141 = vmatpush1.bf16.xpose.msra.mxu0 0
      %2142 = vmatprep.subr.bf16.mxu0 0
      %2143 = vmatpush1.bf16.xpose.msra.mxu0 0
      %2144 = vmatprep.subr.bf16.mxu0 0
      %2145 = vmatpush1.bf16.xpose.msra.mxu0 0
      %2146 = vmatprep.subr.bf16.mxu0 0
      %2147 = vmatpush1.bf16.xpose.msra.mxu0 0
      %2148 = vmatprep.subr.bf16.mxu0 0
      %2149 = vmatpush1.bf16.xpose.msra.mxu0 0
      %2150 = vmatprep.subr.bf16.mxu0 0
      %2151 = vmatpush1.bf16.xpose.msra.mxu0 0
      %2152 = vmatprep.subr.bf16.mxu0 0
      %2153 = vmatpush1.bf16.xpose.msra.mxu0 0
      %2154 = vmatprep.subr.bf16.mxu0 0
      %2155 = vmatpush1.bf16.xpose.msra.mxu0 0
      %2156 = vmatprep.subr.bf16.mxu0 0
      %2157 = vmatpush1.bf16.xpose.msra.mxu0 0
      %2158 = vmatprep.mubr.bf16.mxu0 0
      %2159 = vmatmul.mubr.bf16.gmra.mrb[0].mxu0 %v2121
      %v2160 = vpop.f32.mrb[0].mxu0
      %v2161 = vadd.f32 %v1957, %v2160
      %v2162 = vpop.f32.mrb[0].mxu0
      %v2163 = vpop.f32.mrb[0].mxu0
      %v2164 = vpop.f32.mrb[0].mxu0
      %2165 = vdwg.mxu0
      %2167 = vrot.lane.b32.xlu0 %v1944, 112
      %v2168 = vpop.permute.xlu0 %2167
      %2170 = vrot.lane.b32.xlu0 %v1952, 112
      %v2171 = vpop.permute.xlu0 %2170
      %v2173 = vsel %vm704, %v2168, 0
      %v2176 = vsel %vm704, %v2171, 0
      %2178 = vmatprep.subr.bf16.mxu0 0
      %2179 = vmatpush1.bf16.xpose.msra.mxu0 %v2176
      %2180 = vmatprep.subr.bf16.mxu0 0
      %2181 = vmatpush1.bf16.xpose.msra.mxu0 0
      %2182 = vmatprep.subr.bf16.mxu0 0
      %2183 = vmatpush1.bf16.xpose.msra.mxu0 0
      %2184 = vmatprep.subr.bf16.mxu0 0
      %2185 = vmatpush1.bf16.xpose.msra.mxu0 0
      %2186 = vmatprep.subr.bf16.mxu0 0
      %2187 = vmatpush1.bf16.xpose.msra.mxu0 0
      %2188 = vmatprep.subr.bf16.mxu0 0
      %2189 = vmatpush1.bf16.xpose.msra.mxu0 0
      %2190 = vmatprep.subr.bf16.mxu0 0
      %2191 = vmatpush1.bf16.xpose.msra.mxu0 0
      %2192 = vmatprep.subr.bf16.mxu0 0
      %2193 = vmatpush1.bf16.xpose.msra.mxu0 0
      %2194 = vmatprep.subr.bf16.mxu0 0
      %2195 = vmatpush1.bf16.xpose.msra.mxu0 0
      %2196 = vmatprep.subr.bf16.mxu0 0
      %2197 = vmatpush1.bf16.xpose.msra.mxu0 0
      %2198 = vmatprep.subr.bf16.mxu0 0
      %2199 = vmatpush1.bf16.xpose.msra.mxu0 0
      %2200 = vmatprep.subr.bf16.mxu0 0
      %2201 = vmatpush1.bf16.xpose.msra.mxu0 0
      %2202 = vmatprep.subr.bf16.mxu0 0
      %2203 = vmatpush1.bf16.xpose.msra.mxu0 0
      %2204 = vmatprep.subr.bf16.mxu0 0
      %2205 = vmatpush1.bf16.xpose.msra.mxu0 0
      %2206 = vmatprep.subr.bf16.mxu0 0
      %2207 = vmatpush1.bf16.xpose.msra.mxu0 0
      %2208 = vmatprep.subr.bf16.mxu0 0
      %2209 = vmatpush1.bf16.xpose.msra.mxu0 0
      %2210 = vmatprep.mubr.bf16.mxu0 0
      %2211 = vmatmul.mubr.bf16.gmra.mrb[0].mxu0 %v2173
      %v2212 = vpop.f32.mrb[0].mxu0
      %v2213 = vadd.f32 %v1957, %v2212
      %v2214 = vpop.f32.mrb[0].mxu0
      %v2215 = vpop.f32.mrb[0].mxu0
      %v2216 = vpop.f32.mrb[0].mxu0
      %2217 = vdwg.mxu0
      %2219 = vrot.lane.b32.xlu0 %v1945, 112
      %v2220 = vpop.permute.xlu0 %2219
      %2222 = vrot.lane.b32.xlu0 %v1953, 112
      %v2223 = vpop.permute.xlu0 %2222
      %v2225 = vsel %vm704, %v2220, 0
      %v2228 = vsel %vm704, %v2223, 0
      %2230 = vmatprep.subr.bf16.mxu0 0
      %2231 = vmatpush1.bf16.xpose.msra.mxu0 %v2228
      %2232 = vmatprep.subr.bf16.mxu0 0
      %2233 = vmatpush1.bf16.xpose.msra.mxu0 0
      %2234 = vmatprep.subr.bf16.mxu0 0
      %2235 = vmatpush1.bf16.xpose.msra.mxu0 0
      %2236 = vmatprep.subr.bf16.mxu0 0
      %2237 = vmatpush1.bf16.xpose.msra.mxu0 0
      %2238 = vmatprep.subr.bf16.mxu0 0
      %2239 = vmatpush1.bf16.xpose.msra.mxu0 0
      %2240 = vmatprep.subr.bf16.mxu0 0
      %2241 = vmatpush1.bf16.xpose.msra.mxu0 0
      %2242 = vmatprep.subr.bf16.mxu0 0
      %2243 = vmatpush1.bf16.xpose.msra.mxu0 0
      %2244 = vmatprep.subr.bf16.mxu0 0
      %2245 = vmatpush1.bf16.xpose.msra.mxu0 0
      %2246 = vmatprep.subr.bf16.mxu0 0
      %2247 = vmatpush1.bf16.xpose.msra.mxu0 0
      %2248 = vmatprep.subr.bf16.mxu0 0
      %2249 = vmatpush1.bf16.xpose.msra.mxu0 0
      %2250 = vmatprep.subr.bf16.mxu0 0
      %2251 = vmatpush1.bf16.xpose.msra.mxu0 0
      %2252 = vmatprep.subr.bf16.mxu0 0
      %2253 = vmatpush1.bf16.xpose.msra.mxu0 0
      %2254 = vmatprep.subr.bf16.mxu0 0
      %2255 = vmatpush1.bf16.xpose.msra.mxu0 0
      %2256 = vmatprep.subr.bf16.mxu0 0
      %2257 = vmatpush1.bf16.xpose.msra.mxu0 0
      %2258 = vmatprep.subr.bf16.mxu0 0
      %2259 = vmatpush1.bf16.xpose.msra.mxu0 0
      %2260 = vmatprep.subr.bf16.mxu0 0
      %2261 = vmatpush1.bf16.xpose.msra.mxu0 0
      %2262 = vmatprep.mubr.bf16.mxu0 0
      %2263 = vmatmul.mubr.bf16.gmra.mrb[0].mxu0 %v2225
      %v2264 = vpop.f32.mrb[0].mxu0
      %v2265 = vadd.f32 %v1957, %v2264
      %v2266 = vpop.f32.mrb[0].mxu0
      %v2267 = vpop.f32.mrb[0].mxu0
      %v2268 = vpop.f32.mrb[0].mxu0
      %2269 = vdwg.mxu0
      %2271 = vrot.lane.b32.xlu0 %v1946, 112
      %v2272 = vpop.permute.xlu0 %2271
      %2274 = vrot.lane.b32.xlu0 %v1954, 112
      %v2275 = vpop.permute.xlu0 %2274
      %v2277 = vsel %vm704, %v2272, 0
      %v2280 = vsel %vm704, %v2275, 0
      %2282 = vmatprep.subr.bf16.mxu0 0
      %2283 = vmatpush1.bf16.xpose.msra.mxu0 %v2280
      %2284 = vmatprep.subr.bf16.mxu0 0
      %2285 = vmatpush1.bf16.xpose.msra.mxu0 0
      %2286 = vmatprep.subr.bf16.mxu0 0
      %2287 = vmatpush1.bf16.xpose.msra.mxu0 0
      %2288 = vmatprep.subr.bf16.mxu0 0
      %2289 = vmatpush1.bf16.xpose.msra.mxu0 0
      %2290 = vmatprep.subr.bf16.mxu0 0
      %2291 = vmatpush1.bf16.xpose.msra.mxu0 0
      %2292 = vmatprep.subr.bf16.mxu0 0
      %2293 = vmatpush1.bf16.xpose.msra.mxu0 0
      %2294 = vmatprep.subr.bf16.mxu0 0
      %2295 = vmatpush1.bf16.xpose.msra.mxu0 0
      %2296 = vmatprep.subr.bf16.mxu0 0
      %2297 = vmatpush1.bf16.xpose.msra.mxu0 0
      %2298 = vmatprep.subr.bf16.mxu0 0
      %2299 = vmatpush1.bf16.xpose.msra.mxu0 0
      %2300 = vmatprep.subr.bf16.mxu0 0
      %2301 = vmatpush1.bf16.xpose.msra.mxu0 0
      %2302 = vmatprep.subr.bf16.mxu0 0
      %2303 = vmatpush1.bf16.xpose.msra.mxu0 0
      %2304 = vmatprep.subr.bf16.mxu0 0
      %2305 = vmatpush1.bf16.xpose.msra.mxu0 0
      %2306 = vmatprep.subr.bf16.mxu0 0
      %2307 = vmatpush1.bf16.xpose.msra.mxu0 0
      %2308 = vmatprep.subr.bf16.mxu0 0
      %2309 = vmatpush1.bf16.xpose.msra.mxu0 0
      %2310 = vmatprep.subr.bf16.mxu0 0
      %2311 = vmatpush1.bf16.xpose.msra.mxu0 0
      %2312 = vmatprep.subr.bf16.mxu0 0
      %2313 = vmatpush1.bf16.xpose.msra.mxu0 0
      %2314 = vmatprep.mubr.bf16.mxu0 0
      %2315 = vmatmul.mubr.bf16.gmra.mrb[0].mxu0 %v2277
      %v2316 = vpop.f32.mrb[0].mxu0
      %v2317 = vadd.f32 %v1957, %v2316
      %v2318 = vpop.f32.mrb[0].mxu0
      %v2319 = vpop.f32.mrb[0].mxu0
      %v2320 = vpop.f32.mrb[0].mxu0
      %2321 = vdwg.mxu0
      %2323 = vrot.lane.b32.xlu0 %v1947, 112
      %v2324 = vpop.permute.xlu0 %2323
      %2326 = vrot.lane.b32.xlu0 %v1955, 112
      %v2327 = vpop.permute.xlu0 %2326
      %v2329 = vsel %vm704, %v2324, 0
      %v2332 = vsel %vm704, %v2327, 0
      %2334 = vmatprep.subr.bf16.mxu0 0
      %2335 = vmatpush1.bf16.xpose.msra.mxu0 %v2332
      %2336 = vmatprep.subr.bf16.mxu0 0
      %2337 = vmatpush1.bf16.xpose.msra.mxu0 0
      %2338 = vmatprep.subr.bf16.mxu0 0
      %2339 = vmatpush1.bf16.xpose.msra.mxu0 0
      %2340 = vmatprep.subr.bf16.mxu0 0
      %2341 = vmatpush1.bf16.xpose.msra.mxu0 0
      %2342 = vmatprep.subr.bf16.mxu0 0
      %2343 = vmatpush1.bf16.xpose.msra.mxu0 0
      %2344 = vmatprep.subr.bf16.mxu0 0
      %2345 = vmatpush1.bf16.xpose.msra.mxu0 0
      %2346 = vmatprep.subr.bf16.mxu0 0
      %2347 = vmatpush1.bf16.xpose.msra.mxu0 0
      %2348 = vmatprep.subr.bf16.mxu0 0
      %2349 = vmatpush1.bf16.xpose.msra.mxu0 0
      %2350 = vmatprep.subr.bf16.mxu0 0
      %2351 = vmatpush1.bf16.xpose.msra.mxu0 0
      %2352 = vmatprep.subr.bf16.mxu0 0
      %2353 = vmatpush1.bf16.xpose.msra.mxu0 0
      %2354 = vmatprep.subr.bf16.mxu0 0
      %2355 = vmatpush1.bf16.xpose.msra.mxu0 0
      %2356 = vmatprep.subr.bf16.mxu0 0
      %2357 = vmatpush1.bf16.xpose.msra.mxu0 0
      %2358 = vmatprep.subr.bf16.mxu0 0
      %2359 = vmatpush1.bf16.xpose.msra.mxu0 0
      %2360 = vmatprep.subr.bf16.mxu0 0
      %2361 = vmatpush1.bf16.xpose.msra.mxu0 0
      %2362 = vmatprep.subr.bf16.mxu0 0
      %2363 = vmatpush1.bf16.xpose.msra.mxu0 0
      %2364 = vmatprep.subr.bf16.mxu0 0
      %2365 = vmatpush1.bf16.xpose.msra.mxu0 0
      %2366 = vmatprep.mubr.bf16.mxu0 0
      %2367 = vmatmul.mubr.bf16.gmra.mrb[0].mxu0 %v2329
      %v2368 = vpop.f32.mrb[0].mxu0
      %v2369 = vadd.f32 %v1957, %v2368
      %v2370 = vpop.f32.mrb[0].mxu0
      %v2371 = vpop.f32.mrb[0].mxu0
      %v2372 = vpop.f32.mrb[0].mxu0
      %2373 = vdwg.mxu0
      %v2374 = vsel %vm1255, %v2005, -inf
      %2375 = vmax.xlane.f32.xlu0 %v2374
      %v2376 = vpop.xlane.xlu0 %2375
      %v2377 = vsel %vm1255, %v2057, -inf
      %2378 = vmax.xlane.f32.xlu0 %v2377
      %v2379 = vpop.xlane.xlu0 %2378
      %v2380 = vsel %vm1255, %v2109, -inf
      %2381 = vmax.xlane.f32.xlu0 %v2380
      %v2382 = vpop.xlane.xlu0 %2381
      %v2383 = vsel %vm1255, %v2161, -inf
      %2384 = vmax.xlane.f32.xlu0 %v2383
      %v2385 = vpop.xlane.xlu0 %2384
      %v2386 = vsel %vm1255, %v2213, -inf
      %2387 = vmax.xlane.f32.xlu0 %v2386
      %v2388 = vpop.xlane.xlu0 %2387
      %v2389 = vsel %vm1255, %v2265, -inf
      %2390 = vmax.xlane.f32.xlu0 %v2389
      %v2391 = vpop.xlane.xlu0 %2390
      %v2392 = vsel %vm1255, %v2317, -inf
      %2393 = vmax.xlane.f32.xlu0 %v2392
      %v2394 = vpop.xlane.xlu0 %2393
      %v2395 = vsel %vm1255, %v2369, -inf
      %2396 = vmax.xlane.f32.xlu0 %v2395
      %v2397 = vpop.xlane.xlu0 %2396
      %v2398 = vsub.f32 %v2005, %v2376
      %v2399 = vsub.f32 %v2057, %v2379
      %v2400 = vsub.f32 %v2109, %v2382
      %v2401 = vsub.f32 %v2161, %v2385
      %v2402 = vsub.f32 %v2213, %v2388
      %v2403 = vsub.f32 %v2265, %v2391
      %v2404 = vsub.f32 %v2317, %v2394
      %v2405 = vsub.f32 %v2369, %v2397
      %v2406 = vmul.f32 %v2398, 1.442695
      %v2407 = vpow.pop %v2406
      %v2408 = vmul.f32 %v2399, 1.442695
      %v2409 = vpow.pop %v2408
      %v2410 = vmul.f32 %v2400, 1.442695
      %v2411 = vpow.pop %v2410
      %v2412 = vmul.f32 %v2401, 1.442695
      %v2413 = vpow.pop %v2412
      %v2414 = vmul.f32 %v2402, 1.442695
      %v2415 = vpow.pop %v2414
      %v2416 = vmul.f32 %v2403, 1.442695
      %v2417 = vpow.pop %v2416
      %v2418 = vmul.f32 %v2404, 1.442695
      %v2419 = vpow.pop %v2418
      %v2420 = vmul.f32 %v2405, 1.442695
      %v2421 = vpow.pop %v2420
      %v2422 = vsel %vm1255, %v2407, 0.0
      %2423 = vadd.xlane.f32.xlu0 %v2422
      %v2424 = vpop.xlane.xlu0 %2423
      %v2425 = vsel %vm1255, %v2409, 0.0
      %2426 = vadd.xlane.f32.xlu0 %v2425
      %v2427 = vpop.xlane.xlu0 %2426
      %v2428 = vsel %vm1255, %v2411, 0.0
      %2429 = vadd.xlane.f32.xlu0 %v2428
      %v2430 = vpop.xlane.xlu0 %2429
      %v2431 = vsel %vm1255, %v2413, 0.0
      %2432 = vadd.xlane.f32.xlu0 %v2431
      %v2433 = vpop.xlane.xlu0 %2432
      %v2434 = vsel %vm1255, %v2415, 0.0
      %2435 = vadd.xlane.f32.xlu0 %v2434
      %v2436 = vpop.xlane.xlu0 %2435
      %v2437 = vsel %vm1255, %v2417, 0.0
      %2438 = vadd.xlane.f32.xlu0 %v2437
      %v2439 = vpop.xlane.xlu0 %2438
      %v2440 = vsel %vm1255, %v2419, 0.0
      %2441 = vadd.xlane.f32.xlu0 %v2440
      %v2442 = vpop.xlane.xlu0 %2441
      %v2443 = vsel %vm1255, %v2421, 0.0
      %2444 = vadd.xlane.f32.xlu0 %v2443
      %v2445 = vpop.xlane.xlu0 %2444
      %v2446 = vrcp.pop %v2424
      %v2447 = vrcp.pop %v2427
      %v2448 = vrcp.pop %v2430
      %v2449 = vrcp.pop %v2433
      %v2450 = vrcp.pop %v2436
      %v2451 = vrcp.pop %v2439
      %v2452 = vrcp.pop %v2442
      %v2453 = vrcp.pop %v2445
      %v2454 = vmul.f32 %v2407, %v2446
      %v2455 = vmul.f32 %v2409, %v2447
      %v2456 = vmul.f32 %v2411, %v2448
      %v2457 = vmul.f32 %v2413, %v2449
      %v2458 = vmul.f32 %v2415, %v2450
      %v2459 = vmul.f32 %v2417, %v2451
      %v2460 = vmul.f32 %v2419, %v2452
      %v2461 = vmul.f32 %v2421, %v2453
      %v2462 = vpack.c.bf16 %v2454, %v2454
      %v2463 = vpack.c.bf16 %v2455, %v2455
      %v2464 = vpack.c.bf16 %v2456, %v2456
      %v2465 = vpack.c.bf16 %v2457, %v2457
      %v2466 = vpack.c.bf16 %v2458, %v2458
      %v2467 = vpack.c.bf16 %v2459, %v2459
      %v2468 = vpack.c.bf16 %v2460, %v2460
      %v2469 = vpack.c.bf16 %v2461, %v2461
      %2471 = vrot.lane.b32.xlu0 %v878, 112
      %v2472 = vpop.permute.xlu0 %2471
      %v2474 = vsel %vm1255, %v2462, 0
      %v2477 = vsel %vm1355, %v2472, 0
      %2479 = vmatprep.subr.bf16.mxu0 0
      %2480 = vmatpush1.bf16.msra.mxu0 %v2477
      %2481 = vmatprep.subr.bf16.mxu0 0
      %2482 = vmatpush1.bf16.msra.mxu0 0
      %2483 = vmatprep.subr.bf16.mxu0 0
      %2484 = vmatpush1.bf16.msra.mxu0 0
      %2485 = vmatprep.subr.bf16.mxu0 0
      %2486 = vmatpush1.bf16.msra.mxu0 0
      %2487 = vmatprep.subr.bf16.mxu0 0
      %2488 = vmatpush1.bf16.msra.mxu0 0
      %2489 = vmatprep.subr.bf16.mxu0 0
      %2490 = vmatpush1.bf16.msra.mxu0 0
      %2491 = vmatprep.subr.bf16.mxu0 0
      %2492 = vmatpush1.bf16.msra.mxu0 0
      %2493 = vmatprep.subr.bf16.mxu0 0
      %2494 = vmatpush1.bf16.msra.mxu0 0
      %2495 = vmatprep.subr.bf16.mxu0 0
      %2496 = vmatpush1.bf16.msra.mxu0 0
      %2497 = vmatprep.subr.bf16.mxu0 0
      %2498 = vmatpush1.bf16.msra.mxu0 0
      %2499 = vmatprep.subr.bf16.mxu0 0
      %2500 = vmatpush1.bf16.msra.mxu0 0
      %2501 = vmatprep.subr.bf16.mxu0 0
      %2502 = vmatpush1.bf16.msra.mxu0 0
      %2503 = vmatprep.subr.bf16.mxu0 0
      %2504 = vmatpush1.bf16.msra.mxu0 0
      %2505 = vmatprep.subr.bf16.mxu0 0
      %2506 = vmatpush1.bf16.msra.mxu0 0
      %2507 = vmatprep.subr.bf16.mxu0 0
      %2508 = vmatpush1.bf16.msra.mxu0 0
      %2509 = vmatprep.subr.bf16.mxu0 0
      %2510 = vmatpush1.bf16.msra.mxu0 0
      %2511 = vmatprep.mubr.bf16.mxu0 0
      %2512 = vmatmul.mubr.bf16.gmra.mrb[0].mxu0 %v2474
      %v2513 = vpop.f32.mrb[0].mxu0
      %v2514 = vadd.f32 0.0, %v2513
      %v2515 = vpop.f32.mrb[0].mxu0
      %v2516 = vpop.f32.mrb[0].mxu0
      %v2517 = vpop.f32.mrb[0].mxu0
      %2518 = vdwg.mxu0
      %2520 = vrot.lane.b32.xlu0 %v879, 112
      %v2521 = vpop.permute.xlu0 %2520
      %v2523 = vsel %vm1255, %v2463, 0
      %v2526 = vsel %vm1355, %v2521, 0
      %2528 = vmatprep.subr.bf16.mxu0 0
      %2529 = vmatpush1.bf16.msra.mxu0 %v2526
      %2530 = vmatprep.subr.bf16.mxu0 0
      %2531 = vmatpush1.bf16.msra.mxu0 0
      %2532 = vmatprep.subr.bf16.mxu0 0
      %2533 = vmatpush1.bf16.msra.mxu0 0
      %2534 = vmatprep.subr.bf16.mxu0 0
      %2535 = vmatpush1.bf16.msra.mxu0 0
      %2536 = vmatprep.subr.bf16.mxu0 0
      %2537 = vmatpush1.bf16.msra.mxu0 0
      %2538 = vmatprep.subr.bf16.mxu0 0
      %2539 = vmatpush1.bf16.msra.mxu0 0
      %2540 = vmatprep.subr.bf16.mxu0 0
      %2541 = vmatpush1.bf16.msra.mxu0 0
      %2542 = vmatprep.subr.bf16.mxu0 0
      %2543 = vmatpush1.bf16.msra.mxu0 0
      %2544 = vmatprep.subr.bf16.mxu0 0
      %2545 = vmatpush1.bf16.msra.mxu0 0
      %2546 = vmatprep.subr.bf16.mxu0 0
      %2547 = vmatpush1.bf16.msra.mxu0 0
      %2548 = vmatprep.subr.bf16.mxu0 0
      %2549 = vmatpush1.bf16.msra.mxu0 0
      %2550 = vmatprep.subr.bf16.mxu0 0
      %2551 = vmatpush1.bf16.msra.mxu0 0
      %2552 = vmatprep.subr.bf16.mxu0 0
      %2553 = vmatpush1.bf16.msra.mxu0 0
      %2554 = vmatprep.subr.bf16.mxu0 0
      %2555 = vmatpush1.bf16.msra.mxu0 0
      %2556 = vmatprep.subr.bf16.mxu0 0
      %2557 = vmatpush1.bf16.msra.mxu0 0
      %2558 = vmatprep.subr.bf16.mxu0 0
      %2559 = vmatpush1.bf16.msra.mxu0 0
      %2560 = vmatprep.mubr.bf16.mxu0 0
      %2561 = vmatmul.mubr.bf16.gmra.mrb[0].mxu0 %v2523
      %v2562 = vpop.f32.mrb[0].mxu0
      %v2563 = vadd.f32 0.0, %v2562
      %v2564 = vpop.f32.mrb[0].mxu0
      %v2565 = vpop.f32.mrb[0].mxu0
      %v2566 = vpop.f32.mrb[0].mxu0
      %2567 = vdwg.mxu0
      %2569 = vrot.lane.b32.xlu0 %v880, 112
      %v2570 = vpop.permute.xlu0 %2569
      %v2572 = vsel %vm1255, %v2464, 0
      %v2575 = vsel %vm1355, %v2570, 0
      %2577 = vmatprep.subr.bf16.mxu0 0
      %2578 = vmatpush1.bf16.msra.mxu0 %v2575
      %2579 = vmatprep.subr.bf16.mxu0 0
      %2580 = vmatpush1.bf16.msra.mxu0 0
      %2581 = vmatprep.subr.bf16.mxu0 0
      %2582 = vmatpush1.bf16.msra.mxu0 0
      %2583 = vmatprep.subr.bf16.mxu0 0
      %2584 = vmatpush1.bf16.msra.mxu0 0
      %2585 = vmatprep.subr.bf16.mxu0 0
      %2586 = vmatpush1.bf16.msra.mxu0 0
      %2587 = vmatprep.subr.bf16.mxu0 0
      %2588 = vmatpush1.bf16.msra.mxu0 0
      %2589 = vmatprep.subr.bf16.mxu0 0
      %2590 = vmatpush1.bf16.msra.mxu0 0
      %2591 = vmatprep.subr.bf16.mxu0 0
      %2592 = vmatpush1.bf16.msra.mxu0 0
      %2593 = vmatprep.subr.bf16.mxu0 0
      %2594 = vmatpush1.bf16.msra.mxu0 0
      %2595 = vmatprep.subr.bf16.mxu0 0
      %2596 = vmatpush1.bf16.msra.mxu0 0
      %2597 = vmatprep.subr.bf16.mxu0 0
      %2598 = vmatpush1.bf16.msra.mxu0 0
      %2599 = vmatprep.subr.bf16.mxu0 0
      %2600 = vmatpush1.bf16.msra.mxu0 0
      %2601 = vmatprep.subr.bf16.mxu0 0
      %2602 = vmatpush1.bf16.msra.mxu0 0
      %2603 = vmatprep.subr.bf16.mxu0 0
      %2604 = vmatpush1.bf16.msra.mxu0 0
      %2605 = vmatprep.subr.bf16.mxu0 0
      %2606 = vmatpush1.bf16.msra.mxu0 0
      %2607 = vmatprep.subr.bf16.mxu0 0
      %2608 = vmatpush1.bf16.msra.mxu0 0
      %2609 = vmatprep.mubr.bf16.mxu0 0
      %2610 = vmatmul.mubr.bf16.gmra.mrb[0].mxu0 %v2572
      %v2611 = vpop.f32.mrb[0].mxu0
      %v2612 = vadd.f32 0.0, %v2611
      %v2613 = vpop.f32.mrb[0].mxu0
      %v2614 = vpop.f32.mrb[0].mxu0
      %v2615 = vpop.f32.mrb[0].mxu0
      %2616 = vdwg.mxu0
      %2618 = vrot.lane.b32.xlu0 %v881, 112
      %v2619 = vpop.permute.xlu0 %2618
      %v2621 = vsel %vm1255, %v2465, 0
      %v2624 = vsel %vm1355, %v2619, 0
      %2626 = vmatprep.subr.bf16.mxu0 0
      %2627 = vmatpush1.bf16.msra.mxu0 %v2624
      %2628 = vmatprep.subr.bf16.mxu0 0
      %2629 = vmatpush1.bf16.msra.mxu0 0
      %2630 = vmatprep.subr.bf16.mxu0 0
      %2631 = vmatpush1.bf16.msra.mxu0 0
      %2632 = vmatprep.subr.bf16.mxu0 0
      %2633 = vmatpush1.bf16.msra.mxu0 0
      %2634 = vmatprep.subr.bf16.mxu0 0
      %2635 = vmatpush1.bf16.msra.mxu0 0
      %2636 = vmatprep.subr.bf16.mxu0 0
      %2637 = vmatpush1.bf16.msra.mxu0 0
      %2638 = vmatprep.subr.bf16.mxu0 0
      %2639 = vmatpush1.bf16.msra.mxu0 0
      %2640 = vmatprep.subr.bf16.mxu0 0
      %2641 = vmatpush1.bf16.msra.mxu0 0
      %2642 = vmatprep.subr.bf16.mxu0 0
      %2643 = vmatpush1.bf16.msra.mxu0 0
      %2644 = vmatprep.subr.bf16.mxu0 0
      %2645 = vmatpush1.bf16.msra.mxu0 0
      %2646 = vmatprep.subr.bf16.mxu0 0
      %2647 = vmatpush1.bf16.msra.mxu0 0
      %2648 = vmatprep.subr.bf16.mxu0 0
      %2649 = vmatpush1.bf16.msra.mxu0 0
      %2650 = vmatprep.subr.bf16.mxu0 0
      %2651 = vmatpush1.bf16.msra.mxu0 0
      %2652 = vmatprep.subr.bf16.mxu0 0
      %2653 = vmatpush1.bf16.msra.mxu0 0
      %2654 = vmatprep.subr.bf16.mxu0 0
      %2655 = vmatpush1.bf16.msra.mxu0 0
      %2656 = vmatprep.subr.bf16.mxu0 0
      %2657 = vmatpush1.bf16.msra.mxu0 0
      %2658 = vmatprep.mubr.bf16.mxu0 0
      %2659 = vmatmul.mubr.bf16.gmra.mrb[0].mxu0 %v2621
      %v2660 = vpop.f32.mrb[0].mxu0
      %v2661 = vadd.f32 0.0, %v2660
      %v2662 = vpop.f32.mrb[0].mxu0
      %v2663 = vpop.f32.mrb[0].mxu0
      %v2664 = vpop.f32.mrb[0].mxu0
      %2665 = vdwg.mxu0
      %2667 = vrot.lane.b32.xlu0 %v882, 112
      %v2668 = vpop.permute.xlu0 %2667
      %v2670 = vsel %vm1255, %v2466, 0
      %v2673 = vsel %vm1355, %v2668, 0
      %2675 = vmatprep.subr.bf16.mxu0 0
      %2676 = vmatpush1.bf16.msra.mxu0 %v2673
      %2677 = vmatprep.subr.bf16.mxu0 0
      %2678 = vmatpush1.bf16.msra.mxu0 0
      %2679 = vmatprep.subr.bf16.mxu0 0
      %2680 = vmatpush1.bf16.msra.mxu0 0
      %2681 = vmatprep.subr.bf16.mxu0 0
      %2682 = vmatpush1.bf16.msra.mxu0 0
      %2683 = vmatprep.subr.bf16.mxu0 0
      %2684 = vmatpush1.bf16.msra.mxu0 0
      %2685 = vmatprep.subr.bf16.mxu0 0
      %2686 = vmatpush1.bf16.msra.mxu0 0
      %2687 = vmatprep.subr.bf16.mxu0 0
      %2688 = vmatpush1.bf16.msra.mxu0 0
      %2689 = vmatprep.subr.bf16.mxu0 0
      %2690 = vmatpush1.bf16.msra.mxu0 0
      %2691 = vmatprep.subr.bf16.mxu0 0
      %2692 = vmatpush1.bf16.msra.mxu0 0
      %2693 = vmatprep.subr.bf16.mxu0 0
      %2694 = vmatpush1.bf16.msra.mxu0 0
      %2695 = vmatprep.subr.bf16.mxu0 0
      %2696 = vmatpush1.bf16.msra.mxu0 0
      %2697 = vmatprep.subr.bf16.mxu0 0
      %2698 = vmatpush1.bf16.msra.mxu0 0
      %2699 = vmatprep.subr.bf16.mxu0 0
      %2700 = vmatpush1.bf16.msra.mxu0 0
      %2701 = vmatprep.subr.bf16.mxu0 0
      %2702 = vmatpush1.bf16.msra.mxu0 0
      %2703 = vmatprep.subr.bf16.mxu0 0
      %2704 = vmatpush1.bf16.msra.mxu0 0
      %2705 = vmatprep.subr.bf16.mxu0 0
      %2706 = vmatpush1.bf16.msra.mxu0 0
      %2707 = vmatprep.mubr.bf16.mxu0 0
      %2708 = vmatmul.mubr.bf16.gmra.mrb[0].mxu0 %v2670
      %v2709 = vpop.f32.mrb[0].mxu0
      %v2710 = vadd.f32 0.0, %v2709
      %v2711 = vpop.f32.mrb[0].mxu0
      %v2712 = vpop.f32.mrb[0].mxu0
      %v2713 = vpop.f32.mrb[0].mxu0
      %2714 = vdwg.mxu0
      %2716 = vrot.lane.b32.xlu0 %v883, 112
      %v2717 = vpop.permute.xlu0 %2716
      %v2719 = vsel %vm1255, %v2467, 0
      %v2722 = vsel %vm1355, %v2717, 0
      %2724 = vmatprep.subr.bf16.mxu0 0
      %2725 = vmatpush1.bf16.msra.mxu0 %v2722
      %2726 = vmatprep.subr.bf16.mxu0 0
      %2727 = vmatpush1.bf16.msra.mxu0 0
      %2728 = vmatprep.subr.bf16.mxu0 0
      %2729 = vmatpush1.bf16.msra.mxu0 0
      %2730 = vmatprep.subr.bf16.mxu0 0
      %2731 = vmatpush1.bf16.msra.mxu0 0
      %2732 = vmatprep.subr.bf16.mxu0 0
      %2733 = vmatpush1.bf16.msra.mxu0 0
      %2734 = vmatprep.subr.bf16.mxu0 0
      %2735 = vmatpush1.bf16.msra.mxu0 0
      %2736 = vmatprep.subr.bf16.mxu0 0
      %2737 = vmatpush1.bf16.msra.mxu0 0
      %2738 = vmatprep.subr.bf16.mxu0 0
      %2739 = vmatpush1.bf16.msra.mxu0 0
      %2740 = vmatprep.subr.bf16.mxu0 0
      %2741 = vmatpush1.bf16.msra.mxu0 0
      %2742 = vmatprep.subr.bf16.mxu0 0
      %2743 = vmatpush1.bf16.msra.mxu0 0
      %2744 = vmatprep.subr.bf16.mxu0 0
      %2745 = vmatpush1.bf16.msra.mxu0 0
      %2746 = vmatprep.subr.bf16.mxu0 0
      %2747 = vmatpush1.bf16.msra.mxu0 0
      %2748 = vmatprep.subr.bf16.mxu0 0
      %2749 = vmatpush1.bf16.msra.mxu0 0
      %2750 = vmatprep.subr.bf16.mxu0 0
      %2751 = vmatpush1.bf16.msra.mxu0 0
      %2752 = vmatprep.subr.bf16.mxu0 0
      %2753 = vmatpush1.bf16.msra.mxu0 0
      %2754 = vmatprep.subr.bf16.mxu0 0
      %2755 = vmatpush1.bf16.msra.mxu0 0
      %2756 = vmatprep.mubr.bf16.mxu0 0
      %2757 = vmatmul.mubr.bf16.gmra.mrb[0].mxu0 %v2719
      %v2758 = vpop.f32.mrb[0].mxu0
      %v2759 = vadd.f32 0.0, %v2758
      %v2760 = vpop.f32.mrb[0].mxu0
      %v2761 = vpop.f32.mrb[0].mxu0
      %v2762 = vpop.f32.mrb[0].mxu0
      %2763 = vdwg.mxu0
      %2765 = vrot.lane.b32.xlu0 %v884, 112
      %v2766 = vpop.permute.xlu0 %2765
      %v2768 = vsel %vm1255, %v2468, 0
      %v2771 = vsel %vm1355, %v2766, 0
      %2773 = vmatprep.subr.bf16.mxu0 0
      %2774 = vmatpush1.bf16.msra.mxu0 %v2771
      %2775 = vmatprep.subr.bf16.mxu0 0
      %2776 = vmatpush1.bf16.msra.mxu0 0
      %2777 = vmatprep.subr.bf16.mxu0 0
      %2778 = vmatpush1.bf16.msra.mxu0 0
      %2779 = vmatprep.subr.bf16.mxu0 0
      %2780 = vmatpush1.bf16.msra.mxu0 0
      %2781 = vmatprep.subr.bf16.mxu0 0
      %2782 = vmatpush1.bf16.msra.mxu0 0
      %2783 = vmatprep.subr.bf16.mxu0 0
      %2784 = vmatpush1.bf16.msra.mxu0 0
      %2785 = vmatprep.subr.bf16.mxu0 0
      %2786 = vmatpush1.bf16.msra.mxu0 0
      %2787 = vmatprep.subr.bf16.mxu0 0
      %2788 = vmatpush1.bf16.msra.mxu0 0
      %2789 = vmatprep.subr.bf16.mxu0 0
      %2790 = vmatpush1.bf16.msra.mxu0 0
      %2791 = vmatprep.subr.bf16.mxu0 0
      %2792 = vmatpush1.bf16.msra.mxu0 0
      %2793 = vmatprep.subr.bf16.mxu0 0
      %2794 = vmatpush1.bf16.msra.mxu0 0
      %2795 = vmatprep.subr.bf16.mxu0 0
      %2796 = vmatpush1.bf16.msra.mxu0 0
      %2797 = vmatprep.subr.bf16.mxu0 0
      %2798 = vmatpush1.bf16.msra.mxu0 0
      %2799 = vmatprep.subr.bf16.mxu0 0
      %2800 = vmatpush1.bf16.msra.mxu0 0
      %2801 = vmatprep.subr.bf16.mxu0 0
      %2802 = vmatpush1.bf16.msra.mxu0 0
      %2803 = vmatprep.subr.bf16.mxu0 0
      %2804 = vmatpush1.bf16.msra.mxu0 0
      %2805 = vmatprep.mubr.bf16.mxu0 0
      %2806 = vmatmul.mubr.bf16.gmra.mrb[0].mxu0 %v2768
      %v2807 = vpop.f32.mrb[0].mxu0
      %v2808 = vadd.f32 0.0, %v2807
      %v2809 = vpop.f32.mrb[0].mxu0
      %v2810 = vpop.f32.mrb[0].mxu0
      %v2811 = vpop.f32.mrb[0].mxu0
      %2812 = vdwg.mxu0
      %2814 = vrot.lane.b32.xlu0 %v885, 112
      %v2815 = vpop.permute.xlu0 %2814
      %v2817 = vsel %vm1255, %v2469, 0
      %v2820 = vsel %vm1355, %v2815, 0
      %2822 = vmatprep.subr.bf16.mxu0 0
      %2823 = vmatpush1.bf16.msra.mxu0 %v2820
      %2824 = vmatprep.subr.bf16.mxu0 0
      %2825 = vmatpush1.bf16.msra.mxu0 0
      %2826 = vmatprep.subr.bf16.mxu0 0
      %2827 = vmatpush1.bf16.msra.mxu0 0
      %2828 = vmatprep.subr.bf16.mxu0 0
      %2829 = vmatpush1.bf16.msra.mxu0 0
      %2830 = vmatprep.subr.bf16.mxu0 0
      %2831 = vmatpush1.bf16.msra.mxu0 0
      %2832 = vmatprep.subr.bf16.mxu0 0
      %2833 = vmatpush1.bf16.msra.mxu0 0
      %2834 = vmatprep.subr.bf16.mxu0 0
      %2835 = vmatpush1.bf16.msra.mxu0 0
      %2836 = vmatprep.subr.bf16.mxu0 0
      %2837 = vmatpush1.bf16.msra.mxu0 0
      %2838 = vmatprep.subr.bf16.mxu0 0
      %2839 = vmatpush1.bf16.msra.mxu0 0
      %2840 = vmatprep.subr.bf16.mxu0 0
      %2841 = vmatpush1.bf16.msra.mxu0 0
      %2842 = vmatprep.subr.bf16.mxu0 0
      %2843 = vmatpush1.bf16.msra.mxu0 0
      %2844 = vmatprep.subr.bf16.mxu0 0
      %2845 = vmatpush1.bf16.msra.mxu0 0
      %2846 = vmatprep.subr.bf16.mxu0 0
      %2847 = vmatpush1.bf16.msra.mxu0 0
      %2848 = vmatprep.subr.bf16.mxu0 0
      %2849 = vmatpush1.bf16.msra.mxu0 0
      %2850 = vmatprep.subr.bf16.mxu0 0
      %2851 = vmatpush1.bf16.msra.mxu0 0
      %2852 = vmatprep.subr.bf16.mxu0 0
      %2853 = vmatpush1.bf16.msra.mxu0 0
      %2854 = vmatprep.mubr.bf16.mxu0 0
      %2855 = vmatmul.mubr.bf16.gmra.mrb[0].mxu0 %v2817
      %v2856 = vpop.f32.mrb[0].mxu0
      %v2857 = vadd.f32 0.0, %v2856
      %v2858 = vpop.f32.mrb[0].mxu0
      %v2859 = vpop.f32.mrb[0].mxu0
      %v2860 = vpop.f32.mrb[0].mxu0
      %2861 = vdwg.mxu0
      %v2862 = vpack.c.bf16 %v2563, %v2514
      %v2863 = vpack.c.bf16 %v2661, %v2612
      %v2864 = vpack.c.bf16 %v2759, %v2710
      %v2865 = vpack.c.bf16 %v2857, %v2808
      %s2866 = scalar_lea.vmem %s9, 8
      %v2867 = vld [vmem:[%s2866] sm:$0xf]
      %v2868 = vld [vmem:[%s2866 + $0x4] sm:$0xf]
      %v2871 = vunpack.c.l.b16 %v2867
      %v2872 = vunpack.c.l.b16 %v2868
      %v2873 = vpack.c.b16 %v2872, %v2871
      %v2876 = vsel %vm704, %v2862, 0
      %v2879 = vsel %vm704, %v2863, 0
      %v2882 = vsel %vm704, %v2864, 0
      %v2885 = vsel %vm704, %v2865, 0
      %2887 = vmatprep.subr.bf16.mxu0 0
      %2888 = vmatpush1.bf16.msra.mxu0 %v2873
      %2889 = vmatprep.subr.bf16.mxu0 0
      %2890 = vmatpush1.bf16.msra.mxu0 0
      %2891 = vmatprep.subr.bf16.mxu0 0
      %2892 = vmatpush1.bf16.msra.mxu0 0
      %2893 = vmatprep.subr.bf16.mxu0 0
      %2894 = vmatpush1.bf16.msra.mxu0 0
      %2895 = vmatprep.subr.bf16.mxu0 0
      %2896 = vmatpush1.bf16.msra.mxu0 0
      %2897 = vmatprep.subr.bf16.mxu0 0
      %2898 = vmatpush1.bf16.msra.mxu0 0
      %2899 = vmatprep.subr.bf16.mxu0 0
      %2900 = vmatpush1.bf16.msra.mxu0 0
      %2901 = vmatprep.subr.bf16.mxu0 0
      %2902 = vmatpush1.bf16.msra.mxu0 0
      %2903 = vmatprep.subr.bf16.mxu0 0
      %2904 = vmatpush1.bf16.msra.mxu0 0
      %2905 = vmatprep.subr.bf16.mxu0 0
      %2906 = vmatpush1.bf16.msra.mxu0 0
      %2907 = vmatprep.subr.bf16.mxu0 0
      %2908 = vmatpush1.bf16.msra.mxu0 0
      %2909 = vmatprep.subr.bf16.mxu0 0
      %2910 = vmatpush1.bf16.msra.mxu0 0
      %2911 = vmatprep.subr.bf16.mxu0 0
      %2912 = vmatpush1.bf16.msra.mxu0 0
      %2913 = vmatprep.subr.bf16.mxu0 0
      %2914 = vmatpush1.bf16.msra.mxu0 0
      %2915 = vmatprep.subr.bf16.mxu0 0
      %2916 = vmatpush1.bf16.msra.mxu0 0
      %2917 = vmatprep.subr.bf16.mxu0 0
      %2918 = vmatpush1.bf16.msra.mxu0 0
      %2919 = vmatprep.mubr.bf16.mxu0 0
      %2920 = vmatmul.mubr.bf16.gmra.mrb[0].mxu0 %v2876
      %v2921 = vpop.f32.mrb[0].mxu0
      %v2922 = vadd.f32 0.0, %v2921
      %v2923 = vpop.f32.mrb[0].mxu0
      %v2924 = vpop.f32.mrb[0].mxu0
      %v2925 = vadd.f32 0.0, %v2924
      %v2926 = vpop.f32.mrb[0].mxu0
      %2927 = vmatprep.mubr.bf16.mxu0 0
      %2928 = vmatmul.mubr.bf16.gmra.mrb[0].mxu0 %v2879
      %v2929 = vpop.f32.mrb[0].mxu0
      %v2930 = vadd.f32 0.0, %v2929
      %v2931 = vpop.f32.mrb[0].mxu0
      %v2932 = vpop.f32.mrb[0].mxu0
      %v2933 = vadd.f32 0.0, %v2932
      %v2934 = vpop.f32.mrb[0].mxu0
      %2935 = vmatprep.mubr.bf16.mxu0 0
      %2936 = vmatmul.mubr.bf16.gmra.mrb[0].mxu0 %v2882
      %v2937 = vpop.f32.mrb[0].mxu0
      %v2938 = vadd.f32 0.0, %v2937
      %v2939 = vpop.f32.mrb[0].mxu0
      %v2940 = vpop.f32.mrb[0].mxu0
      %v2941 = vadd.f32 0.0, %v2940
      %v2942 = vpop.f32.mrb[0].mxu0
      %2943 = vmatprep.mubr.bf16.mxu0 0
      %2944 = vmatmul.mubr.bf16.gmra.mrb[0].mxu0 %v2885
      %v2945 = vpop.f32.mrb[0].mxu0
      %v2946 = vadd.f32 0.0, %v2945
      %v2947 = vpop.f32.mrb[0].mxu0
      %v2948 = vpop.f32.mrb[0].mxu0
      %v2949 = vadd.f32 0.0, %v2948
      %v2950 = vpop.f32.mrb[0].mxu0
      %2951 = vdwg.mxu0
      %v2954 = vunpack.c.l.b16 %v1725
      %v2955 = vunpack.c.l.b16 %v1726
      %v2956 = vpack.c.b16 %v2955, %v2954
      %v2959 = vsel %vm704, %v1721, 0
      %v2962 = vsel %vm704, %v1722, 0
      %v2965 = vsel %vm704, %v1723, 0
      %v2968 = vsel %vm704, %v1724, 0
      %2970 = vmatprep.subr.bf16.mxu0 0
      %2971 = vmatpush1.bf16.msra.mxu0 %v2956
      %2972 = vmatprep.subr.bf16.mxu0 0
      %2973 = vmatpush1.bf16.msra.mxu0 0
      %2974 = vmatprep.subr.bf16.mxu0 0
      %2975 = vmatpush1.bf16.msra.mxu0 0
      %2976 = vmatprep.subr.bf16.mxu0 0
      %2977 = vmatpush1.bf16.msra.mxu0 0
      %2978 = vmatprep.subr.bf16.mxu0 0
      %2979 = vmatpush1.bf16.msra.mxu0 0
      %2980 = vmatprep.subr.bf16.mxu0 0
      %2981 = vmatpush1.bf16.msra.mxu0 0
      %2982 = vmatprep.subr.bf16.mxu0 0
      %2983 = vmatpush1.bf16.msra.mxu0 0
      %2984 = vmatprep.subr.bf16.mxu0 0
      %2985 = vmatpush1.bf16.msra.mxu0 0
      %2986 = vmatprep.subr.bf16.mxu0 0
      %2987 = vmatpush1.bf16.msra.mxu0 0
      %2988 = vmatprep.subr.bf16.mxu0 0
      %2989 = vmatpush1.bf16.msra.mxu0 0
      %2990 = vmatprep.subr.bf16.mxu0 0
      %2991 = vmatpush1.bf16.msra.mxu0 0
      %2992 = vmatprep.subr.bf16.mxu0 0
      %2993 = vmatpush1.bf16.msra.mxu0 0
      %2994 = vmatprep.subr.bf16.mxu0 0
      %2995 = vmatpush1.bf16.msra.mxu0 0
      %2996 = vmatprep.subr.bf16.mxu0 0
      %2997 = vmatpush1.bf16.msra.mxu0 0
      %2998 = vmatprep.subr.bf16.mxu0 0
      %2999 = vmatpush1.bf16.msra.mxu0 0
      %3000 = vmatprep.subr.bf16.mxu0 0
      %3001 = vmatpush1.bf16.msra.mxu0 0
      %3002 = vmatprep.mubr.bf16.mxu0 0
      %3003 = vmatmul.mubr.bf16.gmra.mrb[0].mxu0 %v2959
      %v3004 = vpop.f32.mrb[0].mxu0
      %v3005 = vadd.f32 %v2922, %v3004
      %v3006 = vpop.f32.mrb[0].mxu0
      %v3007 = vpop.f32.mrb[0].mxu0
      %v3008 = vadd.f32 %v2925, %v3007
      %v3009 = vpop.f32.mrb[0].mxu0
      %3010 = vmatprep.mubr.bf16.mxu0 0
      %3011 = vmatmul.mubr.bf16.gmra.mrb[0].mxu0 %v2962
      %v3012 = vpop.f32.mrb[0].mxu0
      %v3013 = vadd.f32 %v2930, %v3012
      %v3014 = vpop.f32.mrb[0].mxu0
      %v3015 = vpop.f32.mrb[0].mxu0
      %v3016 = vadd.f32 %v2933, %v3015
      %v3017 = vpop.f32.mrb[0].mxu0
      %3018 = vmatprep.mubr.bf16.mxu0 0
      %3019 = vmatmul.mubr.bf16.gmra.mrb[0].mxu0 %v2965
      %v3020 = vpop.f32.mrb[0].mxu0
      %v3021 = vadd.f32 %v2938, %v3020
      %v3022 = vpop.f32.mrb[0].mxu0
      %v3023 = vpop.f32.mrb[0].mxu0
      %v3024 = vadd.f32 %v2941, %v3023
      %v3025 = vpop.f32.mrb[0].mxu0
      %3026 = vmatprep.mubr.bf16.mxu0 0
      %3027 = vmatmul.mubr.bf16.gmra.mrb[0].mxu0 %v2968
      %v3028 = vpop.f32.mrb[0].mxu0
      %v3029 = vadd.f32 %v2946, %v3028
      %v3030 = vpop.f32.mrb[0].mxu0
      %v3031 = vpop.f32.mrb[0].mxu0
      %v3032 = vadd.f32 %v2949, %v3031
      %v3033 = vpop.f32.mrb[0].mxu0
      %3034 = vdwg.mxu0
      %v3035 = vld [vmem:[%s10] sm:$0x1]
      %v3037 = vlaneseq
      %v3038 = vshrl.u32 %v3037, 7
      %v3039 = vsub.s32 0, %v3038
      %v3040 = vrot.slane %v3035, %v3039
      %v3042 = vadd.f32 %v3005, %v3040
      %v3043 = vadd.f32 %v3008, %v3040
      %v3044 = vadd.f32 %v3013, %v3040
      %v3045 = vadd.f32 %v3016, %v3040
      %v3046 = vadd.f32 %v3021, %v3040
      %v3047 = vadd.f32 %v3024, %v3040
      %v3048 = vadd.f32 %v3029, %v3040
      %v3049 = vadd.f32 %v3032, %v3040
      %3050 = vst.msk [vmem:[%s388] sm:$0xff] %vm442, %v3042
      %3051 = vst.msk [vmem:[%s388 + $0x8] sm:$0xff] %vm442, %v3043
      %3052 = vst.msk [vmem:[%s388 + $0x10] sm:$0xff] %vm442, %v3044
      %3053 = vst.msk [vmem:[%s388 + $0x18] sm:$0xff] %vm442, %v3045
      %3054 = vst.msk [vmem:[%s388 + $0x20] sm:$0xff] %vm442, %v3046
      %3055 = vst.msk [vmem:[%s388 + $0x28] sm:$0xff] %vm442, %v3047
      %3056 = vst.msk [vmem:[%s388 + $0x30] sm:$0xff] %vm442, %v3048
      %3057 = vst.msk [vmem:[%s388 + $0x38] sm:$0xff] %vm442, %v3049
      %s3058 = smul.u32 8, %s22
      %p3059 = scmp.lt.s32.totalorder %s3058, 31
      %s3060 = scalar_select %p3059, %s3058, 31
      %s3061 = smul.addr %s3060, 8
      %s3062 = scalar_lea.vmem %s11, %s3061
      // Predicated region
      $region65: #{tpu_custom_call.1} parent=63 // pred_check
        %p3063 = pneg %p276
      $region66: #{tpu_custom_call.1} parent=63 // pred_check_branch
        %3065 = sbr.rel (%p3063) target = $region68
      $region67: #{tpu_custom_call.1} parent=63 // pred_region
        %s3066 = smul.u32 8, %s22
      $region68: #{tpu_custom_call.1} parent=63 // pred_fallthru
        _
    $region64: #{tpu_custom_call.1} parent=5 // pred_fallthru
      _
    %p3067 = scmp.le.s32.totalorder 2, %s17
    // Predicated region
    $region69: #{tpu_custom_call.1} parent=5 // pred_check
      %p3068 = pneg %p3067
    $region70: #{tpu_custom_call.1} parent=5 // pred_check_branch
      %3070 = sbr.rel (%p3068) target = $region72
    $region71: #{tpu_custom_call.1} parent=5 // pred_region
      %s3071 = ssub.s32 %s17, 2
      // Predicated region
      $region73: #{tpu_custom_call.1} parent=71 // pred_check
        %p3072 = pneg %p282
      $region74: #{tpu_custom_call.1} parent=71 // pred_check_branch
        %3074 = sbr.rel (%p3072) target = $region76
      $region75: #{tpu_custom_call.1} parent=71 // pred_region
        %s3075 = smul.u32 8, %s23
        %p3076 = scmp.lt.s32.totalorder %s3075, 31
        %s3077 = scalar_select %p3076, %s3075, 31
        %s3078 = smul.addr %s3077, 8
        %s3079 = scalar_lea.vmem %s11, %s3078
      $region76: #{tpu_custom_call.1} parent=71 // pred_fallthru
        _
    $region72: #{tpu_custom_call.1} parent=5 // pred_fallthru
      _
  $region6: #{tpu_custom_call.1} parent=0 // loop_footer
    %s21 = sadd.s32 1, %s17
  $region7: #{tpu_custom_call.1} parent=0 // loop_footer_branch
    %16 = sbr.rel target = $region3
  $region8: #{tpu_custom_call.1} parent=0 // loop_exit
    _

// kernel: tpu_custom_call.1
$region0: #{tpu_custom_call.1}
  #allocation0 [shape = 'u32[]', space=smem, size = 0x4, offset = 0x4, fixed_abs, tag = 'smem constant byte address 0x4 - core index']
  #allocation1 [shape = 'u32[144,128]{1,0:T(1,128)}', space=vmem, size = 0x12000, scoped, tag = 'internal scratch']
  %s0 = inlined_call_operand.vmem [shape: bf16[256,32], index: 0, kind: input, shape index: {}]
  %s1 = inlined_call_operand.vmem [shape: bf16[32,32], index: 1, kind: input, shape index: {}]
  %s2 = inlined_call_operand.vmem [shape: bf16[32,32], index: 2, kind: input, shape index: {}]
  %s3 = inlined_call_operand.vmem [shape: bf16[32,32], index: 3, kind: input, shape index: {}]
  %s4 = inlined_call_operand.vmem [shape: f32[1,32], index: 4, kind: input, shape index: {}]
  %s5 = inlined_call_operand.vmem [shape: f32[1,32], index: 5, kind: input, shape index: {}]
  %s6 = inlined_call_operand.vmem [shape: f32[1,32], index: 6, kind: input, shape index: {}]
  %s7 = inlined_call_operand.vmem [shape: f32[2,1], index: 7, kind: input, shape index: {}]
  %s8 = inlined_call_operand.vmem [shape: f32[2,8,8], index: 8, kind: input, shape index: {}]
  %s9 = inlined_call_operand.vmem [shape: bf16[2,16,32], index: 9, kind: input, shape index: {}]
  %s10 = inlined_call_operand.vmem [shape: f32[1,32], index: 10, kind: input, shape index: {}]
  %s11 = inlined_call_operand.vmem [shape: f32[256,32], index: 11, kind: output, shape index: {}]
  %s12 = sld [smem:[#allocation0]]
  $region77: #{tpu_custom_call.1} parent=0
    _
  %s14 = ssub.s32 1, %s12
  %s15 = scalar_select 0, %s14, %s12
  loop: start=0, step=1, limit=6
  $region2: #{tpu_custom_call.1} parent=0 // loop_pre_header
    _
  $region3: #{tpu_custom_call.1} parent=0 // loop_header
    %s17 = sphi 0, %s21
    %p18 = scmp.ge.s32.totalorder %s17, 6
    %s27 = sphi 0, %s29
    %s30 = sphi 0, %s27
    %s31 = sphi 0, %s30
    %s47 = sphi 0, %s31
    %s51 = sphi 0, %s51
    %s53 = sphi 0, %s51
    %s54 = sphi 0, %s53
    %s68 = sphi 0, %s54
    %s72 = sphi 0, %s72
    %s74 = sphi 0, %s72
    %s75 = sphi 0, %s74
    %s89 = sphi 0, %s75
    %s93 = sphi 0, %s93
    %s95 = sphi 0, %s93
    %s96 = sphi 0, %s95
    %s110 = sphi 0, %s96
    %s114 = sphi 0, %s114
    %s116 = sphi 0, %s114
    %s117 = sphi 0, %s116
    %s131 = sphi 0, %s117
    %s135 = sphi 0, %s135
    %s137 = sphi 0, %s135
    %s138 = sphi 0, %s137
    %s152 = sphi 0, %s138
    %s156 = sphi 0, %s156
    %s158 = sphi 0, %s156
    %s159 = sphi 0, %s158
    %s173 = sphi 0, %s159
    %s177 = sphi 0, %s177
    %s179 = sphi 0, %s177
    %s180 = sphi 0, %s179
    %s194 = sphi 0, %s180
    %s198 = sphi 0, %s198
    %s200 = sphi 0, %s198
    %s201 = sphi 0, %s200
    %s215 = sphi 0, %s201
    %s219 = sphi 0, %s219
    %s221 = sphi 0, %s219
    %s222 = sphi 0, %s221
    %s236 = sphi 0, %s222
    %s240 = sphi 0, %s240
    %s242 = sphi 0, %s240
    %s243 = sphi 0, %s242
    %s257 = sphi 0, %s243
    %s263 = sphi 0, %s265
    %s266 = sphi 0, %s263
    %s267 = sphi 0, %s266
    %s283 = sphi 0, %s267
  $region4: #{tpu_custom_call.1} parent=0 // loop_header_branch
    %20 = sbr.rel (%p18) target = $region8
  $region5: #{tpu_custom_call.1} parent=0 // loop_body
    %s22 = ssub.s32 %s17, 1
    %s23 = ssub.s32 %s17, 2
    %s24 = sadd.s32 %s17, 1
    %s25 = ssub.s32 %s17, %s24
    %p26 = scmp.eq.s32.totalorder %s25, 0
    %s28 = sadd.s32 %s27, 1
    %s29 = scalar_select %p26, %s27, %s28
    %p32 = pneg %p26
    %p33 = scmp.eq.s32.totalorder %s17, 3
    %p34 = por %p32, %p33
    %p35 = scmp.ne.s32.totalorder %s27, %s30
    %p36 = scmp.eq.s32.totalorder %s17, 0
    %p37 = por %p35, %p36
    %p38 = scmp.ne.s32.totalorder %s27, %s30
    %p39 = scmp.eq.s32.totalorder %s22, 3
    %p40 = por %p38, %p39
    %p41 = scmp.ne.s32.totalorder %s30, %s31
    %p42 = scmp.eq.s32.totalorder %s22, 0
    %p43 = por %p41, %p42
    %p44 = scmp.ne.s32.totalorder %s30, %s31
    %p45 = scmp.eq.s32.totalorder %s23, 3
    %p46 = por %p44, %p45
    %p48 = scmp.ne.s32.totalorder %s31, %s47
    %p49 = scmp.eq.s32.totalorder %s23, 0
    %p50 = por %p48, %p49
    %s52 = sadd.s32 %s51, 1
    %p55 = scmp.eq.s32.totalorder %s17, 3
    %p56 = scmp.ne.s32.totalorder %s51, %s53
    %p57 = scmp.eq.s32.totalorder %s17, 0
    %p58 = por %p56, %p57
    %p59 = scmp.ne.s32.totalorder %s51, %s53
    %p60 = scmp.eq.s32.totalorder %s22, 3
    %p61 = por %p59, %p60
    %p62 = scmp.ne.s32.totalorder %s53, %s54
    %p63 = scmp.eq.s32.totalorder %s22, 0
    %p64 = por %p62, %p63
    %p65 = scmp.ne.s32.totalorder %s53, %s54
    %p66 = scmp.eq.s32.totalorder %s23, 3
    %p67 = por %p65, %p66
    %p69 = scmp.ne.s32.totalorder %s54, %s68
    %p70 = scmp.eq.s32.totalorder %s23, 0
    %p71 = por %p69, %p70
    %s73 = sadd.s32 %s72, 1
    %p76 = scmp.eq.s32.totalorder %s17, 3
    %p77 = scmp.ne.s32.totalorder %s72, %s74
    %p78 = scmp.eq.s32.totalorder %s17, 0
    %p79 = por %p77, %p78
    %p80 = scmp.ne.s32.totalorder %s72, %s74
    %p81 = scmp.eq.s32.totalorder %s22, 3
    %p82 = por %p80, %p81
    %p83 = scmp.ne.s32.totalorder %s74, %s75
    %p84 = scmp.eq.s32.totalorder %s22, 0
    %p85 = por %p83, %p84
    %p86 = scmp.ne.s32.totalorder %s74, %s75
    %p87 = scmp.eq.s32.totalorder %s23, 3
    %p88 = por %p86, %p87
    %p90 = scmp.ne.s32.totalorder %s75, %s89
    %p91 = scmp.eq.s32.totalorder %s23, 0
    %p92 = por %p90, %p91
    %s94 = sadd.s32 %s93, 1
    %p97 = scmp.eq.s32.totalorder %s17, 3
    %p98 = scmp.ne.s32.totalorder %s93, %s95
    %p99 = scmp.eq.s32.totalorder %s17, 0
    %p100 = por %p98, %p99
    %p101 = scmp.ne.s32.totalorder %s93, %s95
    %p102 = scmp.eq.s32.totalorder %s22, 3
    %p103 = por %p101, %p102
    %p104 = scmp.ne.s32.totalorder %s95, %s96
    %p105 = scmp.eq.s32.totalorder %s22, 0
    %p106 = por %p104, %p105
    %p107 = scmp.ne.s32.totalorder %s95, %s96
    %p108 = scmp.eq.s32.totalorder %s23, 3
    %p109 = por %p107, %p108
    %p111 = scmp.ne.s32.totalorder %s96, %s110
    %p112 = scmp.eq.s32.totalorder %s23, 0
    %p113 = por %p111, %p112
    %s115 = sadd.s32 %s114, 1
    %p118 = scmp.eq.s32.totalorder %s17, 3
    %p119 = scmp.ne.s32.totalorder %s114, %s116
    %p120 = scmp.eq.s32.totalorder %s17, 0
    %p121 = por %p119, %p120
    %p122 = scmp.ne.s32.totalorder %s114, %s116
    %p123 = scmp.eq.s32.totalorder %s22, 3
    %p124 = por %p122, %p123
    %p125 = scmp.ne.s32.totalorder %s116, %s117
    %p126 = scmp.eq.s32.totalorder %s22, 0
    %p127 = por %p125, %p126
    %p128 = scmp.ne.s32.totalorder %s116, %s117
    %p129 = scmp.eq.s32.totalorder %s23, 3
    %p130 = por %p128, %p129
    %p132 = scmp.ne.s32.totalorder %s117, %s131
    %p133 = scmp.eq.s32.totalorder %s23, 0
    %p134 = por %p132, %p133
    %s136 = sadd.s32 %s135, 1
    %p139 = scmp.eq.s32.totalorder %s17, 3
    %p140 = scmp.ne.s32.totalorder %s135, %s137
    %p141 = scmp.eq.s32.totalorder %s17, 0
    %p142 = por %p140, %p141
    %p143 = scmp.ne.s32.totalorder %s135, %s137
    %p144 = scmp.eq.s32.totalorder %s22, 3
    %p145 = por %p143, %p144
    %p146 = scmp.ne.s32.totalorder %s137, %s138
    %p147 = scmp.eq.s32.totalorder %s22, 0
    %p148 = por %p146, %p147
    %p149 = scmp.ne.s32.totalorder %s137, %s138
    %p150 = scmp.eq.s32.totalorder %s23, 3
    %p151 = por %p149, %p150
    %p153 = scmp.ne.s32.totalorder %s138, %s152
    %p154 = scmp.eq.s32.totalorder %s23, 0
    %p155 = por %p153, %p154
    %s157 = sadd.s32 %s156, 1
    %p160 = scmp.eq.s32.totalorder %s17, 3
    %p161 = scmp.ne.s32.totalorder %s156, %s158
    %p162 = scmp.eq.s32.totalorder %s17, 0
    %p163 = por %p161, %p162
    %p164 = scmp.ne.s32.totalorder %s156, %s158
    %p165 = scmp.eq.s32.totalorder %s22, 3
    %p166 = por %p164, %p165
    %p167 = scmp.ne.s32.totalorder %s158, %s159
    %p168 = scmp.eq.s32.totalorder %s22, 0
    %p169 = por %p167, %p168
    %p170 = scmp.ne.s32.totalorder %s158, %s159
    %p171 = scmp.eq.s32.totalorder %s23, 3
    %p172 = por %p170, %p171
    %p174 = scmp.ne.s32.totalorder %s159, %s173
    %p175 = scmp.eq.s32.totalorder %s23, 0
    %p176 = por %p174, %p175
    %s178 = sadd.s32 %s177, 1
    %p181 = scmp.eq.s32.totalorder %s17, 3
    %p182 = scmp.ne.s32.totalorder %s177, %s179
    %p183 = scmp.eq.s32.totalorder %s17, 0
    %p184 = por %p182, %p183
    %p185 = scmp.ne.s32.totalorder %s177, %s179
    %p186 = scmp.eq.s32.totalorder %s22, 3
    %p187 = por %p185, %p186
    %p188 = scmp.ne.s32.totalorder %s179, %s180
    %p189 = scmp.eq.s32.totalorder %s22, 0
    %p190 = por %p188, %p189
    %p191 = scmp.ne.s32.totalorder %s179, %s180
    %p192 = scmp.eq.s32.totalorder %s23, 3
    %p193 = por %p191, %p192
    %p195 = scmp.ne.s32.totalorder %s180, %s194
    %p196 = scmp.eq.s32.totalorder %s23, 0
    %p197 = por %p195, %p196
    %s199 = sadd.s32 %s198, 1
    %p202 = scmp.eq.s32.totalorder %s17, 3
    %p203 = scmp.ne.s32.totalorder %s198, %s200
    %p204 = scmp.eq.s32.totalorder %s17, 0
    %p205 = por %p203, %p204
    %p206 = scmp.ne.s32.totalorder %s198, %s200
    %p207 = scmp.eq.s32.totalorder %s22, 3
    %p208 = por %p206, %p207
    %p209 = scmp.ne.s32.totalorder %s200, %s201
    %p210 = scmp.eq.s32.totalorder %s22, 0
    %p211 = por %p209, %p210
    %p212 = scmp.ne.s32.totalorder %s200, %s201
    %p213 = scmp.eq.s32.totalorder %s23, 3
    %p214 = por %p212, %p213
    %p216 = scmp.ne.s32.totalorder %s201, %s215
    %p217 = scmp.eq.s32.totalorder %s23, 0
    %p218 = por %p216, %p217
    %s220 = sadd.s32 %s219, 1
    %p223 = scmp.eq.s32.totalorder %s17, 3
    %p224 = scmp.ne.s32.totalorder %s219, %s221
    %p225 = scmp.eq.s32.totalorder %s17, 0
    %p226 = por %p224, %p225
    %p227 = scmp.ne.s32.totalorder %s219, %s221
    %p228 = scmp.eq.s32.totalorder %s22, 3
    %p229 = por %p227, %p228
    %p230 = scmp.ne.s32.totalorder %s221, %s222
    %p231 = scmp.eq.s32.totalorder %s22, 0
    %p232 = por %p230, %p231
    %p233 = scmp.ne.s32.totalorder %s221, %s222
    %p234 = scmp.eq.s32.totalorder %s23, 3
    %p235 = por %p233, %p234
    %p237 = scmp.ne.s32.totalorder %s222, %s236
    %p238 = scmp.eq.s32.totalorder %s23, 0
    %p239 = por %p237, %p238
    %s241 = sadd.s32 %s240, 1
    %p244 = scmp.eq.s32.totalorder %s17, 3
    %p245 = scmp.ne.s32.totalorder %s240, %s242
    %p246 = scmp.eq.s32.totalorder %s17, 0
    %p247 = por %p245, %p246
    %p248 = scmp.ne.s32.totalorder %s240, %s242
    %p249 = scmp.eq.s32.totalorder %s22, 3
    %p250 = por %p248, %p249
    %p251 = scmp.ne.s32.totalorder %s242, %s243
    %p252 = scmp.eq.s32.totalorder %s22, 0
    %p253 = por %p251, %p252
    %p254 = scmp.ne.s32.totalorder %s242, %s243
    %p255 = scmp.eq.s32.totalorder %s23, 3
    %p256 = por %p254, %p255
    %p258 = scmp.ne.s32.totalorder %s243, %s257
    %p259 = scmp.eq.s32.totalorder %s23, 0
    %p260 = por %p258, %p259
    %s261 = ssub.s32 %s17, %s24
    %p262 = scmp.eq.s32.totalorder %s261, 0
    %s264 = sadd.s32 %s263, 1
    %s265 = scalar_select %p262, %s263, %s264
    %p268 = pneg %p262
    %p269 = scmp.eq.s32.totalorder %s17, 3
    %p270 = por %p268, %p269
    %p271 = scmp.ne.s32.totalorder %s263, %s266
    %p272 = scmp.eq.s32.totalorder %s17, 0
    %p273 = por %p271, %p272
    %p274 = scmp.ne.s32.totalorder %s263, %s266
    %p275 = scmp.eq.s32.totalorder %s22, 3
    %p276 = por %p274, %p275
    %p277 = scmp.ne.s32.totalorder %s266, %s267
    %p278 = scmp.eq.s32.totalorder %s22, 0
    %p279 = por %p277, %p278
    %p280 = scmp.ne.s32.totalorder %s266, %s267
    %p281 = scmp.eq.s32.totalorder %s23, 3
    %p282 = por %p280, %p281
    %p284 = scmp.ne.s32.totalorder %s267, %s283
    %p285 = scmp.eq.s32.totalorder %s23, 0
    %p286 = por %p284, %p285
    %p287 = scmp.le.s32.totalorder 1, %s17
    %p288 = scmp.lt.s32.totalorder %s17, 5
    %p289 = pnand %p287, %p288
    %p290 = pneg %p289
    // Predicated region
    $region9: #{tpu_custom_call.1} parent=5 // pred_check
      _
    $region10: #{tpu_custom_call.1} parent=5 // pred_check_branch
      %292 = sbr.rel (%p289) target = $region12
    $region11: #{tpu_custom_call.1} parent=5 // pred_region
      %s293 = ssub.s32 %s17, 1
      // Predicated region
      $region13: #{tpu_custom_call.1} parent=11 // pred_check
        %p294 = pneg %p64
      $region14: #{tpu_custom_call.1} parent=11 // pred_check_branch
        %296 = sbr.rel (%p294) target = $region16
      $region15: #{tpu_custom_call.1} parent=11 // pred_region
        _
      $region16: #{tpu_custom_call.1} parent=11 // pred_fallthru
        _
      // Predicated region
      $region17: #{tpu_custom_call.1} parent=11 // pred_check
        %p297 = pneg %p85
      $region18: #{tpu_custom_call.1} parent=11 // pred_check_branch
        %299 = sbr.rel (%p297) target = $region20
      $region19: #{tpu_custom_call.1} parent=11 // pred_region
        _
      $region20: #{tpu_custom_call.1} parent=11 // pred_fallthru
        _
      // Predicated region
      $region21: #{tpu_custom_call.1} parent=11 // pred_check
        %p300 = pneg %p106
      $region22: #{tpu_custom_call.1} parent=11 // pred_check_branch
        %302 = sbr.rel (%p300) target = $region24
      $region23: #{tpu_custom_call.1} parent=11 // pred_region
        _
      $region24: #{tpu_custom_call.1} parent=11 // pred_fallthru
        _
      // Predicated region
      $region25: #{tpu_custom_call.1} parent=11 // pred_check
        %p303 = pneg %p127
      $region26: #{tpu_custom_call.1} parent=11 // pred_check_branch
        %305 = sbr.rel (%p303) target = $region28
      $region27: #{tpu_custom_call.1} parent=11 // pred_region
        _
      $region28: #{tpu_custom_call.1} parent=11 // pred_fallthru
        _
      // Predicated region
      $region29: #{tpu_custom_call.1} parent=11 // pred_check
        %p306 = pneg %p148
      $region30: #{tpu_custom_call.1} parent=11 // pred_check_branch
        %308 = sbr.rel (%p306) target = $region32
      $region31: #{tpu_custom_call.1} parent=11 // pred_region
        _
      $region32: #{tpu_custom_call.1} parent=11 // pred_fallthru
        _
      // Predicated region
      $region33: #{tpu_custom_call.1} parent=11 // pred_check
        %p309 = pneg %p169
      $region34: #{tpu_custom_call.1} parent=11 // pred_check_branch
        %311 = sbr.rel (%p309) target = $region36
      $region35: #{tpu_custom_call.1} parent=11 // pred_region
        _
      $region36: #{tpu_custom_call.1} parent=11 // pred_fallthru
        _
      // Predicated region
      $region37: #{tpu_custom_call.1} parent=11 // pred_check
        %p312 = pneg %p190
      $region38: #{tpu_custom_call.1} parent=11 // pred_check_branch
        %314 = sbr.rel (%p312) target = $region40
      $region39: #{tpu_custom_call.1} parent=11 // pred_region
        _
      $region40: #{tpu_custom_call.1} parent=11 // pred_fallthru
        _
      // Predicated region
      $region41: #{tpu_custom_call.1} parent=11 // pred_check
        %p315 = pneg %p211
      $region42: #{tpu_custom_call.1} parent=11 // pred_check_branch
        %317 = sbr.rel (%p315) target = $region44
      $region43: #{tpu_custom_call.1} parent=11 // pred_region
        _
      $region44: #{tpu_custom_call.1} parent=11 // pred_fallthru
        _
      // Predicated region
      $region45: #{tpu_custom_call.1} parent=11 // pred_check
        %p318 = pneg %p232
      $region46: #{tpu_custom_call.1} parent=11 // pred_check_branch
        %320 = sbr.rel (%p318) target = $region48
      $region47: #{tpu_custom_call.1} parent=11 // pred_region
        _
      $region48: #{tpu_custom_call.1} parent=11 // pred_fallthru
        _
      // Predicated region
      $region49: #{tpu_custom_call.1} parent=11 // pred_check
        %p321 = pneg %p253
      $region50: #{tpu_custom_call.1} parent=11 // pred_check_branch
        %323 = sbr.rel (%p321) target = $region52
      $region51: #{tpu_custom_call.1} parent=11 // pred_region
        _
      $region52: #{tpu_custom_call.1} parent=11 // pred_fallthru
        _
    $region12: #{tpu_custom_call.1} parent=5 // pred_fallthru
      _
    %p324 = scmp.lt.s32.totalorder %s17, 4
    // Predicated region
    $region53: #{tpu_custom_call.1} parent=5 // pred_check
      %p325 = pneg %p324
    $region54: #{tpu_custom_call.1} parent=5 // pred_check_branch
      %327 = sbr.rel (%p325) target = $region56
    $region55: #{tpu_custom_call.1} parent=5 // pred_region
      // Predicated region
      $region57: #{tpu_custom_call.1} parent=55 // pred_check
        %p328 = pneg %p37
      $region58: #{tpu_custom_call.1} parent=55 // pred_check_branch
        %330 = sbr.rel (%p328) target = $region60
      $region59: #{tpu_custom_call.1} parent=55 // pred_region
        %s331 = smul.u32 8, %s17
        %p332 = scmp.lt.s32.totalorder %s331, 31
        %s333 = scalar_select %p332, %s331, 31
        %s334 = smul.addr %s333, 4
        %s335 = scalar_lea.vmem %s0, %s334
        %s336 = smul.u32 8, %s17
      $region60: #{tpu_custom_call.1} parent=55 // pred_fallthru
        _
    $region56: #{tpu_custom_call.1} parent=5 // pred_fallthru
      _
    %p337 = scmp.le.s32.totalorder 1, %s17
    %p338 = scmp.lt.s32.totalorder %s17, 5
    %p339 = pnand %p337, %p338
    %p340 = pneg %p339
    // Predicated region
    $region61: #{tpu_custom_call.1} parent=5 // pred_check
      _
    $region62: #{tpu_custom_call.1} parent=5 // pred_check_branch
      %342 = sbr.rel (%p339) target = $region64
    $region63: #{tpu_custom_call.1} parent=5 // pred_region
      %s343 = ssub.s32 %s17, 1
      %s344 = smul.u32 8, %s22
      %p345 = scmp.lt.s32.totalorder %s344, 31
      %s346 = scalar_select %p345, %s344, 31
      %s347 = smul.addr %s346, 4
      %s348 = scalar_lea.vmem %s0, %s347
      %p349 = pneg %p43
      %p350 = pneg %p40
      %p351 = pneg %p64
      %p352 = pneg %p61
      %p353 = pneg %p85
      %p354 = pneg %p82
      %p355 = pneg %p106
      %p356 = pneg %p103
      %p357 = pneg %p127
      %p358 = pneg %p124
      %p359 = pneg %p148
      %p360 = pneg %p145
      %p361 = pneg %p169
      %p362 = pneg %p166
      %p363 = pneg %p190
      %p364 = pneg %p187
      %p365 = pneg %p211
      %p366 = pneg %p208
      %p367 = pneg %p232
      %p368 = pneg %p229
      %p369 = pneg %p253
      %p370 = pneg %p250
      %p371 = pneg %p279
      %p372 = pneg %p276
      %s373 = smul.u32 8, %s22
      %p374 = scmp.lt.s32.totalorder %s373, 31
      %s375 = scalar_select %p374, %s373, 31
      %s376 = smul.addr %s375, 8
      %s377 = scalar_lea.vmem %s11, %s376
      %s378 = smul.u32 8, %s22
      %p379 = scmp.lt.s32.totalorder %s378, 31
      %s380 = scalar_select %p379, %s378, 31
      %s381 = smul.addr %s380, 4
      %s382 = scalar_lea.vmem %s0, %s381
      %s383 = smul.u32 8, %s22
      %s384 = smul.u32 8, %s22
      %p385 = scmp.lt.s32.totalorder %s384, 31
      %s386 = scalar_select %p385, %s384, 31
      %s387 = smul.addr %s386, 8
      %s388 = scalar_lea.vmem %s11, %s387
      %s389 = smul.u32 8, %s22
      %v391 = vld [vmem:[%s382] sm:$0xf]
      %v392 = vld [vmem:[%s382 + $0x4] sm:$0xf]
      %v393 = vld [vmem:[%s382 + $0x8] sm:$0xf]
      %v394 = vld [vmem:[%s382 + $0xc] sm:$0xf]
      %v395 = vld [vmem:[%s382 + $0x10] sm:$0xf]
      %v396 = vld [vmem:[%s382 + $0x14] sm:$0xf]
      %v397 = vld [vmem:[%s382 + $0x18] sm:$0xf]
      %v398 = vld [vmem:[%s382 + $0x1c] sm:$0xf]
      %v399 = vld [vmem:[%s1] sm:$0xf]
      %v400 = vld [vmem:[%s1 + $0x4] sm:$0xf]
      %v401 = vld [vmem:[%s1 + $0x8] sm:$0xf]
      %v402 = vld [vmem:[%s1 + $0xc] sm:$0xf]
      %v403 = vld [vmem:[%s4] sm:$0x1]
      %v405 = vlaneseq
      %v406 = vshrl.u32 %v405, 7
      %v407 = vsub.s32 0, %v406
      %v408 = vrot.slane %v403, %v407
      %v418 = vunpack.c.l.b16 %v391
      %v419 = vunpack.c.l.b16 %v392
      %v420 = vunpack.c.l.b16 %v393
      %v421 = vunpack.c.l.b16 %v394
      %v422 = vunpack.c.l.b16 %v395
      %v423 = vunpack.c.l.b16 %v396
      %v424 = vunpack.c.l.b16 %v397
      %v425 = vunpack.c.l.b16 %v398
      %v426 = vpack.c.b16 %v419, %v418
      %v427 = vpack.c.b16 %v421, %v420
      %v428 = vpack.c.b16 %v423, %v422
      %v429 = vpack.c.b16 %v425, %v424
      %v434 = vunpack.c.l.b16 %v399
      %v435 = vunpack.c.l.b16 %v400
      %v436 = vunpack.c.l.b16 %v401
      %v437 = vunpack.c.l.b16 %v402
      %v438 = vpack.c.b16 %v435, %v434
      %v439 = vpack.c.b16 %v437, %v436
      %vm442 = vcmask 261120
      %v444 = vsel %vm442, %v426, 0
      %v447 = vsel %vm442, %v427, 0
      %v450 = vsel %vm442, %v428, 0
      %v453 = vsel %vm442, %v429, 0
      %455 = vmatprep.subr.bf16.mxu0 0
      %456 = vmatpush1.bf16.msra.mxu0 %v438
      %457 = vmatprep.subr.bf16.mxu0 0
      %458 = vmatpush1.bf16.msra.mxu0 %v439
      %459 = vmatprep.subr.bf16.mxu0 0
      %460 = vmatpush1.bf16.msra.mxu0 0
      %461 = vmatprep.subr.bf16.mxu0 0
      %462 = vmatpush1.bf16.msra.mxu0 0
      %463 = vmatprep.subr.bf16.mxu0 0
      %464 = vmatpush1.bf16.msra.mxu0 0
      %465 = vmatprep.subr.bf16.mxu0 0
      %466 = vmatpush1.bf16.msra.mxu0 0
      %467 = vmatprep.subr.bf16.mxu0 0
      %468 = vmatpush1.bf16.msra.mxu0 0
      %469 = vmatprep.subr.bf16.mxu0 0
      %470 = vmatpush1.bf16.msra.mxu0 0
      %471 = vmatprep.subr.bf16.mxu0 0
      %472 = vmatpush1.bf16.msra.mxu0 0
      %473 = vmatprep.subr.bf16.mxu0 0
      %474 = vmatpush1.bf16.msra.mxu0 0
      %475 = vmatprep.subr.bf16.mxu0 0
      %476 = vmatpush1.bf16.msra.mxu0 0
      %477 = vmatprep.subr.bf16.mxu0 0
      %478 = vmatpush1.bf16.msra.mxu0 0
      %479 = vmatprep.subr.bf16.mxu0 0
      %480 = vmatpush1.bf16.msra.mxu0 0
      %481 = vmatprep.subr.bf16.mxu0 0
      %482 = vmatpush1.bf16.msra.mxu0 0
      %483 = vmatprep.subr.bf16.mxu0 0
      %484 = vmatpush1.bf16.msra.mxu0 0
      %485 = vmatprep.subr.bf16.mxu0 0
      %486 = vmatpush1.bf16.msra.mxu0 0
      %487 = vmatprep.mubr.bf16.mxu0 0
      %488 = vmatmul.mubr.bf16.gmra.mrb[0].mxu0 %v444
      %v489 = vpop.f32.mrb[0].mxu0
      %v490 = vadd.f32 %v408, %v489
      %v491 = vpop.f32.mrb[0].mxu0
      %v492 = vpop.f32.mrb[0].mxu0
      %v493 = vadd.f32 %v408, %v492
      %v494 = vpop.f32.mrb[0].mxu0
      %495 = vmatprep.mubr.bf16.mxu0 0
      %496 = vmatmul.mubr.bf16.gmra.mrb[0].mxu0 %v447
      %v497 = vpop.f32.mrb[0].mxu0
      %v498 = vadd.f32 %v408, %v497
      %v499 = vpop.f32.mrb[0].mxu0
      %v500 = vpop.f32.mrb[0].mxu0
      %v501 = vadd.f32 %v408, %v500
      %v502 = vpop.f32.mrb[0].mxu0
      %503 = vmatprep.mubr.bf16.mxu0 0
      %504 = vmatmul.mubr.bf16.gmra.mrb[0].mxu0 %v450
      %v505 = vpop.f32.mrb[0].mxu0
      %v506 = vadd.f32 %v408, %v505
      %v507 = vpop.f32.mrb[0].mxu0
      %v508 = vpop.f32.mrb[0].mxu0
      %v509 = vadd.f32 %v408, %v508
      %v510 = vpop.f32.mrb[0].mxu0
      %511 = vmatprep.mubr.bf16.mxu0 0
      %512 = vmatmul.mubr.bf16.gmra.mrb[0].mxu0 %v453
      %v513 = vpop.f32.mrb[0].mxu0
      %v514 = vadd.f32 %v408, %v513
      %v515 = vpop.f32.mrb[0].mxu0
      %v516 = vpop.f32.mrb[0].mxu0
      %v517 = vadd.f32 %v408, %v516
      %v518 = vpop.f32.mrb[0].mxu0
      %519 = vdwg.mxu0
      %v520 = vld [vmem:[%s2] sm:$0xf]
      %v521 = vld [vmem:[%s2 + $0x4] sm:$0xf]
      %v522 = vld [vmem:[%s2 + $0x8] sm:$0xf]
      %v523 = vld [vmem:[%s2 + $0xc] sm:$0xf]
      %v524 = vld [vmem:[%s5] sm:$0x1]
      %v526 = vlaneseq
      %v527 = vshrl.u32 %v526, 7
      %v528 = vsub.s32 0, %v527
      %v529 = vrot.slane %v524, %v528
      %v535 = vunpack.c.l.b16 %v520
      %v536 = vunpack.c.l.b16 %v521
      %v537 = vunpack.c.l.b16 %v522
      %v538 = vunpack.c.l.b16 %v523
      %v539 = vpack.c.b16 %v536, %v535
      %v540 = vpack.c.b16 %v538, %v537
      %543 = vmatprep.subr.bf16.mxu0 0
      %544 = vmatpush1.bf16.msra.mxu0 %v539
      %545 = vmatprep.subr.bf16.mxu0 0
      %546 = vmatpush1.bf16.msra.mxu0 %v540
      %547 = vmatprep.subr.bf16.mxu0 0
      %548 = vmatpush1.bf16.msra.mxu0 0
      %549 = vmatprep.subr.bf16.mxu0 0
      %550 = vmatpush1.bf16.msra.mxu0 0
      %551 = vmatprep.subr.bf16.mxu0 0
      %552 = vmatpush1.bf16.msra.mxu0 0
      %553 = vmatprep.subr.bf16.mxu0 0
      %554 = vmatpush1.bf16.msra.mxu0 0
      %555 = vmatprep.subr.bf16.mxu0 0
      %556 = vmatpush1.bf16.msra.mxu0 0
      %557 = vmatprep.subr.bf16.mxu0 0
      %558 = vmatpush1.bf16.msra.mxu0 0
      %559 = vmatprep.subr.bf16.mxu0 0
      %560 = vmatpush1.bf16.msra.mxu0 0
      %561 = vmatprep.subr.bf16.mxu0 0
      %562 = vmatpush1.bf16.msra.mxu0 0
      %563 = vmatprep.subr.bf16.mxu0 0
      %564 = vmatpush1.bf16.msra.mxu0 0
      %565 = vmatprep.subr.bf16.mxu0 0
      %566 = vmatpush1.bf16.msra.mxu0 0
      %567 = vmatprep.subr.bf16.mxu0 0
      %568 = vmatpush1.bf16.msra.mxu0 0
      %569 = vmatprep.subr.bf16.mxu0 0
      %570 = vmatpush1.bf16.msra.mxu0 0
      %571 = vmatprep.subr.bf16.mxu0 0
      %572 = vmatpush1.bf16.msra.mxu0 0
      %573 = vmatprep.subr.bf16.mxu0 0
      %574 = vmatpush1.bf16.msra.mxu0 0
      %575 = vmatprep.mubr.bf16.mxu0 0
      %576 = vmatmul.mubr.bf16.gmra.mrb[0].mxu0 %v444
      %v577 = vpop.f32.mrb[0].mxu0
      %v578 = vadd.f32 %v529, %v577
      %v579 = vpop.f32.mrb[0].mxu0
      %v580 = vpop.f32.mrb[0].mxu0
      %v581 = vadd.f32 %v529, %v580
      %v582 = vpop.f32.mrb[0].mxu0
      %583 = vmatprep.mubr.bf16.mxu0 0
      %584 = vmatmul.mubr.bf16.gmra.mrb[0].mxu0 %v447
      %v585 = vpop.f32.mrb[0].mxu0
      %v586 = vadd.f32 %v529, %v585
      %v587 = vpop.f32.mrb[0].mxu0
      %v588 = vpop.f32.mrb[0].mxu0
      %v589 = vadd.f32 %v529, %v588
      %v590 = vpop.f32.mrb[0].mxu0
      %591 = vmatprep.mubr.bf16.mxu0 0
      %592 = vmatmul.mubr.bf16.gmra.mrb[0].mxu0 %v450
      %v593 = vpop.f32.mrb[0].mxu0
      %v594 = vadd.f32 %v529, %v593
      %v595 = vpop.f32.mrb[0].mxu0
      %v596 = vpop.f32.mrb[0].mxu0
      %v597 = vadd.f32 %v529, %v596
      %v598 = vpop.f32.mrb[0].mxu0
      %599 = vmatprep.mubr.bf16.mxu0 0
      %600 = vmatmul.mubr.bf16.gmra.mrb[0].mxu0 %v453
      %v601 = vpop.f32.mrb[0].mxu0
      %v602 = vadd.f32 %v529, %v601
      %v603 = vpop.f32.mrb[0].mxu0
      %v604 = vpop.f32.mrb[0].mxu0
      %v605 = vadd.f32 %v529, %v604
      %v606 = vpop.f32.mrb[0].mxu0
      %607 = vdwg.mxu0
      %v608 = vld [vmem:[%s3] sm:$0xf]
      %v609 = vld [vmem:[%s3 + $0x4] sm:$0xf]
      %v610 = vld [vmem:[%s3 + $0x8] sm:$0xf]
      %v611 = vld [vmem:[%s3 + $0xc] sm:$0xf]
      %v612 = vld [vmem:[%s6] sm:$0x1]
      %v614 = vlaneseq
      %v615 = vshrl.u32 %v614, 7
      %v616 = vsub.s32 0, %v615
      %v617 = vrot.slane %v612, %v616
      %v623 = vunpack.c.l.b16 %v608
      %v624 = vunpack.c.l.b16 %v609
      %v625 = vunpack.c.l.b16 %v610
      %v626 = vunpack.c.l.b16 %v611
      %v627 = vpack.c.b16 %v624, %v623
      %v628 = vpack.c.b16 %v626, %v625
      %631 = vmatprep.subr.bf16.mxu0 0
      %632 = vmatpush1.bf16.msra.mxu0 %v627
      %633 = vmatprep.subr.bf16.mxu0 0
      %634 = vmatpush1.bf16.msra.mxu0 %v628
      %635 = vmatprep.subr.bf16.mxu0 0
      %636 = vmatpush1.bf16.msra.mxu0 0
      %637 = vmatprep.subr.bf16.mxu0 0
      %638 = vmatpush1.bf16.msra.mxu0 0
      %639 = vmatprep.subr.bf16.mxu0 0
      %640 = vmatpush1.bf16.msra.mxu0 0
      %641 = vmatprep.subr.bf16.mxu0 0
      %642 = vmatpush1.bf16.msra.mxu0 0
      %643 = vmatprep.subr.bf16.mxu0 0
      %644 = vmatpush1.bf16.msra.mxu0 0
      %645 = vmatprep.subr.bf16.mxu0 0
      %646 = vmatpush1.bf16.msra.mxu0 0
      %647 = vmatprep.subr.bf16.mxu0 0
      %648 = vmatpush1.bf16.msra.mxu0 0
      %649 = vmatprep.subr.bf16.mxu0 0
      %650 = vmatpush1.bf16.msra.mxu0 0
      %651 = vmatprep.subr.bf16.mxu0 0
      %652 = vmatpush1.bf16.msra.mxu0 0
      %653 = vmatprep.subr.bf16.mxu0 0
      %654 = vmatpush1.bf16.msra.mxu0 0
      %655 = vmatprep.subr.bf16.mxu0 0
      %656 = vmatpush1.bf16.msra.mxu0 0
      %657 = vmatprep.subr.bf16.mxu0 0
      %658 = vmatpush1.bf16.msra.mxu0 0
      %659 = vmatprep.subr.bf16.mxu0 0
      %660 = vmatpush1.bf16.msra.mxu0 0
      %661 = vmatprep.subr.bf16.mxu0 0
      %662 = vmatpush1.bf16.msra.mxu0 0
      %663 = vmatprep.mubr.bf16.mxu0 0
      %664 = vmatmul.mubr.bf16.gmra.mrb[0].mxu0 %v444
      %v665 = vpop.f32.mrb[0].mxu0
      %v666 = vadd.f32 %v617, %v665
      %v667 = vpop.f32.mrb[0].mxu0
      %v668 = vpop.f32.mrb[0].mxu0
      %v669 = vadd.f32 %v617, %v668
      %v670 = vpop.f32.mrb[0].mxu0
      %671 = vmatprep.mubr.bf16.mxu0 0
      %672 = vmatmul.mubr.bf16.gmra.mrb[0].mxu0 %v447
      %v673 = vpop.f32.mrb[0].mxu0
      %v674 = vadd.f32 %v617, %v673
      %v675 = vpop.f32.mrb[0].mxu0
      %v676 = vpop.f32.mrb[0].mxu0
      %v677 = vadd.f32 %v617, %v676
      %v678 = vpop.f32.mrb[0].mxu0
      %679 = vmatprep.mubr.bf16.mxu0 0
      %680 = vmatmul.mubr.bf16.gmra.mrb[0].mxu0 %v450
      %v681 = vpop.f32.mrb[0].mxu0
      %v682 = vadd.f32 %v617, %v681
      %v683 = vpop.f32.mrb[0].mxu0
      %v684 = vpop.f32.mrb[0].mxu0
      %v685 = vadd.f32 %v617, %v684
      %v686 = vpop.f32.mrb[0].mxu0
      %687 = vmatprep.mubr.bf16.mxu0 0
      %688 = vmatmul.mubr.bf16.gmra.mrb[0].mxu0 %v453
      %v689 = vpop.f32.mrb[0].mxu0
      %v690 = vadd.f32 %v617, %v689
      %v691 = vpop.f32.mrb[0].mxu0
      %v692 = vpop.f32.mrb[0].mxu0
      %v693 = vadd.f32 %v617, %v692
      %v694 = vpop.f32.mrb[0].mxu0
      %695 = vdwg.mxu0
      %v696 = vmul.f32 %v490, %v490
      %v697 = vmul.f32 %v493, %v493
      %v698 = vmul.f32 %v498, %v498
      %v699 = vmul.f32 %v501, %v501
      %v700 = vmul.f32 %v506, %v506
      %v701 = vmul.f32 %v509, %v509
      %v702 = vmul.f32 %v514, %v514
      %v703 = vmul.f32 %v517, %v517
      %vm704 = vcmask 130048
      %v705 = vsel %vm704, %v696, 0.0
      %706 = vadd.xlane.f32.xlu0 %v705
      %v707 = vpop.xlane.xlu0 %706
      %v708 = vsel %vm704, %v697, 0.0
      %709 = vadd.xlane.f32.xlu0 %v708
      %v710 = vpop.xlane.xlu0 %709
      %v711 = vsel %vm704, %v698, 0.0
      %712 = vadd.xlane.f32.xlu0 %v711
      %v713 = vpop.xlane.xlu0 %712
      %v714 = vsel %vm704, %v699, 0.0
      %715 = vadd.xlane.f32.xlu0 %v714
      %v716 = vpop.xlane.xlu0 %715
      %v717 = vsel %vm704, %v700, 0.0
      %718 = vadd.xlane.f32.xlu0 %v717
      %v719 = vpop.xlane.xlu0 %718
      %v720 = vsel %vm704, %v701, 0.0
      %721 = vadd.xlane.f32.xlu0 %v720
      %v722 = vpop.xlane.xlu0 %721
      %v723 = vsel %vm704, %v702, 0.0
      %724 = vadd.xlane.f32.xlu0 %v723
      %v725 = vpop.xlane.xlu0 %724
      %v726 = vsel %vm704, %v703, 0.0
      %727 = vadd.xlane.f32.xlu0 %v726
      %v728 = vpop.xlane.xlu0 %727
      %v729 = vrsqrt.pop %v707
      %v730 = vrsqrt.pop %v710
      %v731 = vrsqrt.pop %v713
      %v732 = vrsqrt.pop %v716
      %v733 = vrsqrt.pop %v719
      %v734 = vrsqrt.pop %v722
      %v735 = vrsqrt.pop %v725
      %v736 = vrsqrt.pop %v728
      %v737 = vmin.f32 %v729, 1e+12
      %v738 = vmin.f32 %v730, 1e+12
      %v739 = vmin.f32 %v731, 1e+12
      %v740 = vmin.f32 %v732, 1e+12
      %v741 = vmin.f32 %v733, 1e+12
      %v742 = vmin.f32 %v734, 1e+12
      %v743 = vmin.f32 %v735, 1e+12
      %v744 = vmin.f32 %v736, 1e+12
      %v745 = vmul.f32 %v578, %v578
      %v746 = vmul.f32 %v581, %v581
      %v747 = vmul.f32 %v586, %v586
      %v748 = vmul.f32 %v589, %v589
      %v749 = vmul.f32 %v594, %v594
      %v750 = vmul.f32 %v597, %v597
      %v751 = vmul.f32 %v602, %v602
      %v752 = vmul.f32 %v605, %v605
      %v753 = vsel %vm704, %v745, 0.0
      %754 = vadd.xlane.f32.xlu0 %v753
      %v755 = vpop.xlane.xlu0 %754
      %v756 = vsel %vm704, %v746, 0.0
      %757 = vadd.xlane.f32.xlu0 %v756
      %v758 = vpop.xlane.xlu0 %757
      %v759 = vsel %vm704, %v747, 0.0
      %760 = vadd.xlane.f32.xlu0 %v759
      %v761 = vpop.xlane.xlu0 %760
      %v762 = vsel %vm704, %v748, 0.0
      %763 = vadd.xlane.f32.xlu0 %v762
      %v764 = vpop.xlane.xlu0 %763
      %v765 = vsel %vm704, %v749, 0.0
      %766 = vadd.xlane.f32.xlu0 %v765
      %v767 = vpop.xlane.xlu0 %766
      %v768 = vsel %vm704, %v750, 0.0
      %769 = vadd.xlane.f32.xlu0 %v768
      %v770 = vpop.xlane.xlu0 %769
      %v771 = vsel %vm704, %v751, 0.0
      %772 = vadd.xlane.f32.xlu0 %v771
      %v773 = vpop.xlane.xlu0 %772
      %v774 = vsel %vm704, %v752, 0.0
      %775 = vadd.xlane.f32.xlu0 %v774
      %v776 = vpop.xlane.xlu0 %775
      %v777 = vrsqrt.pop %v755
      %v778 = vrsqrt.pop %v758
      %v779 = vrsqrt.pop %v761
      %v780 = vrsqrt.pop %v764
      %v781 = vrsqrt.pop %v767
      %v782 = vrsqrt.pop %v770
      %v783 = vrsqrt.pop %v773
      %v784 = vrsqrt.pop %v776
      %v785 = vmin.f32 %v777, 1e+12
      %v786 = vmin.f32 %v778, 1e+12
      %v787 = vmin.f32 %v779, 1e+12
      %v788 = vmin.f32 %v780, 1e+12
      %v789 = vmin.f32 %v781, 1e+12
      %v790 = vmin.f32 %v782, 1e+12
      %v791 = vmin.f32 %v783, 1e+12
      %v792 = vmin.f32 %v784, 1e+12
      %v793 = vld [vmem:[%s7] sm:$0x1]
      %v794 = vlaneseq
      %v795 = vshrl.u32 %v794, 7
      %v796 = vsub.s32 0, %v795
      %v797 = vrot.slane %v793, %v796
      %v798 = vmul.f32 %v737, %v797
      %v799 = vmul.f32 %v738, %v797
      %v800 = vmul.f32 %v739, %v797
      %v801 = vmul.f32 %v740, %v797
      %v802 = vmul.f32 %v741, %v797
      %v803 = vmul.f32 %v742, %v797
      %v804 = vmul.f32 %v743, %v797
      %v805 = vmul.f32 %v744, %v797
      %807 = vset.pattern.permute.xlu0 0
      %808 = vperm.xlu0 %807, %v798
      %v809 = vpop.permute.xlu0 %808
      %812 = vset.pattern.permute.xlu0 0
      %813 = vperm.xlu0 %812, %v799
      %v814 = vpop.permute.xlu0 %813
      %817 = vset.pattern.permute.xlu0 0
      %818 = vperm.xlu0 %817, %v800
      %v819 = vpop.permute.xlu0 %818
      %822 = vset.pattern.permute.xlu0 0
      %823 = vperm.xlu0 %822, %v801
      %v824 = vpop.permute.xlu0 %823
      %827 = vset.pattern.permute.xlu0 0
      %828 = vperm.xlu0 %827, %v802
      %v829 = vpop.permute.xlu0 %828
      %832 = vset.pattern.permute.xlu0 0
      %833 = vperm.xlu0 %832, %v803
      %v834 = vpop.permute.xlu0 %833
      %837 = vset.pattern.permute.xlu0 0
      %838 = vperm.xlu0 %837, %v804
      %v839 = vpop.permute.xlu0 %838
      %842 = vset.pattern.permute.xlu0 0
      %843 = vperm.xlu0 %842, %v805
      %v844 = vpop.permute.xlu0 %843
      %v846 = vmul.f32 %v490, %v809
      %v847 = vmul.f32 %v493, %v814
      %v848 = vmul.f32 %v498, %v819
      %v849 = vmul.f32 %v501, %v824
      %v850 = vmul.f32 %v506, %v829
      %v851 = vmul.f32 %v509, %v834
      %v852 = vmul.f32 %v514, %v839
      %v853 = vmul.f32 %v517, %v844
      %v854 = vmul.f32 %v578, %v785
      %v855 = vmul.f32 %v581, %v786
      %v856 = vmul.f32 %v586, %v787
      %v857 = vmul.f32 %v589, %v788
      %v858 = vmul.f32 %v594, %v789
      %v859 = vmul.f32 %v597, %v790
      %v860 = vmul.f32 %v602, %v791
      %v861 = vmul.f32 %v605, %v792
      %v862 = vpack.c.bf16 %v846, %v846
      %v863 = vpack.c.bf16 %v847, %v847
      %v864 = vpack.c.bf16 %v848, %v848
      %v865 = vpack.c.bf16 %v849, %v849
      %v866 = vpack.c.bf16 %v850, %v850
      %v867 = vpack.c.bf16 %v851, %v851
      %v868 = vpack.c.bf16 %v852, %v852
      %v869 = vpack.c.bf16 %v853, %v853
      %v870 = vpack.c.bf16 %v854, %v854
      %v871 = vpack.c.bf16 %v855, %v855
      %v872 = vpack.c.bf16 %v856, %v856
      %v873 = vpack.c.bf16 %v857, %v857
      %v874 = vpack.c.bf16 %v858, %v858
      %v875 = vpack.c.bf16 %v859, %v859
      %v876 = vpack.c.bf16 %v860, %v860
      %v877 = vpack.c.bf16 %v861, %v861
      %v878 = vpack.c.bf16 %v666, %v666
      %v879 = vpack.c.bf16 %v669, %v669
      %v880 = vpack.c.bf16 %v674, %v674
      %v881 = vpack.c.bf16 %v677, %v677
      %v882 = vpack.c.bf16 %v682, %v682
      %v883 = vpack.c.bf16 %v685, %v685
      %v884 = vpack.c.bf16 %v690, %v690
      %v885 = vpack.c.bf16 %v693, %v693
      %v886 = vld [vmem:[%s8] sm:$0xff]
      %v888 = vsel %vm704, %v862, 0
      %v891 = vsel %vm704, %v870, 0
      %893 = vmatprep.subr.bf16.mxu0 0
      %894 = vmatpush1.bf16.xpose.msra.mxu0 %v891
      %895 = vmatprep.subr.bf16.mxu0 0
      %896 = vmatpush1.bf16.xpose.msra.mxu0 0
      %897 = vmatprep.subr.bf16.mxu0 0
      %898 = vmatpush1.bf16.xpose.msra.mxu0 0
      %899 = vmatprep.subr.bf16.mxu0 0
      %900 = vmatpush1.bf16.xpose.msra.mxu0 0
      %901 = vmatprep.subr.bf16.mxu0 0
      %902 = vmatpush1.bf16.xpose.msra.mxu0 0
      %903 = vmatprep.subr.bf16.mxu0 0
      %904 = vmatpush1.bf16.xpose.msra.mxu0 0
      %905 = vmatprep.subr.bf16.mxu0 0
      %906 = vmatpush1.bf16.xpose.msra.mxu0 0
      %907 = vmatprep.subr.bf16.mxu0 0
      %908 = vmatpush1.bf16.xpose.msra.mxu0 0
      %909 = vmatprep.subr.bf16.mxu0 0
      %910 = vmatpush1.bf16.xpose.msra.mxu0 0
      %911 = vmatprep.subr.bf16.mxu0 0
      %912 = vmatpush1.bf16.xpose.msra.mxu0 0
      %913 = vmatprep.subr.bf16.mxu0 0
      %914 = vmatpush1.bf16.xpose.msra.mxu0 0
      %915 = vmatprep.subr.bf16.mxu0 0
      %916 = vmatpush1.bf16.xpose.msra.mxu0 0
      %917 = vmatprep.subr.bf16.mxu0 0
      %918 = vmatpush1.bf16.xpose.msra.mxu0 0
      %919 = vmatprep.subr.bf16.mxu0 0
      %920 = vmatpush1.bf16.xpose.msra.mxu0 0
      %921 = vmatprep.subr.bf16.mxu0 0
      %922 = vmatpush1.bf16.xpose.msra.mxu0 0
      %923 = vmatprep.subr.bf16.mxu0 0
      %924 = vmatpush1.bf16.xpose.msra.mxu0 0
      %925 = vmatprep.mubr.bf16.mxu0 0
      %926 = vmatmul.mubr.bf16.gmra.mrb[0].mxu0 %v888
      %v927 = vpop.f32.mrb[0].mxu0
      %v928 = vadd.f32 %v886, %v927
      %v929 = vpop.f32.mrb[0].mxu0
      %v930 = vpop.f32.mrb[0].mxu0
      %v931 = vpop.f32.mrb[0].mxu0
      %932 = vdwg.mxu0
      %v934 = vsel %vm704, %v863, 0
      %v937 = vsel %vm704, %v871, 0
      %939 = vmatprep.subr.bf16.mxu0 0
      %940 = vmatpush1.bf16.xpose.msra.mxu0 %v937
      %941 = vmatprep.subr.bf16.mxu0 0
      %942 = vmatpush1.bf16.xpose.msra.mxu0 0
      %943 = vmatprep.subr.bf16.mxu0 0
      %944 = vmatpush1.bf16.xpose.msra.mxu0 0
      %945 = vmatprep.subr.bf16.mxu0 0
      %946 = vmatpush1.bf16.xpose.msra.mxu0 0
      %947 = vmatprep.subr.bf16.mxu0 0
      %948 = vmatpush1.bf16.xpose.msra.mxu0 0
      %949 = vmatprep.subr.bf16.mxu0 0
      %950 = vmatpush1.bf16.xpose.msra.mxu0 0
      %951 = vmatprep.subr.bf16.mxu0 0
      %952 = vmatpush1.bf16.xpose.msra.mxu0 0
      %953 = vmatprep.subr.bf16.mxu0 0
      %954 = vmatpush1.bf16.xpose.msra.mxu0 0
      %955 = vmatprep.subr.bf16.mxu0 0
      %956 = vmatpush1.bf16.xpose.msra.mxu0 0
      %957 = vmatprep.subr.bf16.mxu0 0
      %958 = vmatpush1.bf16.xpose.msra.mxu0 0
      %959 = vmatprep.subr.bf16.mxu0 0
      %960 = vmatpush1.bf16.xpose.msra.mxu0 0
      %961 = vmatprep.subr.bf16.mxu0 0
      %962 = vmatpush1.bf16.xpose.msra.mxu0 0
      %963 = vmatprep.subr.bf16.mxu0 0
      %964 = vmatpush1.bf16.xpose.msra.mxu0 0
      %965 = vmatprep.subr.bf16.mxu0 0
      %966 = vmatpush1.bf16.xpose.msra.mxu0 0
      %967 = vmatprep.subr.bf16.mxu0 0
      %968 = vmatpush1.bf16.xpose.msra.mxu0 0
      %969 = vmatprep.subr.bf16.mxu0 0
      %970 = vmatpush1.bf16.xpose.msra.mxu0 0
      %971 = vmatprep.mubr.bf16.mxu0 0
      %972 = vmatmul.mubr.bf16.gmra.mrb[0].mxu0 %v934
      %v973 = vpop.f32.mrb[0].mxu0
      %v974 = vadd.f32 %v886, %v973
      %v975 = vpop.f32.mrb[0].mxu0
      %v976 = vpop.f32.mrb[0].mxu0
      %v977 = vpop.f32.mrb[0].mxu0
      %978 = vdwg.mxu0
      %v980 = vsel %vm704, %v864, 0
      %v983 = vsel %vm704, %v872, 0
      %985 = vmatprep.subr.bf16.mxu0 0
      %986 = vmatpush1.bf16.xpose.msra.mxu0 %v983
      %987 = vmatprep.subr.bf16.mxu0 0
      %988 = vmatpush1.bf16.xpose.msra.mxu0 0
      %989 = vmatprep.subr.bf16.mxu0 0
      %990 = vmatpush1.bf16.xpose.msra.mxu0 0
      %991 = vmatprep.subr.bf16.mxu0 0
      %992 = vmatpush1.bf16.xpose.msra.mxu0 0
      %993 = vmatprep.subr.bf16.mxu0 0
      %994 = vmatpush1.bf16.xpose.msra.mxu0 0
      %995 = vmatprep.subr.bf16.mxu0 0
      %996 = vmatpush1.bf16.xpose.msra.mxu0 0
      %997 = vmatprep.subr.bf16.mxu0 0
      %998 = vmatpush1.bf16.xpose.msra.mxu0 0
      %999 = vmatprep.subr.bf16.mxu0 0
      %1000 = vmatpush1.bf16.xpose.msra.mxu0 0
      %1001 = vmatprep.subr.bf16.mxu0 0
      %1002 = vmatpush1.bf16.xpose.msra.mxu0 0
      %1003 = vmatprep.subr.bf16.mxu0 0
      %1004 = vmatpush1.bf16.xpose.msra.mxu0 0
      %1005 = vmatprep.subr.bf16.mxu0 0
      %1006 = vmatpush1.bf16.xpose.msra.mxu0 0
      %1007 = vmatprep.subr.bf16.mxu0 0
      %1008 = vmatpush1.bf16.xpose.msra.mxu0 0
      %1009 = vmatprep.subr.bf16.mxu0 0
      %1010 = vmatpush1.bf16.xpose.msra.mxu0 0
      %1011 = vmatprep.subr.bf16.mxu0 0
      %1012 = vmatpush1.bf16.xpose.msra.mxu0 0
      %1013 = vmatprep.subr.bf16.mxu0 0
      %1014 = vmatpush1.bf16.xpose.msra.mxu0 0
      %1015 = vmatprep.subr.bf16.mxu0 0
      %1016 = vmatpush1.bf16.xpose.msra.mxu0 0
      %1017 = vmatprep.mubr.bf16.mxu0 0
      %1018 = vmatmul.mubr.bf16.gmra.mrb[0].mxu0 %v980
      %v1019 = vpop.f32.mrb[0].mxu0
      %v1020 = vadd.f32 %v886, %v1019
      %v1021 = vpop.f32.mrb[0].mxu0
      %v1022 = vpop.f32.mrb[0].mxu0
      %v1023 = vpop.f32.mrb[0].mxu0
      %1024 = vdwg.mxu0
      %v1026 = vsel %vm704, %v865, 0
      %v1029 = vsel %vm704, %v873, 0
      %1031 = vmatprep.subr.bf16.mxu0 0
      %1032 = vmatpush1.bf16.xpose.msra.mxu0 %v1029
      %1033 = vmatprep.subr.bf16.mxu0 0
      %1034 = vmatpush1.bf16.xpose.msra.mxu0 0
      %1035 = vmatprep.subr.bf16.mxu0 0
      %1036 = vmatpush1.bf16.xpose.msra.mxu0 0
      %1037 = vmatprep.subr.bf16.mxu0 0
      %1038 = vmatpush1.bf16.xpose.msra.mxu0 0
      %1039 = vmatprep.subr.bf16.mxu0 0
      %1040 = vmatpush1.bf16.xpose.msra.mxu0 0
      %1041 = vmatprep.subr.bf16.mxu0 0
      %1042 = vmatpush1.bf16.xpose.msra.mxu0 0
      %1043 = vmatprep.subr.bf16.mxu0 0
      %1044 = vmatpush1.bf16.xpose.msra.mxu0 0
      %1045 = vmatprep.subr.bf16.mxu0 0
      %1046 = vmatpush1.bf16.xpose.msra.mxu0 0
      %1047 = vmatprep.subr.bf16.mxu0 0
      %1048 = vmatpush1.bf16.xpose.msra.mxu0 0
      %1049 = vmatprep.subr.bf16.mxu0 0
      %1050 = vmatpush1.bf16.xpose.msra.mxu0 0
      %1051 = vmatprep.subr.bf16.mxu0 0
      %1052 = vmatpush1.bf16.xpose.msra.mxu0 0
      %1053 = vmatprep.subr.bf16.mxu0 0
      %1054 = vmatpush1.bf16.xpose.msra.mxu0 0
      %1055 = vmatprep.subr.bf16.mxu0 0
      %1056 = vmatpush1.bf16.xpose.msra.mxu0 0
      %1057 = vmatprep.subr.bf16.mxu0 0
      %1058 = vmatpush1.bf16.xpose.msra.mxu0 0
      %1059 = vmatprep.subr.bf16.mxu0 0
      %1060 = vmatpush1.bf16.xpose.msra.mxu0 0
      %1061 = vmatprep.subr.bf16.mxu0 0
      %1062 = vmatpush1.bf16.xpose.msra.mxu0 0
      %1063 = vmatprep.mubr.bf16.mxu0 0
      %1064 = vmatmul.mubr.bf16.gmra.mrb[0].mxu0 %v1026
      %v1065 = vpop.f32.mrb[0].mxu0
      %v1066 = vadd.f32 %v886, %v1065
      %v1067 = vpop.f32.mrb[0].mxu0
      %v1068 = vpop.f32.mrb[0].mxu0
      %v1069 = vpop.f32.mrb[0].mxu0
      %1070 = vdwg.mxu0
      %v1072 = vsel %vm704, %v866, 0
      %v1075 = vsel %vm704, %v874, 0
      %1077 = vmatprep.subr.bf16.mxu0 0
      %1078 = vmatpush1.bf16.xpose.msra.mxu0 %v1075
      %1079 = vmatprep.subr.bf16.mxu0 0
      %1080 = vmatpush1.bf16.xpose.msra.mxu0 0
      %1081 = vmatprep.subr.bf16.mxu0 0
      %1082 = vmatpush1.bf16.xpose.msra.mxu0 0
      %1083 = vmatprep.subr.bf16.mxu0 0
      %1084 = vmatpush1.bf16.xpose.msra.mxu0 0
      %1085 = vmatprep.subr.bf16.mxu0 0
      %1086 = vmatpush1.bf16.xpose.msra.mxu0 0
      %1087 = vmatprep.subr.bf16.mxu0 0
      %1088 = vmatpush1.bf16.xpose.msra.mxu0 0
      %1089 = vmatprep.subr.bf16.mxu0 0
      %1090 = vmatpush1.bf16.xpose.msra.mxu0 0
      %1091 = vmatprep.subr.bf16.mxu0 0
      %1092 = vmatpush1.bf16.xpose.msra.mxu0 0
      %1093 = vmatprep.subr.bf16.mxu0 0
      %1094 = vmatpush1.bf16.xpose.msra.mxu0 0
      %1095 = vmatprep.subr.bf16.mxu0 0
      %1096 = vmatpush1.bf16.xpose.msra.mxu0 0
      %1097 = vmatprep.subr.bf16.mxu0 0
      %1098 = vmatpush1.bf16.xpose.msra.mxu0 0
      %1099 = vmatprep.subr.bf16.mxu0 0
      %1100 = vmatpush1.bf16.xpose.msra.mxu0 0
      %1101 = vmatprep.subr.bf16.mxu0 0
      %1102 = vmatpush1.bf16.xpose.msra.mxu0 0
      %1103 = vmatprep.subr.bf16.mxu0 0
      %1104 = vmatpush1.bf16.xpose.msra.mxu0 0
      %1105 = vmatprep.subr.bf16.mxu0 0
      %1106 = vmatpush1.bf16.xpose.msra.mxu0 0
      %1107 = vmatprep.subr.bf16.mxu0 0
      %1108 = vmatpush1.bf16.xpose.msra.mxu0 0
      %1109 = vmatprep.mubr.bf16.mxu0 0
      %1110 = vmatmul.mubr.bf16.gmra.mrb[0].mxu0 %v1072
      %v1111 = vpop.f32.mrb[0].mxu0
      %v1112 = vadd.f32 %v886, %v1111
      %v1113 = vpop.f32.mrb[0].mxu0
      %v1114 = vpop.f32.mrb[0].mxu0
      %v1115 = vpop.f32.mrb[0].mxu0
      %1116 = vdwg.mxu0
      %v1118 = vsel %vm704, %v867, 0
      %v1121 = vsel %vm704, %v875, 0
      %1123 = vmatprep.subr.bf16.mxu0 0
      %1124 = vmatpush1.bf16.xpose.msra.mxu0 %v1121
      %1125 = vmatprep.subr.bf16.mxu0 0
      %1126 = vmatpush1.bf16.xpose.msra.mxu0 0
      %1127 = vmatprep.subr.bf16.mxu0 0
      %1128 = vmatpush1.bf16.xpose.msra.mxu0 0
      %1129 = vmatprep.subr.bf16.mxu0 0
      %1130 = vmatpush1.bf16.xpose.msra.mxu0 0
      %1131 = vmatprep.subr.bf16.mxu0 0
      %1132 = vmatpush1.bf16.xpose.msra.mxu0 0
      %1133 = vmatprep.subr.bf16.mxu0 0
      %1134 = vmatpush1.bf16.xpose.msra.mxu0 0
      %1135 = vmatprep.subr.bf16.mxu0 0
      %1136 = vmatpush1.bf16.xpose.msra.mxu0 0
      %1137 = vmatprep.subr.bf16.mxu0 0
      %1138 = vmatpush1.bf16.xpose.msra.mxu0 0
      %1139 = vmatprep.subr.bf16.mxu0 0
      %1140 = vmatpush1.bf16.xpose.msra.mxu0 0
      %1141 = vmatprep.subr.bf16.mxu0 0
      %1142 = vmatpush1.bf16.xpose.msra.mxu0 0
      %1143 = vmatprep.subr.bf16.mxu0 0
      %1144 = vmatpush1.bf16.xpose.msra.mxu0 0
      %1145 = vmatprep.subr.bf16.mxu0 0
      %1146 = vmatpush1.bf16.xpose.msra.mxu0 0
      %1147 = vmatprep.subr.bf16.mxu0 0
      %1148 = vmatpush1.bf16.xpose.msra.mxu0 0
      %1149 = vmatprep.subr.bf16.mxu0 0
      %1150 = vmatpush1.bf16.xpose.msra.mxu0 0
      %1151 = vmatprep.subr.bf16.mxu0 0
      %1152 = vmatpush1.bf16.xpose.msra.mxu0 0
      %1153 = vmatprep.subr.bf16.mxu0 0
      %1154 = vmatpush1.bf16.xpose.msra.mxu0 0
      %1155 = vmatprep.mubr.bf16.mxu0 0
      %1156 = vmatmul.mubr.bf16.gmra.mrb[0].mxu0 %v1118
      %v1157 = vpop.f32.mrb[0].mxu0
      %v1158 = vadd.f32 %v886, %v1157
      %v1159 = vpop.f32.mrb[0].mxu0
      %v1160 = vpop.f32.mrb[0].mxu0
      %v1161 = vpop.f32.mrb[0].mxu0
      %1162 = vdwg.mxu0
      %v1164 = vsel %vm704, %v868, 0
      %v1167 = vsel %vm704, %v876, 0
      %1169 = vmatprep.subr.bf16.mxu0 0
      %1170 = vmatpush1.bf16.xpose.msra.mxu0 %v1167
      %1171 = vmatprep.subr.bf16.mxu0 0
      %1172 = vmatpush1.bf16.xpose.msra.mxu0 0
      %1173 = vmatprep.subr.bf16.mxu0 0
      %1174 = vmatpush1.bf16.xpose.msra.mxu0 0
      %1175 = vmatprep.subr.bf16.mxu0 0
      %1176 = vmatpush1.bf16.xpose.msra.mxu0 0
      %1177 = vmatprep.subr.bf16.mxu0 0
      %1178 = vmatpush1.bf16.xpose.msra.mxu0 0
      %1179 = vmatprep.subr.bf16.mxu0 0
      %1180 = vmatpush1.bf16.xpose.msra.mxu0 0
      %1181 = vmatprep.subr.bf16.mxu0 0
      %1182 = vmatpush1.bf16.xpose.msra.mxu0 0
      %1183 = vmatprep.subr.bf16.mxu0 0
      %1184 = vmatpush1.bf16.xpose.msra.mxu0 0
      %1185 = vmatprep.subr.bf16.mxu0 0
      %1186 = vmatpush1.bf16.xpose.msra.mxu0 0
      %1187 = vmatprep.subr.bf16.mxu0 0
      %1188 = vmatpush1.bf16.xpose.msra.mxu0 0
      %1189 = vmatprep.subr.bf16.mxu0 0
      %1190 = vmatpush1.bf16.xpose.msra.mxu0 0
      %1191 = vmatprep.subr.bf16.mxu0 0
      %1192 = vmatpush1.bf16.xpose.msra.mxu0 0
      %1193 = vmatprep.subr.bf16.mxu0 0
      %1194 = vmatpush1.bf16.xpose.msra.mxu0 0
      %1195 = vmatprep.subr.bf16.mxu0 0
      %1196 = vmatpush1.bf16.xpose.msra.mxu0 0
      %1197 = vmatprep.subr.bf16.mxu0 0
      %1198 = vmatpush1.bf16.xpose.msra.mxu0 0
      %1199 = vmatprep.subr.bf16.mxu0 0
      %1200 = vmatpush1.bf16.xpose.msra.mxu0 0
      %1201 = vmatprep.mubr.bf16.mxu0 0
      %1202 = vmatmul.mubr.bf16.gmra.mrb[0].mxu0 %v1164
      %v1203 = vpop.f32.mrb[0].mxu0
      %v1204 = vadd.f32 %v886, %v1203
      %v1205 = vpop.f32.mrb[0].mxu0
      %v1206 = vpop.f32.mrb[0].mxu0
      %v1207 = vpop.f32.mrb[0].mxu0
      %1208 = vdwg.mxu0
      %v1210 = vsel %vm704, %v869, 0
      %v1213 = vsel %vm704, %v877, 0
      %1215 = vmatprep.subr.bf16.mxu0 0
      %1216 = vmatpush1.bf16.xpose.msra.mxu0 %v1213
      %1217 = vmatprep.subr.bf16.mxu0 0
      %1218 = vmatpush1.bf16.xpose.msra.mxu0 0
      %1219 = vmatprep.subr.bf16.mxu0 0
      %1220 = vmatpush1.bf16.xpose.msra.mxu0 0
      %1221 = vmatprep.subr.bf16.mxu0 0
      %1222 = vmatpush1.bf16.xpose.msra.mxu0 0
      %1223 = vmatprep.subr.bf16.mxu0 0
      %1224 = vmatpush1.bf16.xpose.msra.mxu0 0
      %1225 = vmatprep.subr.bf16.mxu0 0
      %1226 = vmatpush1.bf16.xpose.msra.mxu0 0
      %1227 = vmatprep.subr.bf16.mxu0 0
      %1228 = vmatpush1.bf16.xpose.msra.mxu0 0
      %1229 = vmatprep.subr.bf16.mxu0 0
      %1230 = vmatpush1.bf16.xpose.msra.mxu0 0
      %1231 = vmatprep.subr.bf16.mxu0 0
      %1232 = vmatpush1.bf16.xpose.msra.mxu0 0
      %1233 = vmatprep.subr.bf16.mxu0 0
      %1234 = vmatpush1.bf16.xpose.msra.mxu0 0
      %1235 = vmatprep.subr.bf16.mxu0 0
      %1236 = vmatpush1.bf16.xpose.msra.mxu0 0
      %1237 = vmatprep.subr.bf16.mxu0 0
      %1238 = vmatpush1.bf16.xpose.msra.mxu0 0
      %1239 = vmatprep.subr.bf16.mxu0 0
      %1240 = vmatpush1.bf16.xpose.msra.mxu0 0
      %1241 = vmatprep.subr.bf16.mxu0 0
      %1242 = vmatpush1.bf16.xpose.msra.mxu0 0
      %1243 = vmatprep.subr.bf16.mxu0 0
      %1244 = vmatpush1.bf16.xpose.msra.mxu0 0
      %1245 = vmatprep.subr.bf16.mxu0 0
      %1246 = vmatpush1.bf16.xpose.msra.mxu0 0
      %1247 = vmatprep.mubr.bf16.mxu0 0
      %1248 = vmatmul.mubr.bf16.gmra.mrb[0].mxu0 %v1210
      %v1249 = vpop.f32.mrb[0].mxu0
      %v1250 = vadd.f32 %v886, %v1249
      %v1251 = vpop.f32.mrb[0].mxu0
      %v1252 = vpop.f32.mrb[0].mxu0
      %v1253 = vpop.f32.mrb[0].mxu0
      %1254 = vdwg.mxu0
      %vm1255 = vcmask 64512
      %v1256 = vsel %vm1255, %v928, -inf
      %1257 = vmax.xlane.f32.xlu0 %v1256
      %v1258 = vpop.xlane.xlu0 %1257
      %v1259 = vsel %vm1255, %v974, -inf
      %1260 = vmax.xlane.f32.xlu0 %v1259
      %v1261 = vpop.xlane.xlu0 %1260
      %v1262 = vsel %vm1255, %v1020, -inf
      %1263 = vmax.xlane.f32.xlu0 %v1262
      %v1264 = vpop.xlane.xlu0 %1263
      %v1265 = vsel %vm1255, %v1066, -inf
      %1266 = vmax.xlane.f32.xlu0 %v1265
      %v1267 = vpop.xlane.xlu0 %1266
      %v1268 = vsel %vm1255, %v1112, -inf
      %1269 = vmax.xlane.f32.xlu0 %v1268
      %v1270 = vpop.xlane.xlu0 %1269
      %v1271 = vsel %vm1255, %v1158, -inf
      %1272 = vmax.xlane.f32.xlu0 %v1271
      %v1273 = vpop.xlane.xlu0 %1272
      %v1274 = vsel %vm1255, %v1204, -inf
      %1275 = vmax.xlane.f32.xlu0 %v1274
      %v1276 = vpop.xlane.xlu0 %1275
      %v1277 = vsel %vm1255, %v1250, -inf
      %1278 = vmax.xlane.f32.xlu0 %v1277
      %v1279 = vpop.xlane.xlu0 %1278
      %v1280 = vsub.f32 %v928, %v1258
      %v1281 = vsub.f32 %v974, %v1261
      %v1282 = vsub.f32 %v1020, %v1264
      %v1283 = vsub.f32 %v1066, %v1267
      %v1284 = vsub.f32 %v1112, %v1270
      %v1285 = vsub.f32 %v1158, %v1273
      %v1286 = vsub.f32 %v1204, %v1276
      %v1287 = vsub.f32 %v1250, %v1279
      %v1288 = vmul.f32 %v1280, 1.442695
      %v1289 = vpow.pop %v1288
      %v1290 = vmul.f32 %v1281, 1.442695
      %v1291 = vpow.pop %v1290
      %v1292 = vmul.f32 %v1282, 1.442695
      %v1293 = vpow.pop %v1292
      %v1294 = vmul.f32 %v1283, 1.442695
      %v1295 = vpow.pop %v1294
      %v1296 = vmul.f32 %v1284, 1.442695
      %v1297 = vpow.pop %v1296
      %v1298 = vmul.f32 %v1285, 1.442695
      %v1299 = vpow.pop %v1298
      %v1300 = vmul.f32 %v1286, 1.442695
      %v1301 = vpow.pop %v1300
      %v1302 = vmul.f32 %v1287, 1.442695
      %v1303 = vpow.pop %v1302
      %v1304 = vsel %vm1255, %v1289, 0.0
      %1305 = vadd.xlane.f32.xlu0 %v1304
      %v1306 = vpop.xlane.xlu0 %1305
      %v1307 = vsel %vm1255, %v1291, 0.0
      %1308 = vadd.xlane.f32.xlu0 %v1307
      %v1309 = vpop.xlane.xlu0 %1308
      %v1310 = vsel %vm1255, %v1293, 0.0
      %1311 = vadd.xlane.f32.xlu0 %v1310
      %v1312 = vpop.xlane.xlu0 %1311
      %v1313 = vsel %vm1255, %v1295, 0.0
      %1314 = vadd.xlane.f32.xlu0 %v1313
      %v1315 = vpop.xlane.xlu0 %1314
      %v1316 = vsel %vm1255, %v1297, 0.0
      %1317 = vadd.xlane.f32.xlu0 %v1316
      %v1318 = vpop.xlane.xlu0 %1317
      %v1319 = vsel %vm1255, %v1299, 0.0
      %1320 = vadd.xlane.f32.xlu0 %v1319
      %v1321 = vpop.xlane.xlu0 %1320
      %v1322 = vsel %vm1255, %v1301, 0.0
      %1323 = vadd.xlane.f32.xlu0 %v1322
      %v1324 = vpop.xlane.xlu0 %1323
      %v1325 = vsel %vm1255, %v1303, 0.0
      %1326 = vadd.xlane.f32.xlu0 %v1325
      %v1327 = vpop.xlane.xlu0 %1326
      %v1328 = vrcp.pop %v1306
      %v1329 = vrcp.pop %v1309
      %v1330 = vrcp.pop %v1312
      %v1331 = vrcp.pop %v1315
      %v1332 = vrcp.pop %v1318
      %v1333 = vrcp.pop %v1321
      %v1334 = vrcp.pop %v1324
      %v1335 = vrcp.pop %v1327
      %v1336 = vmul.f32 %v1289, %v1328
      %v1337 = vmul.f32 %v1291, %v1329
      %v1338 = vmul.f32 %v1293, %v1330
      %v1339 = vmul.f32 %v1295, %v1331
      %v1340 = vmul.f32 %v1297, %v1332
      %v1341 = vmul.f32 %v1299, %v1333
      %v1342 = vmul.f32 %v1301, %v1334
      %v1343 = vmul.f32 %v1303, %v1335
      %v1344 = vpack.c.bf16 %v1336, %v1336
      %v1345 = vpack.c.bf16 %v1337, %v1337
      %v1346 = vpack.c.bf16 %v1338, %v1338
      %v1347 = vpack.c.bf16 %v1339, %v1339
      %v1348 = vpack.c.bf16 %v1340, %v1340
      %v1349 = vpack.c.bf16 %v1341, %v1341
      %v1350 = vpack.c.bf16 %v1342, %v1342
      %v1351 = vpack.c.bf16 %v1343, %v1343
      %v1353 = vsel %vm1255, %v1344, 0
      %vm1355 = vcmask 1043456
      %v1357 = vsel %vm1355, %v878, 0
      %1359 = vmatprep.subr.bf16.mxu0 0
      %1360 = vmatpush1.bf16.msra.mxu0 %v1357
      %1361 = vmatprep.subr.bf16.mxu0 0
      %1362 = vmatpush1.bf16.msra.mxu0 0
      %1363 = vmatprep.subr.bf16.mxu0 0
      %1364 = vmatpush1.bf16.msra.mxu0 0
      %1365 = vmatprep.subr.bf16.mxu0 0
      %1366 = vmatpush1.bf16.msra.mxu0 0
      %1367 = vmatprep.subr.bf16.mxu0 0
      %1368 = vmatpush1.bf16.msra.mxu0 0
      %1369 = vmatprep.subr.bf16.mxu0 0
      %1370 = vmatpush1.bf16.msra.mxu0 0
      %1371 = vmatprep.subr.bf16.mxu0 0
      %1372 = vmatpush1.bf16.msra.mxu0 0
      %1373 = vmatprep.subr.bf16.mxu0 0
      %1374 = vmatpush1.bf16.msra.mxu0 0
      %1375 = vmatprep.subr.bf16.mxu0 0
      %1376 = vmatpush1.bf16.msra.mxu0 0
      %1377 = vmatprep.subr.bf16.mxu0 0
      %1378 = vmatpush1.bf16.msra.mxu0 0
      %1379 = vmatprep.subr.bf16.mxu0 0
      %1380 = vmatpush1.bf16.msra.mxu0 0
      %1381 = vmatprep.subr.bf16.mxu0 0
      %1382 = vmatpush1.bf16.msra.mxu0 0
      %1383 = vmatprep.subr.bf16.mxu0 0
      %1384 = vmatpush1.bf16.msra.mxu0 0
      %1385 = vmatprep.subr.bf16.mxu0 0
      %1386 = vmatpush1.bf16.msra.mxu0 0
      %1387 = vmatprep.subr.bf16.mxu0 0
      %1388 = vmatpush1.bf16.msra.mxu0 0
      %1389 = vmatprep.subr.bf16.mxu0 0
      %1390 = vmatpush1.bf16.msra.mxu0 0
      %1391 = vmatprep.mubr.bf16.mxu0 0
      %1392 = vmatmul.mubr.bf16.gmra.mrb[0].mxu0 %v1353
      %v1393 = vpop.f32.mrb[0].mxu0
      %v1394 = vadd.f32 0.0, %v1393
      %v1395 = vpop.f32.mrb[0].mxu0
      %v1396 = vpop.f32.mrb[0].mxu0
      %v1397 = vpop.f32.mrb[0].mxu0
      %1398 = vdwg.mxu0
      %v1400 = vsel %vm1255, %v1345, 0
      %v1403 = vsel %vm1355, %v879, 0
      %1405 = vmatprep.subr.bf16.mxu0 0
      %1406 = vmatpush1.bf16.msra.mxu0 %v1403
      %1407 = vmatprep.subr.bf16.mxu0 0
      %1408 = vmatpush1.bf16.msra.mxu0 0
      %1409 = vmatprep.subr.bf16.mxu0 0
      %1410 = vmatpush1.bf16.msra.mxu0 0
      %1411 = vmatprep.subr.bf16.mxu0 0
      %1412 = vmatpush1.bf16.msra.mxu0 0
      %1413 = vmatprep.subr.bf16.mxu0 0
      %1414 = vmatpush1.bf16.msra.mxu0 0
      %1415 = vmatprep.subr.bf16.mxu0 0
      %1416 = vmatpush1.bf16.msra.mxu0 0
      %1417 = vmatprep.subr.bf16.mxu0 0
      %1418 = vmatpush1.bf16.msra.mxu0 0
      %1419 = vmatprep.subr.bf16.mxu0 0
      %1420 = vmatpush1.bf16.msra.mxu0 0
      %1421 = vmatprep.subr.bf16.mxu0 0
      %1422 = vmatpush1.bf16.msra.mxu0 0
      %1423 = vmatprep.subr.bf16.mxu0 0
      %1424 = vmatpush1.bf16.msra.mxu0 0
      %1425 = vmatprep.subr.bf16.mxu0 0
      %1426 = vmatpush1.bf16.msra.mxu0 0
      %1427 = vmatprep.subr.bf16.mxu0 0
      %1428 = vmatpush1.bf16.msra.mxu0 0
      %1429 = vmatprep.subr.bf16.mxu0 0
      %1430 = vmatpush1.bf16.msra.mxu0 0
      %1431 = vmatprep.subr.bf16.mxu0 0
      %1432 = vmatpush1.bf16.msra.mxu0 0
      %1433 = vmatprep.subr.bf16.mxu0 0
      %1434 = vmatpush1.bf16.msra.mxu0 0
      %1435 = vmatprep.subr.bf16.mxu0 0
      %1436 = vmatpush1.bf16.msra.mxu0 0
      %1437 = vmatprep.mubr.bf16.mxu0 0
      %1438 = vmatmul.mubr.bf16.gmra.mrb[0].mxu0 %v1400
      %v1439 = vpop.f32.mrb[0].mxu0
      %v1440 = vadd.f32 0.0, %v1439
      %v1441 = vpop.f32.mrb[0].mxu0
      %v1442 = vpop.f32.mrb[0].mxu0
      %v1443 = vpop.f32.mrb[0].mxu0
      %1444 = vdwg.mxu0
      %v1446 = vsel %vm1255, %v1346, 0
      %v1449 = vsel %vm1355, %v880, 0
      %1451 = vmatprep.subr.bf16.mxu0 0
      %1452 = vmatpush1.bf16.msra.mxu0 %v1449
      %1453 = vmatprep.subr.bf16.mxu0 0
      %1454 = vmatpush1.bf16.msra.mxu0 0
      %1455 = vmatprep.subr.bf16.mxu0 0
      %1456 = vmatpush1.bf16.msra.mxu0 0
      %1457 = vmatprep.subr.bf16.mxu0 0
      %1458 = vmatpush1.bf16.msra.mxu0 0
      %1459 = vmatprep.subr.bf16.mxu0 0
      %1460 = vmatpush1.bf16.msra.mxu0 0
      %1461 = vmatprep.subr.bf16.mxu0 0
      %1462 = vmatpush1.bf16.msra.mxu0 0
      %1463 = vmatprep.subr.bf16.mxu0 0
      %1464 = vmatpush1.bf16.msra.mxu0 0
      %1465 = vmatprep.subr.bf16.mxu0 0
      %1466 = vmatpush1.bf16.msra.mxu0 0
      %1467 = vmatprep.subr.bf16.mxu0 0
      %1468 = vmatpush1.bf16.msra.mxu0 0
      %1469 = vmatprep.subr.bf16.mxu0 0
      %1470 = vmatpush1.bf16.msra.mxu0 0
      %1471 = vmatprep.subr.bf16.mxu0 0
      %1472 = vmatpush1.bf16.msra.mxu0 0
      %1473 = vmatprep.subr.bf16.mxu0 0
      %1474 = vmatpush1.bf16.msra.mxu0 0
      %1475 = vmatprep.subr.bf16.mxu0 0
      %1476 = vmatpush1.bf16.msra.mxu0 0
      %1477 = vmatprep.subr.bf16.mxu0 0
      %1478 = vmatpush1.bf16.msra.mxu0 0
      %1479 = vmatprep.subr.bf16.mxu0 0
      %1480 = vmatpush1.bf16.msra.mxu0 0
      %1481 = vmatprep.subr.bf16.mxu0 0
      %1482 = vmatpush1.bf16.msra.mxu0 0
      %1483 = vmatprep.mubr.bf16.mxu0 0
      %1484 = vmatmul.mubr.bf16.gmra.mrb[0].mxu0 %v1446
      %v1485 = vpop.f32.mrb[0].mxu0
      %v1486 = vadd.f32 0.0, %v1485
      %v1487 = vpop.f32.mrb[0].mxu0
      %v1488 = vpop.f32.mrb[0].mxu0
      %v1489 = vpop.f32.mrb[0].mxu0
      %1490 = vdwg.mxu0
      %v1492 = vsel %vm1255, %v1347, 0
      %v1495 = vsel %vm1355, %v881, 0
      %1497 = vmatprep.subr.bf16.mxu0 0
      %1498 = vmatpush1.bf16.msra.mxu0 %v1495
      %1499 = vmatprep.subr.bf16.mxu0 0
      %1500 = vmatpush1.bf16.msra.mxu0 0
      %1501 = vmatprep.subr.bf16.mxu0 0
      %1502 = vmatpush1.bf16.msra.mxu0 0
      %1503 = vmatprep.subr.bf16.mxu0 0
      %1504 = vmatpush1.bf16.msra.mxu0 0
      %1505 = vmatprep.subr.bf16.mxu0 0
      %1506 = vmatpush1.bf16.msra.mxu0 0
      %1507 = vmatprep.subr.bf16.mxu0 0
      %1508 = vmatpush1.bf16.msra.mxu0 0
      %1509 = vmatprep.subr.bf16.mxu0 0
      %1510 = vmatpush1.bf16.msra.mxu0 0
      %1511 = vmatprep.subr.bf16.mxu0 0
      %1512 = vmatpush1.bf16.msra.mxu0 0
      %1513 = vmatprep.subr.bf16.mxu0 0
      %1514 = vmatpush1.bf16.msra.mxu0 0
      %1515 = vmatprep.subr.bf16.mxu0 0
      %1516 = vmatpush1.bf16.msra.mxu0 0
      %1517 = vmatprep.subr.bf16.mxu0 0
      %1518 = vmatpush1.bf16.msra.mxu0 0
      %1519 = vmatprep.subr.bf16.mxu0 0
      %1520 = vmatpush1.bf16.msra.mxu0 0
      %1521 = vmatprep.subr.bf16.mxu0 0
      %1522 = vmatpush1.bf16.msra.mxu0 0
      %1523 = vmatprep.subr.bf16.mxu0 0
      %1524 = vmatpush1.bf16.msra.mxu0 0
      %1525 = vmatprep.subr.bf16.mxu0 0
      %1526 = vmatpush1.bf16.msra.mxu0 0
      %1527 = vmatprep.subr.bf16.mxu0 0
      %1528 = vmatpush1.bf16.msra.mxu0 0
      %1529 = vmatprep.mubr.bf16.mxu0 0
      %1530 = vmatmul.mubr.bf16.gmra.mrb[0].mxu0 %v1492
      %v1531 = vpop.f32.mrb[0].mxu0
      %v1532 = vadd.f32 0.0, %v1531
      %v1533 = vpop.f32.mrb[0].mxu0
      %v1534 = vpop.f32.mrb[0].mxu0
      %v1535 = vpop.f32.mrb[0].mxu0
      %1536 = vdwg.mxu0
      %v1538 = vsel %vm1255, %v1348, 0
      %v1541 = vsel %vm1355, %v882, 0
      %1543 = vmatprep.subr.bf16.mxu0 0
      %1544 = vmatpush1.bf16.msra.mxu0 %v1541
      %1545 = vmatprep.subr.bf16.mxu0 0
      %1546 = vmatpush1.bf16.msra.mxu0 0
      %1547 = vmatprep.subr.bf16.mxu0 0
      %1548 = vmatpush1.bf16.msra.mxu0 0
      %1549 = vmatprep.subr.bf16.mxu0 0
      %1550 = vmatpush1.bf16.msra.mxu0 0
      %1551 = vmatprep.subr.bf16.mxu0 0
      %1552 = vmatpush1.bf16.msra.mxu0 0
      %1553 = vmatprep.subr.bf16.mxu0 0
      %1554 = vmatpush1.bf16.msra.mxu0 0
      %1555 = vmatprep.subr.bf16.mxu0 0
      %1556 = vmatpush1.bf16.msra.mxu0 0
      %1557 = vmatprep.subr.bf16.mxu0 0
      %1558 = vmatpush1.bf16.msra.mxu0 0
      %1559 = vmatprep.subr.bf16.mxu0 0
      %1560 = vmatpush1.bf16.msra.mxu0 0
      %1561 = vmatprep.subr.bf16.mxu0 0
      %1562 = vmatpush1.bf16.msra.mxu0 0
      %1563 = vmatprep.subr.bf16.mxu0 0
      %1564 = vmatpush1.bf16.msra.mxu0 0
      %1565 = vmatprep.subr.bf16.mxu0 0
      %1566 = vmatpush1.bf16.msra.mxu0 0
      %1567 = vmatprep.subr.bf16.mxu0 0
      %1568 = vmatpush1.bf16.msra.mxu0 0
      %1569 = vmatprep.subr.bf16.mxu0 0
      %1570 = vmatpush1.bf16.msra.mxu0 0
      %1571 = vmatprep.subr.bf16.mxu0 0
      %1572 = vmatpush1.bf16.msra.mxu0 0
      %1573 = vmatprep.subr.bf16.mxu0 0
      %1574 = vmatpush1.bf16.msra.mxu0 0
      %1575 = vmatprep.mubr.bf16.mxu0 0
      %1576 = vmatmul.mubr.bf16.gmra.mrb[0].mxu0 %v1538
      %v1577 = vpop.f32.mrb[0].mxu0
      %v1578 = vadd.f32 0.0, %v1577
      %v1579 = vpop.f32.mrb[0].mxu0
      %v1580 = vpop.f32.mrb[0].mxu0
      %v1581 = vpop.f32.mrb[0].mxu0
      %1582 = vdwg.mxu0
      %v1584 = vsel %vm1255, %v1349, 0
      %v1587 = vsel %vm1355, %v883, 0
      %1589 = vmatprep.subr.bf16.mxu0 0
      %1590 = vmatpush1.bf16.msra.mxu0 %v1587
      %1591 = vmatprep.subr.bf16.mxu0 0
      %1592 = vmatpush1.bf16.msra.mxu0 0
      %1593 = vmatprep.subr.bf16.mxu0 0
      %1594 = vmatpush1.bf16.msra.mxu0 0
      %1595 = vmatprep.subr.bf16.mxu0 0
      %1596 = vmatpush1.bf16.msra.mxu0 0
      %1597 = vmatprep.subr.bf16.mxu0 0
      %1598 = vmatpush1.bf16.msra.mxu0 0
      %1599 = vmatprep.subr.bf16.mxu0 0
      %1600 = vmatpush1.bf16.msra.mxu0 0
      %1601 = vmatprep.subr.bf16.mxu0 0
      %1602 = vmatpush1.bf16.msra.mxu0 0
      %1603 = vmatprep.subr.bf16.mxu0 0
      %1604 = vmatpush1.bf16.msra.mxu0 0
      %1605 = vmatprep.subr.bf16.mxu0 0
      %1606 = vmatpush1.bf16.msra.mxu0 0
      %1607 = vmatprep.subr.bf16.mxu0 0
      %1608 = vmatpush1.bf16.msra.mxu0 0
      %1609 = vmatprep.subr.bf16.mxu0 0
      %1610 = vmatpush1.bf16.msra.mxu0 0
      %1611 = vmatprep.subr.bf16.mxu0 0
      %1612 = vmatpush1.bf16.msra.mxu0 0
      %1613 = vmatprep.subr.bf16.mxu0 0
      %1614 = vmatpush1.bf16.msra.mxu0 0
      %1615 = vmatprep.subr.bf16.mxu0 0
      %1616 = vmatpush1.bf16.msra.mxu0 0
      %1617 = vmatprep.subr.bf16.mxu0 0
      %1618 = vmatpush1.bf16.msra.mxu0 0
      %1619 = vmatprep.subr.bf16.mxu0 0
      %1620 = vmatpush1.bf16.msra.mxu0 0
      %1621 = vmatprep.mubr.bf16.mxu0 0
      %1622 = vmatmul.mubr.bf16.gmra.mrb[0].mxu0 %v1584
      %v1623 = vpop.f32.mrb[0].mxu0
      %v1624 = vadd.f32 0.0, %v1623
      %v1625 = vpop.f32.mrb[0].mxu0
      %v1626 = vpop.f32.mrb[0].mxu0
      %v1627 = vpop.f32.mrb[0].mxu0
      %1628 = vdwg.mxu0
      %v1630 = vsel %vm1255, %v1350, 0
      %v1633 = vsel %vm1355, %v884, 0
      %1635 = vmatprep.subr.bf16.mxu0 0
      %1636 = vmatpush1.bf16.msra.mxu0 %v1633
      %1637 = vmatprep.subr.bf16.mxu0 0
      %1638 = vmatpush1.bf16.msra.mxu0 0
      %1639 = vmatprep.subr.bf16.mxu0 0
      %1640 = vmatpush1.bf16.msra.mxu0 0
      %1641 = vmatprep.subr.bf16.mxu0 0
      %1642 = vmatpush1.bf16.msra.mxu0 0
      %1643 = vmatprep.subr.bf16.mxu0 0
      %1644 = vmatpush1.bf16.msra.mxu0 0
      %1645 = vmatprep.subr.bf16.mxu0 0
      %1646 = vmatpush1.bf16.msra.mxu0 0
      %1647 = vmatprep.subr.bf16.mxu0 0
      %1648 = vmatpush1.bf16.msra.mxu0 0
      %1649 = vmatprep.subr.bf16.mxu0 0
      %1650 = vmatpush1.bf16.msra.mxu0 0
      %1651 = vmatprep.subr.bf16.mxu0 0
      %1652 = vmatpush1.bf16.msra.mxu0 0
      %1653 = vmatprep.subr.bf16.mxu0 0
      %1654 = vmatpush1.bf16.msra.mxu0 0
      %1655 = vmatprep.subr.bf16.mxu0 0
      %1656 = vmatpush1.bf16.msra.mxu0 0
      %1657 = vmatprep.subr.bf16.mxu0 0
      %1658 = vmatpush1.bf16.msra.mxu0 0
      %1659 = vmatprep.subr.bf16.mxu0 0
      %1660 = vmatpush1.bf16.msra.mxu0 0
      %1661 = vmatprep.subr.bf16.mxu0 0
      %1662 = vmatpush1.bf16.msra.mxu0 0
      %1663 = vmatprep.subr.bf16.mxu0 0
      %1664 = vmatpush1.bf16.msra.mxu0 0
      %1665 = vmatprep.subr.bf16.mxu0 0
      %1666 = vmatpush1.bf16.msra.mxu0 0
      %1667 = vmatprep.mubr.bf16.mxu0 0
      %1668 = vmatmul.mubr.bf16.gmra.mrb[0].mxu0 %v1630
      %v1669 = vpop.f32.mrb[0].mxu0
      %v1670 = vadd.f32 0.0, %v1669
      %v1671 = vpop.f32.mrb[0].mxu0
      %v1672 = vpop.f32.mrb[0].mxu0
      %v1673 = vpop.f32.mrb[0].mxu0
      %1674 = vdwg.mxu0
      %v1676 = vsel %vm1255, %v1351, 0
      %v1679 = vsel %vm1355, %v885, 0
      %1681 = vmatprep.subr.bf16.mxu0 0
      %1682 = vmatpush1.bf16.msra.mxu0 %v1679
      %1683 = vmatprep.subr.bf16.mxu0 0
      %1684 = vmatpush1.bf16.msra.mxu0 0
      %1685 = vmatprep.subr.bf16.mxu0 0
      %1686 = vmatpush1.bf16.msra.mxu0 0
      %1687 = vmatprep.subr.bf16.mxu0 0
      %1688 = vmatpush1.bf16.msra.mxu0 0
      %1689 = vmatprep.subr.bf16.mxu0 0
      %1690 = vmatpush1.bf16.msra.mxu0 0
      %1691 = vmatprep.subr.bf16.mxu0 0
      %1692 = vmatpush1.bf16.msra.mxu0 0
      %1693 = vmatprep.subr.bf16.mxu0 0
      %1694 = vmatpush1.bf16.msra.mxu0 0
      %1695 = vmatprep.subr.bf16.mxu0 0
      %1696 = vmatpush1.bf16.msra.mxu0 0
      %1697 = vmatprep.subr.bf16.mxu0 0
      %1698 = vmatpush1.bf16.msra.mxu0 0
      %1699 = vmatprep.subr.bf16.mxu0 0
      %1700 = vmatpush1.bf16.msra.mxu0 0
      %1701 = vmatprep.subr.bf16.mxu0 0
      %1702 = vmatpush1.bf16.msra.mxu0 0
      %1703 = vmatprep.subr.bf16.mxu0 0
      %1704 = vmatpush1.bf16.msra.mxu0 0
      %1705 = vmatprep.subr.bf16.mxu0 0
      %1706 = vmatpush1.bf16.msra.mxu0 0
      %1707 = vmatprep.subr.bf16.mxu0 0
      %1708 = vmatpush1.bf16.msra.mxu0 0
      %1709 = vmatprep.subr.bf16.mxu0 0
      %1710 = vmatpush1.bf16.msra.mxu0 0
      %1711 = vmatprep.subr.bf16.mxu0 0
      %1712 = vmatpush1.bf16.msra.mxu0 0
      %1713 = vmatprep.mubr.bf16.mxu0 0
      %1714 = vmatmul.mubr.bf16.gmra.mrb[0].mxu0 %v1676
      %v1715 = vpop.f32.mrb[0].mxu0
      %v1716 = vadd.f32 0.0, %v1715
      %v1717 = vpop.f32.mrb[0].mxu0
      %v1718 = vpop.f32.mrb[0].mxu0
      %v1719 = vpop.f32.mrb[0].mxu0
      %1720 = vdwg.mxu0
      %v1721 = vpack.c.bf16 %v1440, %v1394
      %v1722 = vpack.c.bf16 %v1532, %v1486
      %v1723 = vpack.c.bf16 %v1624, %v1578
      %v1724 = vpack.c.bf16 %v1716, %v1670
      %v1725 = vld [vmem:[%s9] sm:$0xf]
      %v1726 = vld [vmem:[%s9 + $0x4] sm:$0xf]
      %1735 = vrot.lane.b32.xlu0 %v696, 112
      %v1736 = vpop.permute.xlu0 %1735
      %1737 = vrot.lane.b32.xlu0 %v697, 112
      %v1738 = vpop.permute.xlu0 %1737
      %1739 = vrot.lane.b32.xlu0 %v698, 112
      %v1740 = vpop.permute.xlu0 %1739
      %1741 = vrot.lane.b32.xlu0 %v699, 112
      %v1742 = vpop.permute.xlu0 %1741
      %1743 = vrot.lane.b32.xlu0 %v700, 112
      %v1744 = vpop.permute.xlu0 %1743
      %1745 = vrot.lane.b32.xlu0 %v701, 112
      %v1746 = vpop.permute.xlu0 %1745
      %1747 = vrot.lane.b32.xlu0 %v702, 112
      %v1748 = vpop.permute.xlu0 %1747
      %1749 = vrot.lane.b32.xlu0 %v703, 112
      %v1750 = vpop.permute.xlu0 %1749
      %v1759 = vsel %vm704, %v1736, 0.0
      %1760 = vadd.xlane.f32.xlu0 %v1759
      %v1761 = vpop.xlane.xlu0 %1760
      %v1762 = vsel %vm704, %v1738, 0.0
      %1763 = vadd.xlane.f32.xlu0 %v1762
      %v1764 = vpop.xlane.xlu0 %1763
      %v1765 = vsel %vm704, %v1740, 0.0
      %1766 = vadd.xlane.f32.xlu0 %v1765
      %v1767 = vpop.xlane.xlu0 %1766
      %v1768 = vsel %vm704, %v1742, 0.0
      %1769 = vadd.xlane.f32.xlu0 %v1768
      %v1770 = vpop.xlane.xlu0 %1769
      %v1771 = vsel %vm704, %v1744, 0.0
      %1772 = vadd.xlane.f32.xlu0 %v1771
      %v1773 = vpop.xlane.xlu0 %1772
      %v1774 = vsel %vm704, %v1746, 0.0
      %1775 = vadd.xlane.f32.xlu0 %v1774
      %v1776 = vpop.xlane.xlu0 %1775
      %v1777 = vsel %vm704, %v1748, 0.0
      %1778 = vadd.xlane.f32.xlu0 %v1777
      %v1779 = vpop.xlane.xlu0 %1778
      %v1780 = vsel %vm704, %v1750, 0.0
      %1781 = vadd.xlane.f32.xlu0 %v1780
      %v1782 = vpop.xlane.xlu0 %1781
      %v1783 = vrsqrt.pop %v1761
      %v1784 = vrsqrt.pop %v1764
      %v1785 = vrsqrt.pop %v1767
      %v1786 = vrsqrt.pop %v1770
      %v1787 = vrsqrt.pop %v1773
      %v1788 = vrsqrt.pop %v1776
      %v1789 = vrsqrt.pop %v1779
      %v1790 = vrsqrt.pop %v1782
      %v1791 = vmin.f32 %v1783, 1e+12
      %v1792 = vmin.f32 %v1784, 1e+12
      %v1793 = vmin.f32 %v1785, 1e+12
      %v1794 = vmin.f32 %v1786, 1e+12
      %v1795 = vmin.f32 %v1787, 1e+12
      %v1796 = vmin.f32 %v1788, 1e+12
      %v1797 = vmin.f32 %v1789, 1e+12
      %v1798 = vmin.f32 %v1790, 1e+12
      %1807 = vrot.lane.b32.xlu0 %v745, 112
      %v1808 = vpop.permute.xlu0 %1807
      %1809 = vrot.lane.b32.xlu0 %v746, 112
      %v1810 = vpop.permute.xlu0 %1809
      %1811 = vrot.lane.b32.xlu0 %v747, 112
      %v1812 = vpop.permute.xlu0 %1811
      %1813 = vrot.lane.b32.xlu0 %v748, 112
      %v1814 = vpop.permute.xlu0 %1813
      %1815 = vrot.lane.b32.xlu0 %v749, 112
      %v1816 = vpop.permute.xlu0 %1815
      %1817 = vrot.lane.b32.xlu0 %v750, 112
      %v1818 = vpop.permute.xlu0 %1817
      %1819 = vrot.lane.b32.xlu0 %v751, 112
      %v1820 = vpop.permute.xlu0 %1819
      %1821 = vrot.lane.b32.xlu0 %v752, 112
      %v1822 = vpop.permute.xlu0 %1821
      %v1831 = vsel %vm704, %v1808, 0.0
      %1832 = vadd.xlane.f32.xlu0 %v1831
      %v1833 = vpop.xlane.xlu0 %1832
      %v1834 = vsel %vm704, %v1810, 0.0
      %1835 = vadd.xlane.f32.xlu0 %v1834
      %v1836 = vpop.xlane.xlu0 %1835
      %v1837 = vsel %vm704, %v1812, 0.0
      %1838 = vadd.xlane.f32.xlu0 %v1837
      %v1839 = vpop.xlane.xlu0 %1838
      %v1840 = vsel %vm704, %v1814, 0.0
      %1841 = vadd.xlane.f32.xlu0 %v1840
      %v1842 = vpop.xlane.xlu0 %1841
      %v1843 = vsel %vm704, %v1816, 0.0
      %1844 = vadd.xlane.f32.xlu0 %v1843
      %v1845 = vpop.xlane.xlu0 %1844
      %v1846 = vsel %vm704, %v1818, 0.0
      %1847 = vadd.xlane.f32.xlu0 %v1846
      %v1848 = vpop.xlane.xlu0 %1847
      %v1849 = vsel %vm704, %v1820, 0.0
      %1850 = vadd.xlane.f32.xlu0 %v1849
      %v1851 = vpop.xlane.xlu0 %1850
      %v1852 = vsel %vm704, %v1822, 0.0
      %1853 = vadd.xlane.f32.xlu0 %v1852
      %v1854 = vpop.xlane.xlu0 %1853
      %v1855 = vrsqrt.pop %v1833
      %v1856 = vrsqrt.pop %v1836
      %v1857 = vrsqrt.pop %v1839
      %v1858 = vrsqrt.pop %v1842
      %v1859 = vrsqrt.pop %v1845
      %v1860 = vrsqrt.pop %v1848
      %v1861 = vrsqrt.pop %v1851
      %v1862 = vrsqrt.pop %v1854
      %v1863 = vmin.f32 %v1855, 1e+12
      %v1864 = vmin.f32 %v1856, 1e+12
      %v1865 = vmin.f32 %v1857, 1e+12
      %v1866 = vmin.f32 %v1858, 1e+12
      %v1867 = vmin.f32 %v1859, 1e+12
      %v1868 = vmin.f32 %v1860, 1e+12
      %v1869 = vmin.f32 %v1861, 1e+12
      %v1870 = vmin.f32 %v1862, 1e+12
      %v1871 = vld [vmem:[%s7 + $0x1] sm:$0x1]
      %v1872 = vlaneseq
      %v1873 = vshrl.u32 %v1872, 7
      %v1874 = vsub.s32 0, %v1873
      %v1875 = vrot.slane %v1871, %v1874
      %v1876 = vmul.f32 %v1791, %v1875
      %v1877 = vmul.f32 %v1792, %v1875
      %v1878 = vmul.f32 %v1793, %v1875
      %v1879 = vmul.f32 %v1794, %v1875
      %v1880 = vmul.f32 %v1795, %v1875
      %v1881 = vmul.f32 %v1796, %v1875
      %v1882 = vmul.f32 %v1797, %v1875
      %v1883 = vmul.f32 %v1798, %v1875
      %1885 = vset.pattern.permute.xlu0 0
      %1886 = vperm.xlu0 %1885, %v1876
      %v1887 = vpop.permute.xlu0 %1886
      %1890 = vset.pattern.permute.xlu0 0
      %1891 = vperm.xlu0 %1890, %v1877
      %v1892 = vpop.permute.xlu0 %1891
      %1895 = vset.pattern.permute.xlu0 0
      %1896 = vperm.xlu0 %1895, %v1878
      %v1897 = vpop.permute.xlu0 %1896
      %1900 = vset.pattern.permute.xlu0 0
      %1901 = vperm.xlu0 %1900, %v1879
      %v1902 = vpop.permute.xlu0 %1901
      %1905 = vset.pattern.permute.xlu0 0
      %1906 = vperm.xlu0 %1905, %v1880
      %v1907 = vpop.permute.xlu0 %1906
      %1910 = vset.pattern.permute.xlu0 0
      %1911 = vperm.xlu0 %1910, %v1881
      %v1912 = vpop.permute.xlu0 %1911
      %1915 = vset.pattern.permute.xlu0 0
      %1916 = vperm.xlu0 %1915, %v1882
      %v1917 = vpop.permute.xlu0 %1916
      %1920 = vset.pattern.permute.xlu0 0
      %1921 = vperm.xlu0 %1920, %v1883
      %v1922 = vpop.permute.xlu0 %1921
      %v1924 = vmul.f32 %v490, %v1887
      %v1925 = vmul.f32 %v493, %v1892
      %v1926 = vmul.f32 %v498, %v1897
      %v1927 = vmul.f32 %v501, %v1902
      %v1928 = vmul.f32 %v506, %v1907
      %v1929 = vmul.f32 %v509, %v1912
      %v1930 = vmul.f32 %v514, %v1917
      %v1931 = vmul.f32 %v517, %v1922
      %v1932 = vmul.f32 %v578, %v1863
      %v1933 = vmul.f32 %v581, %v1864
      %v1934 = vmul.f32 %v586, %v1865
      %v1935 = vmul.f32 %v589, %v1866
      %v1936 = vmul.f32 %v594, %v1867
      %v1937 = vmul.f32 %v597, %v1868
      %v1938 = vmul.f32 %v602, %v1869
      %v1939 = vmul.f32 %v605, %v1870
      %v1940 = vpack.c.bf16 %v1924, %v1924
      %v1941 = vpack.c.bf16 %v1925, %v1925
      %v1942 = vpack.c.bf16 %v1926, %v1926
      %v1943 = vpack.c.bf16 %v1927, %v1927
      %v1944 = vpack.c.bf16 %v1928, %v1928
      %v1945 = vpack.c.bf16 %v1929, %v1929
      %v1946 = vpack.c.bf16 %v1930, %v1930
      %v1947 = vpack.c.bf16 %v1931, %v1931
      %v1948 = vpack.c.bf16 %v1932, %v1932
      %v1949 = vpack.c.bf16 %v1933, %v1933
      %v1950 = vpack.c.bf16 %v1934, %v1934
      %v1951 = vpack.c.bf16 %v1935, %v1935
      %v1952 = vpack.c.bf16 %v1936, %v1936
      %v1953 = vpack.c.bf16 %v1937, %v1937
      %v1954 = vpack.c.bf16 %v1938, %v1938
      %v1955 = vpack.c.bf16 %v1939, %v1939
      %s1956 = scalar_lea.vmem %s8, 8
      %v1957 = vld [vmem:[%s1956] sm:$0xff]
      %1959 = vrot.lane.b32.xlu0 %v1940, 112
      %v1960 = vpop.permute.xlu0 %1959
      %1962 = vrot.lane.b32.xlu0 %v1948, 112
      %v1963 = vpop.permute.xlu0 %1962
      %v1965 = vsel %vm704, %v1960, 0
      %v1968 = vsel %vm704, %v1963, 0
      %1970 = vmatprep.subr.bf16.mxu0 0
      %1971 = vmatpush1.bf16.xpose.msra.mxu0 %v1968
      %1972 = vmatprep.subr.bf16.mxu0 0
      %1973 = vmatpush1.bf16.xpose.msra.mxu0 0
      %1974 = vmatprep.subr.bf16.mxu0 0
      %1975 = vmatpush1.bf16.xpose.msra.mxu0 0
      %1976 = vmatprep.subr.bf16.mxu0 0
      %1977 = vmatpush1.bf16.xpose.msra.mxu0 0
      %1978 = vmatprep.subr.bf16.mxu0 0
      %1979 = vmatpush1.bf16.xpose.msra.mxu0 0
      %1980 = vmatprep.subr.bf16.mxu0 0
      %1981 = vmatpush1.bf16.xpose.msra.mxu0 0
      %1982 = vmatprep.subr.bf16.mxu0 0
      %1983 = vmatpush1.bf16.xpose.msra.mxu0 0
      %1984 = vmatprep.subr.bf16.mxu0 0
      %1985 = vmatpush1.bf16.xpose.msra.mxu0 0
      %1986 = vmatprep.subr.bf16.mxu0 0
      %1987 = vmatpush1.bf16.xpose.msra.mxu0 0
      %1988 = vmatprep.subr.bf16.mxu0 0
      %1989 = vmatpush1.bf16.xpose.msra.mxu0 0
      %1990 = vmatprep.subr.bf16.mxu0 0
      %1991 = vmatpush1.bf16.xpose.msra.mxu0 0
      %1992 = vmatprep.subr.bf16.mxu0 0
      %1993 = vmatpush1.bf16.xpose.msra.mxu0 0
      %1994 = vmatprep.subr.bf16.mxu0 0
      %1995 = vmatpush1.bf16.xpose.msra.mxu0 0
      %1996 = vmatprep.subr.bf16.mxu0 0
      %1997 = vmatpush1.bf16.xpose.msra.mxu0 0
      %1998 = vmatprep.subr.bf16.mxu0 0
      %1999 = vmatpush1.bf16.xpose.msra.mxu0 0
      %2000 = vmatprep.subr.bf16.mxu0 0
      %2001 = vmatpush1.bf16.xpose.msra.mxu0 0
      %2002 = vmatprep.mubr.bf16.mxu0 0
      %2003 = vmatmul.mubr.bf16.gmra.mrb[0].mxu0 %v1965
      %v2004 = vpop.f32.mrb[0].mxu0
      %v2005 = vadd.f32 %v1957, %v2004
      %v2006 = vpop.f32.mrb[0].mxu0
      %v2007 = vpop.f32.mrb[0].mxu0
      %v2008 = vpop.f32.mrb[0].mxu0
      %2009 = vdwg.mxu0
      %2011 = vrot.lane.b32.xlu0 %v1941, 112
      %v2012 = vpop.permute.xlu0 %2011
      %2014 = vrot.lane.b32.xlu0 %v1949, 112
      %v2015 = vpop.permute.xlu0 %2014
      %v2017 = vsel %vm704, %v2012, 0
      %v2020 = vsel %vm704, %v2015, 0
      %2022 = vmatprep.subr.bf16.mxu0 0
      %2023 = vmatpush1.bf16.xpose.msra.mxu0 %v2020
      %2024 = vmatprep.subr.bf16.mxu0 0
      %2025 = vmatpush1.bf16.xpose.msra.mxu0 0
      %2026 = vmatprep.subr.bf16.mxu0 0
      %2027 = vmatpush1.bf16.xpose.msra.mxu0 0
      %2028 = vmatprep.subr.bf16.mxu0 0
      %2029 = vmatpush1.bf16.xpose.msra.mxu0 0
      %2030 = vmatprep.subr.bf16.mxu0 0
      %2031 = vmatpush1.bf16.xpose.msra.mxu0 0
      %2032 = vmatprep.subr.bf16.mxu0 0
      %2033 = vmatpush1.bf16.xpose.msra.mxu0 0
      %2034 = vmatprep.subr.bf16.mxu0 0
      %2035 = vmatpush1.bf16.xpose.msra.mxu0 0
      %2036 = vmatprep.subr.bf16.mxu0 0
      %2037 = vmatpush1.bf16.xpose.msra.mxu0 0
      %2038 = vmatprep.subr.bf16.mxu0 0
      %2039 = vmatpush1.bf16.xpose.msra.mxu0 0
      %2040 = vmatprep.subr.bf16.mxu0 0
      %2041 = vmatpush1.bf16.xpose.msra.mxu0 0
      %2042 = vmatprep.subr.bf16.mxu0 0
      %2043 = vmatpush1.bf16.xpose.msra.mxu0 0
      %2044 = vmatprep.subr.bf16.mxu0 0
      %2045 = vmatpush1.bf16.xpose.msra.mxu0 0
      %2046 = vmatprep.subr.bf16.mxu0 0
      %2047 = vmatpush1.bf16.xpose.msra.mxu0 0
      %2048 = vmatprep.subr.bf16.mxu0 0
      %2049 = vmatpush1.bf16.xpose.msra.mxu0 0
      %2050 = vmatprep.subr.bf16.mxu0 0
      %2051 = vmatpush1.bf16.xpose.msra.mxu0 0
      %2052 = vmatprep.subr.bf16.mxu0 0
      %2053 = vmatpush1.bf16.xpose.msra.mxu0 0
      %2054 = vmatprep.mubr.bf16.mxu0 0
      %2055 = vmatmul.mubr.bf16.gmra.mrb[0].mxu0 %v2017
      %v2056 = vpop.f32.mrb[0].mxu0
      %v2057 = vadd.f32 %v1957, %v2056
      %v2058 = vpop.f32.mrb[0].mxu0
      %v2059 = vpop.f32.mrb[0].mxu0
      %v2060 = vpop.f32.mrb[0].mxu0
      %2061 = vdwg.mxu0
      %2063 = vrot.lane.b32.xlu0 %v1942, 112
      %v2064 = vpop.permute.xlu0 %2063
      %2066 = vrot.lane.b32.xlu0 %v1950, 112
      %v2067 = vpop.permute.xlu0 %2066
      %v2069 = vsel %vm704, %v2064, 0
      %v2072 = vsel %vm704, %v2067, 0
      %2074 = vmatprep.subr.bf16.mxu0 0
      %2075 = vmatpush1.bf16.xpose.msra.mxu0 %v2072
      %2076 = vmatprep.subr.bf16.mxu0 0
      %2077 = vmatpush1.bf16.xpose.msra.mxu0 0
      %2078 = vmatprep.subr.bf16.mxu0 0
      %2079 = vmatpush1.bf16.xpose.msra.mxu0 0
      %2080 = vmatprep.subr.bf16.mxu0 0
      %2081 = vmatpush1.bf16.xpose.msra.mxu0 0
      %2082 = vmatprep.subr.bf16.mxu0 0
      %2083 = vmatpush1.bf16.xpose.msra.mxu0 0
      %2084 = vmatprep.subr.bf16.mxu0 0
      %2085 = vmatpush1.bf16.xpose.msra.mxu0 0
      %2086 = vmatprep.subr.bf16.mxu0 0
      %2087 = vmatpush1.bf16.xpose.msra.mxu0 0
      %2088 = vmatprep.subr.bf16.mxu0 0
      %2089 = vmatpush1.bf16.xpose.msra.mxu0 0
      %2090 = vmatprep.subr.bf16.mxu0 0
      %2091 = vmatpush1.bf16.xpose.msra.mxu0 0
      %2092 = vmatprep.subr.bf16.mxu0 0
      %2093 = vmatpush1.bf16.xpose.msra.mxu0 0
      %2094 = vmatprep.subr.bf16.mxu0 0
      %2095 = vmatpush1.bf16.xpose.msra.mxu0 0
      %2096 = vmatprep.subr.bf16.mxu0 0
      %2097 = vmatpush1.bf16.xpose.msra.mxu0 0
      %2098 = vmatprep.subr.bf16.mxu0 0
      %2099 = vmatpush1.bf16.xpose.msra.mxu0 0
      %2100 = vmatprep.subr.bf16.mxu0 0
      %2101 = vmatpush1.bf16.xpose.msra.mxu0 0
      %2102 = vmatprep.subr.bf16.mxu0 0
      %2103 = vmatpush1.bf16.xpose.msra.mxu0 0
      %2104 = vmatprep.subr.bf16.mxu0 0
      %2105 = vmatpush1.bf16.xpose.msra.mxu0 0
      %2106 = vmatprep.mubr.bf16.mxu0 0
      %2107 = vmatmul.mubr.bf16.gmra.mrb[0].mxu0 %v2069
      %v2108 = vpop.f32.mrb[0].mxu0
      %v2109 = vadd.f32 %v1957, %v2108
      %v2110 = vpop.f32.mrb[0].mxu0
      %v2111 = vpop.f32.mrb[0].mxu0
      %v2112 = vpop.f32.mrb[0].mxu0
      %2113 = vdwg.mxu0
      %2115 = vrot.lane.b32.xlu0 %v1943, 112
      %v2116 = vpop.permute.xlu0 %2115
      %2118 = vrot.lane.b32.xlu0 %v1951, 112
      %v2119 = vpop.permute.xlu0 %2118
      %v2121 = vsel %vm704, %v2116, 0
      %v2124 = vsel %vm704, %v2119, 0
      %2126 = vmatprep.subr.bf16.mxu0 0
      %2127 = vmatpush1.bf16.xpose.msra.mxu0 %v2124
      %2128 = vmatprep.subr.bf16.mxu0 0
      %2129 = vmatpush1.bf16.xpose.msra.mxu0 0
      %2130 = vmatprep.subr.bf16.mxu0 0
      %2131 = vmatpush1.bf16.xpose.msra.mxu0 0
      %2132 = vmatprep.subr.bf16.mxu0 0
      %2133 = vmatpush1.bf16.xpose.msra.mxu0 0
      %2134 = vmatprep.subr.bf16.mxu0 0
      %2135 = vmatpush1.bf16.xpose.msra.mxu0 0
      %2136 = vmatprep.subr.bf16.mxu0 0
      %2137 = vmatpush1.bf16.xpose.msra.mxu0 0
      %2138 = vmatprep.subr.bf16.mxu0 0
      %2139 = vmatpush1.bf16.xpose.msra.mxu0 0
      %2140 = vmatprep.subr.bf16.mxu0 0
      %2141 = vmatpush1.bf16.xpose.msra.mxu0 0
      %2142 = vmatprep.subr.bf16.mxu0 0
      %2143 = vmatpush1.bf16.xpose.msra.mxu0 0
      %2144 = vmatprep.subr.bf16.mxu0 0
      %2145 = vmatpush1.bf16.xpose.msra.mxu0 0
      %2146 = vmatprep.subr.bf16.mxu0 0
      %2147 = vmatpush1.bf16.xpose.msra.mxu0 0
      %2148 = vmatprep.subr.bf16.mxu0 0
      %2149 = vmatpush1.bf16.xpose.msra.mxu0 0
      %2150 = vmatprep.subr.bf16.mxu0 0
      %2151 = vmatpush1.bf16.xpose.msra.mxu0 0
      %2152 = vmatprep.subr.bf16.mxu0 0
      %2153 = vmatpush1.bf16.xpose.msra.mxu0 0
      %2154 = vmatprep.subr.bf16.mxu0 0
      %2155 = vmatpush1.bf16.xpose.msra.mxu0 0
      %2156 = vmatprep.subr.bf16.mxu0 0
      %2157 = vmatpush1.bf16.xpose.msra.mxu0 0
      %2158 = vmatprep.mubr.bf16.mxu0 0
      %2159 = vmatmul.mubr.bf16.gmra.mrb[0].mxu0 %v2121
      %v2160 = vpop.f32.mrb[0].mxu0
      %v2161 = vadd.f32 %v1957, %v2160
      %v2162 = vpop.f32.mrb[0].mxu0
      %v2163 = vpop.f32.mrb[0].mxu0
      %v2164 = vpop.f32.mrb[0].mxu0
      %2165 = vdwg.mxu0
      %2167 = vrot.lane.b32.xlu0 %v1944, 112
      %v2168 = vpop.permute.xlu0 %2167
      %2170 = vrot.lane.b32.xlu0 %v1952, 112
      %v2171 = vpop.permute.xlu0 %2170
      %v2173 = vsel %vm704, %v2168, 0
      %v2176 = vsel %vm704, %v2171, 0
      %2178 = vmatprep.subr.bf16.mxu0 0
      %2179 = vmatpush1.bf16.xpose.msra.mxu0 %v2176
      %2180 = vmatprep.subr.bf16.mxu0 0
      %2181 = vmatpush1.bf16.xpose.msra.mxu0 0
      %2182 = vmatprep.subr.bf16.mxu0 0
      %2183 = vmatpush1.bf16.xpose.msra.mxu0 0
      %2184 = vmatprep.subr.bf16.mxu0 0
      %2185 = vmatpush1.bf16.xpose.msra.mxu0 0
      %2186 = vmatprep.subr.bf16.mxu0 0
      %2187 = vmatpush1.bf16.xpose.msra.mxu0 0
      %2188 = vmatprep.subr.bf16.mxu0 0
      %2189 = vmatpush1.bf16.xpose.msra.mxu0 0
      %2190 = vmatprep.subr.bf16.mxu0 0
      %2191 = vmatpush1.bf16.xpose.msra.mxu0 0
      %2192 = vmatprep.subr.bf16.mxu0 0
      %2193 = vmatpush1.bf16.xpose.msra.mxu0 0
      %2194 = vmatprep.subr.bf16.mxu0 0
      %2195 = vmatpush1.bf16.xpose.msra.mxu0 0
      %2196 = vmatprep.subr.bf16.mxu0 0
      %2197 = vmatpush1.bf16.xpose.msra.mxu0 0
      %2198 = vmatprep.subr.bf16.mxu0 0
      %2199 = vmatpush1.bf16.xpose.msra.mxu0 0
      %2200 = vmatprep.subr.bf16.mxu0 0
      %2201 = vmatpush1.bf16.xpose.msra.mxu0 0
      %2202 = vmatprep.subr.bf16.mxu0 0
      %2203 = vmatpush1.bf16.xpose.msra.mxu0 0
      %2204 = vmatprep.subr.bf16.mxu0 0
      %2205 = vmatpush1.bf16.xpose.msra.mxu0 0
      %2206 = vmatprep.subr.bf16.mxu0 0
      %2207 = vmatpush1.bf16.xpose.msra.mxu0 0
      %2208 = vmatprep.subr.bf16.mxu0 0
      %2209 = vmatpush1.bf16.xpose.msra.mxu0 0
      %2210 = vmatprep.mubr.bf16.mxu0 0
      %2211 = vmatmul.mubr.bf16.gmra.mrb[0].mxu0 %v2173
      %v2212 = vpop.f32.mrb[0].mxu0
      %v2213 = vadd.f32 %v1957, %v2212
      %v2214 = vpop.f32.mrb[0].mxu0
      %v2215 = vpop.f32.mrb[0].mxu0
      %v2216 = vpop.f32.mrb[0].mxu0
      %2217 = vdwg.mxu0
      %2219 = vrot.lane.b32.xlu0 %v1945, 112
      %v2220 = vpop.permute.xlu0 %2219
      %2222 = vrot.lane.b32.xlu0 %v1953, 112
      %v2223 = vpop.permute.xlu0 %2222
      %v2225 = vsel %vm704, %v2220, 0
      %v2228 = vsel %vm704, %v2223, 0
      %2230 = vmatprep.subr.bf16.mxu0 0
      %2231 = vmatpush1.bf16.xpose.msra.mxu0 %v2228
      %2232 = vmatprep.subr.bf16.mxu0 0
      %2233 = vmatpush1.bf16.xpose.msra.mxu0 0
      %2234 = vmatprep.subr.bf16.mxu0 0
      %2235 = vmatpush1.bf16.xpose.msra.mxu0 0
      %2236 = vmatprep.subr.bf16.mxu0 0
      %2237 = vmatpush1.bf16.xpose.msra.mxu0 0
      %2238 = vmatprep.subr.bf16.mxu0 0
      %2239 = vmatpush1.bf16.xpose.msra.mxu0 0
      %2240 = vmatprep.subr.bf16.mxu0 0
      %2241 = vmatpush1.bf16.xpose.msra.mxu0 0
      %2242 = vmatprep.subr.bf16.mxu0 0
      %2243 = vmatpush1.bf16.xpose.msra.mxu0 0
      %2244 = vmatprep.subr.bf16.mxu0 0
      %2245 = vmatpush1.bf16.xpose.msra.mxu0 0
      %2246 = vmatprep.subr.bf16.mxu0 0
      %2247 = vmatpush1.bf16.xpose.msra.mxu0 0
      %2248 = vmatprep.subr.bf16.mxu0 0
      %2249 = vmatpush1.bf16.xpose.msra.mxu0 0
      %2250 = vmatprep.subr.bf16.mxu0 0
      %2251 = vmatpush1.bf16.xpose.msra.mxu0 0
      %2252 = vmatprep.subr.bf16.mxu0 0
      %2253 = vmatpush1.bf16.xpose.msra.mxu0 0
      %2254 = vmatprep.subr.bf16.mxu0 0
      %2255 = vmatpush1.bf16.xpose.msra.mxu0 0
      %2256 = vmatprep.subr.bf16.mxu0 0
      %2257 = vmatpush1.bf16.xpose.msra.mxu0 0
      %2258 = vmatprep.subr.bf16.mxu0 0
      %2259 = vmatpush1.bf16.xpose.msra.mxu0 0
      %2260 = vmatprep.subr.bf16.mxu0 0
      %2261 = vmatpush1.bf16.xpose.msra.mxu0 0
      %2262 = vmatprep.mubr.bf16.mxu0 0
      %2263 = vmatmul.mubr.bf16.gmra.mrb[0].mxu0 %v2225
      %v2264 = vpop.f32.mrb[0].mxu0
      %v2265 = vadd.f32 %v1957, %v2264
      %v2266 = vpop.f32.mrb[0].mxu0
      %v2267 = vpop.f32.mrb[0].mxu0
      %v2268 = vpop.f32.mrb[0].mxu0
      %2269 = vdwg.mxu0
      %2271 = vrot.lane.b32.xlu0 %v1946, 112
      %v2272 = vpop.permute.xlu0 %2271
      %2274 = vrot.lane.b32.xlu0 %v1954, 112
      %v2275 = vpop.permute.xlu0 %2274
      %v2277 = vsel %vm704, %v2272, 0
      %v2280 = vsel %vm704, %v2275, 0
      %2282 = vmatprep.subr.bf16.mxu0 0
      %2283 = vmatpush1.bf16.xpose.msra.mxu0 %v2280
      %2284 = vmatprep.subr.bf16.mxu0 0
      %2285 = vmatpush1.bf16.xpose.msra.mxu0 0
      %2286 = vmatprep.subr.bf16.mxu0 0
      %2287 = vmatpush1.bf16.xpose.msra.mxu0 0
      %2288 = vmatprep.subr.bf16.mxu0 0
      %2289 = vmatpush1.bf16.xpose.msra.mxu0 0
      %2290 = vmatprep.subr.bf16.mxu0 0
      %2291 = vmatpush1.bf16.xpose.msra.mxu0 0
      %2292 = vmatprep.subr.bf16.mxu0 0
      %2293 = vmatpush1.bf16.xpose.msra.mxu0 0
      %2294 = vmatprep.subr.bf16.mxu0 0
      %2295 = vmatpush1.bf16.xpose.msra.mxu0 0
      %2296 = vmatprep.subr.bf16.mxu0 0
      %2297 = vmatpush1.bf16.xpose.msra.mxu0 0
      %2298 = vmatprep.subr.bf16.mxu0 0
      %2299 = vmatpush1.bf16.xpose.msra.mxu0 0
      %2300 = vmatprep.subr.bf16.mxu0 0
      %2301 = vmatpush1.bf16.xpose.msra.mxu0 0
      %2302 = vmatprep.subr.bf16.mxu0 0
      %2303 = vmatpush1.bf16.xpose.msra.mxu0 0
      %2304 = vmatprep.subr.bf16.mxu0 0
      %2305 = vmatpush1.bf16.xpose.msra.mxu0 0
      %2306 = vmatprep.subr.bf16.mxu0 0
      %2307 = vmatpush1.bf16.xpose.msra.mxu0 0
      %2308 = vmatprep.subr.bf16.mxu0 0
      %2309 = vmatpush1.bf16.xpose.msra.mxu0 0
      %2310 = vmatprep.subr.bf16.mxu0 0
      %2311 = vmatpush1.bf16.xpose.msra.mxu0 0
      %2312 = vmatprep.subr.bf16.mxu0 0
      %2313 = vmatpush1.bf16.xpose.msra.mxu0 0
      %2314 = vmatprep.mubr.bf16.mxu0 0
      %2315 = vmatmul.mubr.bf16.gmra.mrb[0].mxu0 %v2277
      %v2316 = vpop.f32.mrb[0].mxu0
      %v2317 = vadd.f32 %v1957, %v2316
      %v2318 = vpop.f32.mrb[0].mxu0
      %v2319 = vpop.f32.mrb[0].mxu0
      %v2320 = vpop.f32.mrb[0].mxu0
      %2321 = vdwg.mxu0
      %2323 = vrot.lane.b32.xlu0 %v1947, 112
      %v2324 = vpop.permute.xlu0 %2323
      %2326 = vrot.lane.b32.xlu0 %v1955, 112
      %v2327 = vpop.permute.xlu0 %2326
      %v2329 = vsel %vm704, %v2324, 0
      %v2332 = vsel %vm704, %v2327, 0
      %2334 = vmatprep.subr.bf16.mxu0 0
      %2335 = vmatpush1.bf16.xpose.msra.mxu0 %v2332
      %2336 = vmatprep.subr.bf16.mxu0 0
      %2337 = vmatpush1.bf16.xpose.msra.mxu0 0
      %2338 = vmatprep.subr.bf16.mxu0 0
      %2339 = vmatpush1.bf16.xpose.msra.mxu0 0
      %2340 = vmatprep.subr.bf16.mxu0 0
      %2341 = vmatpush1.bf16.xpose.msra.mxu0 0
      %2342 = vmatprep.subr.bf16.mxu0 0
      %2343 = vmatpush1.bf16.xpose.msra.mxu0 0
      %2344 = vmatprep.subr.bf16.mxu0 0
      %2345 = vmatpush1.bf16.xpose.msra.mxu0 0
      %2346 = vmatprep.subr.bf16.mxu0 0
      %2347 = vmatpush1.bf16.xpose.msra.mxu0 0
      %2348 = vmatprep.subr.bf16.mxu0 0
      %2349 = vmatpush1.bf16.xpose.msra.mxu0 0
      %2350 = vmatprep.subr.bf16.mxu0 0
      %2351 = vmatpush1.bf16.xpose.msra.mxu0 0
      %2352 = vmatprep.subr.bf16.mxu0 0
      %2353 = vmatpush1.bf16.xpose.msra.mxu0 0
      %2354 = vmatprep.subr.bf16.mxu0 0
      %2355 = vmatpush1.bf16.xpose.msra.mxu0 0
      %2356 = vmatprep.subr.bf16.mxu0 0
      %2357 = vmatpush1.bf16.xpose.msra.mxu0 0
      %2358 = vmatprep.subr.bf16.mxu0 0
      %2359 = vmatpush1.bf16.xpose.msra.mxu0 0
      %2360 = vmatprep.subr.bf16.mxu0 0
      %2361 = vmatpush1.bf16.xpose.msra.mxu0 0
      %2362 = vmatprep.subr.bf16.mxu0 0
      %2363 = vmatpush1.bf16.xpose.msra.mxu0 0
      %2364 = vmatprep.subr.bf16.mxu0 0
      %2365 = vmatpush1.bf16.xpose.msra.mxu0 0
      %2366 = vmatprep.mubr.bf16.mxu0 0
      %2367 = vmatmul.mubr.bf16.gmra.mrb[0].mxu0 %v2329
      %v2368 = vpop.f32.mrb[0].mxu0
      %v2369 = vadd.f32 %v1957, %v2368
      %v2370 = vpop.f32.mrb[0].mxu0
      %v2371 = vpop.f32.mrb[0].mxu0
      %v2372 = vpop.f32.mrb[0].mxu0
      %2373 = vdwg.mxu0
      %v2374 = vsel %vm1255, %v2005, -inf
      %2375 = vmax.xlane.f32.xlu0 %v2374
      %v2376 = vpop.xlane.xlu0 %2375
      %v2377 = vsel %vm1255, %v2057, -inf
      %2378 = vmax.xlane.f32.xlu0 %v2377
      %v2379 = vpop.xlane.xlu0 %2378
      %v2380 = vsel %vm1255, %v2109, -inf
      %2381 = vmax.xlane.f32.xlu0 %v2380
      %v2382 = vpop.xlane.xlu0 %2381
      %v2383 = vsel %vm1255, %v2161, -inf
      %2384 = vmax.xlane.f32.xlu0 %v2383
      %v2385 = vpop.xlane.xlu0 %2384
      %v2386 = vsel %vm1255, %v2213, -inf
      %2387 = vmax.xlane.f32.xlu0 %v2386
      %v2388 = vpop.xlane.xlu0 %2387
      %v2389 = vsel %vm1255, %v2265, -inf
      %2390 = vmax.xlane.f32.xlu0 %v2389
      %v2391 = vpop.xlane.xlu0 %2390
      %v2392 = vsel %vm1255, %v2317, -inf
      %2393 = vmax.xlane.f32.xlu0 %v2392
      %v2394 = vpop.xlane.xlu0 %2393
      %v2395 = vsel %vm1255, %v2369, -inf
      %2396 = vmax.xlane.f32.xlu0 %v2395
      %v2397 = vpop.xlane.xlu0 %2396
      %v2398 = vsub.f32 %v2005, %v2376
      %v2399 = vsub.f32 %v2057, %v2379
      %v2400 = vsub.f32 %v2109, %v2382
      %v2401 = vsub.f32 %v2161, %v2385
      %v2402 = vsub.f32 %v2213, %v2388
      %v2403 = vsub.f32 %v2265, %v2391
      %v2404 = vsub.f32 %v2317, %v2394
      %v2405 = vsub.f32 %v2369, %v2397
      %v2406 = vmul.f32 %v2398, 1.442695
      %v2407 = vpow.pop %v2406
      %v2408 = vmul.f32 %v2399, 1.442695
      %v2409 = vpow.pop %v2408
      %v2410 = vmul.f32 %v2400, 1.442695
      %v2411 = vpow.pop %v2410
      %v2412 = vmul.f32 %v2401, 1.442695
      %v2413 = vpow.pop %v2412
      %v2414 = vmul.f32 %v2402, 1.442695
      %v2415 = vpow.pop %v2414
      %v2416 = vmul.f32 %v2403, 1.442695
      %v2417 = vpow.pop %v2416
      %v2418 = vmul.f32 %v2404, 1.442695
      %v2419 = vpow.pop %v2418
      %v2420 = vmul.f32 %v2405, 1.442695
      %v2421 = vpow.pop %v2420
      %v2422 = vsel %vm1255, %v2407, 0.0
      %2423 = vadd.xlane.f32.xlu0 %v2422
      %v2424 = vpop.xlane.xlu0 %2423
      %v2425 = vsel %vm1255, %v2409, 0.0
      %2426 = vadd.xlane.f32.xlu0 %v2425
      %v2427 = vpop.xlane.xlu0 %2426
      %v2428 = vsel %vm1255, %v2411, 0.0
      %2429 = vadd.xlane.f32.xlu0 %v2428
      %v2430 = vpop.xlane.xlu0 %2429
      %v2431 = vsel %vm1255, %v2413, 0.0
      %2432 = vadd.xlane.f32.xlu0 %v2431
      %v2433 = vpop.xlane.xlu0 %2432
      %v2434 = vsel %vm1255, %v2415, 0.0
      %2435 = vadd.xlane.f32.xlu0 %v2434
      %v2436 = vpop.xlane.xlu0 %2435
      %v2437 = vsel %vm1255, %v2417, 0.0
      %2438 = vadd.xlane.f32.xlu0 %v2437
      %v2439 = vpop.xlane.xlu0 %2438
      %v2440 = vsel %vm1255, %v2419, 0.0
      %2441 = vadd.xlane.f32.xlu0 %v2440
      %v2442 = vpop.xlane.xlu0 %2441
      %v2443 = vsel %vm1255, %v2421, 0.0
      %2444 = vadd.xlane.f32.xlu0 %v2443
      %v2445 = vpop.xlane.xlu0 %2444
      %v2446 = vrcp.pop %v2424
      %v2447 = vrcp.pop %v2427
      %v2448 = vrcp.pop %v2430
      %v2449 = vrcp.pop %v2433
      %v2450 = vrcp.pop %v2436
      %v2451 = vrcp.pop %v2439
      %v2452 = vrcp.pop %v2442
      %v2453 = vrcp.pop %v2445
      %v2454 = vmul.f32 %v2407, %v2446
      %v2455 = vmul.f32 %v2409, %v2447
      %v2456 = vmul.f32 %v2411, %v2448
      %v2457 = vmul.f32 %v2413, %v2449
      %v2458 = vmul.f32 %v2415, %v2450
      %v2459 = vmul.f32 %v2417, %v2451
      %v2460 = vmul.f32 %v2419, %v2452
      %v2461 = vmul.f32 %v2421, %v2453
      %v2462 = vpack.c.bf16 %v2454, %v2454
      %v2463 = vpack.c.bf16 %v2455, %v2455
      %v2464 = vpack.c.bf16 %v2456, %v2456
      %v2465 = vpack.c.bf16 %v2457, %v2457
      %v2466 = vpack.c.bf16 %v2458, %v2458
      %v2467 = vpack.c.bf16 %v2459, %v2459
      %v2468 = vpack.c.bf16 %v2460, %v2460
      %v2469 = vpack.c.bf16 %v2461, %v2461
      %2471 = vrot.lane.b32.xlu0 %v878, 112
      %v2472 = vpop.permute.xlu0 %2471
      %v2474 = vsel %vm1255, %v2462, 0
      %v2477 = vsel %vm1355, %v2472, 0
      %2479 = vmatprep.subr.bf16.mxu0 0
      %2480 = vmatpush1.bf16.msra.mxu0 %v2477
      %2481 = vmatprep.subr.bf16.mxu0 0
      %2482 = vmatpush1.bf16.msra.mxu0 0
      %2483 = vmatprep.subr.bf16.mxu0 0
      %2484 = vmatpush1.bf16.msra.mxu0 0
      %2485 = vmatprep.subr.bf16.mxu0 0
      %2486 = vmatpush1.bf16.msra.mxu0 0
      %2487 = vmatprep.subr.bf16.mxu0 0
      %2488 = vmatpush1.bf16.msra.mxu0 0
      %2489 = vmatprep.subr.bf16.mxu0 0
      %2490 = vmatpush1.bf16.msra.mxu0 0
      %2491 = vmatprep.subr.bf16.mxu0 0
      %2492 = vmatpush1.bf16.msra.mxu0 0
      %2493 = vmatprep.subr.bf16.mxu0 0
      %2494 = vmatpush1.bf16.msra.mxu0 0
      %2495 = vmatprep.subr.bf16.mxu0 0
      %2496 = vmatpush1.bf16.msra.mxu0 0
      %2497 = vmatprep.subr.bf16.mxu0 0
      %2498 = vmatpush1.bf16.msra.mxu0 0
      %2499 = vmatprep.subr.bf16.mxu0 0
      %2500 = vmatpush1.bf16.msra.mxu0 0
      %2501 = vmatprep.subr.bf16.mxu0 0
      %2502 = vmatpush1.bf16.msra.mxu0 0
      %2503 = vmatprep.subr.bf16.mxu0 0
      %2504 = vmatpush1.bf16.msra.mxu0 0
      %2505 = vmatprep.subr.bf16.mxu0 0
      %2506 = vmatpush1.bf16.msra.mxu0 0
      %2507 = vmatprep.subr.bf16.mxu0 0
      %2508 = vmatpush1.bf16.msra.mxu0 0
      %2509 = vmatprep.subr.bf16.mxu0 0
      %2510 = vmatpush1.bf16.msra.mxu0 0
      %2511 = vmatprep.mubr.bf16.mxu0 0
      %2512 = vmatmul.mubr.bf16.gmra.mrb[0].mxu0 %v2474
      %v2513 = vpop.f32.mrb[0].mxu0
      %v2514 = vadd.f32 0.0, %v2513
      %v2515 = vpop.f32.mrb[0].mxu0
      %v2516 = vpop.f32.mrb[0].mxu0
      %v2517 = vpop.f32.mrb[0].mxu0
      %2518 = vdwg.mxu0
      %2520 = vrot.lane.b32.xlu0 %v879, 112
      %v2521 = vpop.permute.xlu0 %2520
      %v2523 = vsel %vm1255, %v2463, 0
      %v2526 = vsel %vm1355, %v2521, 0
      %2528 = vmatprep.subr.bf16.mxu0 0
      %2529 = vmatpush1.bf16.msra.mxu0 %v2526
      %2530 = vmatprep.subr.bf16.mxu0 0
      %2531 = vmatpush1.bf16.msra.mxu0 0
      %2532 = vmatprep.subr.bf16.mxu0 0
      %2533 = vmatpush1.bf16.msra.mxu0 0
      %2534 = vmatprep.subr.bf16.mxu0 0
      %2535 = vmatpush1.bf16.msra.mxu0 0
      %2536 = vmatprep.subr.bf16.mxu0 0
      %2537 = vmatpush1.bf16.msra.mxu0 0
      %2538 = vmatprep.subr.bf16.mxu0 0
      %2539 = vmatpush1.bf16.msra.mxu0 0
      %2540 = vmatprep.subr.bf16.mxu0 0
      %2541 = vmatpush1.bf16.msra.mxu0 0
      %2542 = vmatprep.subr.bf16.mxu0 0
      %2543 = vmatpush1.bf16.msra.mxu0 0
      %2544 = vmatprep.subr.bf16.mxu0 0
      %2545 = vmatpush1.bf16.msra.mxu0 0
      %2546 = vmatprep.subr.bf16.mxu0 0
      %2547 = vmatpush1.bf16.msra.mxu0 0
      %2548 = vmatprep.subr.bf16.mxu0 0
      %2549 = vmatpush1.bf16.msra.mxu0 0
      %2550 = vmatprep.subr.bf16.mxu0 0
      %2551 = vmatpush1.bf16.msra.mxu0 0
      %2552 = vmatprep.subr.bf16.mxu0 0
      %2553 = vmatpush1.bf16.msra.mxu0 0
      %2554 = vmatprep.subr.bf16.mxu0 0
      %2555 = vmatpush1.bf16.msra.mxu0 0
      %2556 = vmatprep.subr.bf16.mxu0 0
      %2557 = vmatpush1.bf16.msra.mxu0 0
      %2558 = vmatprep.subr.bf16.mxu0 0
      %2559 = vmatpush1.bf16.msra.mxu0 0
      %2560 = vmatprep.mubr.bf16.mxu0 0
      %2561 = vmatmul.mubr.bf16.gmra.mrb[0].mxu0 %v2523
      %v2562 = vpop.f32.mrb[0].mxu0
      %v2563 = vadd.f32 0.0, %v2562
      %v2564 = vpop.f32.mrb[0].mxu0
      %v2565 = vpop.f32.mrb[0].mxu0
      %v2566 = vpop.f32.mrb[0].mxu0
      %2567 = vdwg.mxu0
      %2569 = vrot.lane.b32.xlu0 %v880, 112
      %v2570 = vpop.permute.xlu0 %2569
      %v2572 = vsel %vm1255, %v2464, 0
      %v2575 = vsel %vm1355, %v2570, 0
      %2577 = vmatprep.subr.bf16.mxu0 0
      %2578 = vmatpush1.bf16.msra.mxu0 %v2575
      %2579 = vmatprep.subr.bf16.mxu0 0
      %2580 = vmatpush1.bf16.msra.mxu0 0
      %2581 = vmatprep.subr.bf16.mxu0 0
      %2582 = vmatpush1.bf16.msra.mxu0 0
      %2583 = vmatprep.subr.bf16.mxu0 0
      %2584 = vmatpush1.bf16.msra.mxu0 0
      %2585 = vmatprep.subr.bf16.mxu0 0
      %2586 = vmatpush1.bf16.msra.mxu0 0
      %2587 = vmatprep.subr.bf16.mxu0 0
      %2588 = vmatpush1.bf16.msra.mxu0 0
      %2589 = vmatprep.subr.bf16.mxu0 0
      %2590 = vmatpush1.bf16.msra.mxu0 0
      %2591 = vmatprep.subr.bf16.mxu0 0
      %2592 = vmatpush1.bf16.msra.mxu0 0
      %2593 = vmatprep.subr.bf16.mxu0 0
      %2594 = vmatpush1.bf16.msra.mxu0 0
      %2595 = vmatprep.subr.bf16.mxu0 0
      %2596 = vmatpush1.bf16.msra.mxu0 0
      %2597 = vmatprep.subr.bf16.mxu0 0
      %2598 = vmatpush1.bf16.msra.mxu0 0
      %2599 = vmatprep.subr.bf16.mxu0 0
      %2600 = vmatpush1.bf16.msra.mxu0 0
      %2601 = vmatprep.subr.bf16.mxu0 0
      %2602 = vmatpush1.bf16.msra.mxu0 0
      %2603 = vmatprep.subr.bf16.mxu0 0
      %2604 = vmatpush1.bf16.msra.mxu0 0
      %2605 = vmatprep.subr.bf16.mxu0 0
      %2606 = vmatpush1.bf16.msra.mxu0 0
      %2607 = vmatprep.subr.bf16.mxu0 0
      %2608 = vmatpush1.bf16.msra.mxu0 0
      %2609 = vmatprep.mubr.bf16.mxu0 0
      %2610 = vmatmul.mubr.bf16.gmra.mrb[0].mxu0 %v2572
      %v2611 = vpop.f32.mrb[0].mxu0
      %v2612 = vadd.f32 0.0, %v2611
      %v2613 = vpop.f32.mrb[0].mxu0
      %v2614 = vpop.f32.mrb[0].mxu0
      %v2615 = vpop.f32.mrb[0].mxu0
      %2616 = vdwg.mxu0
      %2618 = vrot.lane.b32.xlu0 %v881, 112
      %v2619 = vpop.permute.xlu0 %2618
      %v2621 = vsel %vm1255, %v2465, 0
      %v2624 = vsel %vm1355, %v2619, 0
      %2626 = vmatprep.subr.bf16.mxu0 0
      %2627 = vmatpush1.bf16.msra.mxu0 %v2624
      %2628 = vmatprep.subr.bf16.mxu0 0
      %2629 = vmatpush1.bf16.msra.mxu0 0
      %2630 = vmatprep.subr.bf16.mxu0 0
      %2631 = vmatpush1.bf16.msra.mxu0 0
      %2632 = vmatprep.subr.bf16.mxu0 0
      %2633 = vmatpush1.bf16.msra.mxu0 0
      %2634 = vmatprep.subr.bf16.mxu0 0
      %2635 = vmatpush1.bf16.msra.mxu0 0
      %2636 = vmatprep.subr.bf16.mxu0 0
      %2637 = vmatpush1.bf16.msra.mxu0 0
      %2638 = vmatprep.subr.bf16.mxu0 0
      %2639 = vmatpush1.bf16.msra.mxu0 0
      %2640 = vmatprep.subr.bf16.mxu0 0
      %2641 = vmatpush1.bf16.msra.mxu0 0
      %2642 = vmatprep.subr.bf16.mxu0 0
      %2643 = vmatpush1.bf16.msra.mxu0 0
      %2644 = vmatprep.subr.bf16.mxu0 0
      %2645 = vmatpush1.bf16.msra.mxu0 0
      %2646 = vmatprep.subr.bf16.mxu0 0
      %2647 = vmatpush1.bf16.msra.mxu0 0
      %2648 = vmatprep.subr.bf16.mxu0 0
      %2649 = vmatpush1.bf16.msra.mxu0 0
      %2650 = vmatprep.subr.bf16.mxu0 0
      %2651 = vmatpush1.bf16.msra.mxu0 0
      %2652 = vmatprep.subr.bf16.mxu0 0
      %2653 = vmatpush1.bf16.msra.mxu0 0
      %2654 = vmatprep.subr.bf16.mxu0 0
      %2655 = vmatpush1.bf16.msra.mxu0 0
      %2656 = vmatprep.subr.bf16.mxu0 0
      %2657 = vmatpush1.bf16.msra.mxu0 0
      %2658 = vmatprep.mubr.bf16.mxu0 0
      %2659 = vmatmul.mubr.bf16.gmra.mrb[0].mxu0 %v2621
      %v2660 = vpop.f32.mrb[0].mxu0
      %v2661 = vadd.f32 0.0, %v2660
      %v2662 = vpop.f32.mrb[0].mxu0
      %v2663 = vpop.f32.mrb[0].mxu0
      %v2664 = vpop.f32.mrb[0].mxu0
      %2665 = vdwg.mxu0
      %2667 = vrot.lane.b32.xlu0 %v882, 112
      %v2668 = vpop.permute.xlu0 %2667
      %v2670 = vsel %vm1255, %v2466, 0
      %v2673 = vsel %vm1355, %v2668, 0
      %2675 = vmatprep.subr.bf16.mxu0 0
      %2676 = vmatpush1.bf16.msra.mxu0 %v2673
      %2677 = vmatprep.subr.bf16.mxu0 0
      %2678 = vmatpush1.bf16.msra.mxu0 0
      %2679 = vmatprep.subr.bf16.mxu0 0
      %2680 = vmatpush1.bf16.msra.mxu0 0
      %2681 = vmatprep.subr.bf16.mxu0 0
      %2682 = vmatpush1.bf16.msra.mxu0 0
      %2683 = vmatprep.subr.bf16.mxu0 0
      %2684 = vmatpush1.bf16.msra.mxu0 0
      %2685 = vmatprep.subr.bf16.mxu0 0
      %2686 = vmatpush1.bf16.msra.mxu0 0
      %2687 = vmatprep.subr.bf16.mxu0 0
      %2688 = vmatpush1.bf16.msra.mxu0 0
      %2689 = vmatprep.subr.bf16.mxu0 0
      %2690 = vmatpush1.bf16.msra.mxu0 0
      %2691 = vmatprep.subr.bf16.mxu0 0
      %2692 = vmatpush1.bf16.msra.mxu0 0
      %2693 = vmatprep.subr.bf16.mxu0 0
      %2694 = vmatpush1.bf16.msra.mxu0 0
      %2695 = vmatprep.subr.bf16.mxu0 0
      %2696 = vmatpush1.bf16.msra.mxu0 0
      %2697 = vmatprep.subr.bf16.mxu0 0
      %2698 = vmatpush1.bf16.msra.mxu0 0
      %2699 = vmatprep.subr.bf16.mxu0 0
      %2700 = vmatpush1.bf16.msra.mxu0 0
      %2701 = vmatprep.subr.bf16.mxu0 0
      %2702 = vmatpush1.bf16.msra.mxu0 0
      %2703 = vmatprep.subr.bf16.mxu0 0
      %2704 = vmatpush1.bf16.msra.mxu0 0
      %2705 = vmatprep.subr.bf16.mxu0 0
      %2706 = vmatpush1.bf16.msra.mxu0 0
      %2707 = vmatprep.mubr.bf16.mxu0 0
      %2708 = vmatmul.mubr.bf16.gmra.mrb[0].mxu0 %v2670
      %v2709 = vpop.f32.mrb[0].mxu0
      %v2710 = vadd.f32 0.0, %v2709
      %v2711 = vpop.f32.mrb[0].mxu0
      %v2712 = vpop.f32.mrb[0].mxu0
      %v2713 = vpop.f32.mrb[0].mxu0
      %2714 = vdwg.mxu0
      %2716 = vrot.lane.b32.xlu0 %v883, 112
      %v2717 = vpop.permute.xlu0 %2716
      %v2719 = vsel %vm1255, %v2467, 0
      %v2722 = vsel %vm1355, %v2717, 0
      %2724 = vmatprep.subr.bf16.mxu0 0
      %2725 = vmatpush1.bf16.msra.mxu0 %v2722
      %2726 = vmatprep.subr.bf16.mxu0 0
      %2727 = vmatpush1.bf16.msra.mxu0 0
      %2728 = vmatprep.subr.bf16.mxu0 0
      %2729 = vmatpush1.bf16.msra.mxu0 0
      %2730 = vmatprep.subr.bf16.mxu0 0
      %2731 = vmatpush1.bf16.msra.mxu0 0
      %2732 = vmatprep.subr.bf16.mxu0 0
      %2733 = vmatpush1.bf16.msra.mxu0 0
      %2734 = vmatprep.subr.bf16.mxu0 0
      %2735 = vmatpush1.bf16.msra.mxu0 0
      %2736 = vmatprep.subr.bf16.mxu0 0
      %2737 = vmatpush1.bf16.msra.mxu0 0
      %2738 = vmatprep.subr.bf16.mxu0 0
      %2739 = vmatpush1.bf16.msra.mxu0 0
      %2740 = vmatprep.subr.bf16.mxu0 0
      %2741 = vmatpush1.bf16.msra.mxu0 0
      %2742 = vmatprep.subr.bf16.mxu0 0
      %2743 = vmatpush1.bf16.msra.mxu0 0
      %2744 = vmatprep.subr.bf16.mxu0 0
      %2745 = vmatpush1.bf16.msra.mxu0 0
      %2746 = vmatprep.subr.bf16.mxu0 0
      %2747 = vmatpush1.bf16.msra.mxu0 0
      %2748 = vmatprep.subr.bf16.mxu0 0
      %2749 = vmatpush1.bf16.msra.mxu0 0
      %2750 = vmatprep.subr.bf16.mxu0 0
      %2751 = vmatpush1.bf16.msra.mxu0 0
      %2752 = vmatprep.subr.bf16.mxu0 0
      %2753 = vmatpush1.bf16.msra.mxu0 0
      %2754 = vmatprep.subr.bf16.mxu0 0
      %2755 = vmatpush1.bf16.msra.mxu0 0
      %2756 = vmatprep.mubr.bf16.mxu0 0
      %2757 = vmatmul.mubr.bf16.gmra.mrb[0].mxu0 %v2719
      %v2758 = vpop.f32.mrb[0].mxu0
      %v2759 = vadd.f32 0.0, %v2758
      %v2760 = vpop.f32.mrb[0].mxu0
      %v2761 = vpop.f32.mrb[0].mxu0
      %v2762 = vpop.f32.mrb[0].mxu0
      %2763 = vdwg.mxu0
      %2765 = vrot.lane.b32.xlu0 %v884, 112
      %v2766 = vpop.permute.xlu0 %2765
      %v2768 = vsel %vm1255, %v2468, 0
      %v2771 = vsel %vm1355, %v2766, 0
      %2773 = vmatprep.subr.bf16.mxu0 0
      %2774 = vmatpush1.bf16.msra.mxu0 %v2771
      %2775 = vmatprep.subr.bf16.mxu0 0
      %2776 = vmatpush1.bf16.msra.mxu0 0
      %2777 = vmatprep.subr.bf16.mxu0 0
      %2778 = vmatpush1.bf16.msra.mxu0 0
      %2779 = vmatprep.subr.bf16.mxu0 0
      %2780 = vmatpush1.bf16.msra.mxu0 0
      %2781 = vmatprep.subr.bf16.mxu0 0
      %2782 = vmatpush1.bf16.msra.mxu0 0
      %2783 = vmatprep.subr.bf16.mxu0 0
      %2784 = vmatpush1.bf16.msra.mxu0 0
      %2785 = vmatprep.subr.bf16.mxu0 0
      %2786 = vmatpush1.bf16.msra.mxu0 0
      %2787 = vmatprep.subr.bf16.mxu0 0
      %2788 = vmatpush1.bf16.msra.mxu0 0
      %2789 = vmatprep.subr.bf16.mxu0 0
      %2790 = vmatpush1.bf16.msra.mxu0 0
      %2791 = vmatprep.subr.bf16.mxu0 0
      %2792 = vmatpush1.bf16.msra.mxu0 0
      %2793 = vmatprep.subr.bf16.mxu0 0
      %2794 = vmatpush1.bf16.msra.mxu0 0
      %2795 = vmatprep.subr.bf16.mxu0 0
      %2796 = vmatpush1.bf16.msra.mxu0 0
      %2797 = vmatprep.subr.bf16.mxu0 0
      %2798 = vmatpush1.bf16.msra.mxu0 0
      %2799 = vmatprep.subr.bf16.mxu0 0
      %2800 = vmatpush1.bf16.msra.mxu0 0
      %2801 = vmatprep.subr.bf16.mxu0 0
      %2802 = vmatpush1.bf16.msra.mxu0 0
      %2803 = vmatprep.subr.bf16.mxu0 0
      %2804 = vmatpush1.bf16.msra.mxu0 0
      %2805 = vmatprep.mubr.bf16.mxu0 0
      %2806 = vmatmul.mubr.bf16.gmra.mrb[0].mxu0 %v2768
      %v2807 = vpop.f32.mrb[0].mxu0
      %v2808 = vadd.f32 0.0, %v2807
      %v2809 = vpop.f32.mrb[0].mxu0
      %v2810 = vpop.f32.mrb[0].mxu0
      %v2811 = vpop.f32.mrb[0].mxu0
      %2812 = vdwg.mxu0
      %2814 = vrot.lane.b32.xlu0 %v885, 112
      %v2815 = vpop.permute.xlu0 %2814
      %v2817 = vsel %vm1255, %v2469, 0
      %v2820 = vsel %vm1355, %v2815, 0
      %2822 = vmatprep.subr.bf16.mxu0 0
      %2823 = vmatpush1.bf16.msra.mxu0 %v2820
      %2824 = vmatprep.subr.bf16.mxu0 0
      %2825 = vmatpush1.bf16.msra.mxu0 0
      %2826 = vmatprep.subr.bf16.mxu0 0
      %2827 = vmatpush1.bf16.msra.mxu0 0
      %2828 = vmatprep.subr.bf16.mxu0 0
      %2829 = vmatpush1.bf16.msra.mxu0 0
      %2830 = vmatprep.subr.bf16.mxu0 0
      %2831 = vmatpush1.bf16.msra.mxu0 0
      %2832 = vmatprep.subr.bf16.mxu0 0
      %2833 = vmatpush1.bf16.msra.mxu0 0
      %2834 = vmatprep.subr.bf16.mxu0 0
      %2835 = vmatpush1.bf16.msra.mxu0 0
      %2836 = vmatprep.subr.bf16.mxu0 0
      %2837 = vmatpush1.bf16.msra.mxu0 0
      %2838 = vmatprep.subr.bf16.mxu0 0
      %2839 = vmatpush1.bf16.msra.mxu0 0
      %2840 = vmatprep.subr.bf16.mxu0 0
      %2841 = vmatpush1.bf16.msra.mxu0 0
      %2842 = vmatprep.subr.bf16.mxu0 0
      %2843 = vmatpush1.bf16.msra.mxu0 0
      %2844 = vmatprep.subr.bf16.mxu0 0
      %2845 = vmatpush1.bf16.msra.mxu0 0
      %2846 = vmatprep.subr.bf16.mxu0 0
      %2847 = vmatpush1.bf16.msra.mxu0 0
      %2848 = vmatprep.subr.bf16.mxu0 0
      %2849 = vmatpush1.bf16.msra.mxu0 0
      %2850 = vmatprep.subr.bf16.mxu0 0
      %2851 = vmatpush1.bf16.msra.mxu0 0
      %2852 = vmatprep.subr.bf16.mxu0 0
      %2853 = vmatpush1.bf16.msra.mxu0 0
      %2854 = vmatprep.mubr.bf16.mxu0 0
      %2855 = vmatmul.mubr.bf16.gmra.mrb[0].mxu0 %v2817
      %v2856 = vpop.f32.mrb[0].mxu0
      %v2857 = vadd.f32 0.0, %v2856
      %v2858 = vpop.f32.mrb[0].mxu0
      %v2859 = vpop.f32.mrb[0].mxu0
      %v2860 = vpop.f32.mrb[0].mxu0
      %2861 = vdwg.mxu0
      %v2862 = vpack.c.bf16 %v2563, %v2514
      %v2863 = vpack.c.bf16 %v2661, %v2612
      %v2864 = vpack.c.bf16 %v2759, %v2710
      %v2865 = vpack.c.bf16 %v2857, %v2808
      %s2866 = scalar_lea.vmem %s9, 8
      %v2867 = vld [vmem:[%s2866] sm:$0xf]
      %v2868 = vld [vmem:[%s2866 + $0x4] sm:$0xf]
      %v2871 = vunpack.c.l.b16 %v2867
      %v2872 = vunpack.c.l.b16 %v2868
      %v2873 = vpack.c.b16 %v2872, %v2871
      %v2876 = vsel %vm704, %v2862, 0
      %v2879 = vsel %vm704, %v2863, 0
      %v2882 = vsel %vm704, %v2864, 0
      %v2885 = vsel %vm704, %v2865, 0
      %2887 = vmatprep.subr.bf16.mxu0 0
      %2888 = vmatpush1.bf16.msra.mxu0 %v2873
      %2889 = vmatprep.subr.bf16.mxu0 0
      %2890 = vmatpush1.bf16.msra.mxu0 0
      %2891 = vmatprep.subr.bf16.mxu0 0
      %2892 = vmatpush1.bf16.msra.mxu0 0
      %2893 = vmatprep.subr.bf16.mxu0 0
      %2894 = vmatpush1.bf16.msra.mxu0 0
      %2895 = vmatprep.subr.bf16.mxu0 0
      %2896 = vmatpush1.bf16.msra.mxu0 0
      %2897 = vmatprep.subr.bf16.mxu0 0
      %2898 = vmatpush1.bf16.msra.mxu0 0
      %2899 = vmatprep.subr.bf16.mxu0 0
      %2900 = vmatpush1.bf16.msra.mxu0 0
      %2901 = vmatprep.subr.bf16.mxu0 0
      %2902 = vmatpush1.bf16.msra.mxu0 0
      %2903 = vmatprep.subr.bf16.mxu0 0
      %2904 = vmatpush1.bf16.msra.mxu0 0
      %2905 = vmatprep.subr.bf16.mxu0 0
      %2906 = vmatpush1.bf16.msra.mxu0 0
      %2907 = vmatprep.subr.bf16.mxu0 0
      %2908 = vmatpush1.bf16.msra.mxu0 0
      %2909 = vmatprep.subr.bf16.mxu0 0
      %2910 = vmatpush1.bf16.msra.mxu0 0
      %2911 = vmatprep.subr.bf16.mxu0 0
      %2912 = vmatpush1.bf16.msra.mxu0 0
      %2913 = vmatprep.subr.bf16.mxu0 0
      %2914 = vmatpush1.bf16.msra.mxu0 0
      %2915 = vmatprep.subr.bf16.mxu0 0
      %2916 = vmatpush1.bf16.msra.mxu0 0
      %2917 = vmatprep.subr.bf16.mxu0 0
      %2918 = vmatpush1.bf16.msra.mxu0 0
      %2919 = vmatprep.mubr.bf16.mxu0 0
      %2920 = vmatmul.mubr.bf16.gmra.mrb[0].mxu0 %v2876
      %v2921 = vpop.f32.mrb[0].mxu0
      %v2922 = vadd.f32 0.0, %v2921
      %v2923 = vpop.f32.mrb[0].mxu0
      %v2924 = vpop.f32.mrb[0].mxu0
      %v2925 = vadd.f32 0.0, %v2924
      %v2926 = vpop.f32.mrb[0].mxu0
      %2927 = vmatprep.mubr.bf16.mxu0 0
      %2928 = vmatmul.mubr.bf16.gmra.mrb[0].mxu0 %v2879
      %v2929 = vpop.f32.mrb[0].mxu0
      %v2930 = vadd.f32 0.0, %v2929
      %v2931 = vpop.f32.mrb[0].mxu0
      %v2932 = vpop.f32.mrb[0].mxu0
      %v2933 = vadd.f32 0.0, %v2932
      %v2934 = vpop.f32.mrb[0].mxu0
      %2935 = vmatprep.mubr.bf16.mxu0 0
      %2936 = vmatmul.mubr.bf16.gmra.mrb[0].mxu0 %v2882
      %v2937 = vpop.f32.mrb[0].mxu0
      %v2938 = vadd.f32 0.0, %v2937
      %v2939 = vpop.f32.mrb[0].mxu0
      %v2940 = vpop.f32.mrb[0].mxu0
      %v2941 = vadd.f32 0.0, %v2940
      %v2942 = vpop.f32.mrb[0].mxu0
      %2943 = vmatprep.mubr.bf16.mxu0 0
      %2944 = vmatmul.mubr.bf16.gmra.mrb[0].mxu0 %v2885
      %v2945 = vpop.f32.mrb[0].mxu0
      %v2946 = vadd.f32 0.0, %v2945
      %v2947 = vpop.f32.mrb[0].mxu0
      %v2948 = vpop.f32.mrb[0].mxu0
      %v2949 = vadd.f32 0.0, %v2948
      %v2950 = vpop.f32.mrb[0].mxu0
      %2951 = vdwg.mxu0
      %v2954 = vunpack.c.l.b16 %v1725
      %v2955 = vunpack.c.l.b16 %v1726
      %v2956 = vpack.c.b16 %v2955, %v2954
      %v2959 = vsel %vm704, %v1721, 0
      %v2962 = vsel %vm704, %v1722, 0
      %v2965 = vsel %vm704, %v1723, 0
      %v2968 = vsel %vm704, %v1724, 0
      %2970 = vmatprep.subr.bf16.mxu0 0
      %2971 = vmatpush1.bf16.msra.mxu0 %v2956
      %2972 = vmatprep.subr.bf16.mxu0 0
      %2973 = vmatpush1.bf16.msra.mxu0 0
      %2974 = vmatprep.subr.bf16.mxu0 0
      %2975 = vmatpush1.bf16.msra.mxu0 0
      %2976 = vmatprep.subr.bf16.mxu0 0
      %2977 = vmatpush1.bf16.msra.mxu0 0
      %2978 = vmatprep.subr.bf16.mxu0 0
      %2979 = vmatpush1.bf16.msra.mxu0 0
      %2980 = vmatprep.subr.bf16.mxu0 0
      %2981 = vmatpush1.bf16.msra.mxu0 0
      %2982 = vmatprep.subr.bf16.mxu0 0
      %2983 = vmatpush1.bf16.msra.mxu0 0
      %2984 = vmatprep.subr.bf16.mxu0 0
      %2985 = vmatpush1.bf16.msra.mxu0 0
      %2986 = vmatprep.subr.bf16.mxu0 0
      %2987 = vmatpush1.bf16.msra.mxu0 0
      %2988 = vmatprep.subr.bf16.mxu0 0
      %2989 = vmatpush1.bf16.msra.mxu0 0
      %2990 = vmatprep.subr.bf16.mxu0 0
      %2991 = vmatpush1.bf16.msra.mxu0 0
      %2992 = vmatprep.subr.bf16.mxu0 0
      %2993 = vmatpush1.bf16.msra.mxu0 0
      %2994 = vmatprep.subr.bf16.mxu0 0
      %2995 = vmatpush1.bf16.msra.mxu0 0
      %2996 = vmatprep.subr.bf16.mxu0 0
      %2997 = vmatpush1.bf16.msra.mxu0 0
      %2998 = vmatprep.subr.bf16.mxu0 0
      %2999 = vmatpush1.bf16.msra.mxu0 0
      %3000 = vmatprep.subr.bf16.mxu0 0
      %3001 = vmatpush1.bf16.msra.mxu0 0
      %3002 = vmatprep.mubr.bf16.mxu0 0
      %3003 = vmatmul.mubr.bf16.gmra.mrb[0].mxu0 %v2959
      %v3004 = vpop.f32.mrb[0].mxu0
      %v3005 = vadd.f32 %v2922, %v3004
      %v3006 = vpop.f32.mrb[0].mxu0
      %v3007 = vpop.f32.mrb[0].mxu0
      %v3008 = vadd.f32 %v2925, %v3007
      %v3009 = vpop.f32.mrb[0].mxu0
      %3010 = vmatprep.mubr.bf16.mxu0 0
      %3011 = vmatmul.mubr.bf16.gmra.mrb[0].mxu0 %v2962
      %v3012 = vpop.f32.mrb[0].mxu0
      %v3013 = vadd.f32 %v2930, %v3012
      %v3014 = vpop.f32.mrb[0].mxu0
      %v3015 = vpop.f32.mrb[0].mxu0
      %v3016 = vadd.f32 %v2933, %v3015
      %v3017 = vpop.f32.mrb[0].mxu0
      %3018 = vmatprep.mubr.bf16.mxu0 0
      %3019 = vmatmul.mubr.bf16.gmra.mrb[0].mxu0 %v2965
      %v3020 = vpop.f32.mrb[0].mxu0
      %v3021 = vadd.f32 %v2938, %v3020
      %v3022 = vpop.f32.mrb[0].mxu0
      %v3023 = vpop.f32.mrb[0].mxu0
      %v3024 = vadd.f32 %v2941, %v3023
      %v3025 = vpop.f32.mrb[0].mxu0
      %3026 = vmatprep.mubr.bf16.mxu0 0
      %3027 = vmatmul.mubr.bf16.gmra.mrb[0].mxu0 %v2968
      %v3028 = vpop.f32.mrb[0].mxu0
      %v3029 = vadd.f32 %v2946, %v3028
      %v3030 = vpop.f32.mrb[0].mxu0
      %v3031 = vpop.f32.mrb[0].mxu0
      %v3032 = vadd.f32 %v2949, %v3031
      %v3033 = vpop.f32.mrb[0].mxu0
      %3034 = vdwg.mxu0
      %v3035 = vld [vmem:[%s10] sm:$0x1]
      %v3037 = vlaneseq
      %v3038 = vshrl.u32 %v3037, 7
      %v3039 = vsub.s32 0, %v3038
      %v3040 = vrot.slane %v3035, %v3039
      %v3042 = vadd.f32 %v3005, %v3040
      %v3043 = vadd.f32 %v3008, %v3040
      %v3044 = vadd.f32 %v3013, %v3040
      %v3045 = vadd.f32 %v3016, %v3040
      %v3046 = vadd.f32 %v3021, %v3040
      %v3047 = vadd.f32 %v3024, %v3040
      %v3048 = vadd.f32 %v3029, %v3040
      %v3049 = vadd.f32 %v3032, %v3040
      %3050 = vst.msk [vmem:[%s388] sm:$0xff] %vm442, %v3042
      %3051 = vst.msk [vmem:[%s388 + $0x8] sm:$0xff] %vm442, %v3043
      %3052 = vst.msk [vmem:[%s388 + $0x10] sm:$0xff] %vm442, %v3044
      %3053 = vst.msk [vmem:[%s388 + $0x18] sm:$0xff] %vm442, %v3045
      %3054 = vst.msk [vmem:[%s388 + $0x20] sm:$0xff] %vm442, %v3046
      %3055 = vst.msk [vmem:[%s388 + $0x28] sm:$0xff] %vm442, %v3047
      %3056 = vst.msk [vmem:[%s388 + $0x30] sm:$0xff] %vm442, %v3048
      %3057 = vst.msk [vmem:[%s388 + $0x38] sm:$0xff] %vm442, %v3049
      %s3058 = smul.u32 8, %s22
      %p3059 = scmp.lt.s32.totalorder %s3058, 31
      %s3060 = scalar_select %p3059, %s3058, 31
      %s3061 = smul.addr %s3060, 8
      %s3062 = scalar_lea.vmem %s11, %s3061
      // Predicated region
      $region65: #{tpu_custom_call.1} parent=63 // pred_check
        %p3063 = pneg %p276
      $region66: #{tpu_custom_call.1} parent=63 // pred_check_branch
        %3065 = sbr.rel (%p3063) target = $region68
      $region67: #{tpu_custom_call.1} parent=63 // pred_region
        %s3066 = smul.u32 8, %s22
      $region68: #{tpu_custom_call.1} parent=63 // pred_fallthru
        _
    $region64: #{tpu_custom_call.1} parent=5 // pred_fallthru
      _
    %p3067 = scmp.le.s32.totalorder 2, %s17
    // Predicated region
    $region69: #{tpu_custom_call.1} parent=5 // pred_check
      %p3068 = pneg %p3067
    $region70: #{tpu_custom_call.1} parent=5 // pred_check_branch
      %3070 = sbr.rel (%p3068) target = $region72
    $region71: #{tpu_custom_call.1} parent=5 // pred_region
      %s3071 = ssub.s32 %s17, 2
      // Predicated region
      $region73: #{tpu_custom_call.1} parent=71 // pred_check
        %p3072 = pneg %p282
      $region74: #{tpu_custom_call.1} parent=71 // pred_check_branch
        %3074 = sbr.rel (%p3072) target = $region76
      $region75: #{tpu_custom_call.1} parent=71 // pred_region
        %s3075 = smul.u32 8, %s23
        %p3076 = scmp.lt.s32.totalorder %s3075, 31
        %s3077 = scalar_select %p3076, %s3075, 31
        %s3078 = smul.addr %s3077, 8
        %s3079 = scalar_lea.vmem %s11, %s3078
      $region76: #{tpu_custom_call.1} parent=71 // pred_fallthru
        _
    $region72: #{tpu_custom_call.1} parent=5 // pred_fallthru
      _
  $region6: #{tpu_custom_call.1} parent=0 // loop_footer
    %s21 = sadd.s32 1, %s17
  $region7: #{tpu_custom_call.1} parent=0 // loop_footer_branch
    %16 = sbr.rel target = $region3
  $region8: #{tpu_custom_call.1} parent=0 // loop_exit
    _

</llo_original>
